<compile_context>
chip_gen: v5e
topology: v5e:2x2
jax: 0.10.0
libtpu: 0.0.40
codegen_flags: <defaults>
</compile_context>

<pallas_src>
import functools
import math

import numpy as np
import jax
import jax.numpy as jnp
from jax import lax
from jax.experimental import pallas as pl
from jax.experimental.pallas import tpu as pltpu


ACT_C = 128            # channel-padded activation layout (lane width)
_M_SINGLE_MAX = 1024   # single full-extent M block up to this many rows
_K_SINGLE_MAX = 2048   # single full-extent K block up to this size


def _round_up(x, m):
    return (x + m - 1) // m * m


def _m_tiling(M):
    """Return (Mp, tm): padded rows and row-tile size (Mp % tm == 0)."""
    Mp = _round_up(M, 16)
    if Mp <= _M_SINGLE_MAX:
        return Mp, Mp                          # single full-extent block
    ntiles = -(-M // _M_SINGLE_MAX)            # >=2 tiles -> v7x megacore
    tm = _round_up(-(-M // ntiles), 16)
    return tm * ntiles, tm


def _k_padded(K):
    """Padded K consistent between weight prep and the GEMM call."""
    if K <= _K_SINGLE_MAX:
        return _round_up(K, 16)                # single full-extent K block
    return _round_up(K, 512)                   # K tiled with tk=512


# --------------------------------------------------------------------------
# Pallas kernels
# --------------------------------------------------------------------------

def _epilogue_act(y, relu, relu_cols):
    """Optional ReLU; relu_cols (static int) restricts it to columns [0, n)."""
    if relu_cols is not None:
        col = lax.broadcasted_iota(jnp.int32, y.shape, 1)
        return jnp.where(col < relu_cols, jnp.maximum(y, 0.0), y)
    if relu:
        return jnp.maximum(y, 0.0)
    return y


def _gemm_single_kernel(*refs, relu, relu_cols, has_res):
    """Single K step: o = act(x @ w + bias [+ residual]); no scratch."""
    if has_res:
        x_ref, w_ref, b_ref, r_ref, o_ref = refs
    else:
        x_ref, w_ref, b_ref, o_ref = refs
        r_ref = None
    y = jnp.dot(x_ref[...], w_ref[...], preferred_element_type=jnp.float32)
    y = y + b_ref[...]
    if has_res:
        y = y + r_ref[...].astype(jnp.float32)
    y = _epilogue_act(y, relu, relu_cols)
    o_ref[...] = y.astype(o_ref.dtype)


def _gemm_ktiled_kernel(*refs, relu, relu_cols, has_res):
    """K-tiled variant (production widths only): f32 accumulator scratch."""
    if has_res:
        x_ref, w_ref, b_ref, r_ref, o_ref, acc_ref = refs
    else:
        x_ref, w_ref, b_ref, o_ref, acc_ref = refs
        r_ref = None
    k = pl.program_id(1)

    @pl.when(k == 0)
    def _():
        acc_ref[...] = jnp.zeros_like(acc_ref)

    acc_ref[...] += jnp.dot(x_ref[...], w_ref[...],
                            preferred_element_type=jnp.float32)

    @pl.when(k == pl.num_programs(1) - 1)
    def _():
        y = acc_ref[...] + b_ref[...]
        if has_res:
            y = y + r_ref[...].astype(jnp.float32)
        y = _epilogue_act(y, relu, relu_cols)
        o_ref[...] = y.astype(o_ref.dtype)


@functools.lru_cache(maxsize=None)
def _gemm_call(Mp, Kp, Np, tm, tk, relu, relu_cols, has_res, out_dtype):
    out_shape = jax.ShapeDtypeStruct((Mp, Np), jnp.dtype(out_dtype))

    if Kp == tk:
        # Single K step: no accumulator scratch, no pl.when branches.
        kernel = functools.partial(_gemm_single_kernel, relu=relu,
                                   relu_cols=relu_cols, has_res=has_res)
        in_specs = [
            pl.BlockSpec((tm, Kp), lambda i: (i, 0)),   # x tile (bf16)
            pl.BlockSpec((Kp, Np), lambda i: (0, 0)),   # weights (bf16)
            pl.BlockSpec((1, Np), lambda i: (0, 0)),    # bias (f32)
        ]
        if has_res:
            in_specs.append(pl.BlockSpec((tm, Np), lambda i: (i, 0)))  # bf16
        return pl.pallas_call(
            kernel,
            out_shape=out_shape,
            grid_spec=pltpu.PrefetchScalarGridSpec(
                num_scalar_prefetch=0,
                grid=(Mp // tm,),
                in_specs=in_specs,
                out_specs=pl.BlockSpec((tm, Np), lambda i: (i, 0)),
            ),
            compiler_params=pltpu.CompilerParams(
                dimension_semantics=("parallel",)),
        )

    # K-tiled fallback (not exercised at the scaled-down config).
    kernel = functools.partial(_gemm_ktiled_kernel, relu=relu,
                               relu_cols=relu_cols, has_res=has_res)
    in_specs = [
        pl.BlockSpec((tm, tk), lambda i, k: (i, k)),
        pl.BlockSpec((tk, Np), lambda i, k: (k, 0)),
        pl.BlockSpec((1, Np), lambda i, k: (0, 0)),
    ]
    if has_res:
        in_specs.append(pl.BlockSpec((tm, Np), lambda i, k: (i, 0)))
    return pl.pallas_call(
        kernel,
        out_shape=out_shape,
        grid_spec=pltpu.PrefetchScalarGridSpec(
            num_scalar_prefetch=0,
            grid=(Mp // tm, Kp // tk),
            in_specs=in_specs,
            out_specs=pl.BlockSpec((tm, Np), lambda i, k: (i, 0)),
            scratch_shapes=[pltpu.VMEM((tm, Np), jnp.float32)],
        ),
        compiler_params=pltpu.CompilerParams(
            dimension_semantics=("parallel", "arbitrary")),
    )


def gemm(x, w_p, b_p, *, relu=False, relu_cols=None, residual=None,
         out_dtype=jnp.bfloat16):
    """y = act(x @ W + b [+ residual]) with bf16 inputs / f32 epilogue.

    x: (M, K) activations (bf16 preferred, cast otherwise),
    w_p: (Kp, Np) pre-padded bf16 weights (BN scale folded in),
    b_p: (1, Np) f32 bias, residual: (M, Np) bf16 or None.
    Returns (M, Np) in `out_dtype` (channels stay padded to Np).
    """
    M, K = x.shape
    Kp, Np = w_p.shape
    Mp, tm = _m_tiling(M)
    tk = Kp if Kp <= _K_SINGLE_MAX else 512

    if x.dtype != jnp.bfloat16:
        x = x.astype(jnp.bfloat16)
    if (Mp, Kp) != (M, K):
        x = jnp.pad(x, ((0, Mp - M), (0, Kp - K)))

    args = [x, w_p, b_p]
    has_res = residual is not None
    if has_res:
        r = residual
        if r.dtype != jnp.bfloat16:
            r = r.astype(jnp.bfloat16)
        if Mp != M:
            r = jnp.pad(r, ((0, Mp - M), (0, 0)))
        args.append(r)

    out = _gemm_call(Mp, Kp, Np, tm, tk, bool(relu), relu_cols, has_res,
                     jnp.dtype(out_dtype).name)(*args)
    return out[:M] if Mp != M else out


# --------------------------------------------------------------------------
# NN building blocks (im2col / pooling matrices are glue, GEMM is Pallas)
# --------------------------------------------------------------------------

def conv2d(x, cp, *, stride=1, padding=0, dilation=1, relu=False,
           relu_cols=None, residual=None, out_dtype=jnp.bfloat16):
    """x: (N,H,W,C) NHWC where C == cp['cin_layout']; returns (N,Ho,Wo,Np)."""
    N, H, W, C = x.shape
    assert C == cp['cin_layout'], (C, cp['cin_layout'])
    KH, KW = cp['kh'], cp['kw']
    if padding:
        xp = jnp.pad(x, ((0, 0), (padding, padding), (padding, padding), (0, 0)))
    else:
        xp = x
    Hp, Wp = H + 2 * padding, W + 2 * padding
    Ho = (Hp - (KH - 1) * dilation - 1) // stride + 1
    Wo = (Wp - (KW - 1) * dilation - 1) // stride + 1

    if KH == 1 and KW == 1:
        sl = xp[:, 0:(Ho - 1) * stride + 1:stride,
                   0:(Wo - 1) * stride + 1:stride, :]
        patches = sl.reshape(N * Ho * Wo, C)
    else:
        cols = []
        for kh in range(KH):
            for kw in range(KW):
                h0, w0 = kh * dilation, kw * dilation
                cols.append(xp[:, h0:h0 + (Ho - 1) * stride + 1:stride,
                                  w0:w0 + (Wo - 1) * stride + 1:stride, :])
        patches = jnp.stack(cols, axis=3)            # (N,Ho,Wo,KH*KW,C)
        patches = patches.reshape(N * Ho * Wo, KH * KW * C)

    res2d = None
    if residual is not None:
        assert residual.shape[-1] == cp['np'], (residual.shape, cp['np'])
        res2d = residual.reshape(N * Ho * Wo, cp['np'])

    out = gemm(patches, cp['w'], cp['b'], relu=relu, relu_cols=relu_cols,
               residual=res2d, out_dtype=out_dtype)
    return out.reshape(N, Ho, Wo, out.shape[-1])


def max_pool2d(x, *, kernel=3, stride=2, padding=1):
    """MaxPool2d as a fused XLA maximum tree over the shifted window taps
    (perf review: a Pallas launch cannot amortise this tiny reduction)."""
    N, H, W, C = x.shape
    xp = jnp.pad(x, ((0, 0), (padding, padding), (padding, padding), (0, 0)),
                 constant_values=-jnp.inf)
    Hp, Wp = H + 2 * padding, W + 2 * padding
    Ho = (Hp - kernel) // stride + 1
    Wo = (Wp - kernel) // stride + 1
    out = None
    for kh in range(kernel):
        for kw in range(kernel):
            sl = xp[:, kh:kh + (Ho - 1) * stride + 1:stride,
                       kw:kw + (Wo - 1) * stride + 1:stride, :]
            out = sl if out is None else jnp.maximum(out, sl)
    return out


@functools.lru_cache(maxsize=None)
def bilinear_matrix(out_size, in_size):
    """F.interpolate(mode='bilinear', align_corners=False) as a matrix."""
    A = np.zeros((out_size, in_size), dtype=np.float32)
    scale = in_size / out_size
    for i in range(out_size):
        src = max((i + 0.5) * scale - 0.5, 0.0)
        x0 = min(int(math.floor(src)), in_size - 1)
        lam = src - x0
        x1 = min(x0 + 1, in_size - 1)
        A[i, x0] += 1.0 - lam
        A[i, x1] += lam
    return jnp.asarray(A)


@functools.lru_cache(maxsize=None)
def adaptive_avg_matrix(out_size, in_size):
    """nn.AdaptiveAvgPool2d per-axis averaging matrix (PyTorch semantics)."""
    A = np.zeros((out_size, in_size), dtype=np.float32)
    for i in range(out_size):
        start = (i * in_size) // out_size
        end = -(-((i + 1) * in_size) // out_size)
        A[i, start:end] = 1.0 / (end - start)
    return jnp.asarray(A)


def spatial_transform(x, A_h, A_w):
    """out[n,ho,wo,c] = sum_{hi,wi} A_h[ho,hi] A_w[wo,wi] x[n,hi,wi,c].

    Per-axis contractions are <=48x6; left to XLA (fused inside the jit)."""
    return jnp.einsum('hi,wj,nijc->nhwc', A_h, A_w, x)


# --------------------------------------------------------------------------
# Parameter init / preparation (deterministic, no checkpoint)
# --------------------------------------------------------------------------

class KeyGen:
    def __init__(self, seed):
        self.key = jax.random.PRNGKey(seed)

    def __call__(self):
        self.key, sub = jax.random.split(self.key)
        return sub


def make_conv_params(kg, cout, cin, kh, kw, *, cin_layout=None, with_bn=True,
                     with_bias=False, eps=1e-5):
    """Draw a torch-layout conv (+BN) and prepare it for the Pallas GEMM:
    fold BN scale in f32, scatter rows into the channel-padded activation
    layout, pad (Kp, Np), and cast to bf16 once at the end."""
    if cin_layout is None:
        cin_layout = cin
    assert cin_layout >= cin
    w = 0.1 * jax.random.normal(kg(), (cout, cin, kh, kw), jnp.float32)
    w_t = jnp.transpose(w, (2, 3, 1, 0))          # (kh, kw, cin, cout)
    if with_bn:
        gamma = 1.0 + 0.1 * jax.random.normal(kg(), (cout,), jnp.float32)
        beta = 0.1 * jax.random.normal(kg(), (cout,), jnp.float32)
        mean = jnp.zeros((cout,), jnp.float32)
        var = jnp.ones((cout,), jnp.float32)
        scale = gamma / jnp.sqrt(var + eps)
        bias = beta - mean * scale
        w_t = w_t * scale                         # BN fold in f32
    elif with_bias:
        bias = 0.1 * jax.random.normal(kg(), (cout,), jnp.float32)
    else:
        bias = jnp.zeros((cout,), jnp.float32)

    # Scatter the real cin rows of every tap into the padded-channel layout.
    wmat = jnp.zeros((kh * kw, cin_layout, cout), jnp.float32)
    wmat = wmat.at[:, :cin, :].set(w_t.reshape(kh * kw, cin, cout))
    wmat = wmat.reshape(kh * kw * cin_layout, cout)

    K = kh * kw * cin_layout
    Kp = _k_padded(K)
    Np = _round_up(cout, 128)
    w_p = jnp.zeros((Kp, Np), jnp.float32).at[:K, :cout].set(wmat)
    w_p = w_p.astype(jnp.bfloat16)                # single cast after folding
    b_p = jnp.zeros((1, Np), jnp.float32).at[0, :cout].set(bias)
    return dict(w=w_p, b=b_p, kh=kh, kw=kw, cin=cin, cin_layout=cin_layout,
                cout=cout, np=Np)


def fuse_1x1(cp_main, cp_side):
    """Concatenate two 1x1 convs along Cout into one Np=256 GEMM; the `main`
    (conv1) half gets the in-kernel ReLU via relu_cols=split."""
    assert cp_main['kh'] == cp_main['kw'] == 1
    assert cp_side['kh'] == cp_side['kw'] == 1
    assert cp_main['cin_layout'] == cp_side['cin_layout']
    assert cp_main['w'].shape[0] == cp_side['w'].shape[0]
    return dict(w=jnp.concatenate([cp_main['w'], cp_side['w']], axis=1),
                b=jnp.concatenate([cp_main['b'], cp_side['b']], axis=1),
                kh=1, kw=1, cin=cp_main['cin'],
                cin_layout=cp_main['cin_layout'],
                cout=cp_main['np'] + cp_side['np'],
                np=cp_main['np'] + cp_side['np'],
                split=cp_main['np'])


def make_layer(kg, inplanes, planes, blocks, stride, dilation, dilate):
    """Mirrors torchvision ResNet._make_layer (Bottleneck, expansion=4)."""
    expansion = 4
    previous_dilation = dilation
    if dilate:
        dilation *= stride
        stride = 1
    layer = []
    for bi in range(blocks):
        cin = inplanes if bi == 0 else planes * expansion
        strd = stride if bi == 0 else 1
        dil = previous_dilation if bi == 0 else dilation
        conv1 = make_conv_params(kg, planes, cin, 1, 1, cin_layout=ACT_C)
        conv2 = make_conv_params(kg, planes, planes, 3, 3, cin_layout=ACT_C)
        conv3 = make_conv_params(kg, planes * expansion, planes, 1, 1,
                                 cin_layout=ACT_C)
        downsample = None
        fused = None
        if bi == 0 and (stride != 1 or inplanes != planes * expansion):
            downsample = make_conv_params(kg, planes * expansion, cin, 1, 1,
                                          cin_layout=ACT_C)
            if strd == 1:
                # conv1 and downsample share input and stride -> one GEMM.
                fused = fuse_1x1(conv1, downsample)
                conv1 = None
                downsample = None
        layer.append(dict(conv1=conv1, conv2=conv2, conv3=conv3,
                          downsample=downsample, fused=fused,
                          stride=strd, dilation=dil))
    return layer, planes * expansion, dilation


def init_pspnet_params(seed=0, dim=32, num_class=21):
    kg = KeyGen(seed)
    p = {'dim': dim, 'num_class': num_class}
    c1 = dim // 16                                   # scaled resnet50 conv1
    p['conv1'] = make_conv_params(kg, c1, 3, 7, 7, cin_layout=3)
    inplanes, dilation = c1, 1
    p['layer1'], inplanes, dilation = make_layer(kg, inplanes, dim // 16, 3, 1, dilation, False)
    p['layer2'], inplanes, dilation = make_layer(kg, inplanes, dim // 8, 4, 2, dilation, False)
    p['layer3'], inplanes, dilation = make_layer(kg, inplanes, dim // 4, 6, 2, dilation, True)
    p['layer4'], inplanes, dilation = make_layer(kg, inplanes, dim // 2, 3, 2, dilation, True)
    bins = (1, 2, 3, 6)
    red = dim // len(bins)
    p['ppm'] = [dict(bin=b, conv=make_conv_params(kg, red, dim, 1, 1,
                                                  cin_layout=ACT_C))
                for b in bins]

    def head(in_ch, cin_layout):
        return dict(conv1=make_conv_params(kg, dim, in_ch, 3, 3,
                                           cin_layout=cin_layout),
                    conv2=make_conv_params(kg, num_class, dim, 1, 1,
                                           cin_layout=ACT_C,
                                           with_bn=False, with_bias=True))

    p['classifier'] = head(dim * 2, dim * 2)   # consumes compact PPM concat
    p['aux'] = head(dim * 2, ACT_C)            # consumes padded layer4 output
    return p


# --------------------------------------------------------------------------
# Forward pass
# --------------------------------------------------------------------------

def bottleneck_fwd(x, p):
    if p['fused'] is not None:
        split = p['fused']['split']
        y = conv2d(x, p['fused'], relu_cols=split)   # conv1 + downsample
        out = y[..., :split]
        identity = y[..., split:]
    else:
        out = conv2d(x, p['conv1'], relu=True)
        if p['downsample'] is not None:
            identity = conv2d(x, p['downsample'], stride=p['stride'])
        else:
            identity = x
    out = conv2d(out, p['conv2'], stride=p['stride'], padding=p['dilation'],
                 dilation=p['dilation'], relu=True)
    # conv3 + BN + residual add + ReLU fused in one Pallas GEMM epilogue.
    return conv2d(out, p['conv3'], relu=True, residual=identity)


def ppm_fwd(x, ppm_params, int_size, in_dim):
    N, Hi, Wi, _ = x.shape
    outs = [x[..., :in_dim].astype(jnp.float32)]
    for lvl in ppm_params:
        b = lvl['bin']
        pooled = spatial_transform(x, adaptive_avg_matrix(b, Hi),
                                   adaptive_avg_matrix(b, Wi))
        y = conv2d(pooled, lvl['conv'], relu=True)
        y = spatial_transform(y, bilinear_matrix(int_size[0], b),
                              bilinear_matrix(int_size[1], b))
        outs.append(y[..., :lvl['conv']['cout']].astype(jnp.float32))
    return jnp.concatenate(outs, axis=-1)


def head_fwd(x, p, num_class):
    y = conv2d(x, p['conv1'], padding=1, relu=True)
    # Dropout2d(p=0.1) is identity in eval mode.
    y = conv2d(y, p['conv2'], out_dtype=jnp.float32)
    return y[..., :num_class]


def pspnet_forward(params, x_nchw, *, img_size):
    int_size = (img_size[0] // 8, img_size[1] // 8)
    num_class = params['num_class']
    x = jnp.transpose(x_nchw, (0, 2, 3, 1)).astype(jnp.float32)  # NCHW -> NHWC

    # layer0: conv7x7/2 + bn + relu + maxpool3x3/2
    x = conv2d(x, params['conv1'], stride=2, padding=3, relu=True)
    x = max_pool2d(x, kernel=3, stride=2, padding=1)
    for blk in params['layer1']:
        x = bottleneck_fwd(x, blk)
    for blk in params['layer2']:
        x = bottleneck_fwd(x, blk)
    x3 = x
    for blk in params['layer3']:
        x3 = bottleneck_fwd(x3, blk)

    # main branch: PPM -> classifier -> bilinear upsample to img_size
    y = ppm_fwd(x3, params['ppm'], int_size, params['dim'])
    y = head_fwd(y, params['classifier'], num_class)
    y = spatial_transform(y, bilinear_matrix(img_size[0], y.shape[1]),
                          bilinear_matrix(img_size[1], y.shape[2]))

    # aux branch: layer4 -> aux head -> bilinear upsample
    ya = x3
    for blk in params['layer4']:
        ya = bottleneck_fwd(ya, blk)
    ya = head_fwd(ya, params['aux'], num_class)
    ya = spatial_transform(ya, bilinear_matrix(img_size[0], ya.shape[1]),
                           bilinear_matrix(img_size[1], ya.shape[2]))

    # NHWC -> NCHW (match PyTorch output convention)
    return jnp.transpose(y, (0, 3, 1, 2)), jnp.transpose(ya, (0, 3, 1, 2))


# --------------------------------------------------------------------------

if __name__ == "__main__":
    img_size = (48, 48)         # int_size = (6, 6); divisible by all PPM bins
    dim = 32                    # scaled-down stand-in for PSPNet's 1024
    num_class = 21

    params = init_pspnet_params(seed=0, dim=dim, num_class=num_class)
    x = jax.random.normal(jax.random.PRNGKey(0),
                          (2, 3, img_size[0], img_size[1]), jnp.float32)

    # Whole-graph jit; params closed over as constants so strides/dilations
    # stay Python ints and weight padding is hoisted out of the hot path.
    fwd = jax.jit(lambda inp: pspnet_forward(params, inp, img_size=img_size))

    out, out_aux = fwd(x)
    out, out_aux = jax.block_until_ready((out, out_aux))

    assert out.shape == (2, num_class, img_size[0], img_size[1]), out.shape
    assert out_aux.shape == (2, num_class, img_size[0], img_size[1]), out_aux.shape
    assert bool(jnp.all(jnp.isfinite(out))) and bool(jnp.all(jnp.isfinite(out_aux)))
    print("KERNEL_OK")
</pallas_src>

<mosaic_0001>
module attributes {stable_mosaic.version = 11 : i64} {
  func.func @_gemm_single_kernel(%arg0: i32, %arg1: memref<576x160xbf16, #tpu.memory_space<vmem>>, %arg2: memref<160x128xbf16, #tpu.memory_space<vmem>>, %arg3: memref<1x128xf32, #tpu.memory_space<vmem>>, %arg4: memref<576x128xbf16, #tpu.memory_space<vmem>>) attributes {dimension_semantics = [#tpu.dimension_semantics<parallel>], iteration_bounds = array<i64: 2>, scalar_prefetch = 0 : i64, scratch_operands = 0 : i64, tpu.core_type = #tpu.core_type<tc>, window_params = [{transform_indices = @transform_0, window_bounds = array<i64: 576, 160>}, {pipeline_mode = #tpu.pipeline_mode<synchronous>, transform_indices = @transform_1, window_bounds = array<i64: 160, 128>}, {pipeline_mode = #tpu.pipeline_mode<synchronous>, transform_indices = @transform_2, window_bounds = array<i64: 1, 128>}, {transform_indices = @transform_3, window_bounds = array<i64: 576, 128>}]} {
    %c0 = arith.constant 0 : index
    %c0_0 = arith.constant 0 : index
    %0 = vector.load %arg1[%c0, %c0_0] : memref<576x160xbf16, #tpu.memory_space<vmem>>, vector<576x160xbf16>
    %c0_1 = arith.constant 0 : index
    %c0_2 = arith.constant 0 : index
    %1 = vector.load %arg2[%c0_1, %c0_2] : memref<160x128xbf16, #tpu.memory_space<vmem>>, vector<160x128xbf16>
    %cst = arith.constant dense<0.000000e+00> : vector<576x128xf32>
    %2 = tpu.matmul %0, %1, %cst {dimension_numbers = #tpu.dot_dimension_numbers<[1], [0], [0], [1], [0, 0, 1, 1], [], []>} : vector<576x160xbf16>, vector<160x128xbf16>, vector<576x128xf32> -> vector<576x128xf32>
    %c0_3 = arith.constant 0 : index
    %c0_4 = arith.constant 0 : index
    %3 = vector.load %arg3[%c0_3, %c0_4] : memref<1x128xf32, #tpu.memory_space<vmem>>, vector<1x128xf32>
    %4 = vector.broadcast %3 : vector<1x128xf32> to vector<576x128xf32>
    %5 = arith.addf %2, %4 : vector<576x128xf32>
    %cst_5 = arith.constant 0.000000e+00 : f32
    %6 = vector.broadcast %cst_5 : f32 to vector<576x128xf32>
    %7 = arith.maximumf %5, %6 : vector<576x128xf32>
    %8 = arith.truncf %7 : vector<576x128xf32> to vector<576x128xbf16>
    %c0_6 = arith.constant 0 : index
    %c0_7 = arith.constant 0 : index
    %9 = vector.load %arg4[%c0_6, %c0_7] : memref<576x128xbf16, #tpu.memory_space<vmem>>, vector<576x128xbf16>
    tpu.vector_store %arg4[%c0_6, %c0_7], %8 {strides = array<i32>} : memref<576x128xbf16, #tpu.memory_space<vmem>>, vector<576x128xbf16>,
    return
  }
  func.func @transform_0(%arg0: i32) -> (i32, i32) {
    %c0_i32 = arith.constant 0 : i32
    %c0_i32_0 = arith.constant 0 : i32
    return %arg0, %c0_i32 : i32, i32
  }
  func.func @transform_1(%arg0: i32) -> (i32, i32) {
    %c0_i32 = arith.constant 0 : i32
    %c0_i32_0 = arith.constant 0 : i32
    %c0_i32_1 = arith.constant 0 : i32
    return %c0_i32, %c0_i32_0 : i32, i32
  }
  func.func @transform_2(%arg0: i32) -> (i32, i32) {
    %c0_i32 = arith.constant 0 : i32
    %c0_i32_0 = arith.constant 0 : i32
    %c0_i32_1 = arith.constant 0 : i32
    return %c0_i32, %c0_i32_0 : i32, i32
  }
  func.func @transform_3(%arg0: i32) -> (i32, i32) {
    %c0_i32 = arith.constant 0 : i32
    %c0_i32_0 = arith.constant 0 : i32
    return %arg0, %c0_i32 : i32, i32
  }
}

module attributes {stable_mosaic.version = 11 : i64} {
  func.func @_gemm_single_kernel(%arg0: i32, %arg1: memref<288x128xbf16, #tpu.memory_space<vmem>>, %arg2: memref<128x256xbf16, #tpu.memory_space<vmem>>, %arg3: memref<1x256xf32, #tpu.memory_space<vmem>>, %arg4: memref<288x256xbf16, #tpu.memory_space<vmem>>) attributes {dimension_semantics = [#tpu.dimension_semantics<parallel>], iteration_bounds = array<i64: 1>, scalar_prefetch = 0 : i64, scratch_operands = 0 : i64, tpu.core_type = #tpu.core_type<tc>, window_params = [{transform_indices = @transform_0, window_bounds = array<i64: 288, 128>}, {pipeline_mode = #tpu.pipeline_mode<synchronous>, transform_indices = @transform_1, window_bounds = array<i64: 128, 256>}, {pipeline_mode = #tpu.pipeline_mode<synchronous>, transform_indices = @transform_2, window_bounds = array<i64: 1, 256>}, {transform_indices = @transform_3, window_bounds = array<i64: 288, 256>}]} {
    %c0 = arith.constant 0 : index
    %c0_0 = arith.constant 0 : index
    %0 = vector.load %arg1[%c0, %c0_0] : memref<288x128xbf16, #tpu.memory_space<vmem>>, vector<288x128xbf16>
    %c0_1 = arith.constant 0 : index
    %c0_2 = arith.constant 0 : index
    %1 = vector.load %arg2[%c0_1, %c0_2] : memref<128x256xbf16, #tpu.memory_space<vmem>>, vector<128x256xbf16>
    %cst = arith.constant dense<0.000000e+00> : vector<288x256xf32>
    %2 = tpu.matmul %0, %1, %cst {dimension_numbers = #tpu.dot_dimension_numbers<[1], [0], [0], [1], [0, 0, 1, 1], [], []>} : vector<288x128xbf16>, vector<128x256xbf16>, vector<288x256xf32> -> vector<288x256xf32>
    %c0_3 = arith.constant 0 : index
    %c0_4 = arith.constant 0 : index
    %3 = vector.load %arg3[%c0_3, %c0_4] : memref<1x256xf32, #tpu.memory_space<vmem>>, vector<1x256xf32>
    %4 = vector.broadcast %3 : vector<1x256xf32> to vector<288x256xf32>
    %5 = arith.addf %2, %4 : vector<288x256xf32>
    %6 = tpu.iota {dimensions = array<i32: 1>} : vector<288x256xi32>
    %c128_i32 = arith.constant 128 : i32
    %7 = vector.broadcast %c128_i32 : i32 to vector<288x256xi32>
    %8 = arith.cmpi slt, %6, %7 : vector<288x256xi32>
    %cst_5 = arith.constant 0.000000e+00 : f32
    %9 = vector.broadcast %cst_5 : f32 to vector<288x256xf32>
    %10 = arith.maximumf %5, %9 : vector<288x256xf32>
    %11 = arith.select %8, %10, %5 : vector<288x256xi1>, vector<288x256xf32>
    %12 = arith.truncf %11 : vector<288x256xf32> to vector<288x256xbf16>
    %c0_6 = arith.constant 0 : index
    %c0_7 = arith.constant 0 : index
    %13 = vector.load %arg4[%c0_6, %c0_7] : memref<288x256xbf16, #tpu.memory_space<vmem>>, vector<288x256xbf16>
    tpu.vector_store %arg4[%c0_6, %c0_7], %12 {strides = array<i32>} : memref<288x256xbf16, #tpu.memory_space<vmem>>, vector<288x256xbf16>,
    return
  }
  func.func @transform_0(%arg0: i32) -> (i32, i32) {
    %c0_i32 = arith.constant 0 : i32
    %c0_i32_0 = arith.constant 0 : i32
    return %arg0, %c0_i32 : i32, i32
  }
  func.func @transform_1(%arg0: i32) -> (i32, i32) {
    %c0_i32 = arith.constant 0 : i32
    %c0_i32_0 = arith.constant 0 : i32
    %c0_i32_1 = arith.constant 0 : i32
    return %c0_i32, %c0_i32_0 : i32, i32
  }
  func.func @transform_2(%arg0: i32) -> (i32, i32) {
    %c0_i32 = arith.constant 0 : i32
    %c0_i32_0 = arith.constant 0 : i32
    %c0_i32_1 = arith.constant 0 : i32
    return %c0_i32, %c0_i32_0 : i32, i32
  }
  func.func @transform_3(%arg0: i32) -> (i32, i32) {
    %c0_i32 = arith.constant 0 : i32
    %c0_i32_0 = arith.constant 0 : i32
    return %arg0, %c0_i32 : i32, i32
  }
}

module attributes {stable_mosaic.version = 11 : i64} {
  func.func @_gemm_single_kernel(%arg0: i32, %arg1: memref<288x1152xbf16, #tpu.memory_space<vmem>>, %arg2: memref<1152x128xbf16, #tpu.memory_space<vmem>>, %arg3: memref<1x128xf32, #tpu.memory_space<vmem>>, %arg4: memref<288x128xbf16, #tpu.memory_space<vmem>>) attributes {dimension_semantics = [#tpu.dimension_semantics<parallel>], iteration_bounds = array<i64: 1>, scalar_prefetch = 0 : i64, scratch_operands = 0 : i64, tpu.core_type = #tpu.core_type<tc>, window_params = [{transform_indices = @transform_0, window_bounds = array<i64: 288, 1152>}, {pipeline_mode = #tpu.pipeline_mode<synchronous>, transform_indices = @transform_1, window_bounds = array<i64: 1152, 128>}, {pipeline_mode = #tpu.pipeline_mode<synchronous>, transform_indices = @transform_2, window_bounds = array<i64: 1, 128>}, {transform_indices = @transform_3, window_bounds = array<i64: 288, 128>}]} {
    %c0 = arith.constant 0 : index
    %c0_0 = arith.constant 0 : index
    %0 = vector.load %arg1[%c0, %c0_0] : memref<288x1152xbf16, #tpu.memory_space<vmem>>, vector<288x1152xbf16>
    %c0_1 = arith.constant 0 : index
    %c0_2 = arith.constant 0 : index
    %1 = vector.load %arg2[%c0_1, %c0_2] : memref<1152x128xbf16, #tpu.memory_space<vmem>>, vector<1152x128xbf16>
    %cst = arith.constant dense<0.000000e+00> : vector<288x128xf32>
    %2 = tpu.matmul %0, %1, %cst {dimension_numbers = #tpu.dot_dimension_numbers<[1], [0], [0], [1], [0, 0, 1, 1], [], []>} : vector<288x1152xbf16>, vector<1152x128xbf16>, vector<288x128xf32> -> vector<288x128xf32>
    %c0_3 = arith.constant 0 : index
    %c0_4 = arith.constant 0 : index
    %3 = vector.load %arg3[%c0_3, %c0_4] : memref<1x128xf32, #tpu.memory_space<vmem>>, vector<1x128xf32>
    %4 = vector.broadcast %3 : vector<1x128xf32> to vector<288x128xf32>
    %5 = arith.addf %2, %4 : vector<288x128xf32>
    %cst_5 = arith.constant 0.000000e+00 : f32
    %6 = vector.broadcast %cst_5 : f32 to vector<288x128xf32>
    %7 = arith.maximumf %5, %6 : vector<288x128xf32>
    %8 = arith.truncf %7 : vector<288x128xf32> to vector<288x128xbf16>
    %c0_6 = arith.constant 0 : index
    %c0_7 = arith.constant 0 : index
    %9 = vector.load %arg4[%c0_6, %c0_7] : memref<288x128xbf16, #tpu.memory_space<vmem>>, vector<288x128xbf16>
    tpu.vector_store %arg4[%c0_6, %c0_7], %8 {strides = array<i32>} : memref<288x128xbf16, #tpu.memory_space<vmem>>, vector<288x128xbf16>,
    return
  }
  func.func @transform_0(%arg0: i32) -> (i32, i32) {
    %c0_i32 = arith.constant 0 : i32
    %c0_i32_0 = arith.constant 0 : i32
    return %arg0, %c0_i32 : i32, i32
  }
  func.func @transform_1(%arg0: i32) -> (i32, i32) {
    %c0_i32 = arith.constant 0 : i32
    %c0_i32_0 = arith.constant 0 : i32
    %c0_i32_1 = arith.constant 0 : i32
    return %c0_i32, %c0_i32_0 : i32, i32
  }
  func.func @transform_2(%arg0: i32) -> (i32, i32) {
    %c0_i32 = arith.constant 0 : i32
    %c0_i32_0 = arith.constant 0 : i32
    %c0_i32_1 = arith.constant 0 : i32
    return %c0_i32, %c0_i32_0 : i32, i32
  }
  func.func @transform_3(%arg0: i32) -> (i32, i32) {
    %c0_i32 = arith.constant 0 : i32
    %c0_i32_0 = arith.constant 0 : i32
    return %arg0, %c0_i32 : i32, i32
  }
}

module attributes {stable_mosaic.version = 11 : i64} {
  func.func @_gemm_single_kernel(%arg0: i32, %arg1: memref<288x128xbf16, #tpu.memory_space<vmem>>, %arg2: memref<128x128xbf16, #tpu.memory_space<vmem>>, %arg3: memref<1x128xf32, #tpu.memory_space<vmem>>, %arg4: memref<288x128xbf16, #tpu.memory_space<vmem>>, %arg5: memref<288x128xbf16, #tpu.memory_space<vmem>>) attributes {dimension_semantics = [#tpu.dimension_semantics<parallel>], iteration_bounds = array<i64: 1>, scalar_prefetch = 0 : i64, scratch_operands = 0 : i64, tpu.core_type = #tpu.core_type<tc>, window_params = [{transform_indices = @transform_0, window_bounds = array<i64: 288, 128>}, {pipeline_mode = #tpu.pipeline_mode<synchronous>, transform_indices = @transform_1, window_bounds = array<i64: 128, 128>}, {pipeline_mode = #tpu.pipeline_mode<synchronous>, transform_indices = @transform_2, window_bounds = array<i64: 1, 128>}, {transform_indices = @transform_3, window_bounds = array<i64: 288, 128>}, {transform_indices = @transform_4, window_bounds = array<i64: 288, 128>}]} {
    %c0 = arith.constant 0 : index
    %c0_0 = arith.constant 0 : index
    %0 = vector.load %arg1[%c0, %c0_0] : memref<288x128xbf16, #tpu.memory_space<vmem>>, vector<288x128xbf16>
    %c0_1 = arith.constant 0 : index
    %c0_2 = arith.constant 0 : index
    %1 = vector.load %arg2[%c0_1, %c0_2] : memref<128x128xbf16, #tpu.memory_space<vmem>>, vector<128x128xbf16>
    %cst = arith.constant dense<0.000000e+00> : vector<288x128xf32>
    %2 = tpu.matmul %0, %1, %cst {dimension_numbers = #tpu.dot_dimension_numbers<[1], [0], [0], [1], [0, 0, 1, 1], [], []>} : vector<288x128xbf16>, vector<128x128xbf16>, vector<288x128xf32> -> vector<288x128xf32>
    %c0_3 = arith.constant 0 : index
    %c0_4 = arith.constant 0 : index
    %3 = vector.load %arg3[%c0_3, %c0_4] : memref<1x128xf32, #tpu.memory_space<vmem>>, vector<1x128xf32>
    %4 = vector.broadcast %3 : vector<1x128xf32> to vector<288x128xf32>
    %5 = arith.addf %2, %4 : vector<288x128xf32>
    %c0_5 = arith.constant 0 : index
    %c0_6 = arith.constant 0 : index
    %6 = vector.load %arg4[%c0_5, %c0_6] : memref<288x128xbf16, #tpu.memory_space<vmem>>, vector<288x128xbf16>
    %7 = arith.extf %6 : vector<288x128xbf16> to vector<288x128xf32>
    %8 = arith.addf %5, %7 : vector<288x128xf32>
    %cst_7 = arith.constant 0.000000e+00 : f32
    %9 = vector.broadcast %cst_7 : f32 to vector<288x128xf32>
    %10 = arith.maximumf %8, %9 : vector<288x128xf32>
    %11 = arith.truncf %10 : vector<288x128xf32> to vector<288x128xbf16>
    %c0_8 = arith.constant 0 : index
    %c0_9 = arith.constant 0 : index
    %12 = vector.load %arg5[%c0_8, %c0_9] : memref<288x128xbf16, #tpu.memory_space<vmem>>, vector<288x128xbf16>
    tpu.vector_store %arg5[%c0_8, %c0_9], %11 {strides = array<i32>} : memref<288x128xbf16, #tpu.memory_space<vmem>>, vector<288x128xbf16>,
    return
  }
  func.func @transform_0(%arg0: i32) -> (i32, i32) {
    %c0_i32 = arith.constant 0 : i32
    %c0_i32_0 = arith.constant 0 : i32
    return %arg0, %c0_i32 : i32, i32
  }
  func.func @transform_1(%arg0: i32) -> (i32, i32) {
    %c0_i32 = arith.constant 0 : i32
    %c0_i32_0 = arith.constant 0 : i32
    %c0_i32_1 = arith.constant 0 : i32
    return %c0_i32, %c0_i32_0 : i32, i32
  }
  func.func @transform_2(%arg0: i32) -> (i32, i32) {
    %c0_i32 = arith.constant 0 : i32
    %c0_i32_0 = arith.constant 0 : i32
    %c0_i32_1 = arith.constant 0 : i32
    return %c0_i32, %c0_i32_0 : i32, i32
  }
  func.func @transform_3(%arg0: i32) -> (i32, i32) {
    %c0_i32 = arith.constant 0 : i32
    %c0_i32_0 = arith.constant 0 : i32
    return %arg0, %c0_i32 : i32, i32
  }
  func.func @transform_4(%arg0: i32) -> (i32, i32) {
    %c0_i32 = arith.constant 0 : i32
    %c0_i32_0 = arith.constant 0 : i32
    return %arg0, %c0_i32 : i32, i32
  }
}

module attributes {stable_mosaic.version = 11 : i64} {
  func.func @_gemm_single_kernel(%arg0: i32, %arg1: memref<288x128xbf16, #tpu.memory_space<vmem>>, %arg2: memref<128x128xbf16, #tpu.memory_space<vmem>>, %arg3: memref<1x128xf32, #tpu.memory_space<vmem>>, %arg4: memref<288x128xbf16, #tpu.memory_space<vmem>>) attributes {dimension_semantics = [#tpu.dimension_semantics<parallel>], iteration_bounds = array<i64: 1>, scalar_prefetch = 0 : i64, scratch_operands = 0 : i64, tpu.core_type = #tpu.core_type<tc>, window_params = [{transform_indices = @transform_0, window_bounds = array<i64: 288, 128>}, {pipeline_mode = #tpu.pipeline_mode<synchronous>, transform_indices = @transform_1, window_bounds = array<i64: 128, 128>}, {pipeline_mode = #tpu.pipeline_mode<synchronous>, transform_indices = @transform_2, window_bounds = array<i64: 1, 128>}, {transform_indices = @transform_3, window_bounds = array<i64: 288, 128>}]} {
    %c0 = arith.constant 0 : index
    %c0_0 = arith.constant 0 : index
    %0 = vector.load %arg1[%c0, %c0_0] : memref<288x128xbf16, #tpu.memory_space<vmem>>, vector<288x128xbf16>
    %c0_1 = arith.constant 0 : index
    %c0_2 = arith.constant 0 : index
    %1 = vector.load %arg2[%c0_1, %c0_2] : memref<128x128xbf16, #tpu.memory_space<vmem>>, vector<128x128xbf16>
    %cst = arith.constant dense<0.000000e+00> : vector<288x128xf32>
    %2 = tpu.matmul %0, %1, %cst {dimension_numbers = #tpu.dot_dimension_numbers<[1], [0], [0], [1], [0, 0, 1, 1], [], []>} : vector<288x128xbf16>, vector<128x128xbf16>, vector<288x128xf32> -> vector<288x128xf32>
    %c0_3 = arith.constant 0 : index
    %c0_4 = arith.constant 0 : index
    %3 = vector.load %arg3[%c0_3, %c0_4] : memref<1x128xf32, #tpu.memory_space<vmem>>, vector<1x128xf32>
    %4 = vector.broadcast %3 : vector<1x128xf32> to vector<288x128xf32>
    %5 = arith.addf %2, %4 : vector<288x128xf32>
    %cst_5 = arith.constant 0.000000e+00 : f32
    %6 = vector.broadcast %cst_5 : f32 to vector<288x128xf32>
    %7 = arith.maximumf %5, %6 : vector<288x128xf32>
    %8 = arith.truncf %7 : vector<288x128xf32> to vector<288x128xbf16>
    %c0_6 = arith.constant 0 : index
    %c0_7 = arith.constant 0 : index
    %9 = vector.load %arg4[%c0_6, %c0_7] : memref<288x128xbf16, #tpu.memory_space<vmem>>, vector<288x128xbf16>
    tpu.vector_store %arg4[%c0_6, %c0_7], %8 {strides = array<i32>} : memref<288x128xbf16, #tpu.memory_space<vmem>>, vector<288x128xbf16>,
    return
  }
  func.func @transform_0(%arg0: i32) -> (i32, i32) {
    %c0_i32 = arith.constant 0 : i32
    %c0_i32_0 = arith.constant 0 : i32
    return %arg0, %c0_i32 : i32, i32
  }
  func.func @transform_1(%arg0: i32) -> (i32, i32) {
    %c0_i32 = arith.constant 0 : i32
    %c0_i32_0 = arith.constant 0 : i32
    %c0_i32_1 = arith.constant 0 : i32
    return %c0_i32, %c0_i32_0 : i32, i32
  }
  func.func @transform_2(%arg0: i32) -> (i32, i32) {
    %c0_i32 = arith.constant 0 : i32
    %c0_i32_0 = arith.constant 0 : i32
    %c0_i32_1 = arith.constant 0 : i32
    return %c0_i32, %c0_i32_0 : i32, i32
  }
  func.func @transform_3(%arg0: i32) -> (i32, i32) {
    %c0_i32 = arith.constant 0 : i32
    %c0_i32_0 = arith.constant 0 : i32
    return %arg0, %c0_i32 : i32, i32
  }
}

module attributes {stable_mosaic.version = 11 : i64} {
  func.func @_gemm_single_kernel(%arg0: i32, %arg1: memref<80x1152xbf16, #tpu.memory_space<vmem>>, %arg2: memref<1152x128xbf16, #tpu.memory_space<vmem>>, %arg3: memref<1x128xf32, #tpu.memory_space<vmem>>, %arg4: memref<80x128xbf16, #tpu.memory_space<vmem>>) attributes {dimension_semantics = [#tpu.dimension_semantics<parallel>], iteration_bounds = array<i64: 1>, scalar_prefetch = 0 : i64, scratch_operands = 0 : i64, tpu.core_type = #tpu.core_type<tc>, window_params = [{transform_indices = @transform_0, window_bounds = array<i64: 80, 1152>}, {pipeline_mode = #tpu.pipeline_mode<synchronous>, transform_indices = @transform_1, window_bounds = array<i64: 1152, 128>}, {pipeline_mode = #tpu.pipeline_mode<synchronous>, transform_indices = @transform_2, window_bounds = array<i64: 1, 128>}, {transform_indices = @transform_3, window_bounds = array<i64: 80, 128>}]} {
    %c0 = arith.constant 0 : index
    %c0_0 = arith.constant 0 : index
    %0 = vector.load %arg1[%c0, %c0_0] : memref<80x1152xbf16, #tpu.memory_space<vmem>>, vector<80x1152xbf16>
    %c0_1 = arith.constant 0 : index
    %c0_2 = arith.constant 0 : index
    %1 = vector.load %arg2[%c0_1, %c0_2] : memref<1152x128xbf16, #tpu.memory_space<vmem>>, vector<1152x128xbf16>
    %cst = arith.constant dense<0.000000e+00> : vector<80x128xf32>
    %2 = tpu.matmul %0, %1, %cst {dimension_numbers = #tpu.dot_dimension_numbers<[1], [0], [0], [1], [0, 0, 1, 1], [], []>} : vector<80x1152xbf16>, vector<1152x128xbf16>, vector<80x128xf32> -> vector<80x128xf32>
    %c0_3 = arith.constant 0 : index
    %c0_4 = arith.constant 0 : index
    %3 = vector.load %arg3[%c0_3, %c0_4] : memref<1x128xf32, #tpu.memory_space<vmem>>, vector<1x128xf32>
    %4 = vector.broadcast %3 : vector<1x128xf32> to vector<80x128xf32>
    %5 = arith.addf %2, %4 : vector<80x128xf32>
    %cst_5 = arith.constant 0.000000e+00 : f32
    %6 = vector.broadcast %cst_5 : f32 to vector<80x128xf32>
    %7 = arith.maximumf %5, %6 : vector<80x128xf32>
    %8 = arith.truncf %7 : vector<80x128xf32> to vector<80x128xbf16>
    %c0_6 = arith.constant 0 : index
    %c0_7 = arith.constant 0 : index
    %9 = vector.load %arg4[%c0_6, %c0_7] : memref<80x128xbf16, #tpu.memory_space<vmem>>, vector<80x128xbf16>
    tpu.vector_store %arg4[%c0_6, %c0_7], %8 {strides = array<i32>} : memref<80x128xbf16, #tpu.memory_space<vmem>>, vector<80x128xbf16>,
    return
  }
  func.func @transform_0(%arg0: i32) -> (i32, i32) {
    %c0_i32 = arith.constant 0 : i32
    %c0_i32_0 = arith.constant 0 : i32
    return %arg0, %c0_i32 : i32, i32
  }
  func.func @transform_1(%arg0: i32) -> (i32, i32) {
    %c0_i32 = arith.constant 0 : i32
    %c0_i32_0 = arith.constant 0 : i32
    %c0_i32_1 = arith.constant 0 : i32
    return %c0_i32, %c0_i32_0 : i32, i32
  }
  func.func @transform_2(%arg0: i32) -> (i32, i32) {
    %c0_i32 = arith.constant 0 : i32
    %c0_i32_0 = arith.constant 0 : i32
    %c0_i32_1 = arith.constant 0 : i32
    return %c0_i32, %c0_i32_0 : i32, i32
  }
  func.func @transform_3(%arg0: i32) -> (i32, i32) {
    %c0_i32 = arith.constant 0 : i32
    %c0_i32_0 = arith.constant 0 : i32
    return %arg0, %c0_i32 : i32, i32
  }
}

module attributes {stable_mosaic.version = 11 : i64} {
  func.func @_gemm_single_kernel(%arg0: i32, %arg1: memref<80x128xbf16, #tpu.memory_space<vmem>>, %arg2: memref<128x128xbf16, #tpu.memory_space<vmem>>, %arg3: memref<1x128xf32, #tpu.memory_space<vmem>>, %arg4: memref<80x128xbf16, #tpu.memory_space<vmem>>) attributes {dimension_semantics = [#tpu.dimension_semantics<parallel>], iteration_bounds = array<i64: 1>, scalar_prefetch = 0 : i64, scratch_operands = 0 : i64, tpu.core_type = #tpu.core_type<tc>, window_params = [{transform_indices = @transform_0, window_bounds = array<i64: 80, 128>}, {pipeline_mode = #tpu.pipeline_mode<synchronous>, transform_indices = @transform_1, window_bounds = array<i64: 128, 128>}, {pipeline_mode = #tpu.pipeline_mode<synchronous>, transform_indices = @transform_2, window_bounds = array<i64: 1, 128>}, {transform_indices = @transform_3, window_bounds = array<i64: 80, 128>}]} {
    %c0 = arith.constant 0 : index
    %c0_0 = arith.constant 0 : index
    %0 = vector.load %arg1[%c0, %c0_0] : memref<80x128xbf16, #tpu.memory_space<vmem>>, vector<80x128xbf16>
    %c0_1 = arith.constant 0 : index
    %c0_2 = arith.constant 0 : index
    %1 = vector.load %arg2[%c0_1, %c0_2] : memref<128x128xbf16, #tpu.memory_space<vmem>>, vector<128x128xbf16>
    %cst = arith.constant dense<0.000000e+00> : vector<80x128xf32>
    %2 = tpu.matmul %0, %1, %cst {dimension_numbers = #tpu.dot_dimension_numbers<[1], [0], [0], [1], [0, 0, 1, 1], [], []>} : vector<80x128xbf16>, vector<128x128xbf16>, vector<80x128xf32> -> vector<80x128xf32>
    %c0_3 = arith.constant 0 : index
    %c0_4 = arith.constant 0 : index
    %3 = vector.load %arg3[%c0_3, %c0_4] : memref<1x128xf32, #tpu.memory_space<vmem>>, vector<1x128xf32>
    %4 = vector.broadcast %3 : vector<1x128xf32> to vector<80x128xf32>
    %5 = arith.addf %2, %4 : vector<80x128xf32>
    %6 = arith.truncf %5 : vector<80x128xf32> to vector<80x128xbf16>
    %c0_5 = arith.constant 0 : index
    %c0_6 = arith.constant 0 : index
    %7 = vector.load %arg4[%c0_5, %c0_6] : memref<80x128xbf16, #tpu.memory_space<vmem>>, vector<80x128xbf16>
    tpu.vector_store %arg4[%c0_5, %c0_6], %6 {strides = array<i32>} : memref<80x128xbf16, #tpu.memory_space<vmem>>, vector<80x128xbf16>,
    return
  }
  func.func @transform_0(%arg0: i32) -> (i32, i32) {
    %c0_i32 = arith.constant 0 : i32
    %c0_i32_0 = arith.constant 0 : i32
    return %arg0, %c0_i32 : i32, i32
  }
  func.func @transform_1(%arg0: i32) -> (i32, i32) {
    %c0_i32 = arith.constant 0 : i32
    %c0_i32_0 = arith.constant 0 : i32
    %c0_i32_1 = arith.constant 0 : i32
    return %c0_i32, %c0_i32_0 : i32, i32
  }
  func.func @transform_2(%arg0: i32) -> (i32, i32) {
    %c0_i32 = arith.constant 0 : i32
    %c0_i32_0 = arith.constant 0 : i32
    %c0_i32_1 = arith.constant 0 : i32
    return %c0_i32, %c0_i32_0 : i32, i32
  }
  func.func @transform_3(%arg0: i32) -> (i32, i32) {
    %c0_i32 = arith.constant 0 : i32
    %c0_i32_0 = arith.constant 0 : i32
    return %arg0, %c0_i32 : i32, i32
  }
}

module attributes {stable_mosaic.version = 11 : i64} {
  func.func @_gemm_single_kernel(%arg0: i32, %arg1: memref<80x128xbf16, #tpu.memory_space<vmem>>, %arg2: memref<128x128xbf16, #tpu.memory_space<vmem>>, %arg3: memref<1x128xf32, #tpu.memory_space<vmem>>, %arg4: memref<80x128xbf16, #tpu.memory_space<vmem>>, %arg5: memref<80x128xbf16, #tpu.memory_space<vmem>>) attributes {dimension_semantics = [#tpu.dimension_semantics<parallel>], iteration_bounds = array<i64: 1>, scalar_prefetch = 0 : i64, scratch_operands = 0 : i64, tpu.core_type = #tpu.core_type<tc>, window_params = [{transform_indices = @transform_0, window_bounds = array<i64: 80, 128>}, {pipeline_mode = #tpu.pipeline_mode<synchronous>, transform_indices = @transform_1, window_bounds = array<i64: 128, 128>}, {pipeline_mode = #tpu.pipeline_mode<synchronous>, transform_indices = @transform_2, window_bounds = array<i64: 1, 128>}, {transform_indices = @transform_3, window_bounds = array<i64: 80, 128>}, {transform_indices = @transform_4, window_bounds = array<i64: 80, 128>}]} {
    %c0 = arith.constant 0 : index
    %c0_0 = arith.constant 0 : index
    %0 = vector.load %arg1[%c0, %c0_0] : memref<80x128xbf16, #tpu.memory_space<vmem>>, vector<80x128xbf16>
    %c0_1 = arith.constant 0 : index
    %c0_2 = arith.constant 0 : index
    %1 = vector.load %arg2[%c0_1, %c0_2] : memref<128x128xbf16, #tpu.memory_space<vmem>>, vector<128x128xbf16>
    %cst = arith.constant dense<0.000000e+00> : vector<80x128xf32>
    %2 = tpu.matmul %0, %1, %cst {dimension_numbers = #tpu.dot_dimension_numbers<[1], [0], [0], [1], [0, 0, 1, 1], [], []>} : vector<80x128xbf16>, vector<128x128xbf16>, vector<80x128xf32> -> vector<80x128xf32>
    %c0_3 = arith.constant 0 : index
    %c0_4 = arith.constant 0 : index
    %3 = vector.load %arg3[%c0_3, %c0_4] : memref<1x128xf32, #tpu.memory_space<vmem>>, vector<1x128xf32>
    %4 = vector.broadcast %3 : vector<1x128xf32> to vector<80x128xf32>
    %5 = arith.addf %2, %4 : vector<80x128xf32>
    %c0_5 = arith.constant 0 : index
    %c0_6 = arith.constant 0 : index
    %6 = vector.load %arg4[%c0_5, %c0_6] : memref<80x128xbf16, #tpu.memory_space<vmem>>, vector<80x128xbf16>
    %7 = arith.extf %6 : vector<80x128xbf16> to vector<80x128xf32>
    %8 = arith.addf %5, %7 : vector<80x128xf32>
    %cst_7 = arith.constant 0.000000e+00 : f32
    %9 = vector.broadcast %cst_7 : f32 to vector<80x128xf32>
    %10 = arith.maximumf %8, %9 : vector<80x128xf32>
    %11 = arith.truncf %10 : vector<80x128xf32> to vector<80x128xbf16>
    %c0_8 = arith.constant 0 : index
    %c0_9 = arith.constant 0 : index
    %12 = vector.load %arg5[%c0_8, %c0_9] : memref<80x128xbf16, #tpu.memory_space<vmem>>, vector<80x128xbf16>
    tpu.vector_store %arg5[%c0_8, %c0_9], %11 {strides = array<i32>} : memref<80x128xbf16, #tpu.memory_space<vmem>>, vector<80x128xbf16>,
    return
  }
  func.func @transform_0(%arg0: i32) -> (i32, i32) {
    %c0_i32 = arith.constant 0 : i32
    %c0_i32_0 = arith.constant 0 : i32
    return %arg0, %c0_i32 : i32, i32
  }
  func.func @transform_1(%arg0: i32) -> (i32, i32) {
    %c0_i32 = arith.constant 0 : i32
    %c0_i32_0 = arith.constant 0 : i32
    %c0_i32_1 = arith.constant 0 : i32
    return %c0_i32, %c0_i32_0 : i32, i32
  }
  func.func @transform_2(%arg0: i32) -> (i32, i32) {
    %c0_i32 = arith.constant 0 : i32
    %c0_i32_0 = arith.constant 0 : i32
    %c0_i32_1 = arith.constant 0 : i32
    return %c0_i32, %c0_i32_0 : i32, i32
  }
  func.func @transform_3(%arg0: i32) -> (i32, i32) {
    %c0_i32 = arith.constant 0 : i32
    %c0_i32_0 = arith.constant 0 : i32
    return %arg0, %c0_i32 : i32, i32
  }
  func.func @transform_4(%arg0: i32) -> (i32, i32) {
    %c0_i32 = arith.constant 0 : i32
    %c0_i32_0 = arith.constant 0 : i32
    return %arg0, %c0_i32 : i32, i32
  }
}

module attributes {stable_mosaic.version = 11 : i64} {
  func.func @_gemm_single_kernel(%arg0: i32, %arg1: memref<80x128xbf16, #tpu.memory_space<vmem>>, %arg2: memref<128x128xbf16, #tpu.memory_space<vmem>>, %arg3: memref<1x128xf32, #tpu.memory_space<vmem>>, %arg4: memref<80x128xbf16, #tpu.memory_space<vmem>>) attributes {dimension_semantics = [#tpu.dimension_semantics<parallel>], iteration_bounds = array<i64: 1>, scalar_prefetch = 0 : i64, scratch_operands = 0 : i64, tpu.core_type = #tpu.core_type<tc>, window_params = [{transform_indices = @transform_0, window_bounds = array<i64: 80, 128>}, {pipeline_mode = #tpu.pipeline_mode<synchronous>, transform_indices = @transform_1, window_bounds = array<i64: 128, 128>}, {pipeline_mode = #tpu.pipeline_mode<synchronous>, transform_indices = @transform_2, window_bounds = array<i64: 1, 128>}, {transform_indices = @transform_3, window_bounds = array<i64: 80, 128>}]} {
    %c0 = arith.constant 0 : index
    %c0_0 = arith.constant 0 : index
    %0 = vector.load %arg1[%c0, %c0_0] : memref<80x128xbf16, #tpu.memory_space<vmem>>, vector<80x128xbf16>
    %c0_1 = arith.constant 0 : index
    %c0_2 = arith.constant 0 : index
    %1 = vector.load %arg2[%c0_1, %c0_2] : memref<128x128xbf16, #tpu.memory_space<vmem>>, vector<128x128xbf16>
    %cst = arith.constant dense<0.000000e+00> : vector<80x128xf32>
    %2 = tpu.matmul %0, %1, %cst {dimension_numbers = #tpu.dot_dimension_numbers<[1], [0], [0], [1], [0, 0, 1, 1], [], []>} : vector<80x128xbf16>, vector<128x128xbf16>, vector<80x128xf32> -> vector<80x128xf32>
    %c0_3 = arith.constant 0 : index
    %c0_4 = arith.constant 0 : index
    %3 = vector.load %arg3[%c0_3, %c0_4] : memref<1x128xf32, #tpu.memory_space<vmem>>, vector<1x128xf32>
    %4 = vector.broadcast %3 : vector<1x128xf32> to vector<80x128xf32>
    %5 = arith.addf %2, %4 : vector<80x128xf32>
    %cst_5 = arith.constant 0.000000e+00 : f32
    %6 = vector.broadcast %cst_5 : f32 to vector<80x128xf32>
    %7 = arith.maximumf %5, %6 : vector<80x128xf32>
    %8 = arith.truncf %7 : vector<80x128xf32> to vector<80x128xbf16>
    %c0_6 = arith.constant 0 : index
    %c0_7 = arith.constant 0 : index
    %9 = vector.load %arg4[%c0_6, %c0_7] : memref<80x128xbf16, #tpu.memory_space<vmem>>, vector<80x128xbf16>
    tpu.vector_store %arg4[%c0_6, %c0_7], %8 {strides = array<i32>} : memref<80x128xbf16, #tpu.memory_space<vmem>>, vector<80x128xbf16>,
    return
  }
  func.func @transform_0(%arg0: i32) -> (i32, i32) {
    %c0_i32 = arith.constant 0 : i32
    %c0_i32_0 = arith.constant 0 : i32
    return %arg0, %c0_i32 : i32, i32
  }
  func.func @transform_1(%arg0: i32) -> (i32, i32) {
    %c0_i32 = arith.constant 0 : i32
    %c0_i32_0 = arith.constant 0 : i32
    %c0_i32_1 = arith.constant 0 : i32
    return %c0_i32, %c0_i32_0 : i32, i32
  }
  func.func @transform_2(%arg0: i32) -> (i32, i32) {
    %c0_i32 = arith.constant 0 : i32
    %c0_i32_0 = arith.constant 0 : i32
    %c0_i32_1 = arith.constant 0 : i32
    return %c0_i32, %c0_i32_0 : i32, i32
  }
  func.func @transform_3(%arg0: i32) -> (i32, i32) {
    %c0_i32 = arith.constant 0 : i32
    %c0_i32_0 = arith.constant 0 : i32
    return %arg0, %c0_i32 : i32, i32
  }
}

module attributes {stable_mosaic.version = 11 : i64} {
  func.func @_gemm_single_kernel(%arg0: i32, %arg1: memref<80x128xbf16, #tpu.memory_space<vmem>>, %arg2: memref<128x256xbf16, #tpu.memory_space<vmem>>, %arg3: memref<1x256xf32, #tpu.memory_space<vmem>>, %arg4: memref<80x256xbf16, #tpu.memory_space<vmem>>) attributes {dimension_semantics = [#tpu.dimension_semantics<parallel>], iteration_bounds = array<i64: 1>, scalar_prefetch = 0 : i64, scratch_operands = 0 : i64, tpu.core_type = #tpu.core_type<tc>, window_params = [{transform_indices = @transform_0, window_bounds = array<i64: 80, 128>}, {pipeline_mode = #tpu.pipeline_mode<synchronous>, transform_indices = @transform_1, window_bounds = array<i64: 128, 256>}, {pipeline_mode = #tpu.pipeline_mode<synchronous>, transform_indices = @transform_2, window_bounds = array<i64: 1, 256>}, {transform_indices = @transform_3, window_bounds = array<i64: 80, 256>}]} {
    %c0 = arith.constant 0 : index
    %c0_0 = arith.constant 0 : index
    %0 = vector.load %arg1[%c0, %c0_0] : memref<80x128xbf16, #tpu.memory_space<vmem>>, vector<80x128xbf16>
    %c0_1 = arith.constant 0 : index
    %c0_2 = arith.constant 0 : index
    %1 = vector.load %arg2[%c0_1, %c0_2] : memref<128x256xbf16, #tpu.memory_space<vmem>>, vector<128x256xbf16>
    %cst = arith.constant dense<0.000000e+00> : vector<80x256xf32>
    %2 = tpu.matmul %0, %1, %cst {dimension_numbers = #tpu.dot_dimension_numbers<[1], [0], [0], [1], [0, 0, 1, 1], [], []>} : vector<80x128xbf16>, vector<128x256xbf16>, vector<80x256xf32> -> vector<80x256xf32>
    %c0_3 = arith.constant 0 : index
    %c0_4 = arith.constant 0 : index
    %3 = vector.load %arg3[%c0_3, %c0_4] : memref<1x256xf32, #tpu.memory_space<vmem>>, vector<1x256xf32>
    %4 = vector.broadcast %3 : vector<1x256xf32> to vector<80x256xf32>
    %5 = arith.addf %2, %4 : vector<80x256xf32>
    %6 = tpu.iota {dimensions = array<i32: 1>} : vector<80x256xi32>
    %c128_i32 = arith.constant 128 : i32
    %7 = vector.broadcast %c128_i32 : i32 to vector<80x256xi32>
    %8 = arith.cmpi slt, %6, %7 : vector<80x256xi32>
    %cst_5 = arith.constant 0.000000e+00 : f32
    %9 = vector.broadcast %cst_5 : f32 to vector<80x256xf32>
    %10 = arith.maximumf %5, %9 : vector<80x256xf32>
    %11 = arith.select %8, %10, %5 : vector<80x256xi1>, vector<80x256xf32>
    %12 = arith.truncf %11 : vector<80x256xf32> to vector<80x256xbf16>
    %c0_6 = arith.constant 0 : index
    %c0_7 = arith.constant 0 : index
    %13 = vector.load %arg4[%c0_6, %c0_7] : memref<80x256xbf16, #tpu.memory_space<vmem>>, vector<80x256xbf16>
    tpu.vector_store %arg4[%c0_6, %c0_7], %12 {strides = array<i32>} : memref<80x256xbf16, #tpu.memory_space<vmem>>, vector<80x256xbf16>,
    return
  }
  func.func @transform_0(%arg0: i32) -> (i32, i32) {
    %c0_i32 = arith.constant 0 : i32
    %c0_i32_0 = arith.constant 0 : i32
    return %arg0, %c0_i32 : i32, i32
  }
  func.func @transform_1(%arg0: i32) -> (i32, i32) {
    %c0_i32 = arith.constant 0 : i32
    %c0_i32_0 = arith.constant 0 : i32
    %c0_i32_1 = arith.constant 0 : i32
    return %c0_i32, %c0_i32_0 : i32, i32
  }
  func.func @transform_2(%arg0: i32) -> (i32, i32) {
    %c0_i32 = arith.constant 0 : i32
    %c0_i32_0 = arith.constant 0 : i32
    %c0_i32_1 = arith.constant 0 : i32
    return %c0_i32, %c0_i32_0 : i32, i32
  }
  func.func @transform_3(%arg0: i32) -> (i32, i32) {
    %c0_i32 = arith.constant 0 : i32
    %c0_i32_0 = arith.constant 0 : i32
    return %arg0, %c0_i32 : i32, i32
  }
}

module attributes {stable_mosaic.version = 11 : i64} {
  func.func @_gemm_single_kernel(%arg0: i32, %arg1: memref<32x128xbf16, #tpu.memory_space<vmem>>, %arg2: memref<128x128xbf16, #tpu.memory_space<vmem>>, %arg3: memref<1x128xf32, #tpu.memory_space<vmem>>, %arg4: memref<32x128xbf16, #tpu.memory_space<vmem>>) attributes {dimension_semantics = [#tpu.dimension_semantics<parallel>], iteration_bounds = array<i64: 1>, scalar_prefetch = 0 : i64, scratch_operands = 0 : i64, tpu.core_type = #tpu.core_type<tc>, window_params = [{transform_indices = @transform_0, window_bounds = array<i64: 32, 128>}, {pipeline_mode = #tpu.pipeline_mode<synchronous>, transform_indices = @transform_1, window_bounds = array<i64: 128, 128>}, {pipeline_mode = #tpu.pipeline_mode<synchronous>, transform_indices = @transform_2, window_bounds = array<i64: 1, 128>}, {transform_indices = @transform_3, window_bounds = array<i64: 32, 128>}]} {
    %c0 = arith.constant 0 : index
    %c0_0 = arith.constant 0 : index
    %0 = vector.load %arg1[%c0, %c0_0] : memref<32x128xbf16, #tpu.memory_space<vmem>>, vector<32x128xbf16>
    %c0_1 = arith.constant 0 : index
    %c0_2 = arith.constant 0 : index
    %1 = vector.load %arg2[%c0_1, %c0_2] : memref<128x128xbf16, #tpu.memory_space<vmem>>, vector<128x128xbf16>
    %cst = arith.constant dense<0.000000e+00> : vector<32x128xf32>
    %2 = tpu.matmul %0, %1, %cst {dimension_numbers = #tpu.dot_dimension_numbers<[1], [0], [0], [1], [0, 0, 1, 1], [], []>} : vector<32x128xbf16>, vector<128x128xbf16>, vector<32x128xf32> -> vector<32x128xf32>
    %c0_3 = arith.constant 0 : index
    %c0_4 = arith.constant 0 : index
    %3 = vector.load %arg3[%c0_3, %c0_4] : memref<1x128xf32, #tpu.memory_space<vmem>>, vector<1x128xf32>
    %4 = vector.broadcast %3 : vector<1x128xf32> to vector<32x128xf32>
    %5 = arith.addf %2, %4 : vector<32x128xf32>
    %cst_5 = arith.constant 0.000000e+00 : f32
    %6 = vector.broadcast %cst_5 : f32 to vector<32x128xf32>
    %7 = arith.maximumf %5, %6 : vector<32x128xf32>
    %8 = arith.truncf %7 : vector<32x128xf32> to vector<32x128xbf16>
    %c0_6 = arith.constant 0 : index
    %c0_7 = arith.constant 0 : index
    %9 = vector.load %arg4[%c0_6, %c0_7] : memref<32x128xbf16, #tpu.memory_space<vmem>>, vector<32x128xbf16>
    tpu.vector_store %arg4[%c0_6, %c0_7], %8 {strides = array<i32>} : memref<32x128xbf16, #tpu.memory_space<vmem>>, vector<32x128xbf16>,
    return
  }
  func.func @transform_0(%arg0: i32) -> (i32, i32) {
    %c0_i32 = arith.constant 0 : i32
    %c0_i32_0 = arith.constant 0 : i32
    return %arg0, %c0_i32 : i32, i32
  }
  func.func @transform_1(%arg0: i32) -> (i32, i32) {
    %c0_i32 = arith.constant 0 : i32
    %c0_i32_0 = arith.constant 0 : i32
    %c0_i32_1 = arith.constant 0 : i32
    return %c0_i32, %c0_i32_0 : i32, i32
  }
  func.func @transform_2(%arg0: i32) -> (i32, i32) {
    %c0_i32 = arith.constant 0 : i32
    %c0_i32_0 = arith.constant 0 : i32
    %c0_i32_1 = arith.constant 0 : i32
    return %c0_i32, %c0_i32_0 : i32, i32
  }
  func.func @transform_3(%arg0: i32) -> (i32, i32) {
    %c0_i32 = arith.constant 0 : i32
    %c0_i32_0 = arith.constant 0 : i32
    return %arg0, %c0_i32 : i32, i32
  }
}

module attributes {stable_mosaic.version = 11 : i64} {
  func.func @_gemm_single_kernel(%arg0: i32, %arg1: memref<16x128xbf16, #tpu.memory_space<vmem>>, %arg2: memref<128x128xbf16, #tpu.memory_space<vmem>>, %arg3: memref<1x128xf32, #tpu.memory_space<vmem>>, %arg4: memref<16x128xbf16, #tpu.memory_space<vmem>>) attributes {dimension_semantics = [#tpu.dimension_semantics<parallel>], iteration_bounds = array<i64: 1>, scalar_prefetch = 0 : i64, scratch_operands = 0 : i64, tpu.core_type = #tpu.core_type<tc>, window_params = [{transform_indices = @transform_0, window_bounds = array<i64: 16, 128>}, {pipeline_mode = #tpu.pipeline_mode<synchronous>, transform_indices = @transform_1, window_bounds = array<i64: 128, 128>}, {pipeline_mode = #tpu.pipeline_mode<synchronous>, transform_indices = @transform_2, window_bounds = array<i64: 1, 128>}, {transform_indices = @transform_3, window_bounds = array<i64: 16, 128>}]} {
    %c0 = arith.constant 0 : index
    %c0_0 = arith.constant 0 : index
    %0 = vector.load %arg1[%c0, %c0_0] : memref<16x128xbf16, #tpu.memory_space<vmem>>, vector<16x128xbf16>
    %c0_1 = arith.constant 0 : index
    %c0_2 = arith.constant 0 : index
    %1 = vector.load %arg2[%c0_1, %c0_2] : memref<128x128xbf16, #tpu.memory_space<vmem>>, vector<128x128xbf16>
    %cst = arith.constant dense<0.000000e+00> : vector<16x128xf32>
    %2 = tpu.matmul %0, %1, %cst {dimension_numbers = #tpu.dot_dimension_numbers<[1], [0], [0], [1], [0, 0, 1, 1], [], []>} : vector<16x128xbf16>, vector<128x128xbf16>, vector<16x128xf32> -> vector<16x128xf32>
    %c0_3 = arith.constant 0 : index
    %c0_4 = arith.constant 0 : index
    %3 = vector.load %arg3[%c0_3, %c0_4] : memref<1x128xf32, #tpu.memory_space<vmem>>, vector<1x128xf32>
    %4 = vector.broadcast %3 : vector<1x128xf32> to vector<16x128xf32>
    %5 = arith.addf %2, %4 : vector<16x128xf32>
    %cst_5 = arith.constant 0.000000e+00 : f32
    %6 = vector.broadcast %cst_5 : f32 to vector<16x128xf32>
    %7 = arith.maximumf %5, %6 : vector<16x128xf32>
    %8 = arith.truncf %7 : vector<16x128xf32> to vector<16x128xbf16>
    %c0_6 = arith.constant 0 : index
    %c0_7 = arith.constant 0 : index
    %9 = vector.load %arg4[%c0_6, %c0_7] : memref<16x128xbf16, #tpu.memory_space<vmem>>, vector<16x128xbf16>
    tpu.vector_store %arg4[%c0_6, %c0_7], %8 {strides = array<i32>} : memref<16x128xbf16, #tpu.memory_space<vmem>>, vector<16x128xbf16>,
    return
  }
  func.func @transform_0(%arg0: i32) -> (i32, i32) {
    %c0_i32 = arith.constant 0 : i32
    %c0_i32_0 = arith.constant 0 : i32
    return %arg0, %c0_i32 : i32, i32
  }
  func.func @transform_1(%arg0: i32) -> (i32, i32) {
    %c0_i32 = arith.constant 0 : i32
    %c0_i32_0 = arith.constant 0 : i32
    %c0_i32_1 = arith.constant 0 : i32
    return %c0_i32, %c0_i32_0 : i32, i32
  }
  func.func @transform_2(%arg0: i32) -> (i32, i32) {
    %c0_i32 = arith.constant 0 : i32
    %c0_i32_0 = arith.constant 0 : i32
    %c0_i32_1 = arith.constant 0 : i32
    return %c0_i32, %c0_i32_0 : i32, i32
  }
  func.func @transform_3(%arg0: i32) -> (i32, i32) {
    %c0_i32 = arith.constant 0 : i32
    %c0_i32_0 = arith.constant 0 : i32
    return %arg0, %c0_i32 : i32, i32
  }
}

module attributes {stable_mosaic.version = 11 : i64} {
  func.func @_gemm_single_kernel(%arg0: i32, %arg1: memref<80x576xbf16, #tpu.memory_space<vmem>>, %arg2: memref<576x128xbf16, #tpu.memory_space<vmem>>, %arg3: memref<1x128xf32, #tpu.memory_space<vmem>>, %arg4: memref<80x128xbf16, #tpu.memory_space<vmem>>) attributes {dimension_semantics = [#tpu.dimension_semantics<parallel>], iteration_bounds = array<i64: 1>, scalar_prefetch = 0 : i64, scratch_operands = 0 : i64, tpu.core_type = #tpu.core_type<tc>, window_params = [{transform_indices = @transform_0, window_bounds = array<i64: 80, 576>}, {pipeline_mode = #tpu.pipeline_mode<synchronous>, transform_indices = @transform_1, window_bounds = array<i64: 576, 128>}, {pipeline_mode = #tpu.pipeline_mode<synchronous>, transform_indices = @transform_2, window_bounds = array<i64: 1, 128>}, {transform_indices = @transform_3, window_bounds = array<i64: 80, 128>}]} {
    %c0 = arith.constant 0 : index
    %c0_0 = arith.constant 0 : index
    %0 = vector.load %arg1[%c0, %c0_0] : memref<80x576xbf16, #tpu.memory_space<vmem>>, vector<80x576xbf16>
    %c0_1 = arith.constant 0 : index
    %c0_2 = arith.constant 0 : index
    %1 = vector.load %arg2[%c0_1, %c0_2] : memref<576x128xbf16, #tpu.memory_space<vmem>>, vector<576x128xbf16>
    %cst = arith.constant dense<0.000000e+00> : vector<80x128xf32>
    %2 = tpu.matmul %0, %1, %cst {dimension_numbers = #tpu.dot_dimension_numbers<[1], [0], [0], [1], [0, 0, 1, 1], [], []>} : vector<80x576xbf16>, vector<576x128xbf16>, vector<80x128xf32> -> vector<80x128xf32>
    %c0_3 = arith.constant 0 : index
    %c0_4 = arith.constant 0 : index
    %3 = vector.load %arg3[%c0_3, %c0_4] : memref<1x128xf32, #tpu.memory_space<vmem>>, vector<1x128xf32>
    %4 = vector.broadcast %3 : vector<1x128xf32> to vector<80x128xf32>
    %5 = arith.addf %2, %4 : vector<80x128xf32>
    %cst_5 = arith.constant 0.000000e+00 : f32
    %6 = vector.broadcast %cst_5 : f32 to vector<80x128xf32>
    %7 = arith.maximumf %5, %6 : vector<80x128xf32>
    %8 = arith.truncf %7 : vector<80x128xf32> to vector<80x128xbf16>
    %c0_6 = arith.constant 0 : index
    %c0_7 = arith.constant 0 : index
    %9 = vector.load %arg4[%c0_6, %c0_7] : memref<80x128xbf16, #tpu.memory_space<vmem>>, vector<80x128xbf16>
    tpu.vector_store %arg4[%c0_6, %c0_7], %8 {strides = array<i32>} : memref<80x128xbf16, #tpu.memory_space<vmem>>, vector<80x128xbf16>,
    return
  }
  func.func @transform_0(%arg0: i32) -> (i32, i32) {
    %c0_i32 = arith.constant 0 : i32
    %c0_i32_0 = arith.constant 0 : i32
    return %arg0, %c0_i32 : i32, i32
  }
  func.func @transform_1(%arg0: i32) -> (i32, i32) {
    %c0_i32 = arith.constant 0 : i32
    %c0_i32_0 = arith.constant 0 : i32
    %c0_i32_1 = arith.constant 0 : i32
    return %c0_i32, %c0_i32_0 : i32, i32
  }
  func.func @transform_2(%arg0: i32) -> (i32, i32) {
    %c0_i32 = arith.constant 0 : i32
    %c0_i32_0 = arith.constant 0 : i32
    %c0_i32_1 = arith.constant 0 : i32
    return %c0_i32, %c0_i32_0 : i32, i32
  }
  func.func @transform_3(%arg0: i32) -> (i32, i32) {
    %c0_i32 = arith.constant 0 : i32
    %c0_i32_0 = arith.constant 0 : i32
    return %arg0, %c0_i32 : i32, i32
  }
}

module attributes {stable_mosaic.version = 11 : i64} {
  func.func @_gemm_single_kernel(%arg0: i32, %arg1: memref<80x128xbf16, #tpu.memory_space<vmem>>, %arg2: memref<128x128xbf16, #tpu.memory_space<vmem>>, %arg3: memref<1x128xf32, #tpu.memory_space<vmem>>, %arg4: memref<80x128xf32, #tpu.memory_space<vmem>>) attributes {dimension_semantics = [#tpu.dimension_semantics<parallel>], iteration_bounds = array<i64: 1>, scalar_prefetch = 0 : i64, scratch_operands = 0 : i64, tpu.core_type = #tpu.core_type<tc>, window_params = [{transform_indices = @transform_0, window_bounds = array<i64: 80, 128>}, {pipeline_mode = #tpu.pipeline_mode<synchronous>, transform_indices = @transform_1, window_bounds = array<i64: 128, 128>}, {pipeline_mode = #tpu.pipeline_mode<synchronous>, transform_indices = @transform_2, window_bounds = array<i64: 1, 128>}, {transform_indices = @transform_3, window_bounds = array<i64: 80, 128>}]} {
    %c0 = arith.constant 0 : index
    %c0_0 = arith.constant 0 : index
    %0 = vector.load %arg1[%c0, %c0_0] : memref<80x128xbf16, #tpu.memory_space<vmem>>, vector<80x128xbf16>
    %c0_1 = arith.constant 0 : index
    %c0_2 = arith.constant 0 : index
    %1 = vector.load %arg2[%c0_1, %c0_2] : memref<128x128xbf16, #tpu.memory_space<vmem>>, vector<128x128xbf16>
    %cst = arith.constant dense<0.000000e+00> : vector<80x128xf32>
    %2 = tpu.matmul %0, %1, %cst {dimension_numbers = #tpu.dot_dimension_numbers<[1], [0], [0], [1], [0, 0, 1, 1], [], []>} : vector<80x128xbf16>, vector<128x128xbf16>, vector<80x128xf32> -> vector<80x128xf32>
    %c0_3 = arith.constant 0 : index
    %c0_4 = arith.constant 0 : index
    %3 = vector.load %arg3[%c0_3, %c0_4] : memref<1x128xf32, #tpu.memory_space<vmem>>, vector<1x128xf32>
    %4 = vector.broadcast %3 : vector<1x128xf32> to vector<80x128xf32>
    %5 = arith.addf %2, %4 : vector<80x128xf32>
    %c0_5 = arith.constant 0 : index
    %c0_6 = arith.constant 0 : index
    %6 = vector.load %arg4[%c0_5, %c0_6] : memref<80x128xf32, #tpu.memory_space<vmem>>, vector<80x128xf32>
    tpu.vector_store %arg4[%c0_5, %c0_6], %5 {strides = array<i32>} : memref<80x128xf32, #tpu.memory_space<vmem>>, vector<80x128xf32>,
    return
  }
  func.func @transform_0(%arg0: i32) -> (i32, i32) {
    %c0_i32 = arith.constant 0 : i32
    %c0_i32_0 = arith.constant 0 : i32
    return %arg0, %c0_i32 : i32, i32
  }
  func.func @transform_1(%arg0: i32) -> (i32, i32) {
    %c0_i32 = arith.constant 0 : i32
    %c0_i32_0 = arith.constant 0 : i32
    %c0_i32_1 = arith.constant 0 : i32
    return %c0_i32, %c0_i32_0 : i32, i32
  }
  func.func @transform_2(%arg0: i32) -> (i32, i32) {
    %c0_i32 = arith.constant 0 : i32
    %c0_i32_0 = arith.constant 0 : i32
    %c0_i32_1 = arith.constant 0 : i32
    return %c0_i32, %c0_i32_0 : i32, i32
  }
  func.func @transform_3(%arg0: i32) -> (i32, i32) {
    %c0_i32 = arith.constant 0 : i32
    %c0_i32_0 = arith.constant 0 : i32
    return %arg0, %c0_i32 : i32, i32
  }
}

</mosaic_0001>

<llo_original>
// kernel: _lambda_.58
$region0: #{_lambda_.58}
  #allocation0 [shape = 'u32[]', space=smem, size = 0x4, offset = 0x4, fixed_abs, tag = 'smem constant byte address 0x4 - core index']
  #allocation1 [shape = 'u32[72,128]{1,0:T(1,128)}', space=vmem, size = 0x9000, scoped, tag = 'internal scratch']
  %s0 = inlined_call_operand.vmem [shape: bf16[1152,160], index: 0, kind: input, shape index: {}]
  %s1 = inlined_call_operand.vmem [shape: bf16[160,128], index: 1, kind: input, shape index: {}]
  %s2 = inlined_call_operand.vmem [shape: f32[1,128], index: 2, kind: input, shape index: {}]
  %s3 = inlined_call_operand.vmem [shape: bf16[1152,128], index: 3, kind: output, shape index: {}]
  %s4 = sld [smem:[#allocation0]]
  $region45: #{_lambda_.58} parent=0
    _
  %s6 = ssub.s32 1, %s4
  %s7 = scalar_select 0, %s6, %s4
  loop: start=0, step=1, limit=4
  $region2: #{_lambda_.58} parent=0 // loop_pre_header
    _
  $region3: #{_lambda_.58} parent=0 // loop_header
    %s9 = sphi 0, %s13
    %p10 = scmp.ge.s32.totalorder %s9, 4
    %s19 = sphi 0, %s21
    %s22 = sphi 0, %s19
    %s23 = sphi 0, %s22
    %s39 = sphi 0, %s23
    %s43 = sphi 0, %s43
    %s45 = sphi 0, %s43
    %s46 = sphi 0, %s45
    %s60 = sphi 0, %s46
    %s64 = sphi 0, %s64
    %s66 = sphi 0, %s64
    %s67 = sphi 0, %s66
    %s81 = sphi 0, %s67
    %s87 = sphi 0, %s89
    %s90 = sphi 0, %s87
    %s91 = sphi 0, %s90
    %s107 = sphi 0, %s91
  $region4: #{_lambda_.58} parent=0 // loop_header_branch
    %12 = sbr.rel (%p10) target = $region8
  $region5: #{_lambda_.58} parent=0 // loop_body
    %s14 = ssub.s32 %s9, 1
    %s15 = ssub.s32 %s9, 2
    %s16 = sadd.s32 %s9, 1
    %s17 = ssub.s32 %s9, %s16
    %p18 = scmp.eq.s32.totalorder %s17, 0
    %s20 = sadd.s32 %s19, 1
    %s21 = scalar_select %p18, %s19, %s20
    %p24 = pneg %p18
    %p25 = scmp.eq.s32.totalorder %s9, 1
    %p26 = por %p24, %p25
    %p27 = scmp.ne.s32.totalorder %s19, %s22
    %p28 = scmp.eq.s32.totalorder %s9, 0
    %p29 = por %p27, %p28
    %p30 = scmp.ne.s32.totalorder %s19, %s22
    %p31 = scmp.eq.s32.totalorder %s14, 1
    %p32 = por %p30, %p31
    %p33 = scmp.ne.s32.totalorder %s22, %s23
    %p34 = scmp.eq.s32.totalorder %s14, 0
    %p35 = por %p33, %p34
    %p36 = scmp.ne.s32.totalorder %s22, %s23
    %p37 = scmp.eq.s32.totalorder %s15, 1
    %p38 = por %p36, %p37
    %p40 = scmp.ne.s32.totalorder %s23, %s39
    %p41 = scmp.eq.s32.totalorder %s15, 0
    %p42 = por %p40, %p41
    %s44 = sadd.s32 %s43, 1
    %p47 = scmp.eq.s32.totalorder %s9, 1
    %p48 = scmp.ne.s32.totalorder %s43, %s45
    %p49 = scmp.eq.s32.totalorder %s9, 0
    %p50 = por %p48, %p49
    %p51 = scmp.ne.s32.totalorder %s43, %s45
    %p52 = scmp.eq.s32.totalorder %s14, 1
    %p53 = por %p51, %p52
    %p54 = scmp.ne.s32.totalorder %s45, %s46
    %p55 = scmp.eq.s32.totalorder %s14, 0
    %p56 = por %p54, %p55
    %p57 = scmp.ne.s32.totalorder %s45, %s46
    %p58 = scmp.eq.s32.totalorder %s15, 1
    %p59 = por %p57, %p58
    %p61 = scmp.ne.s32.totalorder %s46, %s60
    %p62 = scmp.eq.s32.totalorder %s15, 0
    %p63 = por %p61, %p62
    %s65 = sadd.s32 %s64, 1
    %p68 = scmp.eq.s32.totalorder %s9, 1
    %p69 = scmp.ne.s32.totalorder %s64, %s66
    %p70 = scmp.eq.s32.totalorder %s9, 0
    %p71 = por %p69, %p70
    %p72 = scmp.ne.s32.totalorder %s64, %s66
    %p73 = scmp.eq.s32.totalorder %s14, 1
    %p74 = por %p72, %p73
    %p75 = scmp.ne.s32.totalorder %s66, %s67
    %p76 = scmp.eq.s32.totalorder %s14, 0
    %p77 = por %p75, %p76
    %p78 = scmp.ne.s32.totalorder %s66, %s67
    %p79 = scmp.eq.s32.totalorder %s15, 1
    %p80 = por %p78, %p79
    %p82 = scmp.ne.s32.totalorder %s67, %s81
    %p83 = scmp.eq.s32.totalorder %s15, 0
    %p84 = por %p82, %p83
    %s85 = ssub.s32 %s9, %s16
    %p86 = scmp.eq.s32.totalorder %s85, 0
    %s88 = sadd.s32 %s87, 1
    %s89 = scalar_select %p86, %s87, %s88
    %p92 = pneg %p86
    %p93 = scmp.eq.s32.totalorder %s9, 1
    %p94 = por %p92, %p93
    %p95 = scmp.ne.s32.totalorder %s87, %s90
    %p96 = scmp.eq.s32.totalorder %s9, 0
    %p97 = por %p95, %p96
    %p98 = scmp.ne.s32.totalorder %s87, %s90
    %p99 = scmp.eq.s32.totalorder %s14, 1
    %p100 = por %p98, %p99
    %p101 = scmp.ne.s32.totalorder %s90, %s91
    %p102 = scmp.eq.s32.totalorder %s14, 0
    %p103 = por %p101, %p102
    %p104 = scmp.ne.s32.totalorder %s90, %s91
    %p105 = scmp.eq.s32.totalorder %s15, 1
    %p106 = por %p104, %p105
    %p108 = scmp.ne.s32.totalorder %s91, %s107
    %p109 = scmp.eq.s32.totalorder %s15, 0
    %p110 = por %p108, %p109
    %p111 = scmp.le.s32.totalorder 1, %s9
    %p112 = scmp.lt.s32.totalorder %s9, 3
    %p113 = pnand %p111, %p112
    %p114 = pneg %p113
    // Predicated region
    $region9: #{_lambda_.58} parent=5 // pred_check
      _
    $region10: #{_lambda_.58} parent=5 // pred_check_branch
      %116 = sbr.rel (%p113) target = $region12
    $region11: #{_lambda_.58} parent=5 // pred_region
      %s117 = ssub.s32 %s9, 1
      // Predicated region
      $region13: #{_lambda_.58} parent=11 // pred_check
        %p118 = pneg %p56
      $region14: #{_lambda_.58} parent=11 // pred_check_branch
        %120 = sbr.rel (%p118) target = $region16
      $region15: #{_lambda_.58} parent=11 // pred_region
        _
      $region16: #{_lambda_.58} parent=11 // pred_fallthru
        _
      // Predicated region
      $region17: #{_lambda_.58} parent=11 // pred_check
        %p121 = pneg %p77
      $region18: #{_lambda_.58} parent=11 // pred_check_branch
        %123 = sbr.rel (%p121) target = $region20
      $region19: #{_lambda_.58} parent=11 // pred_region
        _
      $region20: #{_lambda_.58} parent=11 // pred_fallthru
        _
    $region12: #{_lambda_.58} parent=5 // pred_fallthru
      _
    %p124 = scmp.lt.s32.totalorder %s9, 2
    // Predicated region
    $region21: #{_lambda_.58} parent=5 // pred_check
      %p125 = pneg %p124
    $region22: #{_lambda_.58} parent=5 // pred_check_branch
      %127 = sbr.rel (%p125) target = $region24
    $region23: #{_lambda_.58} parent=5 // pred_region
      // Predicated region
      $region25: #{_lambda_.58} parent=23 // pred_check
        %p128 = pneg %p29
      $region26: #{_lambda_.58} parent=23 // pred_check_branch
        %130 = sbr.rel (%p128) target = $region28
      $region27: #{_lambda_.58} parent=23 // pred_region
        %s131 = smul.u32 72, %s9
        %p132 = scmp.lt.s32.totalorder %s131, 143
        %s133 = scalar_select %p132, %s131, 143
        %s134 = smul.addr %s133, 2
        %s135 = smul.addr %s134, 4
        %s136 = scalar_lea.vmem %s0, %s135
        %s137 = smul.u32 72, %s9
      $region28: #{_lambda_.58} parent=23 // pred_fallthru
        _
    $region24: #{_lambda_.58} parent=5 // pred_fallthru
      _
    %p138 = scmp.le.s32.totalorder 1, %s9
    %p139 = scmp.lt.s32.totalorder %s9, 3
    %p140 = pnand %p138, %p139
    %p141 = pneg %p140
    // Predicated region
    $region29: #{_lambda_.58} parent=5 // pred_check
      _
    $region30: #{_lambda_.58} parent=5 // pred_check_branch
      %143 = sbr.rel (%p140) target = $region32
    $region31: #{_lambda_.58} parent=5 // pred_region
      %s144 = ssub.s32 %s9, 1
      %s145 = smul.u32 72, %s14
      %p146 = scmp.lt.s32.totalorder %s145, 143
      %s147 = scalar_select %p146, %s145, 143
      %s148 = smul.addr %s147, 2
      %s149 = smul.addr %s148, 4
      %s150 = scalar_lea.vmem %s0, %s149
      %p151 = pneg %p35
      %p152 = pneg %p32
      %p153 = pneg %p56
      %p154 = pneg %p53
      %p155 = pneg %p77
      %p156 = pneg %p74
      %p157 = pneg %p103
      %p158 = pneg %p100
      %s159 = smul.u32 72, %s14
      %p160 = scmp.lt.s32.totalorder %s159, 143
      %s161 = scalar_select %p160, %s159, 143
      %s162 = smul.addr %s161, 4
      %s163 = scalar_lea.vmem %s3, %s162
      %s164 = smul.u32 72, %s14
      %p165 = scmp.lt.s32.totalorder %s164, 143
      %s166 = scalar_select %p165, %s164, 143
      %s167 = smul.addr %s166, 2
      %s168 = smul.addr %s167, 4
      %s169 = scalar_lea.vmem %s0, %s168
      %s170 = smul.u32 72, %s14
      %s171 = smul.u32 72, %s14
      %p172 = scmp.lt.s32.totalorder %s171, 143
      %s173 = scalar_select %p172, %s171, 143
      %s174 = smul.addr %s173, 4
      %s175 = scalar_lea.vmem %s3, %s174
      %s176 = smul.u32 72, %s14
      %v178 = vld [vmem:[%s169] sm:$0xff]
      %v179 = vld [vmem:[%s169 + $0x8] sm:$0xff]
      %v180 = vld [vmem:[%s169 + $0x10] sm:$0xff]
      %v181 = vld [vmem:[%s169 + $0x18] sm:$0xff]
      %v182 = vld [vmem:[%s169 + $0x20] sm:$0xff]
      %v183 = vld [vmem:[%s169 + $0x28] sm:$0xff]
      %v184 = vld [vmem:[%s169 + $0x30] sm:$0xff]
      %v185 = vld [vmem:[%s169 + $0x38] sm:$0xff]
      %v186 = vld [vmem:[%s169 + $0x40] sm:$0xff]
      %v187 = vld [vmem:[%s169 + $0x48] sm:$0xff]
      %v188 = vld [vmem:[%s169 + $0x50] sm:$0xff]
      %v189 = vld [vmem:[%s169 + $0x58] sm:$0xff]
      %v190 = vld [vmem:[%s169 + $0x60] sm:$0xff]
      %v191 = vld [vmem:[%s169 + $0x68] sm:$0xff]
      %v192 = vld [vmem:[%s169 + $0x70] sm:$0xff]
      %v193 = vld [vmem:[%s169 + $0x78] sm:$0xff]
      %v194 = vld [vmem:[%s169 + $0x80] sm:$0xff]
      %v195 = vld [vmem:[%s169 + $0x88] sm:$0xff]
      %v196 = vld [vmem:[%s169 + $0x90] sm:$0xff]
      %v197 = vld [vmem:[%s169 + $0x98] sm:$0xff]
      %v198 = vld [vmem:[%s169 + $0xa0] sm:$0xff]
      %v199 = vld [vmem:[%s169 + $0xa8] sm:$0xff]
      %v200 = vld [vmem:[%s169 + $0xb0] sm:$0xff]
      %v201 = vld [vmem:[%s169 + $0xb8] sm:$0xff]
      %v202 = vld [vmem:[%s169 + $0xc0] sm:$0xff]
      %v203 = vld [vmem:[%s169 + $0xc8] sm:$0xff]
      %v204 = vld [vmem:[%s169 + $0xd0] sm:$0xff]
      %v205 = vld [vmem:[%s169 + $0xd8] sm:$0xff]
      %v206 = vld [vmem:[%s169 + $0xe0] sm:$0xff]
      %v207 = vld [vmem:[%s169 + $0xe8] sm:$0xff]
      %v208 = vld [vmem:[%s169 + $0xf0] sm:$0xff]
      %v209 = vld [vmem:[%s169 + $0xf8] sm:$0xff]
      %v210 = vld [vmem:[%s169 + $0x100] sm:$0xff]
      %v211 = vld [vmem:[%s169 + $0x108] sm:$0xff]
      %v212 = vld [vmem:[%s169 + $0x110] sm:$0xff]
      %v213 = vld [vmem:[%s169 + $0x118] sm:$0xff]
      %v214 = vld [vmem:[%s169 + $0x120] sm:$0xff]
      %v215 = vld [vmem:[%s169 + $0x128] sm:$0xff]
      %v216 = vld [vmem:[%s169 + $0x130] sm:$0xff]
      %v217 = vld [vmem:[%s169 + $0x138] sm:$0xff]
      %v218 = vld [vmem:[%s169 + $0x140] sm:$0xff]
      %v219 = vld [vmem:[%s169 + $0x148] sm:$0xff]
      %v220 = vld [vmem:[%s169 + $0x150] sm:$0xff]
      %v221 = vld [vmem:[%s169 + $0x158] sm:$0xff]
      %v222 = vld [vmem:[%s169 + $0x160] sm:$0xff]
      %v223 = vld [vmem:[%s169 + $0x168] sm:$0xff]
      %v224 = vld [vmem:[%s169 + $0x170] sm:$0xff]
      %v225 = vld [vmem:[%s169 + $0x178] sm:$0xff]
      %v226 = vld [vmem:[%s169 + $0x180] sm:$0xff]
      %v227 = vld [vmem:[%s169 + $0x188] sm:$0xff]
      %v228 = vld [vmem:[%s169 + $0x190] sm:$0xff]
      %v229 = vld [vmem:[%s169 + $0x198] sm:$0xff]
      %v230 = vld [vmem:[%s169 + $0x1a0] sm:$0xff]
      %v231 = vld [vmem:[%s169 + $0x1a8] sm:$0xff]
      %v232 = vld [vmem:[%s169 + $0x1b0] sm:$0xff]
      %v233 = vld [vmem:[%s169 + $0x1b8] sm:$0xff]
      %v234 = vld [vmem:[%s169 + $0x1c0] sm:$0xff]
      %v235 = vld [vmem:[%s169 + $0x1c8] sm:$0xff]
      %v236 = vld [vmem:[%s169 + $0x1d0] sm:$0xff]
      %v237 = vld [vmem:[%s169 + $0x1d8] sm:$0xff]
      %v238 = vld [vmem:[%s169 + $0x1e0] sm:$0xff]
      %v239 = vld [vmem:[%s169 + $0x1e8] sm:$0xff]
      %v240 = vld [vmem:[%s169 + $0x1f0] sm:$0xff]
      %v241 = vld [vmem:[%s169 + $0x1f8] sm:$0xff]
      %v242 = vld [vmem:[%s169 + $0x200] sm:$0xff]
      %v243 = vld [vmem:[%s169 + $0x208] sm:$0xff]
      %v244 = vld [vmem:[%s169 + $0x210] sm:$0xff]
      %v245 = vld [vmem:[%s169 + $0x218] sm:$0xff]
      %v246 = vld [vmem:[%s169 + $0x220] sm:$0xff]
      %v247 = vld [vmem:[%s169 + $0x228] sm:$0xff]
      %v248 = vld [vmem:[%s169 + $0x230] sm:$0xff]
      %v249 = vld [vmem:[%s169 + $0x238] sm:$0xff]
      %v250 = vld [vmem:[%s1] sm:$0xf]
      %v251 = vld [vmem:[%s1 + $0x4] sm:$0xf]
      %v252 = vld [vmem:[%s1 + $0x8] sm:$0xf]
      %v253 = vld [vmem:[%s1 + $0xc] sm:$0xf]
      %v254 = vld [vmem:[%s1 + $0x10] sm:$0xf]
      %v255 = vld [vmem:[%s1 + $0x14] sm:$0xf]
      %v256 = vld [vmem:[%s1 + $0x18] sm:$0xf]
      %v257 = vld [vmem:[%s1 + $0x1c] sm:$0xf]
      %v258 = vld [vmem:[%s1 + $0x20] sm:$0xf]
      %v259 = vld [vmem:[%s1 + $0x24] sm:$0xf]
      %v260 = vld [vmem:[%s1 + $0x28] sm:$0xf]
      %v261 = vld [vmem:[%s1 + $0x2c] sm:$0xf]
      %v262 = vld [vmem:[%s1 + $0x30] sm:$0xf]
      %v263 = vld [vmem:[%s1 + $0x34] sm:$0xf]
      %v264 = vld [vmem:[%s1 + $0x38] sm:$0xf]
      %v265 = vld [vmem:[%s1 + $0x3c] sm:$0xf]
      %v266 = vld [vmem:[%s1 + $0x40] sm:$0xf]
      %v267 = vld [vmem:[%s1 + $0x44] sm:$0xf]
      %v268 = vld [vmem:[%s1 + $0x48] sm:$0xf]
      %v269 = vld [vmem:[%s1 + $0x4c] sm:$0xf]
      %v270 = vld [vmem:[%s2] sm:$0x1]
      %v272 = vperm.slane %v270, 0
      %v346 = vunpack.c.l.b16 %v178
      %v347 = vunpack.c.h.b16 %v178
      %v348 = vunpack.c.l.b16 %v179
      %v349 = vunpack.c.h.b16 %v179
      %v350 = vunpack.c.l.b16 %v180
      %v351 = vunpack.c.h.b16 %v180
      %v352 = vunpack.c.l.b16 %v181
      %v353 = vunpack.c.h.b16 %v181
      %v354 = vunpack.c.l.b16 %v182
      %v355 = vunpack.c.h.b16 %v182
      %v356 = vunpack.c.l.b16 %v183
      %v357 = vunpack.c.h.b16 %v183
      %v358 = vunpack.c.l.b16 %v184
      %v359 = vunpack.c.h.b16 %v184
      %v360 = vunpack.c.l.b16 %v185
      %v361 = vunpack.c.h.b16 %v185
      %v362 = vunpack.c.l.b16 %v186
      %v363 = vunpack.c.h.b16 %v186
      %v364 = vunpack.c.l.b16 %v187
      %v365 = vunpack.c.h.b16 %v187
      %v366 = vunpack.c.l.b16 %v188
      %v367 = vunpack.c.h.b16 %v188
      %v368 = vunpack.c.l.b16 %v189
      %v369 = vunpack.c.h.b16 %v189
      %v370 = vunpack.c.l.b16 %v190
      %v371 = vunpack.c.h.b16 %v190
      %v372 = vunpack.c.l.b16 %v191
      %v373 = vunpack.c.h.b16 %v191
      %v374 = vunpack.c.l.b16 %v192
      %v375 = vunpack.c.h.b16 %v192
      %v376 = vunpack.c.l.b16 %v193
      %v377 = vunpack.c.h.b16 %v193
      %v378 = vunpack.c.l.b16 %v194
      %v379 = vunpack.c.h.b16 %v194
      %v380 = vunpack.c.l.b16 %v195
      %v381 = vunpack.c.h.b16 %v195
      %v382 = vunpack.c.l.b16 %v196
      %v383 = vunpack.c.h.b16 %v196
      %v384 = vunpack.c.l.b16 %v197
      %v385 = vunpack.c.h.b16 %v197
      %v386 = vunpack.c.l.b16 %v198
      %v387 = vunpack.c.h.b16 %v198
      %v388 = vunpack.c.l.b16 %v199
      %v389 = vunpack.c.h.b16 %v199
      %v390 = vunpack.c.l.b16 %v200
      %v391 = vunpack.c.h.b16 %v200
      %v392 = vunpack.c.l.b16 %v201
      %v393 = vunpack.c.h.b16 %v201
      %v394 = vunpack.c.l.b16 %v202
      %v395 = vunpack.c.h.b16 %v202
      %v396 = vunpack.c.l.b16 %v203
      %v397 = vunpack.c.h.b16 %v203
      %v398 = vunpack.c.l.b16 %v204
      %v399 = vunpack.c.h.b16 %v204
      %v400 = vunpack.c.l.b16 %v205
      %v401 = vunpack.c.h.b16 %v205
      %v402 = vunpack.c.l.b16 %v206
      %v403 = vunpack.c.h.b16 %v206
      %v404 = vunpack.c.l.b16 %v207
      %v405 = vunpack.c.h.b16 %v207
      %v406 = vunpack.c.l.b16 %v208
      %v407 = vunpack.c.h.b16 %v208
      %v408 = vunpack.c.l.b16 %v209
      %v409 = vunpack.c.h.b16 %v209
      %v410 = vunpack.c.l.b16 %v210
      %v411 = vunpack.c.h.b16 %v210
      %v412 = vunpack.c.l.b16 %v211
      %v413 = vunpack.c.h.b16 %v211
      %v414 = vunpack.c.l.b16 %v212
      %v415 = vunpack.c.h.b16 %v212
      %v416 = vunpack.c.l.b16 %v213
      %v417 = vunpack.c.h.b16 %v213
      %v418 = vunpack.c.l.b16 %v214
      %v419 = vunpack.c.h.b16 %v214
      %v420 = vunpack.c.l.b16 %v215
      %v421 = vunpack.c.h.b16 %v215
      %v422 = vunpack.c.l.b16 %v216
      %v423 = vunpack.c.h.b16 %v216
      %v424 = vunpack.c.l.b16 %v217
      %v425 = vunpack.c.h.b16 %v217
      %v426 = vunpack.c.l.b16 %v218
      %v427 = vunpack.c.h.b16 %v218
      %v428 = vunpack.c.l.b16 %v219
      %v429 = vunpack.c.h.b16 %v219
      %v430 = vunpack.c.l.b16 %v220
      %v431 = vunpack.c.h.b16 %v220
      %v432 = vunpack.c.l.b16 %v221
      %v433 = vunpack.c.h.b16 %v221
      %v434 = vunpack.c.l.b16 %v222
      %v435 = vunpack.c.h.b16 %v222
      %v436 = vunpack.c.l.b16 %v223
      %v437 = vunpack.c.h.b16 %v223
      %v438 = vunpack.c.l.b16 %v224
      %v439 = vunpack.c.h.b16 %v224
      %v440 = vunpack.c.l.b16 %v225
      %v441 = vunpack.c.h.b16 %v225
      %v442 = vunpack.c.l.b16 %v226
      %v443 = vunpack.c.h.b16 %v226
      %v444 = vunpack.c.l.b16 %v227
      %v445 = vunpack.c.h.b16 %v227
      %v446 = vunpack.c.l.b16 %v228
      %v447 = vunpack.c.h.b16 %v228
      %v448 = vunpack.c.l.b16 %v229
      %v449 = vunpack.c.h.b16 %v229
      %v450 = vunpack.c.l.b16 %v230
      %v451 = vunpack.c.h.b16 %v230
      %v452 = vunpack.c.l.b16 %v231
      %v453 = vunpack.c.h.b16 %v231
      %v454 = vunpack.c.l.b16 %v232
      %v455 = vunpack.c.h.b16 %v232
      %v456 = vunpack.c.l.b16 %v233
      %v457 = vunpack.c.h.b16 %v233
      %v458 = vunpack.c.l.b16 %v234
      %v459 = vunpack.c.h.b16 %v234
      %v460 = vunpack.c.l.b16 %v235
      %v461 = vunpack.c.h.b16 %v235
      %v462 = vunpack.c.l.b16 %v236
      %v463 = vunpack.c.h.b16 %v236
      %v464 = vunpack.c.l.b16 %v237
      %v465 = vunpack.c.h.b16 %v237
      %v466 = vunpack.c.l.b16 %v238
      %v467 = vunpack.c.h.b16 %v238
      %v468 = vunpack.c.l.b16 %v239
      %v469 = vunpack.c.h.b16 %v239
      %v470 = vunpack.c.l.b16 %v240
      %v471 = vunpack.c.h.b16 %v240
      %v472 = vunpack.c.l.b16 %v241
      %v473 = vunpack.c.h.b16 %v241
      %v474 = vunpack.c.l.b16 %v242
      %v475 = vunpack.c.h.b16 %v242
      %v476 = vunpack.c.l.b16 %v243
      %v477 = vunpack.c.h.b16 %v243
      %v478 = vunpack.c.l.b16 %v244
      %v479 = vunpack.c.h.b16 %v244
      %v480 = vunpack.c.l.b16 %v245
      %v481 = vunpack.c.h.b16 %v245
      %v482 = vunpack.c.l.b16 %v246
      %v483 = vunpack.c.h.b16 %v246
      %v484 = vunpack.c.l.b16 %v247
      %v485 = vunpack.c.h.b16 %v247
      %v486 = vunpack.c.l.b16 %v248
      %v487 = vunpack.c.h.b16 %v248
      %v488 = vunpack.c.l.b16 %v249
      %v489 = vunpack.c.h.b16 %v249
      %v490 = vpack.c.b16 %v348, %v346
      %v491 = vpack.c.b16 %v349, %v347
      %v492 = vpack.c.b16 %v352, %v350
      %v493 = vpack.c.b16 %v353, %v351
      %v494 = vpack.c.b16 %v356, %v354
      %v495 = vpack.c.b16 %v357, %v355
      %v496 = vpack.c.b16 %v360, %v358
      %v497 = vpack.c.b16 %v361, %v359
      %v498 = vpack.c.b16 %v364, %v362
      %v499 = vpack.c.b16 %v365, %v363
      %v500 = vpack.c.b16 %v368, %v366
      %v501 = vpack.c.b16 %v369, %v367
      %v502 = vpack.c.b16 %v372, %v370
      %v503 = vpack.c.b16 %v373, %v371
      %v504 = vpack.c.b16 %v376, %v374
      %v505 = vpack.c.b16 %v377, %v375
      %v506 = vpack.c.b16 %v380, %v378
      %v507 = vpack.c.b16 %v381, %v379
      %v508 = vpack.c.b16 %v384, %v382
      %v509 = vpack.c.b16 %v385, %v383
      %v510 = vpack.c.b16 %v388, %v386
      %v511 = vpack.c.b16 %v389, %v387
      %v512 = vpack.c.b16 %v392, %v390
      %v513 = vpack.c.b16 %v393, %v391
      %v514 = vpack.c.b16 %v396, %v394
      %v515 = vpack.c.b16 %v397, %v395
      %v516 = vpack.c.b16 %v400, %v398
      %v517 = vpack.c.b16 %v401, %v399
      %v518 = vpack.c.b16 %v404, %v402
      %v519 = vpack.c.b16 %v405, %v403
      %v520 = vpack.c.b16 %v408, %v406
      %v521 = vpack.c.b16 %v409, %v407
      %v522 = vpack.c.b16 %v412, %v410
      %v523 = vpack.c.b16 %v413, %v411
      %v524 = vpack.c.b16 %v416, %v414
      %v525 = vpack.c.b16 %v417, %v415
      %v526 = vpack.c.b16 %v420, %v418
      %v527 = vpack.c.b16 %v421, %v419
      %v528 = vpack.c.b16 %v424, %v422
      %v529 = vpack.c.b16 %v425, %v423
      %v530 = vpack.c.b16 %v428, %v426
      %v531 = vpack.c.b16 %v429, %v427
      %v532 = vpack.c.b16 %v432, %v430
      %v533 = vpack.c.b16 %v433, %v431
      %v534 = vpack.c.b16 %v436, %v434
      %v535 = vpack.c.b16 %v437, %v435
      %v536 = vpack.c.b16 %v440, %v438
      %v537 = vpack.c.b16 %v441, %v439
      %v538 = vpack.c.b16 %v444, %v442
      %v539 = vpack.c.b16 %v445, %v443
      %v540 = vpack.c.b16 %v448, %v446
      %v541 = vpack.c.b16 %v449, %v447
      %v542 = vpack.c.b16 %v452, %v450
      %v543 = vpack.c.b16 %v453, %v451
      %v544 = vpack.c.b16 %v456, %v454
      %v545 = vpack.c.b16 %v457, %v455
      %v546 = vpack.c.b16 %v460, %v458
      %v547 = vpack.c.b16 %v461, %v459
      %v548 = vpack.c.b16 %v464, %v462
      %v549 = vpack.c.b16 %v465, %v463
      %v550 = vpack.c.b16 %v468, %v466
      %v551 = vpack.c.b16 %v469, %v467
      %v552 = vpack.c.b16 %v472, %v470
      %v553 = vpack.c.b16 %v473, %v471
      %v554 = vpack.c.b16 %v476, %v474
      %v555 = vpack.c.b16 %v477, %v475
      %v556 = vpack.c.b16 %v480, %v478
      %v557 = vpack.c.b16 %v481, %v479
      %v558 = vpack.c.b16 %v484, %v482
      %v559 = vpack.c.b16 %v485, %v483
      %v560 = vpack.c.b16 %v488, %v486
      %v561 = vpack.c.b16 %v489, %v487
      %v618 = vunpack.c.l.b16 %v250
      %v619 = vunpack.c.l.b16 %v251
      %v620 = vunpack.c.l.b16 %v252
      %v621 = vunpack.c.l.b16 %v253
      %v622 = vunpack.c.l.b16 %v254
      %v623 = vunpack.c.l.b16 %v255
      %v624 = vunpack.c.l.b16 %v256
      %v625 = vunpack.c.l.b16 %v257
      %v626 = vunpack.c.l.b16 %v258
      %v627 = vunpack.c.l.b16 %v259
      %v628 = vunpack.c.l.b16 %v260
      %v629 = vunpack.c.l.b16 %v261
      %v630 = vunpack.c.l.b16 %v262
      %v631 = vunpack.c.l.b16 %v263
      %v632 = vunpack.c.l.b16 %v264
      %v633 = vunpack.c.l.b16 %v265
      %v634 = vunpack.c.l.b16 %v266
      %v635 = vunpack.c.l.b16 %v267
      %v636 = vunpack.c.l.b16 %v268
      %v637 = vunpack.c.l.b16 %v269
      %v638 = vpack.c.b16 %v619, %v618
      %v639 = vpack.c.b16 %v621, %v620
      %v640 = vpack.c.b16 %v623, %v622
      %v641 = vpack.c.b16 %v625, %v624
      %v642 = vpack.c.b16 %v627, %v626
      %v643 = vpack.c.b16 %v629, %v628
      %v644 = vpack.c.b16 %v631, %v630
      %v645 = vpack.c.b16 %v633, %v632
      %v646 = vpack.c.b16 %v635, %v634
      %v647 = vpack.c.b16 %v637, %v636
      %vm658 = vcmask 261120
      %v660 = vsel %vm658, %v491, 0
      %v663 = vsel %vm658, %v493, 0
      %v666 = vsel %vm658, %v495, 0
      %v669 = vsel %vm658, %v497, 0
      %v672 = vsel %vm658, %v499, 0
      %v675 = vsel %vm658, %v501, 0
      %v678 = vsel %vm658, %v503, 0
      %v681 = vsel %vm658, %v505, 0
      %v684 = vsel %vm658, %v507, 0
      %v687 = vsel %vm658, %v509, 0
      %v690 = vsel %vm658, %v511, 0
      %v693 = vsel %vm658, %v513, 0
      %v696 = vsel %vm658, %v515, 0
      %v699 = vsel %vm658, %v517, 0
      %v702 = vsel %vm658, %v519, 0
      %v705 = vsel %vm658, %v521, 0
      %v708 = vsel %vm658, %v523, 0
      %v711 = vsel %vm658, %v525, 0
      %v714 = vsel %vm658, %v527, 0
      %v717 = vsel %vm658, %v529, 0
      %v720 = vsel %vm658, %v531, 0
      %v723 = vsel %vm658, %v533, 0
      %v726 = vsel %vm658, %v535, 0
      %v729 = vsel %vm658, %v537, 0
      %v732 = vsel %vm658, %v539, 0
      %v735 = vsel %vm658, %v541, 0
      %v738 = vsel %vm658, %v543, 0
      %v741 = vsel %vm658, %v545, 0
      %v744 = vsel %vm658, %v547, 0
      %v747 = vsel %vm658, %v549, 0
      %v750 = vsel %vm658, %v551, 0
      %v753 = vsel %vm658, %v553, 0
      %v756 = vsel %vm658, %v555, 0
      %v759 = vsel %vm658, %v557, 0
      %v762 = vsel %vm658, %v559, 0
      %v765 = vsel %vm658, %v561, 0
      %767 = vmatpush.bf16.msra.mxu0 %v645
      %768 = vmatpush.bf16.msra.mxu0 %v644
      %769 = vmatpush.bf16.msra.mxu0 %v643
      %770 = vmatpush.bf16.msra.mxu0 %v642
      %771 = vmatpush.bf16.msra.mxu0 %v641
      %772 = vmatpush.bf16.msra.mxu0 %v640
      %773 = vmatpush.bf16.msra.mxu0 %v639
      %774 = vmatpush.bf16.msra.mxu0 %v638
      %775 = vmatmul.bf16.gmra.mxu0 %v490
      %v776 = vpop.f32.mrf.mxu0
      %v777 = vadd.f32 %v272, %v776
      %v778 = vpop.f32.mrf.mxu0
      %v779 = vadd.f32 %v272, %v778
      %780 = vmatmul.bf16.gmra.mxu0 %v492
      %v781 = vpop.f32.mrf.mxu0
      %v782 = vadd.f32 %v272, %v781
      %v783 = vpop.f32.mrf.mxu0
      %v784 = vadd.f32 %v272, %v783
      %785 = vmatmul.bf16.gmra.mxu0 %v494
      %v786 = vpop.f32.mrf.mxu0
      %v787 = vadd.f32 %v272, %v786
      %v788 = vpop.f32.mrf.mxu0
      %v789 = vadd.f32 %v272, %v788
      %790 = vmatmul.bf16.gmra.mxu0 %v496
      %v791 = vpop.f32.mrf.mxu0
      %v792 = vadd.f32 %v272, %v791
      %v793 = vpop.f32.mrf.mxu0
      %v794 = vadd.f32 %v272, %v793
      %795 = vmatmul.bf16.gmra.mxu0 %v498
      %v796 = vpop.f32.mrf.mxu0
      %v797 = vadd.f32 %v272, %v796
      %v798 = vpop.f32.mrf.mxu0
      %v799 = vadd.f32 %v272, %v798
      %800 = vmatmul.bf16.gmra.mxu0 %v500
      %v801 = vpop.f32.mrf.mxu0
      %v802 = vadd.f32 %v272, %v801
      %v803 = vpop.f32.mrf.mxu0
      %v804 = vadd.f32 %v272, %v803
      %805 = vmatmul.bf16.gmra.mxu0 %v502
      %v806 = vpop.f32.mrf.mxu0
      %v807 = vadd.f32 %v272, %v806
      %v808 = vpop.f32.mrf.mxu0
      %v809 = vadd.f32 %v272, %v808
      %810 = vmatmul.bf16.gmra.mxu0 %v504
      %v811 = vpop.f32.mrf.mxu0
      %v812 = vadd.f32 %v272, %v811
      %v813 = vpop.f32.mrf.mxu0
      %v814 = vadd.f32 %v272, %v813
      %815 = vmatmul.bf16.gmra.mxu0 %v506
      %v816 = vpop.f32.mrf.mxu0
      %v817 = vadd.f32 %v272, %v816
      %v818 = vpop.f32.mrf.mxu0
      %v819 = vadd.f32 %v272, %v818
      %820 = vmatmul.bf16.gmra.mxu0 %v508
      %v821 = vpop.f32.mrf.mxu0
      %v822 = vadd.f32 %v272, %v821
      %v823 = vpop.f32.mrf.mxu0
      %v824 = vadd.f32 %v272, %v823
      %825 = vmatmul.bf16.gmra.mxu0 %v510
      %v826 = vpop.f32.mrf.mxu0
      %v827 = vadd.f32 %v272, %v826
      %v828 = vpop.f32.mrf.mxu0
      %v829 = vadd.f32 %v272, %v828
      %830 = vmatmul.bf16.gmra.mxu0 %v512
      %v831 = vpop.f32.mrf.mxu0
      %v832 = vadd.f32 %v272, %v831
      %v833 = vpop.f32.mrf.mxu0
      %v834 = vadd.f32 %v272, %v833
      %835 = vmatmul.bf16.gmra.mxu0 %v514
      %v836 = vpop.f32.mrf.mxu0
      %v837 = vadd.f32 %v272, %v836
      %v838 = vpop.f32.mrf.mxu0
      %v839 = vadd.f32 %v272, %v838
      %840 = vmatmul.bf16.gmra.mxu0 %v516
      %v841 = vpop.f32.mrf.mxu0
      %v842 = vadd.f32 %v272, %v841
      %v843 = vpop.f32.mrf.mxu0
      %v844 = vadd.f32 %v272, %v843
      %845 = vmatmul.bf16.gmra.mxu0 %v518
      %v846 = vpop.f32.mrf.mxu0
      %v847 = vadd.f32 %v272, %v846
      %v848 = vpop.f32.mrf.mxu0
      %v849 = vadd.f32 %v272, %v848
      %850 = vmatmul.bf16.gmra.mxu0 %v520
      %v851 = vpop.f32.mrf.mxu0
      %v852 = vadd.f32 %v272, %v851
      %v853 = vpop.f32.mrf.mxu0
      %v854 = vadd.f32 %v272, %v853
      %855 = vmatmul.bf16.gmra.mxu0 %v522
      %v856 = vpop.f32.mrf.mxu0
      %v857 = vadd.f32 %v272, %v856
      %v858 = vpop.f32.mrf.mxu0
      %v859 = vadd.f32 %v272, %v858
      %860 = vmatmul.bf16.gmra.mxu0 %v524
      %v861 = vpop.f32.mrf.mxu0
      %v862 = vadd.f32 %v272, %v861
      %v863 = vpop.f32.mrf.mxu0
      %v864 = vadd.f32 %v272, %v863
      %865 = vmatmul.bf16.gmra.mxu0 %v526
      %v866 = vpop.f32.mrf.mxu0
      %v867 = vadd.f32 %v272, %v866
      %v868 = vpop.f32.mrf.mxu0
      %v869 = vadd.f32 %v272, %v868
      %870 = vmatmul.bf16.gmra.mxu0 %v528
      %v871 = vpop.f32.mrf.mxu0
      %v872 = vadd.f32 %v272, %v871
      %v873 = vpop.f32.mrf.mxu0
      %v874 = vadd.f32 %v272, %v873
      %875 = vmatmul.bf16.gmra.mxu0 %v530
      %v876 = vpop.f32.mrf.mxu0
      %v877 = vadd.f32 %v272, %v876
      %v878 = vpop.f32.mrf.mxu0
      %v879 = vadd.f32 %v272, %v878
      %880 = vmatmul.bf16.gmra.mxu0 %v532
      %v881 = vpop.f32.mrf.mxu0
      %v882 = vadd.f32 %v272, %v881
      %v883 = vpop.f32.mrf.mxu0
      %v884 = vadd.f32 %v272, %v883
      %885 = vmatmul.bf16.gmra.mxu0 %v534
      %v886 = vpop.f32.mrf.mxu0
      %v887 = vadd.f32 %v272, %v886
      %v888 = vpop.f32.mrf.mxu0
      %v889 = vadd.f32 %v272, %v888
      %890 = vmatmul.bf16.gmra.mxu0 %v536
      %v891 = vpop.f32.mrf.mxu0
      %v892 = vadd.f32 %v272, %v891
      %v893 = vpop.f32.mrf.mxu0
      %v894 = vadd.f32 %v272, %v893
      %895 = vmatmul.bf16.gmra.mxu0 %v538
      %v896 = vpop.f32.mrf.mxu0
      %v897 = vadd.f32 %v272, %v896
      %v898 = vpop.f32.mrf.mxu0
      %v899 = vadd.f32 %v272, %v898
      %900 = vmatmul.bf16.gmra.mxu0 %v540
      %v901 = vpop.f32.mrf.mxu0
      %v902 = vadd.f32 %v272, %v901
      %v903 = vpop.f32.mrf.mxu0
      %v904 = vadd.f32 %v272, %v903
      %905 = vmatmul.bf16.gmra.mxu0 %v542
      %v906 = vpop.f32.mrf.mxu0
      %v907 = vadd.f32 %v272, %v906
      %v908 = vpop.f32.mrf.mxu0
      %v909 = vadd.f32 %v272, %v908
      %910 = vmatmul.bf16.gmra.mxu0 %v544
      %v911 = vpop.f32.mrf.mxu0
      %v912 = vadd.f32 %v272, %v911
      %v913 = vpop.f32.mrf.mxu0
      %v914 = vadd.f32 %v272, %v913
      %915 = vmatmul.bf16.gmra.mxu0 %v546
      %v916 = vpop.f32.mrf.mxu0
      %v917 = vadd.f32 %v272, %v916
      %v918 = vpop.f32.mrf.mxu0
      %v919 = vadd.f32 %v272, %v918
      %920 = vmatmul.bf16.gmra.mxu0 %v548
      %v921 = vpop.f32.mrf.mxu0
      %v922 = vadd.f32 %v272, %v921
      %v923 = vpop.f32.mrf.mxu0
      %v924 = vadd.f32 %v272, %v923
      %925 = vmatmul.bf16.gmra.mxu0 %v550
      %v926 = vpop.f32.mrf.mxu0
      %v927 = vadd.f32 %v272, %v926
      %v928 = vpop.f32.mrf.mxu0
      %v929 = vadd.f32 %v272, %v928
      %930 = vmatmul.bf16.gmra.mxu0 %v552
      %v931 = vpop.f32.mrf.mxu0
      %v932 = vadd.f32 %v272, %v931
      %v933 = vpop.f32.mrf.mxu0
      %v934 = vadd.f32 %v272, %v933
      %935 = vmatmul.bf16.gmra.mxu0 %v554
      %v936 = vpop.f32.mrf.mxu0
      %v937 = vadd.f32 %v272, %v936
      %v938 = vpop.f32.mrf.mxu0
      %v939 = vadd.f32 %v272, %v938
      %940 = vmatmul.bf16.gmra.mxu0 %v556
      %v941 = vpop.f32.mrf.mxu0
      %v942 = vadd.f32 %v272, %v941
      %v943 = vpop.f32.mrf.mxu0
      %v944 = vadd.f32 %v272, %v943
      %945 = vmatmul.bf16.gmra.mxu0 %v558
      %v946 = vpop.f32.mrf.mxu0
      %v947 = vadd.f32 %v272, %v946
      %v948 = vpop.f32.mrf.mxu0
      %v949 = vadd.f32 %v272, %v948
      %950 = vmatmul.bf16.gmra.mxu0 %v560
      %v951 = vpop.f32.mrf.mxu0
      %v952 = vadd.f32 %v272, %v951
      %v953 = vpop.f32.mrf.mxu0
      %v954 = vadd.f32 %v272, %v953
      %955 = vdwg.mxu0
      %956 = vmatpush.bf16.msra.mxu0 0
      %957 = vmatpush.bf16.msra.mxu0 0
      %958 = vmatpush.bf16.msra.mxu0 0
      %959 = vmatpush.bf16.msra.mxu0 0
      %960 = vmatpush.bf16.msra.mxu0 0
      %961 = vmatpush.bf16.msra.mxu0 0
      %962 = vmatpush.bf16.msra.mxu0 %v647
      %963 = vmatpush.bf16.msra.mxu0 %v646
      %964 = vmatmul.bf16.gmra.mxu0 %v660
      %v965 = vpop.f32.mrf.mxu0
      %v966 = vadd.f32 %v777, %v965
      %v967 = vpop.f32.mrf.mxu0
      %v968 = vadd.f32 %v779, %v967
      %969 = vmatmul.bf16.gmra.mxu0 %v663
      %v970 = vpop.f32.mrf.mxu0
      %v971 = vadd.f32 %v782, %v970
      %v972 = vpop.f32.mrf.mxu0
      %v973 = vadd.f32 %v784, %v972
      %974 = vmatmul.bf16.gmra.mxu0 %v666
      %v975 = vpop.f32.mrf.mxu0
      %v976 = vadd.f32 %v787, %v975
      %v977 = vpop.f32.mrf.mxu0
      %v978 = vadd.f32 %v789, %v977
      %979 = vmatmul.bf16.gmra.mxu0 %v669
      %v980 = vpop.f32.mrf.mxu0
      %v981 = vadd.f32 %v792, %v980
      %v982 = vpop.f32.mrf.mxu0
      %v983 = vadd.f32 %v794, %v982
      %984 = vmatmul.bf16.gmra.mxu0 %v672
      %v985 = vpop.f32.mrf.mxu0
      %v986 = vadd.f32 %v797, %v985
      %v987 = vpop.f32.mrf.mxu0
      %v988 = vadd.f32 %v799, %v987
      %989 = vmatmul.bf16.gmra.mxu0 %v675
      %v990 = vpop.f32.mrf.mxu0
      %v991 = vadd.f32 %v802, %v990
      %v992 = vpop.f32.mrf.mxu0
      %v993 = vadd.f32 %v804, %v992
      %994 = vmatmul.bf16.gmra.mxu0 %v678
      %v995 = vpop.f32.mrf.mxu0
      %v996 = vadd.f32 %v807, %v995
      %v997 = vpop.f32.mrf.mxu0
      %v998 = vadd.f32 %v809, %v997
      %999 = vmatmul.bf16.gmra.mxu0 %v681
      %v1000 = vpop.f32.mrf.mxu0
      %v1001 = vadd.f32 %v812, %v1000
      %v1002 = vpop.f32.mrf.mxu0
      %v1003 = vadd.f32 %v814, %v1002
      %1004 = vmatmul.bf16.gmra.mxu0 %v684
      %v1005 = vpop.f32.mrf.mxu0
      %v1006 = vadd.f32 %v817, %v1005
      %v1007 = vpop.f32.mrf.mxu0
      %v1008 = vadd.f32 %v819, %v1007
      %1009 = vmatmul.bf16.gmra.mxu0 %v687
      %v1010 = vpop.f32.mrf.mxu0
      %v1011 = vadd.f32 %v822, %v1010
      %v1012 = vpop.f32.mrf.mxu0
      %v1013 = vadd.f32 %v824, %v1012
      %1014 = vmatmul.bf16.gmra.mxu0 %v690
      %v1015 = vpop.f32.mrf.mxu0
      %v1016 = vadd.f32 %v827, %v1015
      %v1017 = vpop.f32.mrf.mxu0
      %v1018 = vadd.f32 %v829, %v1017
      %1019 = vmatmul.bf16.gmra.mxu0 %v693
      %v1020 = vpop.f32.mrf.mxu0
      %v1021 = vadd.f32 %v832, %v1020
      %v1022 = vpop.f32.mrf.mxu0
      %v1023 = vadd.f32 %v834, %v1022
      %1024 = vmatmul.bf16.gmra.mxu0 %v696
      %v1025 = vpop.f32.mrf.mxu0
      %v1026 = vadd.f32 %v837, %v1025
      %v1027 = vpop.f32.mrf.mxu0
      %v1028 = vadd.f32 %v839, %v1027
      %1029 = vmatmul.bf16.gmra.mxu0 %v699
      %v1030 = vpop.f32.mrf.mxu0
      %v1031 = vadd.f32 %v842, %v1030
      %v1032 = vpop.f32.mrf.mxu0
      %v1033 = vadd.f32 %v844, %v1032
      %1034 = vmatmul.bf16.gmra.mxu0 %v702
      %v1035 = vpop.f32.mrf.mxu0
      %v1036 = vadd.f32 %v847, %v1035
      %v1037 = vpop.f32.mrf.mxu0
      %v1038 = vadd.f32 %v849, %v1037
      %1039 = vmatmul.bf16.gmra.mxu0 %v705
      %v1040 = vpop.f32.mrf.mxu0
      %v1041 = vadd.f32 %v852, %v1040
      %v1042 = vpop.f32.mrf.mxu0
      %v1043 = vadd.f32 %v854, %v1042
      %1044 = vmatmul.bf16.gmra.mxu0 %v708
      %v1045 = vpop.f32.mrf.mxu0
      %v1046 = vadd.f32 %v857, %v1045
      %v1047 = vpop.f32.mrf.mxu0
      %v1048 = vadd.f32 %v859, %v1047
      %1049 = vmatmul.bf16.gmra.mxu0 %v711
      %v1050 = vpop.f32.mrf.mxu0
      %v1051 = vadd.f32 %v862, %v1050
      %v1052 = vpop.f32.mrf.mxu0
      %v1053 = vadd.f32 %v864, %v1052
      %1054 = vmatmul.bf16.gmra.mxu0 %v714
      %v1055 = vpop.f32.mrf.mxu0
      %v1056 = vadd.f32 %v867, %v1055
      %v1057 = vpop.f32.mrf.mxu0
      %v1058 = vadd.f32 %v869, %v1057
      %1059 = vmatmul.bf16.gmra.mxu0 %v717
      %v1060 = vpop.f32.mrf.mxu0
      %v1061 = vadd.f32 %v872, %v1060
      %v1062 = vpop.f32.mrf.mxu0
      %v1063 = vadd.f32 %v874, %v1062
      %1064 = vmatmul.bf16.gmra.mxu0 %v720
      %v1065 = vpop.f32.mrf.mxu0
      %v1066 = vadd.f32 %v877, %v1065
      %v1067 = vpop.f32.mrf.mxu0
      %v1068 = vadd.f32 %v879, %v1067
      %1069 = vmatmul.bf16.gmra.mxu0 %v723
      %v1070 = vpop.f32.mrf.mxu0
      %v1071 = vadd.f32 %v882, %v1070
      %v1072 = vpop.f32.mrf.mxu0
      %v1073 = vadd.f32 %v884, %v1072
      %1074 = vmatmul.bf16.gmra.mxu0 %v726
      %v1075 = vpop.f32.mrf.mxu0
      %v1076 = vadd.f32 %v887, %v1075
      %v1077 = vpop.f32.mrf.mxu0
      %v1078 = vadd.f32 %v889, %v1077
      %1079 = vmatmul.bf16.gmra.mxu0 %v729
      %v1080 = vpop.f32.mrf.mxu0
      %v1081 = vadd.f32 %v892, %v1080
      %v1082 = vpop.f32.mrf.mxu0
      %v1083 = vadd.f32 %v894, %v1082
      %1084 = vmatmul.bf16.gmra.mxu0 %v732
      %v1085 = vpop.f32.mrf.mxu0
      %v1086 = vadd.f32 %v897, %v1085
      %v1087 = vpop.f32.mrf.mxu0
      %v1088 = vadd.f32 %v899, %v1087
      %1089 = vmatmul.bf16.gmra.mxu0 %v735
      %v1090 = vpop.f32.mrf.mxu0
      %v1091 = vadd.f32 %v902, %v1090
      %v1092 = vpop.f32.mrf.mxu0
      %v1093 = vadd.f32 %v904, %v1092
      %1094 = vmatmul.bf16.gmra.mxu0 %v738
      %v1095 = vpop.f32.mrf.mxu0
      %v1096 = vadd.f32 %v907, %v1095
      %v1097 = vpop.f32.mrf.mxu0
      %v1098 = vadd.f32 %v909, %v1097
      %1099 = vmatmul.bf16.gmra.mxu0 %v741
      %v1100 = vpop.f32.mrf.mxu0
      %v1101 = vadd.f32 %v912, %v1100
      %v1102 = vpop.f32.mrf.mxu0
      %v1103 = vadd.f32 %v914, %v1102
      %1104 = vmatmul.bf16.gmra.mxu0 %v744
      %v1105 = vpop.f32.mrf.mxu0
      %v1106 = vadd.f32 %v917, %v1105
      %v1107 = vpop.f32.mrf.mxu0
      %v1108 = vadd.f32 %v919, %v1107
      %1109 = vmatmul.bf16.gmra.mxu0 %v747
      %v1110 = vpop.f32.mrf.mxu0
      %v1111 = vadd.f32 %v922, %v1110
      %v1112 = vpop.f32.mrf.mxu0
      %v1113 = vadd.f32 %v924, %v1112
      %1114 = vmatmul.bf16.gmra.mxu0 %v750
      %v1115 = vpop.f32.mrf.mxu0
      %v1116 = vadd.f32 %v927, %v1115
      %v1117 = vpop.f32.mrf.mxu0
      %v1118 = vadd.f32 %v929, %v1117
      %1119 = vmatmul.bf16.gmra.mxu0 %v753
      %v1120 = vpop.f32.mrf.mxu0
      %v1121 = vadd.f32 %v932, %v1120
      %v1122 = vpop.f32.mrf.mxu0
      %v1123 = vadd.f32 %v934, %v1122
      %1124 = vmatmul.bf16.gmra.mxu0 %v756
      %v1125 = vpop.f32.mrf.mxu0
      %v1126 = vadd.f32 %v937, %v1125
      %v1127 = vpop.f32.mrf.mxu0
      %v1128 = vadd.f32 %v939, %v1127
      %1129 = vmatmul.bf16.gmra.mxu0 %v759
      %v1130 = vpop.f32.mrf.mxu0
      %v1131 = vadd.f32 %v942, %v1130
      %v1132 = vpop.f32.mrf.mxu0
      %v1133 = vadd.f32 %v944, %v1132
      %1134 = vmatmul.bf16.gmra.mxu0 %v762
      %v1135 = vpop.f32.mrf.mxu0
      %v1136 = vadd.f32 %v947, %v1135
      %v1137 = vpop.f32.mrf.mxu0
      %v1138 = vadd.f32 %v949, %v1137
      %1139 = vmatmul.bf16.gmra.mxu0 %v765
      %v1140 = vpop.f32.mrf.mxu0
      %v1141 = vadd.f32 %v952, %v1140
      %v1142 = vpop.f32.mrf.mxu0
      %v1143 = vadd.f32 %v954, %v1142
      %1144 = vdwg.mxu0
      %v1145 = vmax.f32 %v966, 0.0
      %v1146 = vmax.f32 %v968, 0.0
      %v1147 = vmax.f32 %v971, 0.0
      %v1148 = vmax.f32 %v973, 0.0
      %v1149 = vmax.f32 %v976, 0.0
      %v1150 = vmax.f32 %v978, 0.0
      %v1151 = vmax.f32 %v981, 0.0
      %v1152 = vmax.f32 %v983, 0.0
      %v1153 = vmax.f32 %v986, 0.0
      %v1154 = vmax.f32 %v988, 0.0
      %v1155 = vmax.f32 %v991, 0.0
      %v1156 = vmax.f32 %v993, 0.0
      %v1157 = vmax.f32 %v996, 0.0
      %v1158 = vmax.f32 %v998, 0.0
      %v1159 = vmax.f32 %v1001, 0.0
      %v1160 = vmax.f32 %v1003, 0.0
      %v1161 = vmax.f32 %v1006, 0.0
      %v1162 = vmax.f32 %v1008, 0.0
      %v1163 = vmax.f32 %v1011, 0.0
      %v1164 = vmax.f32 %v1013, 0.0
      %v1165 = vmax.f32 %v1016, 0.0
      %v1166 = vmax.f32 %v1018, 0.0
      %v1167 = vmax.f32 %v1021, 0.0
      %v1168 = vmax.f32 %v1023, 0.0
      %v1169 = vmax.f32 %v1026, 0.0
      %v1170 = vmax.f32 %v1028, 0.0
      %v1171 = vmax.f32 %v1031, 0.0
      %v1172 = vmax.f32 %v1033, 0.0
      %v1173 = vmax.f32 %v1036, 0.0
      %v1174 = vmax.f32 %v1038, 0.0
      %v1175 = vmax.f32 %v1041, 0.0
      %v1176 = vmax.f32 %v1043, 0.0
      %v1177 = vmax.f32 %v1046, 0.0
      %v1178 = vmax.f32 %v1048, 0.0
      %v1179 = vmax.f32 %v1051, 0.0
      %v1180 = vmax.f32 %v1053, 0.0
      %v1181 = vmax.f32 %v1056, 0.0
      %v1182 = vmax.f32 %v1058, 0.0
      %v1183 = vmax.f32 %v1061, 0.0
      %v1184 = vmax.f32 %v1063, 0.0
      %v1185 = vmax.f32 %v1066, 0.0
      %v1186 = vmax.f32 %v1068, 0.0
      %v1187 = vmax.f32 %v1071, 0.0
      %v1188 = vmax.f32 %v1073, 0.0
      %v1189 = vmax.f32 %v1076, 0.0
      %v1190 = vmax.f32 %v1078, 0.0
      %v1191 = vmax.f32 %v1081, 0.0
      %v1192 = vmax.f32 %v1083, 0.0
      %v1193 = vmax.f32 %v1086, 0.0
      %v1194 = vmax.f32 %v1088, 0.0
      %v1195 = vmax.f32 %v1091, 0.0
      %v1196 = vmax.f32 %v1093, 0.0
      %v1197 = vmax.f32 %v1096, 0.0
      %v1198 = vmax.f32 %v1098, 0.0
      %v1199 = vmax.f32 %v1101, 0.0
      %v1200 = vmax.f32 %v1103, 0.0
      %v1201 = vmax.f32 %v1106, 0.0
      %v1202 = vmax.f32 %v1108, 0.0
      %v1203 = vmax.f32 %v1111, 0.0
      %v1204 = vmax.f32 %v1113, 0.0
      %v1205 = vmax.f32 %v1116, 0.0
      %v1206 = vmax.f32 %v1118, 0.0
      %v1207 = vmax.f32 %v1121, 0.0
      %v1208 = vmax.f32 %v1123, 0.0
      %v1209 = vmax.f32 %v1126, 0.0
      %v1210 = vmax.f32 %v1128, 0.0
      %v1211 = vmax.f32 %v1131, 0.0
      %v1212 = vmax.f32 %v1133, 0.0
      %v1213 = vmax.f32 %v1136, 0.0
      %v1214 = vmax.f32 %v1138, 0.0
      %v1215 = vmax.f32 %v1141, 0.0
      %v1216 = vmax.f32 %v1143, 0.0
      %v1217 = vpack.c.bf16 %v1145, %v1145
      %v1218 = vpack.c.bf16 %v1146, %v1146
      %v1219 = vpack.c.bf16 %v1147, %v1147
      %v1220 = vpack.c.bf16 %v1148, %v1148
      %v1221 = vpack.c.bf16 %v1149, %v1149
      %v1222 = vpack.c.bf16 %v1150, %v1150
      %v1223 = vpack.c.bf16 %v1151, %v1151
      %v1224 = vpack.c.bf16 %v1152, %v1152
      %v1225 = vpack.c.bf16 %v1153, %v1153
      %v1226 = vpack.c.bf16 %v1154, %v1154
      %v1227 = vpack.c.bf16 %v1155, %v1155
      %v1228 = vpack.c.bf16 %v1156, %v1156
      %v1229 = vpack.c.bf16 %v1157, %v1157
      %v1230 = vpack.c.bf16 %v1158, %v1158
      %v1231 = vpack.c.bf16 %v1159, %v1159
      %v1232 = vpack.c.bf16 %v1160, %v1160
      %v1233 = vpack.c.bf16 %v1161, %v1161
      %v1234 = vpack.c.bf16 %v1162, %v1162
      %v1235 = vpack.c.bf16 %v1163, %v1163
      %v1236 = vpack.c.bf16 %v1164, %v1164
      %v1237 = vpack.c.bf16 %v1165, %v1165
      %v1238 = vpack.c.bf16 %v1166, %v1166
      %v1239 = vpack.c.bf16 %v1167, %v1167
      %v1240 = vpack.c.bf16 %v1168, %v1168
      %v1241 = vpack.c.bf16 %v1169, %v1169
      %v1242 = vpack.c.bf16 %v1170, %v1170
      %v1243 = vpack.c.bf16 %v1171, %v1171
      %v1244 = vpack.c.bf16 %v1172, %v1172
      %v1245 = vpack.c.bf16 %v1173, %v1173
      %v1246 = vpack.c.bf16 %v1174, %v1174
      %v1247 = vpack.c.bf16 %v1175, %v1175
      %v1248 = vpack.c.bf16 %v1176, %v1176
      %v1249 = vpack.c.bf16 %v1177, %v1177
      %v1250 = vpack.c.bf16 %v1178, %v1178
      %v1251 = vpack.c.bf16 %v1179, %v1179
      %v1252 = vpack.c.bf16 %v1180, %v1180
      %v1253 = vpack.c.bf16 %v1181, %v1181
      %v1254 = vpack.c.bf16 %v1182, %v1182
      %v1255 = vpack.c.bf16 %v1183, %v1183
      %v1256 = vpack.c.bf16 %v1184, %v1184
      %v1257 = vpack.c.bf16 %v1185, %v1185
      %v1258 = vpack.c.bf16 %v1186, %v1186
      %v1259 = vpack.c.bf16 %v1187, %v1187
      %v1260 = vpack.c.bf16 %v1188, %v1188
      %v1261 = vpack.c.bf16 %v1189, %v1189
      %v1262 = vpack.c.bf16 %v1190, %v1190
      %v1263 = vpack.c.bf16 %v1191, %v1191
      %v1264 = vpack.c.bf16 %v1192, %v1192
      %v1265 = vpack.c.bf16 %v1193, %v1193
      %v1266 = vpack.c.bf16 %v1194, %v1194
      %v1267 = vpack.c.bf16 %v1195, %v1195
      %v1268 = vpack.c.bf16 %v1196, %v1196
      %v1269 = vpack.c.bf16 %v1197, %v1197
      %v1270 = vpack.c.bf16 %v1198, %v1198
      %v1271 = vpack.c.bf16 %v1199, %v1199
      %v1272 = vpack.c.bf16 %v1200, %v1200
      %v1273 = vpack.c.bf16 %v1201, %v1201
      %v1274 = vpack.c.bf16 %v1202, %v1202
      %v1275 = vpack.c.bf16 %v1203, %v1203
      %v1276 = vpack.c.bf16 %v1204, %v1204
      %v1277 = vpack.c.bf16 %v1205, %v1205
      %v1278 = vpack.c.bf16 %v1206, %v1206
      %v1279 = vpack.c.bf16 %v1207, %v1207
      %v1280 = vpack.c.bf16 %v1208, %v1208
      %v1281 = vpack.c.bf16 %v1209, %v1209
      %v1282 = vpack.c.bf16 %v1210, %v1210
      %v1283 = vpack.c.bf16 %v1211, %v1211
      %v1284 = vpack.c.bf16 %v1212, %v1212
      %v1285 = vpack.c.bf16 %v1213, %v1213
      %v1286 = vpack.c.bf16 %v1214, %v1214
      %v1287 = vpack.c.bf16 %v1215, %v1215
      %v1288 = vpack.c.bf16 %v1216, %v1216
      %1289 = vst [vmem:[%s175] sm:$0xf] %v1217
      %1290 = vst [vmem:[%s175 + $0x4] sm:$0xf] %v1218
      %1291 = vst [vmem:[%s175 + $0x8] sm:$0xf] %v1219
      %1292 = vst [vmem:[%s175 + $0xc] sm:$0xf] %v1220
      %1293 = vst [vmem:[%s175 + $0x10] sm:$0xf] %v1221
      %1294 = vst [vmem:[%s175 + $0x14] sm:$0xf] %v1222
      %1295 = vst [vmem:[%s175 + $0x18] sm:$0xf] %v1223
      %1296 = vst [vmem:[%s175 + $0x1c] sm:$0xf] %v1224
      %1297 = vst [vmem:[%s175 + $0x20] sm:$0xf] %v1225
      %1298 = vst [vmem:[%s175 + $0x24] sm:$0xf] %v1226
      %1299 = vst [vmem:[%s175 + $0x28] sm:$0xf] %v1227
      %1300 = vst [vmem:[%s175 + $0x2c] sm:$0xf] %v1228
      %1301 = vst [vmem:[%s175 + $0x30] sm:$0xf] %v1229
      %1302 = vst [vmem:[%s175 + $0x34] sm:$0xf] %v1230
      %1303 = vst [vmem:[%s175 + $0x38] sm:$0xf] %v1231
      %1304 = vst [vmem:[%s175 + $0x3c] sm:$0xf] %v1232
      %1305 = vst [vmem:[%s175 + $0x40] sm:$0xf] %v1233
      %1306 = vst [vmem:[%s175 + $0x44] sm:$0xf] %v1234
      %1307 = vst [vmem:[%s175 + $0x48] sm:$0xf] %v1235
      %1308 = vst [vmem:[%s175 + $0x4c] sm:$0xf] %v1236
      %1309 = vst [vmem:[%s175 + $0x50] sm:$0xf] %v1237
      %1310 = vst [vmem:[%s175 + $0x54] sm:$0xf] %v1238
      %1311 = vst [vmem:[%s175 + $0x58] sm:$0xf] %v1239
      %1312 = vst [vmem:[%s175 + $0x5c] sm:$0xf] %v1240
      %1313 = vst [vmem:[%s175 + $0x60] sm:$0xf] %v1241
      %1314 = vst [vmem:[%s175 + $0x64] sm:$0xf] %v1242
      %1315 = vst [vmem:[%s175 + $0x68] sm:$0xf] %v1243
      %1316 = vst [vmem:[%s175 + $0x6c] sm:$0xf] %v1244
      %1317 = vst [vmem:[%s175 + $0x70] sm:$0xf] %v1245
      %1318 = vst [vmem:[%s175 + $0x74] sm:$0xf] %v1246
      %1319 = vst [vmem:[%s175 + $0x78] sm:$0xf] %v1247
      %1320 = vst [vmem:[%s175 + $0x7c] sm:$0xf] %v1248
      %1321 = vst [vmem:[%s175 + $0x80] sm:$0xf] %v1249
      %1322 = vst [vmem:[%s175 + $0x84] sm:$0xf] %v1250
      %1323 = vst [vmem:[%s175 + $0x88] sm:$0xf] %v1251
      %1324 = vst [vmem:[%s175 + $0x8c] sm:$0xf] %v1252
      %1325 = vst [vmem:[%s175 + $0x90] sm:$0xf] %v1253
      %1326 = vst [vmem:[%s175 + $0x94] sm:$0xf] %v1254
      %1327 = vst [vmem:[%s175 + $0x98] sm:$0xf] %v1255
      %1328 = vst [vmem:[%s175 + $0x9c] sm:$0xf] %v1256
      %1329 = vst [vmem:[%s175 + $0xa0] sm:$0xf] %v1257
      %1330 = vst [vmem:[%s175 + $0xa4] sm:$0xf] %v1258
      %1331 = vst [vmem:[%s175 + $0xa8] sm:$0xf] %v1259
      %1332 = vst [vmem:[%s175 + $0xac] sm:$0xf] %v1260
      %1333 = vst [vmem:[%s175 + $0xb0] sm:$0xf] %v1261
      %1334 = vst [vmem:[%s175 + $0xb4] sm:$0xf] %v1262
      %1335 = vst [vmem:[%s175 + $0xb8] sm:$0xf] %v1263
      %1336 = vst [vmem:[%s175 + $0xbc] sm:$0xf] %v1264
      %1337 = vst [vmem:[%s175 + $0xc0] sm:$0xf] %v1265
      %1338 = vst [vmem:[%s175 + $0xc4] sm:$0xf] %v1266
      %1339 = vst [vmem:[%s175 + $0xc8] sm:$0xf] %v1267
      %1340 = vst [vmem:[%s175 + $0xcc] sm:$0xf] %v1268
      %1341 = vst [vmem:[%s175 + $0xd0] sm:$0xf] %v1269
      %1342 = vst [vmem:[%s175 + $0xd4] sm:$0xf] %v1270
      %1343 = vst [vmem:[%s175 + $0xd8] sm:$0xf] %v1271
      %1344 = vst [vmem:[%s175 + $0xdc] sm:$0xf] %v1272
      %1345 = vst [vmem:[%s175 + $0xe0] sm:$0xf] %v1273
      %1346 = vst [vmem:[%s175 + $0xe4] sm:$0xf] %v1274
      %1347 = vst [vmem:[%s175 + $0xe8] sm:$0xf] %v1275
      %1348 = vst [vmem:[%s175 + $0xec] sm:$0xf] %v1276
      %1349 = vst [vmem:[%s175 + $0xf0] sm:$0xf] %v1277
      %1350 = vst [vmem:[%s175 + $0xf4] sm:$0xf] %v1278
      %1351 = vst [vmem:[%s175 + $0xf8] sm:$0xf] %v1279
      %1352 = vst [vmem:[%s175 + $0xfc] sm:$0xf] %v1280
      %1353 = vst [vmem:[%s175 + $0x100] sm:$0xf] %v1281
      %1354 = vst [vmem:[%s175 + $0x104] sm:$0xf] %v1282
      %1355 = vst [vmem:[%s175 + $0x108] sm:$0xf] %v1283
      %1356 = vst [vmem:[%s175 + $0x10c] sm:$0xf] %v1284
      %1357 = vst [vmem:[%s175 + $0x110] sm:$0xf] %v1285
      %1358 = vst [vmem:[%s175 + $0x114] sm:$0xf] %v1286
      %1359 = vst [vmem:[%s175 + $0x118] sm:$0xf] %v1287
      %1360 = vst [vmem:[%s175 + $0x11c] sm:$0xf] %v1288
      %s1361 = smul.u32 72, %s14
      %p1362 = scmp.lt.s32.totalorder %s1361, 143
      %s1363 = scalar_select %p1362, %s1361, 143
      %s1364 = smul.addr %s1363, 4
      %s1365 = scalar_lea.vmem %s3, %s1364
      // Predicated region
      $region33: #{_lambda_.58} parent=31 // pred_check
        %p1366 = pneg %p100
      $region34: #{_lambda_.58} parent=31 // pred_check_branch
        %1368 = sbr.rel (%p1366) target = $region36
      $region35: #{_lambda_.58} parent=31 // pred_region
        %s1369 = smul.u32 72, %s14
      $region36: #{_lambda_.58} parent=31 // pred_fallthru
        _
    $region32: #{_lambda_.58} parent=5 // pred_fallthru
      _
    %p1370 = scmp.le.s32.totalorder 2, %s9
    // Predicated region
    $region37: #{_lambda_.58} parent=5 // pred_check
      %p1371 = pneg %p1370
    $region38: #{_lambda_.58} parent=5 // pred_check_branch
      %1373 = sbr.rel (%p1371) target = $region40
    $region39: #{_lambda_.58} parent=5 // pred_region
      %s1374 = ssub.s32 %s9, 2
      // Predicated region
      $region41: #{_lambda_.58} parent=39 // pred_check
        %p1375 = pneg %p106
      $region42: #{_lambda_.58} parent=39 // pred_check_branch
        %1377 = sbr.rel (%p1375) target = $region44
      $region43: #{_lambda_.58} parent=39 // pred_region
        %s1378 = smul.u32 72, %s15
        %p1379 = scmp.lt.s32.totalorder %s1378, 143
        %s1380 = scalar_select %p1379, %s1378, 143
        %s1381 = smul.addr %s1380, 4
        %s1382 = scalar_lea.vmem %s3, %s1381
      $region44: #{_lambda_.58} parent=39 // pred_fallthru
        _
    $region40: #{_lambda_.58} parent=5 // pred_fallthru
      _
  $region6: #{_lambda_.58} parent=0 // loop_footer
    %s13 = sadd.s32 1, %s9
  $region7: #{_lambda_.58} parent=0 // loop_footer_branch
    %8 = sbr.rel target = $region3
  $region8: #{_lambda_.58} parent=0 // loop_exit
    _

// kernel: _lambda_.59
$region0: #{_lambda_.59}
  #allocation0 [shape = 'u32[]', space=smem, size = 0x4, offset = 0x4, fixed_abs, tag = 'smem constant byte address 0x4 - core index']
  #allocation1 [shape = 'u32[72,128]{1,0:T(1,128)}', space=vmem, size = 0x9000, scoped, tag = 'internal scratch']
  %s0 = inlined_call_operand.vmem [shape: bf16[288,128], index: 0, kind: input, shape index: {}]
  %s1 = inlined_call_operand.vmem [shape: bf16[128,256], index: 1, kind: input, shape index: {}]
  %s2 = inlined_call_operand.vmem [shape: f32[1,256], index: 2, kind: input, shape index: {}]
  %s3 = inlined_call_operand.vmem [shape: bf16[288,256], index: 3, kind: output, shape index: {}]
  %s4 = sld [smem:[#allocation0]]
  $region22: #{_lambda_.59} parent=0
    _
  %s6 = ssub.s32 1, %s4
  %s7 = scalar_select 0, %s6, %s4
  // Predicated region
  $region2: #{_lambda_.59} parent=0 // pred_check
    _
  $region3: #{_lambda_.59} parent=0 // pred_check_branch
    %9 = sbr.rel (0) target = $region5
  $region4: #{_lambda_.59} parent=0 // pred_region
    _
  $region5: #{_lambda_.59} parent=0 // pred_fallthru
    _
  // Predicated region
  $region6: #{_lambda_.59} parent=0 // pred_check
    _
  $region7: #{_lambda_.59} parent=0 // pred_check_branch
    %11 = sbr.rel (0) target = $region9
  $region8: #{_lambda_.59} parent=0 // pred_region
    _
  $region9: #{_lambda_.59} parent=0 // pred_fallthru
    _
  // Predicated region
  $region10: #{_lambda_.59} parent=0 // pred_check
    _
  $region11: #{_lambda_.59} parent=0 // pred_check_branch
    %13 = sbr.rel (0) target = $region13
  $region12: #{_lambda_.59} parent=0 // pred_region
    _
  $region13: #{_lambda_.59} parent=0 // pred_fallthru
    _
  %v14 = vld [vmem:[%s0] sm:$0xf]
  %v15 = vld [vmem:[%s0 + $0x4] sm:$0xf]
  %v16 = vld [vmem:[%s0 + $0x8] sm:$0xf]
  %v17 = vld [vmem:[%s0 + $0xc] sm:$0xf]
  %v18 = vld [vmem:[%s0 + $0x10] sm:$0xf]
  %v19 = vld [vmem:[%s0 + $0x14] sm:$0xf]
  %v20 = vld [vmem:[%s0 + $0x18] sm:$0xf]
  %v21 = vld [vmem:[%s0 + $0x1c] sm:$0xf]
  %v22 = vld [vmem:[%s0 + $0x20] sm:$0xf]
  %v23 = vld [vmem:[%s0 + $0x24] sm:$0xf]
  %v24 = vld [vmem:[%s0 + $0x28] sm:$0xf]
  %v25 = vld [vmem:[%s0 + $0x2c] sm:$0xf]
  %v26 = vld [vmem:[%s0 + $0x30] sm:$0xf]
  %v27 = vld [vmem:[%s0 + $0x34] sm:$0xf]
  %v28 = vld [vmem:[%s0 + $0x38] sm:$0xf]
  %v29 = vld [vmem:[%s0 + $0x3c] sm:$0xf]
  %v30 = vld [vmem:[%s0 + $0x40] sm:$0xf]
  %v31 = vld [vmem:[%s0 + $0x44] sm:$0xf]
  %v32 = vld [vmem:[%s0 + $0x48] sm:$0xf]
  %v33 = vld [vmem:[%s0 + $0x4c] sm:$0xf]
  %v34 = vld [vmem:[%s0 + $0x50] sm:$0xf]
  %v35 = vld [vmem:[%s0 + $0x54] sm:$0xf]
  %v36 = vld [vmem:[%s0 + $0x58] sm:$0xf]
  %v37 = vld [vmem:[%s0 + $0x5c] sm:$0xf]
  %v38 = vld [vmem:[%s0 + $0x60] sm:$0xf]
  %v39 = vld [vmem:[%s0 + $0x64] sm:$0xf]
  %v40 = vld [vmem:[%s0 + $0x68] sm:$0xf]
  %v41 = vld [vmem:[%s0 + $0x6c] sm:$0xf]
  %v42 = vld [vmem:[%s0 + $0x70] sm:$0xf]
  %v43 = vld [vmem:[%s0 + $0x74] sm:$0xf]
  %v44 = vld [vmem:[%s0 + $0x78] sm:$0xf]
  %v45 = vld [vmem:[%s0 + $0x7c] sm:$0xf]
  %v46 = vld [vmem:[%s0 + $0x80] sm:$0xf]
  %v47 = vld [vmem:[%s0 + $0x84] sm:$0xf]
  %v48 = vld [vmem:[%s0 + $0x88] sm:$0xf]
  %v49 = vld [vmem:[%s0 + $0x8c] sm:$0xf]
  %v50 = vld [vmem:[%s1] sm:$0xff]
  %v51 = vld [vmem:[%s1 + $0x8] sm:$0xff]
  %v52 = vld [vmem:[%s1 + $0x10] sm:$0xff]
  %v53 = vld [vmem:[%s1 + $0x18] sm:$0xff]
  %v54 = vld [vmem:[%s1 + $0x20] sm:$0xff]
  %v55 = vld [vmem:[%s1 + $0x28] sm:$0xff]
  %v56 = vld [vmem:[%s1 + $0x30] sm:$0xff]
  %v57 = vld [vmem:[%s1 + $0x38] sm:$0xff]
  %v58 = vld [vmem:[%s1 + $0x40] sm:$0xff]
  %v59 = vld [vmem:[%s1 + $0x48] sm:$0xff]
  %v60 = vld [vmem:[%s1 + $0x50] sm:$0xff]
  %v61 = vld [vmem:[%s1 + $0x58] sm:$0xff]
  %v62 = vld [vmem:[%s1 + $0x60] sm:$0xff]
  %v63 = vld [vmem:[%s1 + $0x68] sm:$0xff]
  %v64 = vld [vmem:[%s1 + $0x70] sm:$0xff]
  %v65 = vld [vmem:[%s1 + $0x78] sm:$0xff]
  %v66 = vld [vmem:[%s2] sm:$0x3]
  %v68 = vperm.slane %v66, 0
  %v69 = vperm.slane %v66, 1
  %v108 = vunpack.c.l.b16 %v14
  %v109 = vunpack.c.l.b16 %v15
  %v110 = vunpack.c.l.b16 %v16
  %v111 = vunpack.c.l.b16 %v17
  %v112 = vunpack.c.l.b16 %v18
  %v113 = vunpack.c.l.b16 %v19
  %v114 = vunpack.c.l.b16 %v20
  %v115 = vunpack.c.l.b16 %v21
  %v116 = vunpack.c.l.b16 %v22
  %v117 = vunpack.c.l.b16 %v23
  %v118 = vunpack.c.l.b16 %v24
  %v119 = vunpack.c.l.b16 %v25
  %v120 = vunpack.c.l.b16 %v26
  %v121 = vunpack.c.l.b16 %v27
  %v122 = vunpack.c.l.b16 %v28
  %v123 = vunpack.c.l.b16 %v29
  %v124 = vunpack.c.l.b16 %v30
  %v125 = vunpack.c.l.b16 %v31
  %v126 = vunpack.c.l.b16 %v32
  %v127 = vunpack.c.l.b16 %v33
  %v128 = vunpack.c.l.b16 %v34
  %v129 = vunpack.c.l.b16 %v35
  %v130 = vunpack.c.l.b16 %v36
  %v131 = vunpack.c.l.b16 %v37
  %v132 = vunpack.c.l.b16 %v38
  %v133 = vunpack.c.l.b16 %v39
  %v134 = vunpack.c.l.b16 %v40
  %v135 = vunpack.c.l.b16 %v41
  %v136 = vunpack.c.l.b16 %v42
  %v137 = vunpack.c.l.b16 %v43
  %v138 = vunpack.c.l.b16 %v44
  %v139 = vunpack.c.l.b16 %v45
  %v140 = vunpack.c.l.b16 %v46
  %v141 = vunpack.c.l.b16 %v47
  %v142 = vunpack.c.l.b16 %v48
  %v143 = vunpack.c.l.b16 %v49
  %v144 = vpack.c.b16 %v109, %v108
  %v145 = vpack.c.b16 %v111, %v110
  %v146 = vpack.c.b16 %v113, %v112
  %v147 = vpack.c.b16 %v115, %v114
  %v148 = vpack.c.b16 %v117, %v116
  %v149 = vpack.c.b16 %v119, %v118
  %v150 = vpack.c.b16 %v121, %v120
  %v151 = vpack.c.b16 %v123, %v122
  %v152 = vpack.c.b16 %v125, %v124
  %v153 = vpack.c.b16 %v127, %v126
  %v154 = vpack.c.b16 %v129, %v128
  %v155 = vpack.c.b16 %v131, %v130
  %v156 = vpack.c.b16 %v133, %v132
  %v157 = vpack.c.b16 %v135, %v134
  %v158 = vpack.c.b16 %v137, %v136
  %v159 = vpack.c.b16 %v139, %v138
  %v160 = vpack.c.b16 %v141, %v140
  %v161 = vpack.c.b16 %v143, %v142
  %v196 = vunpack.c.l.b16 %v50
  %v197 = vunpack.c.h.b16 %v50
  %v198 = vunpack.c.l.b16 %v51
  %v199 = vunpack.c.h.b16 %v51
  %v200 = vunpack.c.l.b16 %v52
  %v201 = vunpack.c.h.b16 %v52
  %v202 = vunpack.c.l.b16 %v53
  %v203 = vunpack.c.h.b16 %v53
  %v204 = vunpack.c.l.b16 %v54
  %v205 = vunpack.c.h.b16 %v54
  %v206 = vunpack.c.l.b16 %v55
  %v207 = vunpack.c.h.b16 %v55
  %v208 = vunpack.c.l.b16 %v56
  %v209 = vunpack.c.h.b16 %v56
  %v210 = vunpack.c.l.b16 %v57
  %v211 = vunpack.c.h.b16 %v57
  %v212 = vunpack.c.l.b16 %v58
  %v213 = vunpack.c.h.b16 %v58
  %v214 = vunpack.c.l.b16 %v59
  %v215 = vunpack.c.h.b16 %v59
  %v216 = vunpack.c.l.b16 %v60
  %v217 = vunpack.c.h.b16 %v60
  %v218 = vunpack.c.l.b16 %v61
  %v219 = vunpack.c.h.b16 %v61
  %v220 = vunpack.c.l.b16 %v62
  %v221 = vunpack.c.h.b16 %v62
  %v222 = vunpack.c.l.b16 %v63
  %v223 = vunpack.c.h.b16 %v63
  %v224 = vunpack.c.l.b16 %v64
  %v225 = vunpack.c.h.b16 %v64
  %v226 = vunpack.c.l.b16 %v65
  %v227 = vunpack.c.h.b16 %v65
  %v228 = vpack.c.b16 %v198, %v196
  %v229 = vpack.c.b16 %v199, %v197
  %v230 = vpack.c.b16 %v202, %v200
  %v231 = vpack.c.b16 %v203, %v201
  %v232 = vpack.c.b16 %v206, %v204
  %v233 = vpack.c.b16 %v207, %v205
  %v234 = vpack.c.b16 %v210, %v208
  %v235 = vpack.c.b16 %v211, %v209
  %v236 = vpack.c.b16 %v214, %v212
  %v237 = vpack.c.b16 %v215, %v213
  %v238 = vpack.c.b16 %v218, %v216
  %v239 = vpack.c.b16 %v219, %v217
  %v240 = vpack.c.b16 %v222, %v220
  %v241 = vpack.c.b16 %v223, %v221
  %v242 = vpack.c.b16 %v226, %v224
  %v243 = vpack.c.b16 %v227, %v225
  %260 = vmatpush.bf16.msra.mxu0 %v242
  %261 = vmatpush.bf16.msra.mxu0 %v240
  %262 = vmatpush.bf16.msra.mxu0 %v238
  %263 = vmatpush.bf16.msra.mxu0 %v236
  %264 = vmatpush.bf16.msra.mxu0 %v234
  %265 = vmatpush.bf16.msra.mxu0 %v232
  %266 = vmatpush.bf16.msra.mxu0 %v230
  %267 = vmatpush.bf16.msra.mxu0 %v228
  %268 = vmatmul.bf16.gmra.mxu0 %v144
  %v269 = vpop.f32.mrf.mxu0
  %v270 = vadd.f32 %v68, %v269
  %v271 = vpop.f32.mrf.mxu0
  %v272 = vadd.f32 %v68, %v271
  %273 = vmatmul.bf16.gmra.mxu0 %v145
  %v274 = vpop.f32.mrf.mxu0
  %v275 = vadd.f32 %v68, %v274
  %v276 = vpop.f32.mrf.mxu0
  %v277 = vadd.f32 %v68, %v276
  %278 = vmatmul.bf16.gmra.mxu0 %v146
  %v279 = vpop.f32.mrf.mxu0
  %v280 = vadd.f32 %v68, %v279
  %v281 = vpop.f32.mrf.mxu0
  %v282 = vadd.f32 %v68, %v281
  %283 = vmatmul.bf16.gmra.mxu0 %v147
  %v284 = vpop.f32.mrf.mxu0
  %v285 = vadd.f32 %v68, %v284
  %v286 = vpop.f32.mrf.mxu0
  %v287 = vadd.f32 %v68, %v286
  %288 = vmatmul.bf16.gmra.mxu0 %v148
  %v289 = vpop.f32.mrf.mxu0
  %v290 = vadd.f32 %v68, %v289
  %v291 = vpop.f32.mrf.mxu0
  %v292 = vadd.f32 %v68, %v291
  %293 = vmatmul.bf16.gmra.mxu0 %v149
  %v294 = vpop.f32.mrf.mxu0
  %v295 = vadd.f32 %v68, %v294
  %v296 = vpop.f32.mrf.mxu0
  %v297 = vadd.f32 %v68, %v296
  %298 = vmatmul.bf16.gmra.mxu0 %v150
  %v299 = vpop.f32.mrf.mxu0
  %v300 = vadd.f32 %v68, %v299
  %v301 = vpop.f32.mrf.mxu0
  %v302 = vadd.f32 %v68, %v301
  %303 = vmatmul.bf16.gmra.mxu0 %v151
  %v304 = vpop.f32.mrf.mxu0
  %v305 = vadd.f32 %v68, %v304
  %v306 = vpop.f32.mrf.mxu0
  %v307 = vadd.f32 %v68, %v306
  %308 = vmatmul.bf16.gmra.mxu0 %v152
  %v309 = vpop.f32.mrf.mxu0
  %v310 = vadd.f32 %v68, %v309
  %v311 = vpop.f32.mrf.mxu0
  %v312 = vadd.f32 %v68, %v311
  %313 = vmatmul.bf16.gmra.mxu0 %v153
  %v314 = vpop.f32.mrf.mxu0
  %v315 = vadd.f32 %v68, %v314
  %v316 = vpop.f32.mrf.mxu0
  %v317 = vadd.f32 %v68, %v316
  %318 = vmatmul.bf16.gmra.mxu0 %v154
  %v319 = vpop.f32.mrf.mxu0
  %v320 = vadd.f32 %v68, %v319
  %v321 = vpop.f32.mrf.mxu0
  %v322 = vadd.f32 %v68, %v321
  %323 = vmatmul.bf16.gmra.mxu0 %v155
  %v324 = vpop.f32.mrf.mxu0
  %v325 = vadd.f32 %v68, %v324
  %v326 = vpop.f32.mrf.mxu0
  %v327 = vadd.f32 %v68, %v326
  %328 = vmatmul.bf16.gmra.mxu0 %v156
  %v329 = vpop.f32.mrf.mxu0
  %v330 = vadd.f32 %v68, %v329
  %v331 = vpop.f32.mrf.mxu0
  %v332 = vadd.f32 %v68, %v331
  %333 = vmatmul.bf16.gmra.mxu0 %v157
  %v334 = vpop.f32.mrf.mxu0
  %v335 = vadd.f32 %v68, %v334
  %v336 = vpop.f32.mrf.mxu0
  %v337 = vadd.f32 %v68, %v336
  %338 = vmatmul.bf16.gmra.mxu0 %v158
  %v339 = vpop.f32.mrf.mxu0
  %v340 = vadd.f32 %v68, %v339
  %v341 = vpop.f32.mrf.mxu0
  %v342 = vadd.f32 %v68, %v341
  %343 = vmatmul.bf16.gmra.mxu0 %v159
  %v344 = vpop.f32.mrf.mxu0
  %v345 = vadd.f32 %v68, %v344
  %v346 = vpop.f32.mrf.mxu0
  %v347 = vadd.f32 %v68, %v346
  %348 = vmatmul.bf16.gmra.mxu0 %v160
  %v349 = vpop.f32.mrf.mxu0
  %v350 = vadd.f32 %v68, %v349
  %v351 = vpop.f32.mrf.mxu0
  %v352 = vadd.f32 %v68, %v351
  %353 = vmatmul.bf16.gmra.mxu0 %v161
  %v354 = vpop.f32.mrf.mxu0
  %v355 = vadd.f32 %v68, %v354
  %v356 = vpop.f32.mrf.mxu0
  %v357 = vadd.f32 %v68, %v356
  %358 = vdwg.mxu0
  %359 = vmatpush.bf16.msra.mxu0 %v243
  %360 = vmatpush.bf16.msra.mxu0 %v241
  %361 = vmatpush.bf16.msra.mxu0 %v239
  %362 = vmatpush.bf16.msra.mxu0 %v237
  %363 = vmatpush.bf16.msra.mxu0 %v235
  %364 = vmatpush.bf16.msra.mxu0 %v233
  %365 = vmatpush.bf16.msra.mxu0 %v231
  %366 = vmatpush.bf16.msra.mxu0 %v229
  %367 = vmatmul.bf16.gmra.mxu0 %v144
  %v368 = vpop.f32.mrf.mxu0
  %v369 = vadd.f32 %v69, %v368
  %v370 = vpop.f32.mrf.mxu0
  %v371 = vadd.f32 %v69, %v370
  %372 = vmatmul.bf16.gmra.mxu0 %v145
  %v373 = vpop.f32.mrf.mxu0
  %v374 = vadd.f32 %v69, %v373
  %v375 = vpop.f32.mrf.mxu0
  %v376 = vadd.f32 %v69, %v375
  %377 = vmatmul.bf16.gmra.mxu0 %v146
  %v378 = vpop.f32.mrf.mxu0
  %v379 = vadd.f32 %v69, %v378
  %v380 = vpop.f32.mrf.mxu0
  %v381 = vadd.f32 %v69, %v380
  %382 = vmatmul.bf16.gmra.mxu0 %v147
  %v383 = vpop.f32.mrf.mxu0
  %v384 = vadd.f32 %v69, %v383
  %v385 = vpop.f32.mrf.mxu0
  %v386 = vadd.f32 %v69, %v385
  %387 = vmatmul.bf16.gmra.mxu0 %v148
  %v388 = vpop.f32.mrf.mxu0
  %v389 = vadd.f32 %v69, %v388
  %v390 = vpop.f32.mrf.mxu0
  %v391 = vadd.f32 %v69, %v390
  %392 = vmatmul.bf16.gmra.mxu0 %v149
  %v393 = vpop.f32.mrf.mxu0
  %v394 = vadd.f32 %v69, %v393
  %v395 = vpop.f32.mrf.mxu0
  %v396 = vadd.f32 %v69, %v395
  %397 = vmatmul.bf16.gmra.mxu0 %v150
  %v398 = vpop.f32.mrf.mxu0
  %v399 = vadd.f32 %v69, %v398
  %v400 = vpop.f32.mrf.mxu0
  %v401 = vadd.f32 %v69, %v400
  %402 = vmatmul.bf16.gmra.mxu0 %v151
  %v403 = vpop.f32.mrf.mxu0
  %v404 = vadd.f32 %v69, %v403
  %v405 = vpop.f32.mrf.mxu0
  %v406 = vadd.f32 %v69, %v405
  %407 = vmatmul.bf16.gmra.mxu0 %v152
  %v408 = vpop.f32.mrf.mxu0
  %v409 = vadd.f32 %v69, %v408
  %v410 = vpop.f32.mrf.mxu0
  %v411 = vadd.f32 %v69, %v410
  %412 = vmatmul.bf16.gmra.mxu0 %v153
  %v413 = vpop.f32.mrf.mxu0
  %v414 = vadd.f32 %v69, %v413
  %v415 = vpop.f32.mrf.mxu0
  %v416 = vadd.f32 %v69, %v415
  %417 = vmatmul.bf16.gmra.mxu0 %v154
  %v418 = vpop.f32.mrf.mxu0
  %v419 = vadd.f32 %v69, %v418
  %v420 = vpop.f32.mrf.mxu0
  %v421 = vadd.f32 %v69, %v420
  %422 = vmatmul.bf16.gmra.mxu0 %v155
  %v423 = vpop.f32.mrf.mxu0
  %v424 = vadd.f32 %v69, %v423
  %v425 = vpop.f32.mrf.mxu0
  %v426 = vadd.f32 %v69, %v425
  %427 = vmatmul.bf16.gmra.mxu0 %v156
  %v428 = vpop.f32.mrf.mxu0
  %v429 = vadd.f32 %v69, %v428
  %v430 = vpop.f32.mrf.mxu0
  %v431 = vadd.f32 %v69, %v430
  %432 = vmatmul.bf16.gmra.mxu0 %v157
  %v433 = vpop.f32.mrf.mxu0
  %v434 = vadd.f32 %v69, %v433
  %v435 = vpop.f32.mrf.mxu0
  %v436 = vadd.f32 %v69, %v435
  %437 = vmatmul.bf16.gmra.mxu0 %v158
  %v438 = vpop.f32.mrf.mxu0
  %v439 = vadd.f32 %v69, %v438
  %v440 = vpop.f32.mrf.mxu0
  %v441 = vadd.f32 %v69, %v440
  %442 = vmatmul.bf16.gmra.mxu0 %v159
  %v443 = vpop.f32.mrf.mxu0
  %v444 = vadd.f32 %v69, %v443
  %v445 = vpop.f32.mrf.mxu0
  %v446 = vadd.f32 %v69, %v445
  %447 = vmatmul.bf16.gmra.mxu0 %v160
  %v448 = vpop.f32.mrf.mxu0
  %v449 = vadd.f32 %v69, %v448
  %v450 = vpop.f32.mrf.mxu0
  %v451 = vadd.f32 %v69, %v450
  %452 = vmatmul.bf16.gmra.mxu0 %v161
  %v453 = vpop.f32.mrf.mxu0
  %v454 = vadd.f32 %v69, %v453
  %v455 = vpop.f32.mrf.mxu0
  %v456 = vadd.f32 %v69, %v455
  %457 = vdwg.mxu0
  %v458 = vlaneseq
  %v459 = vand.u32 %v458, 127
  %v460 = vadd.s32 %v459, 128
  %vm461 = vcmp.lt.s32.totalorder %v459, 128
  %vm462 = vcmp.lt.s32.totalorder %v460, 128
  %v463 = vmax.f32 %v270, 0.0
  %v464 = vmax.f32 %v369, 0.0
  %v465 = vmax.f32 %v272, 0.0
  %v466 = vmax.f32 %v371, 0.0
  %v467 = vmax.f32 %v275, 0.0
  %v468 = vmax.f32 %v374, 0.0
  %v469 = vmax.f32 %v277, 0.0
  %v470 = vmax.f32 %v376, 0.0
  %v471 = vmax.f32 %v280, 0.0
  %v472 = vmax.f32 %v379, 0.0
  %v473 = vmax.f32 %v282, 0.0
  %v474 = vmax.f32 %v381, 0.0
  %v475 = vmax.f32 %v285, 0.0
  %v476 = vmax.f32 %v384, 0.0
  %v477 = vmax.f32 %v287, 0.0
  %v478 = vmax.f32 %v386, 0.0
  %v479 = vmax.f32 %v290, 0.0
  %v480 = vmax.f32 %v389, 0.0
  %v481 = vmax.f32 %v292, 0.0
  %v482 = vmax.f32 %v391, 0.0
  %v483 = vmax.f32 %v295, 0.0
  %v484 = vmax.f32 %v394, 0.0
  %v485 = vmax.f32 %v297, 0.0
  %v486 = vmax.f32 %v396, 0.0
  %v487 = vmax.f32 %v300, 0.0
  %v488 = vmax.f32 %v399, 0.0
  %v489 = vmax.f32 %v302, 0.0
  %v490 = vmax.f32 %v401, 0.0
  %v491 = vmax.f32 %v305, 0.0
  %v492 = vmax.f32 %v404, 0.0
  %v493 = vmax.f32 %v307, 0.0
  %v494 = vmax.f32 %v406, 0.0
  %v495 = vmax.f32 %v310, 0.0
  %v496 = vmax.f32 %v409, 0.0
  %v497 = vmax.f32 %v312, 0.0
  %v498 = vmax.f32 %v411, 0.0
  %v499 = vmax.f32 %v315, 0.0
  %v500 = vmax.f32 %v414, 0.0
  %v501 = vmax.f32 %v317, 0.0
  %v502 = vmax.f32 %v416, 0.0
  %v503 = vmax.f32 %v320, 0.0
  %v504 = vmax.f32 %v419, 0.0
  %v505 = vmax.f32 %v322, 0.0
  %v506 = vmax.f32 %v421, 0.0
  %v507 = vmax.f32 %v325, 0.0
  %v508 = vmax.f32 %v424, 0.0
  %v509 = vmax.f32 %v327, 0.0
  %v510 = vmax.f32 %v426, 0.0
  %v511 = vmax.f32 %v330, 0.0
  %v512 = vmax.f32 %v429, 0.0
  %v513 = vmax.f32 %v332, 0.0
  %v514 = vmax.f32 %v431, 0.0
  %v515 = vmax.f32 %v335, 0.0
  %v516 = vmax.f32 %v434, 0.0
  %v517 = vmax.f32 %v337, 0.0
  %v518 = vmax.f32 %v436, 0.0
  %v519 = vmax.f32 %v340, 0.0
  %v520 = vmax.f32 %v439, 0.0
  %v521 = vmax.f32 %v342, 0.0
  %v522 = vmax.f32 %v441, 0.0
  %v523 = vmax.f32 %v345, 0.0
  %v524 = vmax.f32 %v444, 0.0
  %v525 = vmax.f32 %v347, 0.0
  %v526 = vmax.f32 %v446, 0.0
  %v527 = vmax.f32 %v350, 0.0
  %v528 = vmax.f32 %v449, 0.0
  %v529 = vmax.f32 %v352, 0.0
  %v530 = vmax.f32 %v451, 0.0
  %v531 = vmax.f32 %v355, 0.0
  %v532 = vmax.f32 %v454, 0.0
  %v533 = vmax.f32 %v357, 0.0
  %v534 = vmax.f32 %v456, 0.0
  %v535 = vsel %vm461, %v463, %v270
  %v536 = vsel %vm462, %v464, %v369
  %v537 = vsel %vm461, %v465, %v272
  %v538 = vsel %vm462, %v466, %v371
  %v539 = vsel %vm461, %v467, %v275
  %v540 = vsel %vm462, %v468, %v374
  %v541 = vsel %vm461, %v469, %v277
  %v542 = vsel %vm462, %v470, %v376
  %v543 = vsel %vm461, %v471, %v280
  %v544 = vsel %vm462, %v472, %v379
  %v545 = vsel %vm461, %v473, %v282
  %v546 = vsel %vm462, %v474, %v381
  %v547 = vsel %vm461, %v475, %v285
  %v548 = vsel %vm462, %v476, %v384
  %v549 = vsel %vm461, %v477, %v287
  %v550 = vsel %vm462, %v478, %v386
  %v551 = vsel %vm461, %v479, %v290
  %v552 = vsel %vm462, %v480, %v389
  %v553 = vsel %vm461, %v481, %v292
  %v554 = vsel %vm462, %v482, %v391
  %v555 = vsel %vm461, %v483, %v295
  %v556 = vsel %vm462, %v484, %v394
  %v557 = vsel %vm461, %v485, %v297
  %v558 = vsel %vm462, %v486, %v396
  %v559 = vsel %vm461, %v487, %v300
  %v560 = vsel %vm462, %v488, %v399
  %v561 = vsel %vm461, %v489, %v302
  %v562 = vsel %vm462, %v490, %v401
  %v563 = vsel %vm461, %v491, %v305
  %v564 = vsel %vm462, %v492, %v404
  %v565 = vsel %vm461, %v493, %v307
  %v566 = vsel %vm462, %v494, %v406
  %v567 = vsel %vm461, %v495, %v310
  %v568 = vsel %vm462, %v496, %v409
  %v569 = vsel %vm461, %v497, %v312
  %v570 = vsel %vm462, %v498, %v411
  %v571 = vsel %vm461, %v499, %v315
  %v572 = vsel %vm462, %v500, %v414
  %v573 = vsel %vm461, %v501, %v317
  %v574 = vsel %vm462, %v502, %v416
  %v575 = vsel %vm461, %v503, %v320
  %v576 = vsel %vm462, %v504, %v419
  %v577 = vsel %vm461, %v505, %v322
  %v578 = vsel %vm462, %v506, %v421
  %v579 = vsel %vm461, %v507, %v325
  %v580 = vsel %vm462, %v508, %v424
  %v581 = vsel %vm461, %v509, %v327
  %v582 = vsel %vm462, %v510, %v426
  %v583 = vsel %vm461, %v511, %v330
  %v584 = vsel %vm462, %v512, %v429
  %v585 = vsel %vm461, %v513, %v332
  %v586 = vsel %vm462, %v514, %v431
  %v587 = vsel %vm461, %v515, %v335
  %v588 = vsel %vm462, %v516, %v434
  %v589 = vsel %vm461, %v517, %v337
  %v590 = vsel %vm462, %v518, %v436
  %v591 = vsel %vm461, %v519, %v340
  %v592 = vsel %vm462, %v520, %v439
  %v593 = vsel %vm461, %v521, %v342
  %v594 = vsel %vm462, %v522, %v441
  %v595 = vsel %vm461, %v523, %v345
  %v596 = vsel %vm462, %v524, %v444
  %v597 = vsel %vm461, %v525, %v347
  %v598 = vsel %vm462, %v526, %v446
  %v599 = vsel %vm461, %v527, %v350
  %v600 = vsel %vm462, %v528, %v449
  %v601 = vsel %vm461, %v529, %v352
  %v602 = vsel %vm462, %v530, %v451
  %v603 = vsel %vm461, %v531, %v355
  %v604 = vsel %vm462, %v532, %v454
  %v605 = vsel %vm461, %v533, %v357
  %v606 = vsel %vm462, %v534, %v456
  %v607 = vpack.c.bf16 %v536, %v535
  %v608 = vpack.c.bf16 %v538, %v537
  %v609 = vpack.c.bf16 %v540, %v539
  %v610 = vpack.c.bf16 %v542, %v541
  %v611 = vpack.c.bf16 %v544, %v543
  %v612 = vpack.c.bf16 %v546, %v545
  %v613 = vpack.c.bf16 %v548, %v547
  %v614 = vpack.c.bf16 %v550, %v549
  %v615 = vpack.c.bf16 %v552, %v551
  %v616 = vpack.c.bf16 %v554, %v553
  %v617 = vpack.c.bf16 %v556, %v555
  %v618 = vpack.c.bf16 %v558, %v557
  %v619 = vpack.c.bf16 %v560, %v559
  %v620 = vpack.c.bf16 %v562, %v561
  %v621 = vpack.c.bf16 %v564, %v563
  %v622 = vpack.c.bf16 %v566, %v565
  %v623 = vpack.c.bf16 %v568, %v567
  %v624 = vpack.c.bf16 %v570, %v569
  %v625 = vpack.c.bf16 %v572, %v571
  %v626 = vpack.c.bf16 %v574, %v573
  %v627 = vpack.c.bf16 %v576, %v575
  %v628 = vpack.c.bf16 %v578, %v577
  %v629 = vpack.c.bf16 %v580, %v579
  %v630 = vpack.c.bf16 %v582, %v581
  %v631 = vpack.c.bf16 %v584, %v583
  %v632 = vpack.c.bf16 %v586, %v585
  %v633 = vpack.c.bf16 %v588, %v587
  %v634 = vpack.c.bf16 %v590, %v589
  %v635 = vpack.c.bf16 %v592, %v591
  %v636 = vpack.c.bf16 %v594, %v593
  %v637 = vpack.c.bf16 %v596, %v595
  %v638 = vpack.c.bf16 %v598, %v597
  %v639 = vpack.c.bf16 %v600, %v599
  %v640 = vpack.c.bf16 %v602, %v601
  %v641 = vpack.c.bf16 %v604, %v603
  %v642 = vpack.c.bf16 %v606, %v605
  %643 = vst [vmem:[%s3] sm:$0xff] %v607
  %644 = vst [vmem:[%s3 + $0x8] sm:$0xff] %v608
  %645 = vst [vmem:[%s3 + $0x10] sm:$0xff] %v609
  %646 = vst [vmem:[%s3 + $0x18] sm:$0xff] %v610
  %647 = vst [vmem:[%s3 + $0x20] sm:$0xff] %v611
  %648 = vst [vmem:[%s3 + $0x28] sm:$0xff] %v612
  %649 = vst [vmem:[%s3 + $0x30] sm:$0xff] %v613
  %650 = vst [vmem:[%s3 + $0x38] sm:$0xff] %v614
  %651 = vst [vmem:[%s3 + $0x40] sm:$0xff] %v615
  %652 = vst [vmem:[%s3 + $0x48] sm:$0xff] %v616
  %653 = vst [vmem:[%s3 + $0x50] sm:$0xff] %v617
  %654 = vst [vmem:[%s3 + $0x58] sm:$0xff] %v618
  %655 = vst [vmem:[%s3 + $0x60] sm:$0xff] %v619
  %656 = vst [vmem:[%s3 + $0x68] sm:$0xff] %v620
  %657 = vst [vmem:[%s3 + $0x70] sm:$0xff] %v621
  %658 = vst [vmem:[%s3 + $0x78] sm:$0xff] %v622
  %659 = vst [vmem:[%s3 + $0x80] sm:$0xff] %v623
  %660 = vst [vmem:[%s3 + $0x88] sm:$0xff] %v624
  %661 = vst [vmem:[%s3 + $0x90] sm:$0xff] %v625
  %662 = vst [vmem:[%s3 + $0x98] sm:$0xff] %v626
  %663 = vst [vmem:[%s3 + $0xa0] sm:$0xff] %v627
  %664 = vst [vmem:[%s3 + $0xa8] sm:$0xff] %v628
  %665 = vst [vmem:[%s3 + $0xb0] sm:$0xff] %v629
  %666 = vst [vmem:[%s3 + $0xb8] sm:$0xff] %v630
  %667 = vst [vmem:[%s3 + $0xc0] sm:$0xff] %v631
  %668 = vst [vmem:[%s3 + $0xc8] sm:$0xff] %v632
  %669 = vst [vmem:[%s3 + $0xd0] sm:$0xff] %v633
  %670 = vst [vmem:[%s3 + $0xd8] sm:$0xff] %v634
  %671 = vst [vmem:[%s3 + $0xe0] sm:$0xff] %v635
  %672 = vst [vmem:[%s3 + $0xe8] sm:$0xff] %v636
  %673 = vst [vmem:[%s3 + $0xf0] sm:$0xff] %v637
  %674 = vst [vmem:[%s3 + $0xf8] sm:$0xff] %v638
  %675 = vst [vmem:[%s3 + $0x100] sm:$0xff] %v639
  %676 = vst [vmem:[%s3 + $0x108] sm:$0xff] %v640
  %677 = vst [vmem:[%s3 + $0x110] sm:$0xff] %v641
  %678 = vst [vmem:[%s3 + $0x118] sm:$0xff] %v642
  // Predicated region
  $region14: #{_lambda_.59} parent=0 // pred_check
    _
  $region15: #{_lambda_.59} parent=0 // pred_check_branch
    %680 = sbr.rel (0) target = $region17
  $region16: #{_lambda_.59} parent=0 // pred_region
    _
  $region17: #{_lambda_.59} parent=0 // pred_fallthru
    _
  // Predicated region
  $region18: #{_lambda_.59} parent=0 // pred_check
    _
  $region19: #{_lambda_.59} parent=0 // pred_check_branch
    %682 = sbr.rel (0) target = $region21
  $region20: #{_lambda_.59} parent=0 // pred_region
    _
  $region21: #{_lambda_.59} parent=0 // pred_fallthru
    _

// kernel: _lambda_.60
$region0: #{_lambda_.60}
  #allocation0 [shape = 'u32[]', space=smem, size = 0x4, offset = 0x4, fixed_abs, tag = 'smem constant byte address 0x4 - core index']
  #allocation1 [shape = 'u32[72,128]{1,0:T(1,128)}', space=vmem, size = 0x9000, scoped, tag = 'internal scratch']
  %s0 = inlined_call_operand.vmem [shape: bf16[288,1152], index: 0, kind: input, shape index: {}]
  %s1 = inlined_call_operand.vmem [shape: bf16[1152,128], index: 1, kind: input, shape index: {}]
  %s2 = inlined_call_operand.vmem [shape: f32[1,128], index: 2, kind: input, shape index: {}]
  %s3 = inlined_call_operand.vmem [shape: bf16[288,128], index: 3, kind: output, shape index: {}]
  %s4 = sld [smem:[#allocation0]]
  $region22: #{_lambda_.60} parent=0
    _
  %s6 = ssub.s32 1, %s4
  %s7 = scalar_select 0, %s6, %s4
  // Predicated region
  $region2: #{_lambda_.60} parent=0 // pred_check
    _
  $region3: #{_lambda_.60} parent=0 // pred_check_branch
    %9 = sbr.rel (0) target = $region5
  $region4: #{_lambda_.60} parent=0 // pred_region
    _
  $region5: #{_lambda_.60} parent=0 // pred_fallthru
    _
  // Predicated region
  $region6: #{_lambda_.60} parent=0 // pred_check
    _
  $region7: #{_lambda_.60} parent=0 // pred_check_branch
    %11 = sbr.rel (0) target = $region9
  $region8: #{_lambda_.60} parent=0 // pred_region
    _
  $region9: #{_lambda_.60} parent=0 // pred_fallthru
    _
  // Predicated region
  $region10: #{_lambda_.60} parent=0 // pred_check
    _
  $region11: #{_lambda_.60} parent=0 // pred_check_branch
    %13 = sbr.rel (0) target = $region13
  $region12: #{_lambda_.60} parent=0 // pred_region
    _
  $region13: #{_lambda_.60} parent=0 // pred_fallthru
    _
  %v14 = vld [vmem:[%s0] sm:$0xff]
  %v15 = vld [vmem:[%s0 + $0x8] sm:$0xff]
  %v16 = vld [vmem:[%s0 + $0x10] sm:$0xff]
  %v17 = vld [vmem:[%s0 + $0x18] sm:$0xff]
  %v18 = vld [vmem:[%s0 + $0x20] sm:$0xf]
  %v19 = vld [vmem:[%s0 + $0x24] sm:$0xff]
  %v20 = vld [vmem:[%s0 + $0x2c] sm:$0xff]
  %v21 = vld [vmem:[%s0 + $0x34] sm:$0xff]
  %v22 = vld [vmem:[%s0 + $0x3c] sm:$0xff]
  %v23 = vld [vmem:[%s0 + $0x44] sm:$0xf]
  %v24 = vld [vmem:[%s0 + $0x48] sm:$0xff]
  %v25 = vld [vmem:[%s0 + $0x50] sm:$0xff]
  %v26 = vld [vmem:[%s0 + $0x58] sm:$0xff]
  %v27 = vld [vmem:[%s0 + $0x60] sm:$0xff]
  %v28 = vld [vmem:[%s0 + $0x68] sm:$0xf]
  %v29 = vld [vmem:[%s0 + $0x6c] sm:$0xff]
  %v30 = vld [vmem:[%s0 + $0x74] sm:$0xff]
  %v31 = vld [vmem:[%s0 + $0x7c] sm:$0xff]
  %v32 = vld [vmem:[%s0 + $0x84] sm:$0xff]
  %v33 = vld [vmem:[%s0 + $0x8c] sm:$0xf]
  %v34 = vld [vmem:[%s0 + $0x90] sm:$0xff]
  %v35 = vld [vmem:[%s0 + $0x98] sm:$0xff]
  %v36 = vld [vmem:[%s0 + $0xa0] sm:$0xff]
  %v37 = vld [vmem:[%s0 + $0xa8] sm:$0xff]
  %v38 = vld [vmem:[%s0 + $0xb0] sm:$0xf]
  %v39 = vld [vmem:[%s0 + $0xb4] sm:$0xff]
  %v40 = vld [vmem:[%s0 + $0xbc] sm:$0xff]
  %v41 = vld [vmem:[%s0 + $0xc4] sm:$0xff]
  %v42 = vld [vmem:[%s0 + $0xcc] sm:$0xff]
  %v43 = vld [vmem:[%s0 + $0xd4] sm:$0xf]
  %v44 = vld [vmem:[%s0 + $0xd8] sm:$0xff]
  %v45 = vld [vmem:[%s0 + $0xe0] sm:$0xff]
  %v46 = vld [vmem:[%s0 + $0xe8] sm:$0xff]
  %v47 = vld [vmem:[%s0 + $0xf0] sm:$0xff]
  %v48 = vld [vmem:[%s0 + $0xf8] sm:$0xf]
  %v49 = vld [vmem:[%s0 + $0xfc] sm:$0xff]
  %v50 = vld [vmem:[%s0 + $0x104] sm:$0xff]
  %v51 = vld [vmem:[%s0 + $0x10c] sm:$0xff]
  %v52 = vld [vmem:[%s0 + $0x114] sm:$0xff]
  %v53 = vld [vmem:[%s0 + $0x11c] sm:$0xf]
  %v54 = vld [vmem:[%s0 + $0x120] sm:$0xff]
  %v55 = vld [vmem:[%s0 + $0x128] sm:$0xff]
  %v56 = vld [vmem:[%s0 + $0x130] sm:$0xff]
  %v57 = vld [vmem:[%s0 + $0x138] sm:$0xff]
  %v58 = vld [vmem:[%s0 + $0x140] sm:$0xf]
  %v59 = vld [vmem:[%s0 + $0x144] sm:$0xff]
  %v60 = vld [vmem:[%s0 + $0x14c] sm:$0xff]
  %v61 = vld [vmem:[%s0 + $0x154] sm:$0xff]
  %v62 = vld [vmem:[%s0 + $0x15c] sm:$0xff]
  %v63 = vld [vmem:[%s0 + $0x164] sm:$0xf]
  %v64 = vld [vmem:[%s0 + $0x168] sm:$0xff]
  %v65 = vld [vmem:[%s0 + $0x170] sm:$0xff]
  %v66 = vld [vmem:[%s0 + $0x178] sm:$0xff]
  %v67 = vld [vmem:[%s0 + $0x180] sm:$0xff]
  %v68 = vld [vmem:[%s0 + $0x188] sm:$0xf]
  %v69 = vld [vmem:[%s0 + $0x18c] sm:$0xff]
  %v70 = vld [vmem:[%s0 + $0x194] sm:$0xff]
  %v71 = vld [vmem:[%s0 + $0x19c] sm:$0xff]
  %v72 = vld [vmem:[%s0 + $0x1a4] sm:$0xff]
  %v73 = vld [vmem:[%s0 + $0x1ac] sm:$0xf]
  %v74 = vld [vmem:[%s0 + $0x1b0] sm:$0xff]
  %v75 = vld [vmem:[%s0 + $0x1b8] sm:$0xff]
  %v76 = vld [vmem:[%s0 + $0x1c0] sm:$0xff]
  %v77 = vld [vmem:[%s0 + $0x1c8] sm:$0xff]
  %v78 = vld [vmem:[%s0 + $0x1d0] sm:$0xf]
  %v79 = vld [vmem:[%s0 + $0x1d4] sm:$0xff]
  %v80 = vld [vmem:[%s0 + $0x1dc] sm:$0xff]
  %v81 = vld [vmem:[%s0 + $0x1e4] sm:$0xff]
  %v82 = vld [vmem:[%s0 + $0x1ec] sm:$0xff]
  %v83 = vld [vmem:[%s0 + $0x1f4] sm:$0xf]
  %v84 = vld [vmem:[%s0 + $0x1f8] sm:$0xff]
  %v85 = vld [vmem:[%s0 + $0x200] sm:$0xff]
  %v86 = vld [vmem:[%s0 + $0x208] sm:$0xff]
  %v87 = vld [vmem:[%s0 + $0x210] sm:$0xff]
  %v88 = vld [vmem:[%s0 + $0x218] sm:$0xf]
  %v89 = vld [vmem:[%s0 + $0x21c] sm:$0xff]
  %v90 = vld [vmem:[%s0 + $0x224] sm:$0xff]
  %v91 = vld [vmem:[%s0 + $0x22c] sm:$0xff]
  %v92 = vld [vmem:[%s0 + $0x234] sm:$0xff]
  %v93 = vld [vmem:[%s0 + $0x23c] sm:$0xf]
  %v94 = vld [vmem:[%s0 + $0x240] sm:$0xff]
  %v95 = vld [vmem:[%s0 + $0x248] sm:$0xff]
  %v96 = vld [vmem:[%s0 + $0x250] sm:$0xff]
  %v97 = vld [vmem:[%s0 + $0x258] sm:$0xff]
  %v98 = vld [vmem:[%s0 + $0x260] sm:$0xf]
  %v99 = vld [vmem:[%s0 + $0x264] sm:$0xff]
  %v100 = vld [vmem:[%s0 + $0x26c] sm:$0xff]
  %v101 = vld [vmem:[%s0 + $0x274] sm:$0xff]
  %v102 = vld [vmem:[%s0 + $0x27c] sm:$0xff]
  %v103 = vld [vmem:[%s0 + $0x284] sm:$0xf]
  %v104 = vld [vmem:[%s0 + $0x288] sm:$0xff]
  %v105 = vld [vmem:[%s0 + $0x290] sm:$0xff]
  %v106 = vld [vmem:[%s0 + $0x298] sm:$0xff]
  %v107 = vld [vmem:[%s0 + $0x2a0] sm:$0xff]
  %v108 = vld [vmem:[%s0 + $0x2a8] sm:$0xf]
  %v109 = vld [vmem:[%s0 + $0x2ac] sm:$0xff]
  %v110 = vld [vmem:[%s0 + $0x2b4] sm:$0xff]
  %v111 = vld [vmem:[%s0 + $0x2bc] sm:$0xff]
  %v112 = vld [vmem:[%s0 + $0x2c4] sm:$0xff]
  %v113 = vld [vmem:[%s0 + $0x2cc] sm:$0xf]
  %v114 = vld [vmem:[%s0 + $0x2d0] sm:$0xff]
  %v115 = vld [vmem:[%s0 + $0x2d8] sm:$0xff]
  %v116 = vld [vmem:[%s0 + $0x2e0] sm:$0xff]
  %v117 = vld [vmem:[%s0 + $0x2e8] sm:$0xff]
  %v118 = vld [vmem:[%s0 + $0x2f0] sm:$0xf]
  %v119 = vld [vmem:[%s0 + $0x2f4] sm:$0xff]
  %v120 = vld [vmem:[%s0 + $0x2fc] sm:$0xff]
  %v121 = vld [vmem:[%s0 + $0x304] sm:$0xff]
  %v122 = vld [vmem:[%s0 + $0x30c] sm:$0xff]
  %v123 = vld [vmem:[%s0 + $0x314] sm:$0xf]
  %v124 = vld [vmem:[%s0 + $0x318] sm:$0xff]
  %v125 = vld [vmem:[%s0 + $0x320] sm:$0xff]
  %v126 = vld [vmem:[%s0 + $0x328] sm:$0xff]
  %v127 = vld [vmem:[%s0 + $0x330] sm:$0xff]
  %v128 = vld [vmem:[%s0 + $0x338] sm:$0xf]
  %v129 = vld [vmem:[%s0 + $0x33c] sm:$0xff]
  %v130 = vld [vmem:[%s0 + $0x344] sm:$0xff]
  %v131 = vld [vmem:[%s0 + $0x34c] sm:$0xff]
  %v132 = vld [vmem:[%s0 + $0x354] sm:$0xff]
  %v133 = vld [vmem:[%s0 + $0x35c] sm:$0xf]
  %v134 = vld [vmem:[%s0 + $0x360] sm:$0xff]
  %v135 = vld [vmem:[%s0 + $0x368] sm:$0xff]
  %v136 = vld [vmem:[%s0 + $0x370] sm:$0xff]
  %v137 = vld [vmem:[%s0 + $0x378] sm:$0xff]
  %v138 = vld [vmem:[%s0 + $0x380] sm:$0xf]
  %v139 = vld [vmem:[%s0 + $0x384] sm:$0xff]
  %v140 = vld [vmem:[%s0 + $0x38c] sm:$0xff]
  %v141 = vld [vmem:[%s0 + $0x394] sm:$0xff]
  %v142 = vld [vmem:[%s0 + $0x39c] sm:$0xff]
  %v143 = vld [vmem:[%s0 + $0x3a4] sm:$0xf]
  %v144 = vld [vmem:[%s0 + $0x3a8] sm:$0xff]
  %v145 = vld [vmem:[%s0 + $0x3b0] sm:$0xff]
  %v146 = vld [vmem:[%s0 + $0x3b8] sm:$0xff]
  %v147 = vld [vmem:[%s0 + $0x3c0] sm:$0xff]
  %v148 = vld [vmem:[%s0 + $0x3c8] sm:$0xf]
  %v149 = vld [vmem:[%s0 + $0x3cc] sm:$0xff]
  %v150 = vld [vmem:[%s0 + $0x3d4] sm:$0xff]
  %v151 = vld [vmem:[%s0 + $0x3dc] sm:$0xff]
  %v152 = vld [vmem:[%s0 + $0x3e4] sm:$0xff]
  %v153 = vld [vmem:[%s0 + $0x3ec] sm:$0xf]
  %v154 = vld [vmem:[%s0 + $0x3f0] sm:$0xff]
  %v155 = vld [vmem:[%s0 + $0x3f8] sm:$0xff]
  %v156 = vld [vmem:[%s0 + $0x400] sm:$0xff]
  %v157 = vld [vmem:[%s0 + $0x408] sm:$0xff]
  %v158 = vld [vmem:[%s0 + $0x410] sm:$0xf]
  %v159 = vld [vmem:[%s0 + $0x414] sm:$0xff]
  %v160 = vld [vmem:[%s0 + $0x41c] sm:$0xff]
  %v161 = vld [vmem:[%s0 + $0x424] sm:$0xff]
  %v162 = vld [vmem:[%s0 + $0x42c] sm:$0xff]
  %v163 = vld [vmem:[%s0 + $0x434] sm:$0xf]
  %v164 = vld [vmem:[%s0 + $0x438] sm:$0xff]
  %v165 = vld [vmem:[%s0 + $0x440] sm:$0xff]
  %v166 = vld [vmem:[%s0 + $0x448] sm:$0xff]
  %v167 = vld [vmem:[%s0 + $0x450] sm:$0xff]
  %v168 = vld [vmem:[%s0 + $0x458] sm:$0xf]
  %v169 = vld [vmem:[%s0 + $0x45c] sm:$0xff]
  %v170 = vld [vmem:[%s0 + $0x464] sm:$0xff]
  %v171 = vld [vmem:[%s0 + $0x46c] sm:$0xff]
  %v172 = vld [vmem:[%s0 + $0x474] sm:$0xff]
  %v173 = vld [vmem:[%s0 + $0x47c] sm:$0xf]
  %v174 = vld [vmem:[%s0 + $0x480] sm:$0xff]
  %v175 = vld [vmem:[%s0 + $0x488] sm:$0xff]
  %v176 = vld [vmem:[%s0 + $0x490] sm:$0xff]
  %v177 = vld [vmem:[%s0 + $0x498] sm:$0xff]
  %v178 = vld [vmem:[%s0 + $0x4a0] sm:$0xf]
  %v179 = vld [vmem:[%s0 + $0x4a4] sm:$0xff]
  %v180 = vld [vmem:[%s0 + $0x4ac] sm:$0xff]
  %v181 = vld [vmem:[%s0 + $0x4b4] sm:$0xff]
  %v182 = vld [vmem:[%s0 + $0x4bc] sm:$0xff]
  %v183 = vld [vmem:[%s0 + $0x4c4] sm:$0xf]
  %v184 = vld [vmem:[%s0 + $0x4c8] sm:$0xff]
  %v185 = vld [vmem:[%s0 + $0x4d0] sm:$0xff]
  %v186 = vld [vmem:[%s0 + $0x4d8] sm:$0xff]
  %v187 = vld [vmem:[%s0 + $0x4e0] sm:$0xff]
  %v188 = vld [vmem:[%s0 + $0x4e8] sm:$0xf]
  %v189 = vld [vmem:[%s0 + $0x4ec] sm:$0xff]
  %v190 = vld [vmem:[%s0 + $0x4f4] sm:$0xff]
  %v191 = vld [vmem:[%s0 + $0x4fc] sm:$0xff]
  %v192 = vld [vmem:[%s0 + $0x504] sm:$0xff]
  %v193 = vld [vmem:[%s0 + $0x50c] sm:$0xf]
  %v194 = vld [vmem:[%s1] sm:$0xf]
  %v195 = vld [vmem:[%s1 + $0x4] sm:$0xf]
  %v196 = vld [vmem:[%s1 + $0x8] sm:$0xf]
  %v197 = vld [vmem:[%s1 + $0xc] sm:$0xf]
  %v198 = vld [vmem:[%s1 + $0x10] sm:$0xf]
  %v199 = vld [vmem:[%s1 + $0x14] sm:$0xf]
  %v200 = vld [vmem:[%s1 + $0x18] sm:$0xf]
  %v201 = vld [vmem:[%s1 + $0x1c] sm:$0xf]
  %v202 = vld [vmem:[%s1 + $0x20] sm:$0xf]
  %v203 = vld [vmem:[%s1 + $0x24] sm:$0xf]
  %v204 = vld [vmem:[%s1 + $0x28] sm:$0xf]
  %v205 = vld [vmem:[%s1 + $0x2c] sm:$0xf]
  %v206 = vld [vmem:[%s1 + $0x30] sm:$0xf]
  %v207 = vld [vmem:[%s1 + $0x34] sm:$0xf]
  %v208 = vld [vmem:[%s1 + $0x38] sm:$0xf]
  %v209 = vld [vmem:[%s1 + $0x3c] sm:$0xf]
  %v210 = vld [vmem:[%s1 + $0x40] sm:$0xf]
  %v211 = vld [vmem:[%s1 + $0x44] sm:$0xf]
  %v212 = vld [vmem:[%s1 + $0x48] sm:$0xf]
  %v213 = vld [vmem:[%s1 + $0x4c] sm:$0xf]
  %v214 = vld [vmem:[%s1 + $0x50] sm:$0xf]
  %v215 = vld [vmem:[%s1 + $0x54] sm:$0xf]
  %v216 = vld [vmem:[%s1 + $0x58] sm:$0xf]
  %v217 = vld [vmem:[%s1 + $0x5c] sm:$0xf]
  %v218 = vld [vmem:[%s1 + $0x60] sm:$0xf]
  %v219 = vld [vmem:[%s1 + $0x64] sm:$0xf]
  %v220 = vld [vmem:[%s1 + $0x68] sm:$0xf]
  %v221 = vld [vmem:[%s1 + $0x6c] sm:$0xf]
  %v222 = vld [vmem:[%s1 + $0x70] sm:$0xf]
  %v223 = vld [vmem:[%s1 + $0x74] sm:$0xf]
  %v224 = vld [vmem:[%s1 + $0x78] sm:$0xf]
  %v225 = vld [vmem:[%s1 + $0x7c] sm:$0xf]
  %v226 = vld [vmem:[%s1 + $0x80] sm:$0xf]
  %v227 = vld [vmem:[%s1 + $0x84] sm:$0xf]
  %v228 = vld [vmem:[%s1 + $0x88] sm:$0xf]
  %v229 = vld [vmem:[%s1 + $0x8c] sm:$0xf]
  %v230 = vld [vmem:[%s1 + $0x90] sm:$0xf]
  %v231 = vld [vmem:[%s1 + $0x94] sm:$0xf]
  %v232 = vld [vmem:[%s1 + $0x98] sm:$0xf]
  %v233 = vld [vmem:[%s1 + $0x9c] sm:$0xf]
  %v234 = vld [vmem:[%s1 + $0xa0] sm:$0xf]
  %v235 = vld [vmem:[%s1 + $0xa4] sm:$0xf]
  %v236 = vld [vmem:[%s1 + $0xa8] sm:$0xf]
  %v237 = vld [vmem:[%s1 + $0xac] sm:$0xf]
  %v238 = vld [vmem:[%s1 + $0xb0] sm:$0xf]
  %v239 = vld [vmem:[%s1 + $0xb4] sm:$0xf]
  %v240 = vld [vmem:[%s1 + $0xb8] sm:$0xf]
  %v241 = vld [vmem:[%s1 + $0xbc] sm:$0xf]
  %v242 = vld [vmem:[%s1 + $0xc0] sm:$0xf]
  %v243 = vld [vmem:[%s1 + $0xc4] sm:$0xf]
  %v244 = vld [vmem:[%s1 + $0xc8] sm:$0xf]
  %v245 = vld [vmem:[%s1 + $0xcc] sm:$0xf]
  %v246 = vld [vmem:[%s1 + $0xd0] sm:$0xf]
  %v247 = vld [vmem:[%s1 + $0xd4] sm:$0xf]
  %v248 = vld [vmem:[%s1 + $0xd8] sm:$0xf]
  %v249 = vld [vmem:[%s1 + $0xdc] sm:$0xf]
  %v250 = vld [vmem:[%s1 + $0xe0] sm:$0xf]
  %v251 = vld [vmem:[%s1 + $0xe4] sm:$0xf]
  %v252 = vld [vmem:[%s1 + $0xe8] sm:$0xf]
  %v253 = vld [vmem:[%s1 + $0xec] sm:$0xf]
  %v254 = vld [vmem:[%s1 + $0xf0] sm:$0xf]
  %v255 = vld [vmem:[%s1 + $0xf4] sm:$0xf]
  %v256 = vld [vmem:[%s1 + $0xf8] sm:$0xf]
  %v257 = vld [vmem:[%s1 + $0xfc] sm:$0xf]
  %v258 = vld [vmem:[%s1 + $0x100] sm:$0xf]
  %v259 = vld [vmem:[%s1 + $0x104] sm:$0xf]
  %v260 = vld [vmem:[%s1 + $0x108] sm:$0xf]
  %v261 = vld [vmem:[%s1 + $0x10c] sm:$0xf]
  %v262 = vld [vmem:[%s1 + $0x110] sm:$0xf]
  %v263 = vld [vmem:[%s1 + $0x114] sm:$0xf]
  %v264 = vld [vmem:[%s1 + $0x118] sm:$0xf]
  %v265 = vld [vmem:[%s1 + $0x11c] sm:$0xf]
  %v266 = vld [vmem:[%s1 + $0x120] sm:$0xf]
  %v267 = vld [vmem:[%s1 + $0x124] sm:$0xf]
  %v268 = vld [vmem:[%s1 + $0x128] sm:$0xf]
  %v269 = vld [vmem:[%s1 + $0x12c] sm:$0xf]
  %v270 = vld [vmem:[%s1 + $0x130] sm:$0xf]
  %v271 = vld [vmem:[%s1 + $0x134] sm:$0xf]
  %v272 = vld [vmem:[%s1 + $0x138] sm:$0xf]
  %v273 = vld [vmem:[%s1 + $0x13c] sm:$0xf]
  %v274 = vld [vmem:[%s1 + $0x140] sm:$0xf]
  %v275 = vld [vmem:[%s1 + $0x144] sm:$0xf]
  %v276 = vld [vmem:[%s1 + $0x148] sm:$0xf]
  %v277 = vld [vmem:[%s1 + $0x14c] sm:$0xf]
  %v278 = vld [vmem:[%s1 + $0x150] sm:$0xf]
  %v279 = vld [vmem:[%s1 + $0x154] sm:$0xf]
  %v280 = vld [vmem:[%s1 + $0x158] sm:$0xf]
  %v281 = vld [vmem:[%s1 + $0x15c] sm:$0xf]
  %v282 = vld [vmem:[%s1 + $0x160] sm:$0xf]
  %v283 = vld [vmem:[%s1 + $0x164] sm:$0xf]
  %v284 = vld [vmem:[%s1 + $0x168] sm:$0xf]
  %v285 = vld [vmem:[%s1 + $0x16c] sm:$0xf]
  %v286 = vld [vmem:[%s1 + $0x170] sm:$0xf]
  %v287 = vld [vmem:[%s1 + $0x174] sm:$0xf]
  %v288 = vld [vmem:[%s1 + $0x178] sm:$0xf]
  %v289 = vld [vmem:[%s1 + $0x17c] sm:$0xf]
  %v290 = vld [vmem:[%s1 + $0x180] sm:$0xf]
  %v291 = vld [vmem:[%s1 + $0x184] sm:$0xf]
  %v292 = vld [vmem:[%s1 + $0x188] sm:$0xf]
  %v293 = vld [vmem:[%s1 + $0x18c] sm:$0xf]
  %v294 = vld [vmem:[%s1 + $0x190] sm:$0xf]
  %v295 = vld [vmem:[%s1 + $0x194] sm:$0xf]
  %v296 = vld [vmem:[%s1 + $0x198] sm:$0xf]
  %v297 = vld [vmem:[%s1 + $0x19c] sm:$0xf]
  %v298 = vld [vmem:[%s1 + $0x1a0] sm:$0xf]
  %v299 = vld [vmem:[%s1 + $0x1a4] sm:$0xf]
  %v300 = vld [vmem:[%s1 + $0x1a8] sm:$0xf]
  %v301 = vld [vmem:[%s1 + $0x1ac] sm:$0xf]
  %v302 = vld [vmem:[%s1 + $0x1b0] sm:$0xf]
  %v303 = vld [vmem:[%s1 + $0x1b4] sm:$0xf]
  %v304 = vld [vmem:[%s1 + $0x1b8] sm:$0xf]
  %v305 = vld [vmem:[%s1 + $0x1bc] sm:$0xf]
  %v306 = vld [vmem:[%s1 + $0x1c0] sm:$0xf]
  %v307 = vld [vmem:[%s1 + $0x1c4] sm:$0xf]
  %v308 = vld [vmem:[%s1 + $0x1c8] sm:$0xf]
  %v309 = vld [vmem:[%s1 + $0x1cc] sm:$0xf]
  %v310 = vld [vmem:[%s1 + $0x1d0] sm:$0xf]
  %v311 = vld [vmem:[%s1 + $0x1d4] sm:$0xf]
  %v312 = vld [vmem:[%s1 + $0x1d8] sm:$0xf]
  %v313 = vld [vmem:[%s1 + $0x1dc] sm:$0xf]
  %v314 = vld [vmem:[%s1 + $0x1e0] sm:$0xf]
  %v315 = vld [vmem:[%s1 + $0x1e4] sm:$0xf]
  %v316 = vld [vmem:[%s1 + $0x1e8] sm:$0xf]
  %v317 = vld [vmem:[%s1 + $0x1ec] sm:$0xf]
  %v318 = vld [vmem:[%s1 + $0x1f0] sm:$0xf]
  %v319 = vld [vmem:[%s1 + $0x1f4] sm:$0xf]
  %v320 = vld [vmem:[%s1 + $0x1f8] sm:$0xf]
  %v321 = vld [vmem:[%s1 + $0x1fc] sm:$0xf]
  %v322 = vld [vmem:[%s1 + $0x200] sm:$0xf]
  %v323 = vld [vmem:[%s1 + $0x204] sm:$0xf]
  %v324 = vld [vmem:[%s1 + $0x208] sm:$0xf]
  %v325 = vld [vmem:[%s1 + $0x20c] sm:$0xf]
  %v326 = vld [vmem:[%s1 + $0x210] sm:$0xf]
  %v327 = vld [vmem:[%s1 + $0x214] sm:$0xf]
  %v328 = vld [vmem:[%s1 + $0x218] sm:$0xf]
  %v329 = vld [vmem:[%s1 + $0x21c] sm:$0xf]
  %v330 = vld [vmem:[%s1 + $0x220] sm:$0xf]
  %v331 = vld [vmem:[%s1 + $0x224] sm:$0xf]
  %v332 = vld [vmem:[%s1 + $0x228] sm:$0xf]
  %v333 = vld [vmem:[%s1 + $0x22c] sm:$0xf]
  %v334 = vld [vmem:[%s1 + $0x230] sm:$0xf]
  %v335 = vld [vmem:[%s1 + $0x234] sm:$0xf]
  %v336 = vld [vmem:[%s1 + $0x238] sm:$0xf]
  %v337 = vld [vmem:[%s1 + $0x23c] sm:$0xf]
  %v338 = vld [vmem:[%s2] sm:$0x1]
  %v340 = vperm.slane %v338, 0
  %v522 = vunpack.c.l.b16 %v14
  %v523 = vunpack.c.h.b16 %v14
  %v524 = vunpack.c.l.b16 %v15
  %v525 = vunpack.c.h.b16 %v15
  %v526 = vunpack.c.l.b16 %v16
  %v527 = vunpack.c.h.b16 %v16
  %v528 = vunpack.c.l.b16 %v17
  %v529 = vunpack.c.h.b16 %v17
  %v530 = vunpack.c.l.b16 %v18
  %v531 = vunpack.c.l.b16 %v19
  %v532 = vunpack.c.h.b16 %v19
  %v533 = vunpack.c.l.b16 %v20
  %v534 = vunpack.c.h.b16 %v20
  %v535 = vunpack.c.l.b16 %v21
  %v536 = vunpack.c.h.b16 %v21
  %v537 = vunpack.c.l.b16 %v22
  %v538 = vunpack.c.h.b16 %v22
  %v539 = vunpack.c.l.b16 %v23
  %v540 = vunpack.c.l.b16 %v24
  %v541 = vunpack.c.h.b16 %v24
  %v542 = vunpack.c.l.b16 %v25
  %v543 = vunpack.c.h.b16 %v25
  %v544 = vunpack.c.l.b16 %v26
  %v545 = vunpack.c.h.b16 %v26
  %v546 = vunpack.c.l.b16 %v27
  %v547 = vunpack.c.h.b16 %v27
  %v548 = vunpack.c.l.b16 %v28
  %v549 = vunpack.c.l.b16 %v29
  %v550 = vunpack.c.h.b16 %v29
  %v551 = vunpack.c.l.b16 %v30
  %v552 = vunpack.c.h.b16 %v30
  %v553 = vunpack.c.l.b16 %v31
  %v554 = vunpack.c.h.b16 %v31
  %v555 = vunpack.c.l.b16 %v32
  %v556 = vunpack.c.h.b16 %v32
  %v557 = vunpack.c.l.b16 %v33
  %v558 = vunpack.c.l.b16 %v34
  %v559 = vunpack.c.h.b16 %v34
  %v560 = vunpack.c.l.b16 %v35
  %v561 = vunpack.c.h.b16 %v35
  %v562 = vunpack.c.l.b16 %v36
  %v563 = vunpack.c.h.b16 %v36
  %v564 = vunpack.c.l.b16 %v37
  %v565 = vunpack.c.h.b16 %v37
  %v566 = vunpack.c.l.b16 %v38
  %v567 = vunpack.c.l.b16 %v39
  %v568 = vunpack.c.h.b16 %v39
  %v569 = vunpack.c.l.b16 %v40
  %v570 = vunpack.c.h.b16 %v40
  %v571 = vunpack.c.l.b16 %v41
  %v572 = vunpack.c.h.b16 %v41
  %v573 = vunpack.c.l.b16 %v42
  %v574 = vunpack.c.h.b16 %v42
  %v575 = vunpack.c.l.b16 %v43
  %v576 = vunpack.c.l.b16 %v44
  %v577 = vunpack.c.h.b16 %v44
  %v578 = vunpack.c.l.b16 %v45
  %v579 = vunpack.c.h.b16 %v45
  %v580 = vunpack.c.l.b16 %v46
  %v581 = vunpack.c.h.b16 %v46
  %v582 = vunpack.c.l.b16 %v47
  %v583 = vunpack.c.h.b16 %v47
  %v584 = vunpack.c.l.b16 %v48
  %v585 = vunpack.c.l.b16 %v49
  %v586 = vunpack.c.h.b16 %v49
  %v587 = vunpack.c.l.b16 %v50
  %v588 = vunpack.c.h.b16 %v50
  %v589 = vunpack.c.l.b16 %v51
  %v590 = vunpack.c.h.b16 %v51
  %v591 = vunpack.c.l.b16 %v52
  %v592 = vunpack.c.h.b16 %v52
  %v593 = vunpack.c.l.b16 %v53
  %v594 = vunpack.c.l.b16 %v54
  %v595 = vunpack.c.h.b16 %v54
  %v596 = vunpack.c.l.b16 %v55
  %v597 = vunpack.c.h.b16 %v55
  %v598 = vunpack.c.l.b16 %v56
  %v599 = vunpack.c.h.b16 %v56
  %v600 = vunpack.c.l.b16 %v57
  %v601 = vunpack.c.h.b16 %v57
  %v602 = vunpack.c.l.b16 %v58
  %v603 = vunpack.c.l.b16 %v59
  %v604 = vunpack.c.h.b16 %v59
  %v605 = vunpack.c.l.b16 %v60
  %v606 = vunpack.c.h.b16 %v60
  %v607 = vunpack.c.l.b16 %v61
  %v608 = vunpack.c.h.b16 %v61
  %v609 = vunpack.c.l.b16 %v62
  %v610 = vunpack.c.h.b16 %v62
  %v611 = vunpack.c.l.b16 %v63
  %v612 = vunpack.c.l.b16 %v64
  %v613 = vunpack.c.h.b16 %v64
  %v614 = vunpack.c.l.b16 %v65
  %v615 = vunpack.c.h.b16 %v65
  %v616 = vunpack.c.l.b16 %v66
  %v617 = vunpack.c.h.b16 %v66
  %v618 = vunpack.c.l.b16 %v67
  %v619 = vunpack.c.h.b16 %v67
  %v620 = vunpack.c.l.b16 %v68
  %v621 = vunpack.c.l.b16 %v69
  %v622 = vunpack.c.h.b16 %v69
  %v623 = vunpack.c.l.b16 %v70
  %v624 = vunpack.c.h.b16 %v70
  %v625 = vunpack.c.l.b16 %v71
  %v626 = vunpack.c.h.b16 %v71
  %v627 = vunpack.c.l.b16 %v72
  %v628 = vunpack.c.h.b16 %v72
  %v629 = vunpack.c.l.b16 %v73
  %v630 = vunpack.c.l.b16 %v74
  %v631 = vunpack.c.h.b16 %v74
  %v632 = vunpack.c.l.b16 %v75
  %v633 = vunpack.c.h.b16 %v75
  %v634 = vunpack.c.l.b16 %v76
  %v635 = vunpack.c.h.b16 %v76
  %v636 = vunpack.c.l.b16 %v77
  %v637 = vunpack.c.h.b16 %v77
  %v638 = vunpack.c.l.b16 %v78
  %v639 = vunpack.c.l.b16 %v79
  %v640 = vunpack.c.h.b16 %v79
  %v641 = vunpack.c.l.b16 %v80
  %v642 = vunpack.c.h.b16 %v80
  %v643 = vunpack.c.l.b16 %v81
  %v644 = vunpack.c.h.b16 %v81
  %v645 = vunpack.c.l.b16 %v82
  %v646 = vunpack.c.h.b16 %v82
  %v647 = vunpack.c.l.b16 %v83
  %v648 = vunpack.c.l.b16 %v84
  %v649 = vunpack.c.h.b16 %v84
  %v650 = vunpack.c.l.b16 %v85
  %v651 = vunpack.c.h.b16 %v85
  %v652 = vunpack.c.l.b16 %v86
  %v653 = vunpack.c.h.b16 %v86
  %v654 = vunpack.c.l.b16 %v87
  %v655 = vunpack.c.h.b16 %v87
  %v656 = vunpack.c.l.b16 %v88
  %v657 = vunpack.c.l.b16 %v89
  %v658 = vunpack.c.h.b16 %v89
  %v659 = vunpack.c.l.b16 %v90
  %v660 = vunpack.c.h.b16 %v90
  %v661 = vunpack.c.l.b16 %v91
  %v662 = vunpack.c.h.b16 %v91
  %v663 = vunpack.c.l.b16 %v92
  %v664 = vunpack.c.h.b16 %v92
  %v665 = vunpack.c.l.b16 %v93
  %v666 = vunpack.c.l.b16 %v94
  %v667 = vunpack.c.h.b16 %v94
  %v668 = vunpack.c.l.b16 %v95
  %v669 = vunpack.c.h.b16 %v95
  %v670 = vunpack.c.l.b16 %v96
  %v671 = vunpack.c.h.b16 %v96
  %v672 = vunpack.c.l.b16 %v97
  %v673 = vunpack.c.h.b16 %v97
  %v674 = vunpack.c.l.b16 %v98
  %v675 = vunpack.c.l.b16 %v99
  %v676 = vunpack.c.h.b16 %v99
  %v677 = vunpack.c.l.b16 %v100
  %v678 = vunpack.c.h.b16 %v100
  %v679 = vunpack.c.l.b16 %v101
  %v680 = vunpack.c.h.b16 %v101
  %v681 = vunpack.c.l.b16 %v102
  %v682 = vunpack.c.h.b16 %v102
  %v683 = vunpack.c.l.b16 %v103
  %v684 = vunpack.c.l.b16 %v104
  %v685 = vunpack.c.h.b16 %v104
  %v686 = vunpack.c.l.b16 %v105
  %v687 = vunpack.c.h.b16 %v105
  %v688 = vunpack.c.l.b16 %v106
  %v689 = vunpack.c.h.b16 %v106
  %v690 = vunpack.c.l.b16 %v107
  %v691 = vunpack.c.h.b16 %v107
  %v692 = vunpack.c.l.b16 %v108
  %v693 = vunpack.c.l.b16 %v109
  %v694 = vunpack.c.h.b16 %v109
  %v695 = vunpack.c.l.b16 %v110
  %v696 = vunpack.c.h.b16 %v110
  %v697 = vunpack.c.l.b16 %v111
  %v698 = vunpack.c.h.b16 %v111
  %v699 = vunpack.c.l.b16 %v112
  %v700 = vunpack.c.h.b16 %v112
  %v701 = vunpack.c.l.b16 %v113
  %v702 = vunpack.c.l.b16 %v114
  %v703 = vunpack.c.h.b16 %v114
  %v704 = vunpack.c.l.b16 %v115
  %v705 = vunpack.c.h.b16 %v115
  %v706 = vunpack.c.l.b16 %v116
  %v707 = vunpack.c.h.b16 %v116
  %v708 = vunpack.c.l.b16 %v117
  %v709 = vunpack.c.h.b16 %v117
  %v710 = vunpack.c.l.b16 %v118
  %v711 = vunpack.c.l.b16 %v119
  %v712 = vunpack.c.h.b16 %v119
  %v713 = vunpack.c.l.b16 %v120
  %v714 = vunpack.c.h.b16 %v120
  %v715 = vunpack.c.l.b16 %v121
  %v716 = vunpack.c.h.b16 %v121
  %v717 = vunpack.c.l.b16 %v122
  %v718 = vunpack.c.h.b16 %v122
  %v719 = vunpack.c.l.b16 %v123
  %v720 = vunpack.c.l.b16 %v124
  %v721 = vunpack.c.h.b16 %v124
  %v722 = vunpack.c.l.b16 %v125
  %v723 = vunpack.c.h.b16 %v125
  %v724 = vunpack.c.l.b16 %v126
  %v725 = vunpack.c.h.b16 %v126
  %v726 = vunpack.c.l.b16 %v127
  %v727 = vunpack.c.h.b16 %v127
  %v728 = vunpack.c.l.b16 %v128
  %v729 = vunpack.c.l.b16 %v129
  %v730 = vunpack.c.h.b16 %v129
  %v731 = vunpack.c.l.b16 %v130
  %v732 = vunpack.c.h.b16 %v130
  %v733 = vunpack.c.l.b16 %v131
  %v734 = vunpack.c.h.b16 %v131
  %v735 = vunpack.c.l.b16 %v132
  %v736 = vunpack.c.h.b16 %v132
  %v737 = vunpack.c.l.b16 %v133
  %v738 = vunpack.c.l.b16 %v134
  %v739 = vunpack.c.h.b16 %v134
  %v740 = vunpack.c.l.b16 %v135
  %v741 = vunpack.c.h.b16 %v135
  %v742 = vunpack.c.l.b16 %v136
  %v743 = vunpack.c.h.b16 %v136
  %v744 = vunpack.c.l.b16 %v137
  %v745 = vunpack.c.h.b16 %v137
  %v746 = vunpack.c.l.b16 %v138
  %v747 = vunpack.c.l.b16 %v139
  %v748 = vunpack.c.h.b16 %v139
  %v749 = vunpack.c.l.b16 %v140
  %v750 = vunpack.c.h.b16 %v140
  %v751 = vunpack.c.l.b16 %v141
  %v752 = vunpack.c.h.b16 %v141
  %v753 = vunpack.c.l.b16 %v142
  %v754 = vunpack.c.h.b16 %v142
  %v755 = vunpack.c.l.b16 %v143
  %v756 = vunpack.c.l.b16 %v144
  %v757 = vunpack.c.h.b16 %v144
  %v758 = vunpack.c.l.b16 %v145
  %v759 = vunpack.c.h.b16 %v145
  %v760 = vunpack.c.l.b16 %v146
  %v761 = vunpack.c.h.b16 %v146
  %v762 = vunpack.c.l.b16 %v147
  %v763 = vunpack.c.h.b16 %v147
  %v764 = vunpack.c.l.b16 %v148
  %v765 = vunpack.c.l.b16 %v149
  %v766 = vunpack.c.h.b16 %v149
  %v767 = vunpack.c.l.b16 %v150
  %v768 = vunpack.c.h.b16 %v150
  %v769 = vunpack.c.l.b16 %v151
  %v770 = vunpack.c.h.b16 %v151
  %v771 = vunpack.c.l.b16 %v152
  %v772 = vunpack.c.h.b16 %v152
  %v773 = vunpack.c.l.b16 %v153
  %v774 = vunpack.c.l.b16 %v154
  %v775 = vunpack.c.h.b16 %v154
  %v776 = vunpack.c.l.b16 %v155
  %v777 = vunpack.c.h.b16 %v155
  %v778 = vunpack.c.l.b16 %v156
  %v779 = vunpack.c.h.b16 %v156
  %v780 = vunpack.c.l.b16 %v157
  %v781 = vunpack.c.h.b16 %v157
  %v782 = vunpack.c.l.b16 %v158
  %v783 = vunpack.c.l.b16 %v159
  %v784 = vunpack.c.h.b16 %v159
  %v785 = vunpack.c.l.b16 %v160
  %v786 = vunpack.c.h.b16 %v160
  %v787 = vunpack.c.l.b16 %v161
  %v788 = vunpack.c.h.b16 %v161
  %v789 = vunpack.c.l.b16 %v162
  %v790 = vunpack.c.h.b16 %v162
  %v791 = vunpack.c.l.b16 %v163
  %v792 = vunpack.c.l.b16 %v164
  %v793 = vunpack.c.h.b16 %v164
  %v794 = vunpack.c.l.b16 %v165
  %v795 = vunpack.c.h.b16 %v165
  %v796 = vunpack.c.l.b16 %v166
  %v797 = vunpack.c.h.b16 %v166
  %v798 = vunpack.c.l.b16 %v167
  %v799 = vunpack.c.h.b16 %v167
  %v800 = vunpack.c.l.b16 %v168
  %v801 = vunpack.c.l.b16 %v169
  %v802 = vunpack.c.h.b16 %v169
  %v803 = vunpack.c.l.b16 %v170
  %v804 = vunpack.c.h.b16 %v170
  %v805 = vunpack.c.l.b16 %v171
  %v806 = vunpack.c.h.b16 %v171
  %v807 = vunpack.c.l.b16 %v172
  %v808 = vunpack.c.h.b16 %v172
  %v809 = vunpack.c.l.b16 %v173
  %v810 = vunpack.c.l.b16 %v174
  %v811 = vunpack.c.h.b16 %v174
  %v812 = vunpack.c.l.b16 %v175
  %v813 = vunpack.c.h.b16 %v175
  %v814 = vunpack.c.l.b16 %v176
  %v815 = vunpack.c.h.b16 %v176
  %v816 = vunpack.c.l.b16 %v177
  %v817 = vunpack.c.h.b16 %v177
  %v818 = vunpack.c.l.b16 %v178
  %v819 = vunpack.c.l.b16 %v179
  %v820 = vunpack.c.h.b16 %v179
  %v821 = vunpack.c.l.b16 %v180
  %v822 = vunpack.c.h.b16 %v180
  %v823 = vunpack.c.l.b16 %v181
  %v824 = vunpack.c.h.b16 %v181
  %v825 = vunpack.c.l.b16 %v182
  %v826 = vunpack.c.h.b16 %v182
  %v827 = vunpack.c.l.b16 %v183
  %v828 = vunpack.c.l.b16 %v184
  %v829 = vunpack.c.h.b16 %v184
  %v830 = vunpack.c.l.b16 %v185
  %v831 = vunpack.c.h.b16 %v185
  %v832 = vunpack.c.l.b16 %v186
  %v833 = vunpack.c.h.b16 %v186
  %v834 = vunpack.c.l.b16 %v187
  %v835 = vunpack.c.h.b16 %v187
  %v836 = vunpack.c.l.b16 %v188
  %v837 = vunpack.c.l.b16 %v189
  %v838 = vunpack.c.h.b16 %v189
  %v839 = vunpack.c.l.b16 %v190
  %v840 = vunpack.c.h.b16 %v190
  %v841 = vunpack.c.l.b16 %v191
  %v842 = vunpack.c.h.b16 %v191
  %v843 = vunpack.c.l.b16 %v192
  %v844 = vunpack.c.h.b16 %v192
  %v845 = vunpack.c.l.b16 %v193
  %v846 = vpack.c.b16 %v531, %v522
  %v847 = vpack.c.b16 %v532, %v523
  %v848 = vpack.c.b16 %v533, %v524
  %v849 = vpack.c.b16 %v534, %v525
  %v850 = vpack.c.b16 %v535, %v526
  %v851 = vpack.c.b16 %v536, %v527
  %v852 = vpack.c.b16 %v537, %v528
  %v853 = vpack.c.b16 %v538, %v529
  %v854 = vpack.c.b16 %v539, %v530
  %v855 = vpack.c.b16 %v549, %v540
  %v856 = vpack.c.b16 %v550, %v541
  %v857 = vpack.c.b16 %v551, %v542
  %v858 = vpack.c.b16 %v552, %v543
  %v859 = vpack.c.b16 %v553, %v544
  %v860 = vpack.c.b16 %v554, %v545
  %v861 = vpack.c.b16 %v555, %v546
  %v862 = vpack.c.b16 %v556, %v547
  %v863 = vpack.c.b16 %v557, %v548
  %v864 = vpack.c.b16 %v567, %v558
  %v865 = vpack.c.b16 %v568, %v559
  %v866 = vpack.c.b16 %v569, %v560
  %v867 = vpack.c.b16 %v570, %v561
  %v868 = vpack.c.b16 %v571, %v562
  %v869 = vpack.c.b16 %v572, %v563
  %v870 = vpack.c.b16 %v573, %v564
  %v871 = vpack.c.b16 %v574, %v565
  %v872 = vpack.c.b16 %v575, %v566
  %v873 = vpack.c.b16 %v585, %v576
  %v874 = vpack.c.b16 %v586, %v577
  %v875 = vpack.c.b16 %v587, %v578
  %v876 = vpack.c.b16 %v588, %v579
  %v877 = vpack.c.b16 %v589, %v580
  %v878 = vpack.c.b16 %v590, %v581
  %v879 = vpack.c.b16 %v591, %v582
  %v880 = vpack.c.b16 %v592, %v583
  %v881 = vpack.c.b16 %v593, %v584
  %v882 = vpack.c.b16 %v603, %v594
  %v883 = vpack.c.b16 %v604, %v595
  %v884 = vpack.c.b16 %v605, %v596
  %v885 = vpack.c.b16 %v606, %v597
  %v886 = vpack.c.b16 %v607, %v598
  %v887 = vpack.c.b16 %v608, %v599
  %v888 = vpack.c.b16 %v609, %v600
  %v889 = vpack.c.b16 %v610, %v601
  %v890 = vpack.c.b16 %v611, %v602
  %v891 = vpack.c.b16 %v621, %v612
  %v892 = vpack.c.b16 %v622, %v613
  %v893 = vpack.c.b16 %v623, %v614
  %v894 = vpack.c.b16 %v624, %v615
  %v895 = vpack.c.b16 %v625, %v616
  %v896 = vpack.c.b16 %v626, %v617
  %v897 = vpack.c.b16 %v627, %v618
  %v898 = vpack.c.b16 %v628, %v619
  %v899 = vpack.c.b16 %v629, %v620
  %v900 = vpack.c.b16 %v639, %v630
  %v901 = vpack.c.b16 %v640, %v631
  %v902 = vpack.c.b16 %v641, %v632
  %v903 = vpack.c.b16 %v642, %v633
  %v904 = vpack.c.b16 %v643, %v634
  %v905 = vpack.c.b16 %v644, %v635
  %v906 = vpack.c.b16 %v645, %v636
  %v907 = vpack.c.b16 %v646, %v637
  %v908 = vpack.c.b16 %v647, %v638
  %v909 = vpack.c.b16 %v657, %v648
  %v910 = vpack.c.b16 %v658, %v649
  %v911 = vpack.c.b16 %v659, %v650
  %v912 = vpack.c.b16 %v660, %v651
  %v913 = vpack.c.b16 %v661, %v652
  %v914 = vpack.c.b16 %v662, %v653
  %v915 = vpack.c.b16 %v663, %v654
  %v916 = vpack.c.b16 %v664, %v655
  %v917 = vpack.c.b16 %v665, %v656
  %v918 = vpack.c.b16 %v675, %v666
  %v919 = vpack.c.b16 %v676, %v667
  %v920 = vpack.c.b16 %v677, %v668
  %v921 = vpack.c.b16 %v678, %v669
  %v922 = vpack.c.b16 %v679, %v670
  %v923 = vpack.c.b16 %v680, %v671
  %v924 = vpack.c.b16 %v681, %v672
  %v925 = vpack.c.b16 %v682, %v673
  %v926 = vpack.c.b16 %v683, %v674
  %v927 = vpack.c.b16 %v693, %v684
  %v928 = vpack.c.b16 %v694, %v685
  %v929 = vpack.c.b16 %v695, %v686
  %v930 = vpack.c.b16 %v696, %v687
  %v931 = vpack.c.b16 %v697, %v688
  %v932 = vpack.c.b16 %v698, %v689
  %v933 = vpack.c.b16 %v699, %v690
  %v934 = vpack.c.b16 %v700, %v691
  %v935 = vpack.c.b16 %v701, %v692
  %v936 = vpack.c.b16 %v711, %v702
  %v937 = vpack.c.b16 %v712, %v703
  %v938 = vpack.c.b16 %v713, %v704
  %v939 = vpack.c.b16 %v714, %v705
  %v940 = vpack.c.b16 %v715, %v706
  %v941 = vpack.c.b16 %v716, %v707
  %v942 = vpack.c.b16 %v717, %v708
  %v943 = vpack.c.b16 %v718, %v709
  %v944 = vpack.c.b16 %v719, %v710
  %v945 = vpack.c.b16 %v729, %v720
  %v946 = vpack.c.b16 %v730, %v721
  %v947 = vpack.c.b16 %v731, %v722
  %v948 = vpack.c.b16 %v732, %v723
  %v949 = vpack.c.b16 %v733, %v724
  %v950 = vpack.c.b16 %v734, %v725
  %v951 = vpack.c.b16 %v735, %v726
  %v952 = vpack.c.b16 %v736, %v727
  %v953 = vpack.c.b16 %v737, %v728
  %v954 = vpack.c.b16 %v747, %v738
  %v955 = vpack.c.b16 %v748, %v739
  %v956 = vpack.c.b16 %v749, %v740
  %v957 = vpack.c.b16 %v750, %v741
  %v958 = vpack.c.b16 %v751, %v742
  %v959 = vpack.c.b16 %v752, %v743
  %v960 = vpack.c.b16 %v753, %v744
  %v961 = vpack.c.b16 %v754, %v745
  %v962 = vpack.c.b16 %v755, %v746
  %v963 = vpack.c.b16 %v765, %v756
  %v964 = vpack.c.b16 %v766, %v757
  %v965 = vpack.c.b16 %v767, %v758
  %v966 = vpack.c.b16 %v768, %v759
  %v967 = vpack.c.b16 %v769, %v760
  %v968 = vpack.c.b16 %v770, %v761
  %v969 = vpack.c.b16 %v771, %v762
  %v970 = vpack.c.b16 %v772, %v763
  %v971 = vpack.c.b16 %v773, %v764
  %v972 = vpack.c.b16 %v783, %v774
  %v973 = vpack.c.b16 %v784, %v775
  %v974 = vpack.c.b16 %v785, %v776
  %v975 = vpack.c.b16 %v786, %v777
  %v976 = vpack.c.b16 %v787, %v778
  %v977 = vpack.c.b16 %v788, %v779
  %v978 = vpack.c.b16 %v789, %v780
  %v979 = vpack.c.b16 %v790, %v781
  %v980 = vpack.c.b16 %v791, %v782
  %v981 = vpack.c.b16 %v801, %v792
  %v982 = vpack.c.b16 %v802, %v793
  %v983 = vpack.c.b16 %v803, %v794
  %v984 = vpack.c.b16 %v804, %v795
  %v985 = vpack.c.b16 %v805, %v796
  %v986 = vpack.c.b16 %v806, %v797
  %v987 = vpack.c.b16 %v807, %v798
  %v988 = vpack.c.b16 %v808, %v799
  %v989 = vpack.c.b16 %v809, %v800
  %v990 = vpack.c.b16 %v819, %v810
  %v991 = vpack.c.b16 %v820, %v811
  %v992 = vpack.c.b16 %v821, %v812
  %v993 = vpack.c.b16 %v822, %v813
  %v994 = vpack.c.b16 %v823, %v814
  %v995 = vpack.c.b16 %v824, %v815
  %v996 = vpack.c.b16 %v825, %v816
  %v997 = vpack.c.b16 %v826, %v817
  %v998 = vpack.c.b16 %v827, %v818
  %v999 = vpack.c.b16 %v837, %v828
  %v1000 = vpack.c.b16 %v838, %v829
  %v1001 = vpack.c.b16 %v839, %v830
  %v1002 = vpack.c.b16 %v840, %v831
  %v1003 = vpack.c.b16 %v841, %v832
  %v1004 = vpack.c.b16 %v842, %v833
  %v1005 = vpack.c.b16 %v843, %v834
  %v1006 = vpack.c.b16 %v844, %v835
  %v1007 = vpack.c.b16 %v845, %v836
  %v1314 = vunpack.c.l.b16 %v194
  %v1315 = vunpack.c.l.b16 %v195
  %v1316 = vunpack.c.l.b16 %v196
  %v1317 = vunpack.c.l.b16 %v197
  %v1318 = vunpack.c.l.b16 %v198
  %v1319 = vunpack.c.l.b16 %v199
  %v1320 = vunpack.c.l.b16 %v200
  %v1321 = vunpack.c.l.b16 %v201
  %v1322 = vunpack.c.l.b16 %v202
  %v1323 = vunpack.c.l.b16 %v203
  %v1324 = vunpack.c.l.b16 %v204
  %v1325 = vunpack.c.l.b16 %v205
  %v1326 = vunpack.c.l.b16 %v206
  %v1327 = vunpack.c.l.b16 %v207
  %v1328 = vunpack.c.l.b16 %v208
  %v1329 = vunpack.c.l.b16 %v209
  %v1330 = vunpack.c.l.b16 %v210
  %v1331 = vunpack.c.l.b16 %v211
  %v1332 = vunpack.c.l.b16 %v212
  %v1333 = vunpack.c.l.b16 %v213
  %v1334 = vunpack.c.l.b16 %v214
  %v1335 = vunpack.c.l.b16 %v215
  %v1336 = vunpack.c.l.b16 %v216
  %v1337 = vunpack.c.l.b16 %v217
  %v1338 = vunpack.c.l.b16 %v218
  %v1339 = vunpack.c.l.b16 %v219
  %v1340 = vunpack.c.l.b16 %v220
  %v1341 = vunpack.c.l.b16 %v221
  %v1342 = vunpack.c.l.b16 %v222
  %v1343 = vunpack.c.l.b16 %v223
  %v1344 = vunpack.c.l.b16 %v224
  %v1345 = vunpack.c.l.b16 %v225
  %v1346 = vunpack.c.l.b16 %v226
  %v1347 = vunpack.c.l.b16 %v227
  %v1348 = vunpack.c.l.b16 %v228
  %v1349 = vunpack.c.l.b16 %v229
  %v1350 = vunpack.c.l.b16 %v230
  %v1351 = vunpack.c.l.b16 %v231
  %v1352 = vunpack.c.l.b16 %v232
  %v1353 = vunpack.c.l.b16 %v233
  %v1354 = vunpack.c.l.b16 %v234
  %v1355 = vunpack.c.l.b16 %v235
  %v1356 = vunpack.c.l.b16 %v236
  %v1357 = vunpack.c.l.b16 %v237
  %v1358 = vunpack.c.l.b16 %v238
  %v1359 = vunpack.c.l.b16 %v239
  %v1360 = vunpack.c.l.b16 %v240
  %v1361 = vunpack.c.l.b16 %v241
  %v1362 = vunpack.c.l.b16 %v242
  %v1363 = vunpack.c.l.b16 %v243
  %v1364 = vunpack.c.l.b16 %v244
  %v1365 = vunpack.c.l.b16 %v245
  %v1366 = vunpack.c.l.b16 %v246
  %v1367 = vunpack.c.l.b16 %v247
  %v1368 = vunpack.c.l.b16 %v248
  %v1369 = vunpack.c.l.b16 %v249
  %v1370 = vunpack.c.l.b16 %v250
  %v1371 = vunpack.c.l.b16 %v251
  %v1372 = vunpack.c.l.b16 %v252
  %v1373 = vunpack.c.l.b16 %v253
  %v1374 = vunpack.c.l.b16 %v254
  %v1375 = vunpack.c.l.b16 %v255
  %v1376 = vunpack.c.l.b16 %v256
  %v1377 = vunpack.c.l.b16 %v257
  %v1378 = vunpack.c.l.b16 %v258
  %v1379 = vunpack.c.l.b16 %v259
  %v1380 = vunpack.c.l.b16 %v260
  %v1381 = vunpack.c.l.b16 %v261
  %v1382 = vunpack.c.l.b16 %v262
  %v1383 = vunpack.c.l.b16 %v263
  %v1384 = vunpack.c.l.b16 %v264
  %v1385 = vunpack.c.l.b16 %v265
  %v1386 = vunpack.c.l.b16 %v266
  %v1387 = vunpack.c.l.b16 %v267
  %v1388 = vunpack.c.l.b16 %v268
  %v1389 = vunpack.c.l.b16 %v269
  %v1390 = vunpack.c.l.b16 %v270
  %v1391 = vunpack.c.l.b16 %v271
  %v1392 = vunpack.c.l.b16 %v272
  %v1393 = vunpack.c.l.b16 %v273
  %v1394 = vunpack.c.l.b16 %v274
  %v1395 = vunpack.c.l.b16 %v275
  %v1396 = vunpack.c.l.b16 %v276
  %v1397 = vunpack.c.l.b16 %v277
  %v1398 = vunpack.c.l.b16 %v278
  %v1399 = vunpack.c.l.b16 %v279
  %v1400 = vunpack.c.l.b16 %v280
  %v1401 = vunpack.c.l.b16 %v281
  %v1402 = vunpack.c.l.b16 %v282
  %v1403 = vunpack.c.l.b16 %v283
  %v1404 = vunpack.c.l.b16 %v284
  %v1405 = vunpack.c.l.b16 %v285
  %v1406 = vunpack.c.l.b16 %v286
  %v1407 = vunpack.c.l.b16 %v287
  %v1408 = vunpack.c.l.b16 %v288
  %v1409 = vunpack.c.l.b16 %v289
  %v1410 = vunpack.c.l.b16 %v290
  %v1411 = vunpack.c.l.b16 %v291
  %v1412 = vunpack.c.l.b16 %v292
  %v1413 = vunpack.c.l.b16 %v293
  %v1414 = vunpack.c.l.b16 %v294
  %v1415 = vunpack.c.l.b16 %v295
  %v1416 = vunpack.c.l.b16 %v296
  %v1417 = vunpack.c.l.b16 %v297
  %v1418 = vunpack.c.l.b16 %v298
  %v1419 = vunpack.c.l.b16 %v299
  %v1420 = vunpack.c.l.b16 %v300
  %v1421 = vunpack.c.l.b16 %v301
  %v1422 = vunpack.c.l.b16 %v302
  %v1423 = vunpack.c.l.b16 %v303
  %v1424 = vunpack.c.l.b16 %v304
  %v1425 = vunpack.c.l.b16 %v305
  %v1426 = vunpack.c.l.b16 %v306
  %v1427 = vunpack.c.l.b16 %v307
  %v1428 = vunpack.c.l.b16 %v308
  %v1429 = vunpack.c.l.b16 %v309
  %v1430 = vunpack.c.l.b16 %v310
  %v1431 = vunpack.c.l.b16 %v311
  %v1432 = vunpack.c.l.b16 %v312
  %v1433 = vunpack.c.l.b16 %v313
  %v1434 = vunpack.c.l.b16 %v314
  %v1435 = vunpack.c.l.b16 %v315
  %v1436 = vunpack.c.l.b16 %v316
  %v1437 = vunpack.c.l.b16 %v317
  %v1438 = vunpack.c.l.b16 %v318
  %v1439 = vunpack.c.l.b16 %v319
  %v1440 = vunpack.c.l.b16 %v320
  %v1441 = vunpack.c.l.b16 %v321
  %v1442 = vunpack.c.l.b16 %v322
  %v1443 = vunpack.c.l.b16 %v323
  %v1444 = vunpack.c.l.b16 %v324
  %v1445 = vunpack.c.l.b16 %v325
  %v1446 = vunpack.c.l.b16 %v326
  %v1447 = vunpack.c.l.b16 %v327
  %v1448 = vunpack.c.l.b16 %v328
  %v1449 = vunpack.c.l.b16 %v329
  %v1450 = vunpack.c.l.b16 %v330
  %v1451 = vunpack.c.l.b16 %v331
  %v1452 = vunpack.c.l.b16 %v332
  %v1453 = vunpack.c.l.b16 %v333
  %v1454 = vunpack.c.l.b16 %v334
  %v1455 = vunpack.c.l.b16 %v335
  %v1456 = vunpack.c.l.b16 %v336
  %v1457 = vunpack.c.l.b16 %v337
  %v1458 = vpack.c.b16 %v1315, %v1314
  %v1459 = vpack.c.b16 %v1317, %v1316
  %v1460 = vpack.c.b16 %v1319, %v1318
  %v1461 = vpack.c.b16 %v1321, %v1320
  %v1462 = vpack.c.b16 %v1323, %v1322
  %v1463 = vpack.c.b16 %v1325, %v1324
  %v1464 = vpack.c.b16 %v1327, %v1326
  %v1465 = vpack.c.b16 %v1329, %v1328
  %v1466 = vpack.c.b16 %v1331, %v1330
  %v1467 = vpack.c.b16 %v1333, %v1332
  %v1468 = vpack.c.b16 %v1335, %v1334
  %v1469 = vpack.c.b16 %v1337, %v1336
  %v1470 = vpack.c.b16 %v1339, %v1338
  %v1471 = vpack.c.b16 %v1341, %v1340
  %v1472 = vpack.c.b16 %v1343, %v1342
  %v1473 = vpack.c.b16 %v1345, %v1344
  %v1474 = vpack.c.b16 %v1347, %v1346
  %v1475 = vpack.c.b16 %v1349, %v1348
  %v1476 = vpack.c.b16 %v1351, %v1350
  %v1477 = vpack.c.b16 %v1353, %v1352
  %v1478 = vpack.c.b16 %v1355, %v1354
  %v1479 = vpack.c.b16 %v1357, %v1356
  %v1480 = vpack.c.b16 %v1359, %v1358
  %v1481 = vpack.c.b16 %v1361, %v1360
  %v1482 = vpack.c.b16 %v1363, %v1362
  %v1483 = vpack.c.b16 %v1365, %v1364
  %v1484 = vpack.c.b16 %v1367, %v1366
  %v1485 = vpack.c.b16 %v1369, %v1368
  %v1486 = vpack.c.b16 %v1371, %v1370
  %v1487 = vpack.c.b16 %v1373, %v1372
  %v1488 = vpack.c.b16 %v1375, %v1374
  %v1489 = vpack.c.b16 %v1377, %v1376
  %v1490 = vpack.c.b16 %v1379, %v1378
  %v1491 = vpack.c.b16 %v1381, %v1380
  %v1492 = vpack.c.b16 %v1383, %v1382
  %v1493 = vpack.c.b16 %v1385, %v1384
  %v1494 = vpack.c.b16 %v1387, %v1386
  %v1495 = vpack.c.b16 %v1389, %v1388
  %v1496 = vpack.c.b16 %v1391, %v1390
  %v1497 = vpack.c.b16 %v1393, %v1392
  %v1498 = vpack.c.b16 %v1395, %v1394
  %v1499 = vpack.c.b16 %v1397, %v1396
  %v1500 = vpack.c.b16 %v1399, %v1398
  %v1501 = vpack.c.b16 %v1401, %v1400
  %v1502 = vpack.c.b16 %v1403, %v1402
  %v1503 = vpack.c.b16 %v1405, %v1404
  %v1504 = vpack.c.b16 %v1407, %v1406
  %v1505 = vpack.c.b16 %v1409, %v1408
  %v1506 = vpack.c.b16 %v1411, %v1410
  %v1507 = vpack.c.b16 %v1413, %v1412
  %v1508 = vpack.c.b16 %v1415, %v1414
  %v1509 = vpack.c.b16 %v1417, %v1416
  %v1510 = vpack.c.b16 %v1419, %v1418
  %v1511 = vpack.c.b16 %v1421, %v1420
  %v1512 = vpack.c.b16 %v1423, %v1422
  %v1513 = vpack.c.b16 %v1425, %v1424
  %v1514 = vpack.c.b16 %v1427, %v1426
  %v1515 = vpack.c.b16 %v1429, %v1428
  %v1516 = vpack.c.b16 %v1431, %v1430
  %v1517 = vpack.c.b16 %v1433, %v1432
  %v1518 = vpack.c.b16 %v1435, %v1434
  %v1519 = vpack.c.b16 %v1437, %v1436
  %v1520 = vpack.c.b16 %v1439, %v1438
  %v1521 = vpack.c.b16 %v1441, %v1440
  %v1522 = vpack.c.b16 %v1443, %v1442
  %v1523 = vpack.c.b16 %v1445, %v1444
  %v1524 = vpack.c.b16 %v1447, %v1446
  %v1525 = vpack.c.b16 %v1449, %v1448
  %v1526 = vpack.c.b16 %v1451, %v1450
  %v1527 = vpack.c.b16 %v1453, %v1452
  %v1528 = vpack.c.b16 %v1455, %v1454
  %v1529 = vpack.c.b16 %v1457, %v1456
  %1602 = vmatpush.bf16.msra.mxu0 %v1465
  %1603 = vmatpush.bf16.msra.mxu0 %v1464
  %1604 = vmatpush.bf16.msra.mxu0 %v1463
  %1605 = vmatpush.bf16.msra.mxu0 %v1462
  %1606 = vmatpush.bf16.msra.mxu0 %v1461
  %1607 = vmatpush.bf16.msra.mxu0 %v1460
  %1608 = vmatpush.bf16.msra.mxu0 %v1459
  %1609 = vmatpush.bf16.msra.mxu0 %v1458
  %1610 = vmatmul.bf16.gmra.mxu0 %v846
  %v1611 = vpop.f32.mrf.mxu0
  %v1612 = vadd.f32 %v340, %v1611
  %v1613 = vpop.f32.mrf.mxu0
  %v1614 = vadd.f32 %v340, %v1613
  %1615 = vmatmul.bf16.gmra.mxu0 %v855
  %v1616 = vpop.f32.mrf.mxu0
  %v1617 = vadd.f32 %v340, %v1616
  %v1618 = vpop.f32.mrf.mxu0
  %v1619 = vadd.f32 %v340, %v1618
  %1620 = vmatmul.bf16.gmra.mxu0 %v864
  %v1621 = vpop.f32.mrf.mxu0
  %v1622 = vadd.f32 %v340, %v1621
  %v1623 = vpop.f32.mrf.mxu0
  %v1624 = vadd.f32 %v340, %v1623
  %1625 = vmatmul.bf16.gmra.mxu0 %v873
  %v1626 = vpop.f32.mrf.mxu0
  %v1627 = vadd.f32 %v340, %v1626
  %v1628 = vpop.f32.mrf.mxu0
  %v1629 = vadd.f32 %v340, %v1628
  %1630 = vmatmul.bf16.gmra.mxu0 %v882
  %v1631 = vpop.f32.mrf.mxu0
  %v1632 = vadd.f32 %v340, %v1631
  %v1633 = vpop.f32.mrf.mxu0
  %v1634 = vadd.f32 %v340, %v1633
  %1635 = vmatmul.bf16.gmra.mxu0 %v891
  %v1636 = vpop.f32.mrf.mxu0
  %v1637 = vadd.f32 %v340, %v1636
  %v1638 = vpop.f32.mrf.mxu0
  %v1639 = vadd.f32 %v340, %v1638
  %1640 = vmatmul.bf16.gmra.mxu0 %v900
  %v1641 = vpop.f32.mrf.mxu0
  %v1642 = vadd.f32 %v340, %v1641
  %v1643 = vpop.f32.mrf.mxu0
  %v1644 = vadd.f32 %v340, %v1643
  %1645 = vmatmul.bf16.gmra.mxu0 %v909
  %v1646 = vpop.f32.mrf.mxu0
  %v1647 = vadd.f32 %v340, %v1646
  %v1648 = vpop.f32.mrf.mxu0
  %v1649 = vadd.f32 %v340, %v1648
  %1650 = vmatmul.bf16.gmra.mxu0 %v918
  %v1651 = vpop.f32.mrf.mxu0
  %v1652 = vadd.f32 %v340, %v1651
  %v1653 = vpop.f32.mrf.mxu0
  %v1654 = vadd.f32 %v340, %v1653
  %1655 = vmatmul.bf16.gmra.mxu0 %v927
  %v1656 = vpop.f32.mrf.mxu0
  %v1657 = vadd.f32 %v340, %v1656
  %v1658 = vpop.f32.mrf.mxu0
  %v1659 = vadd.f32 %v340, %v1658
  %1660 = vmatmul.bf16.gmra.mxu0 %v936
  %v1661 = vpop.f32.mrf.mxu0
  %v1662 = vadd.f32 %v340, %v1661
  %v1663 = vpop.f32.mrf.mxu0
  %v1664 = vadd.f32 %v340, %v1663
  %1665 = vmatmul.bf16.gmra.mxu0 %v945
  %v1666 = vpop.f32.mrf.mxu0
  %v1667 = vadd.f32 %v340, %v1666
  %v1668 = vpop.f32.mrf.mxu0
  %v1669 = vadd.f32 %v340, %v1668
  %1670 = vmatmul.bf16.gmra.mxu0 %v954
  %v1671 = vpop.f32.mrf.mxu0
  %v1672 = vadd.f32 %v340, %v1671
  %v1673 = vpop.f32.mrf.mxu0
  %v1674 = vadd.f32 %v340, %v1673
  %1675 = vmatmul.bf16.gmra.mxu0 %v963
  %v1676 = vpop.f32.mrf.mxu0
  %v1677 = vadd.f32 %v340, %v1676
  %v1678 = vpop.f32.mrf.mxu0
  %v1679 = vadd.f32 %v340, %v1678
  %1680 = vmatmul.bf16.gmra.mxu0 %v972
  %v1681 = vpop.f32.mrf.mxu0
  %v1682 = vadd.f32 %v340, %v1681
  %v1683 = vpop.f32.mrf.mxu0
  %v1684 = vadd.f32 %v340, %v1683
  %1685 = vmatmul.bf16.gmra.mxu0 %v981
  %v1686 = vpop.f32.mrf.mxu0
  %v1687 = vadd.f32 %v340, %v1686
  %v1688 = vpop.f32.mrf.mxu0
  %v1689 = vadd.f32 %v340, %v1688
  %1690 = vmatmul.bf16.gmra.mxu0 %v990
  %v1691 = vpop.f32.mrf.mxu0
  %v1692 = vadd.f32 %v340, %v1691
  %v1693 = vpop.f32.mrf.mxu0
  %v1694 = vadd.f32 %v340, %v1693
  %1695 = vmatmul.bf16.gmra.mxu0 %v999
  %v1696 = vpop.f32.mrf.mxu0
  %v1697 = vadd.f32 %v340, %v1696
  %v1698 = vpop.f32.mrf.mxu0
  %v1699 = vadd.f32 %v340, %v1698
  %1700 = vdwg.mxu0
  %1701 = vmatpush.bf16.msra.mxu0 %v1473
  %1702 = vmatpush.bf16.msra.mxu0 %v1472
  %1703 = vmatpush.bf16.msra.mxu0 %v1471
  %1704 = vmatpush.bf16.msra.mxu0 %v1470
  %1705 = vmatpush.bf16.msra.mxu0 %v1469
  %1706 = vmatpush.bf16.msra.mxu0 %v1468
  %1707 = vmatpush.bf16.msra.mxu0 %v1467
  %1708 = vmatpush.bf16.msra.mxu0 %v1466
  %1709 = vmatmul.bf16.gmra.mxu0 %v847
  %v1710 = vpop.f32.mrf.mxu0
  %v1711 = vadd.f32 %v1612, %v1710
  %v1712 = vpop.f32.mrf.mxu0
  %v1713 = vadd.f32 %v1614, %v1712
  %1714 = vmatmul.bf16.gmra.mxu0 %v856
  %v1715 = vpop.f32.mrf.mxu0
  %v1716 = vadd.f32 %v1617, %v1715
  %v1717 = vpop.f32.mrf.mxu0
  %v1718 = vadd.f32 %v1619, %v1717
  %1719 = vmatmul.bf16.gmra.mxu0 %v865
  %v1720 = vpop.f32.mrf.mxu0
  %v1721 = vadd.f32 %v1622, %v1720
  %v1722 = vpop.f32.mrf.mxu0
  %v1723 = vadd.f32 %v1624, %v1722
  %1724 = vmatmul.bf16.gmra.mxu0 %v874
  %v1725 = vpop.f32.mrf.mxu0
  %v1726 = vadd.f32 %v1627, %v1725
  %v1727 = vpop.f32.mrf.mxu0
  %v1728 = vadd.f32 %v1629, %v1727
  %1729 = vmatmul.bf16.gmra.mxu0 %v883
  %v1730 = vpop.f32.mrf.mxu0
  %v1731 = vadd.f32 %v1632, %v1730
  %v1732 = vpop.f32.mrf.mxu0
  %v1733 = vadd.f32 %v1634, %v1732
  %1734 = vmatmul.bf16.gmra.mxu0 %v892
  %v1735 = vpop.f32.mrf.mxu0
  %v1736 = vadd.f32 %v1637, %v1735
  %v1737 = vpop.f32.mrf.mxu0
  %v1738 = vadd.f32 %v1639, %v1737
  %1739 = vmatmul.bf16.gmra.mxu0 %v901
  %v1740 = vpop.f32.mrf.mxu0
  %v1741 = vadd.f32 %v1642, %v1740
  %v1742 = vpop.f32.mrf.mxu0
  %v1743 = vadd.f32 %v1644, %v1742
  %1744 = vmatmul.bf16.gmra.mxu0 %v910
  %v1745 = vpop.f32.mrf.mxu0
  %v1746 = vadd.f32 %v1647, %v1745
  %v1747 = vpop.f32.mrf.mxu0
  %v1748 = vadd.f32 %v1649, %v1747
  %1749 = vmatmul.bf16.gmra.mxu0 %v919
  %v1750 = vpop.f32.mrf.mxu0
  %v1751 = vadd.f32 %v1652, %v1750
  %v1752 = vpop.f32.mrf.mxu0
  %v1753 = vadd.f32 %v1654, %v1752
  %1754 = vmatmul.bf16.gmra.mxu0 %v928
  %v1755 = vpop.f32.mrf.mxu0
  %v1756 = vadd.f32 %v1657, %v1755
  %v1757 = vpop.f32.mrf.mxu0
  %v1758 = vadd.f32 %v1659, %v1757
  %1759 = vmatmul.bf16.gmra.mxu0 %v937
  %v1760 = vpop.f32.mrf.mxu0
  %v1761 = vadd.f32 %v1662, %v1760
  %v1762 = vpop.f32.mrf.mxu0
  %v1763 = vadd.f32 %v1664, %v1762
  %1764 = vmatmul.bf16.gmra.mxu0 %v946
  %v1765 = vpop.f32.mrf.mxu0
  %v1766 = vadd.f32 %v1667, %v1765
  %v1767 = vpop.f32.mrf.mxu0
  %v1768 = vadd.f32 %v1669, %v1767
  %1769 = vmatmul.bf16.gmra.mxu0 %v955
  %v1770 = vpop.f32.mrf.mxu0
  %v1771 = vadd.f32 %v1672, %v1770
  %v1772 = vpop.f32.mrf.mxu0
  %v1773 = vadd.f32 %v1674, %v1772
  %1774 = vmatmul.bf16.gmra.mxu0 %v964
  %v1775 = vpop.f32.mrf.mxu0
  %v1776 = vadd.f32 %v1677, %v1775
  %v1777 = vpop.f32.mrf.mxu0
  %v1778 = vadd.f32 %v1679, %v1777
  %1779 = vmatmul.bf16.gmra.mxu0 %v973
  %v1780 = vpop.f32.mrf.mxu0
  %v1781 = vadd.f32 %v1682, %v1780
  %v1782 = vpop.f32.mrf.mxu0
  %v1783 = vadd.f32 %v1684, %v1782
  %1784 = vmatmul.bf16.gmra.mxu0 %v982
  %v1785 = vpop.f32.mrf.mxu0
  %v1786 = vadd.f32 %v1687, %v1785
  %v1787 = vpop.f32.mrf.mxu0
  %v1788 = vadd.f32 %v1689, %v1787
  %1789 = vmatmul.bf16.gmra.mxu0 %v991
  %v1790 = vpop.f32.mrf.mxu0
  %v1791 = vadd.f32 %v1692, %v1790
  %v1792 = vpop.f32.mrf.mxu0
  %v1793 = vadd.f32 %v1694, %v1792
  %1794 = vmatmul.bf16.gmra.mxu0 %v1000
  %v1795 = vpop.f32.mrf.mxu0
  %v1796 = vadd.f32 %v1697, %v1795
  %v1797 = vpop.f32.mrf.mxu0
  %v1798 = vadd.f32 %v1699, %v1797
  %1799 = vdwg.mxu0
  %1800 = vmatpush.bf16.msra.mxu0 %v1481
  %1801 = vmatpush.bf16.msra.mxu0 %v1480
  %1802 = vmatpush.bf16.msra.mxu0 %v1479
  %1803 = vmatpush.bf16.msra.mxu0 %v1478
  %1804 = vmatpush.bf16.msra.mxu0 %v1477
  %1805 = vmatpush.bf16.msra.mxu0 %v1476
  %1806 = vmatpush.bf16.msra.mxu0 %v1475
  %1807 = vmatpush.bf16.msra.mxu0 %v1474
  %1808 = vmatmul.bf16.gmra.mxu0 %v848
  %v1809 = vpop.f32.mrf.mxu0
  %v1810 = vadd.f32 %v1711, %v1809
  %v1811 = vpop.f32.mrf.mxu0
  %v1812 = vadd.f32 %v1713, %v1811
  %1813 = vmatmul.bf16.gmra.mxu0 %v857
  %v1814 = vpop.f32.mrf.mxu0
  %v1815 = vadd.f32 %v1716, %v1814
  %v1816 = vpop.f32.mrf.mxu0
  %v1817 = vadd.f32 %v1718, %v1816
  %1818 = vmatmul.bf16.gmra.mxu0 %v866
  %v1819 = vpop.f32.mrf.mxu0
  %v1820 = vadd.f32 %v1721, %v1819
  %v1821 = vpop.f32.mrf.mxu0
  %v1822 = vadd.f32 %v1723, %v1821
  %1823 = vmatmul.bf16.gmra.mxu0 %v875
  %v1824 = vpop.f32.mrf.mxu0
  %v1825 = vadd.f32 %v1726, %v1824
  %v1826 = vpop.f32.mrf.mxu0
  %v1827 = vadd.f32 %v1728, %v1826
  %1828 = vmatmul.bf16.gmra.mxu0 %v884
  %v1829 = vpop.f32.mrf.mxu0
  %v1830 = vadd.f32 %v1731, %v1829
  %v1831 = vpop.f32.mrf.mxu0
  %v1832 = vadd.f32 %v1733, %v1831
  %1833 = vmatmul.bf16.gmra.mxu0 %v893
  %v1834 = vpop.f32.mrf.mxu0
  %v1835 = vadd.f32 %v1736, %v1834
  %v1836 = vpop.f32.mrf.mxu0
  %v1837 = vadd.f32 %v1738, %v1836
  %1838 = vmatmul.bf16.gmra.mxu0 %v902
  %v1839 = vpop.f32.mrf.mxu0
  %v1840 = vadd.f32 %v1741, %v1839
  %v1841 = vpop.f32.mrf.mxu0
  %v1842 = vadd.f32 %v1743, %v1841
  %1843 = vmatmul.bf16.gmra.mxu0 %v911
  %v1844 = vpop.f32.mrf.mxu0
  %v1845 = vadd.f32 %v1746, %v1844
  %v1846 = vpop.f32.mrf.mxu0
  %v1847 = vadd.f32 %v1748, %v1846
  %1848 = vmatmul.bf16.gmra.mxu0 %v920
  %v1849 = vpop.f32.mrf.mxu0
  %v1850 = vadd.f32 %v1751, %v1849
  %v1851 = vpop.f32.mrf.mxu0
  %v1852 = vadd.f32 %v1753, %v1851
  %1853 = vmatmul.bf16.gmra.mxu0 %v929
  %v1854 = vpop.f32.mrf.mxu0
  %v1855 = vadd.f32 %v1756, %v1854
  %v1856 = vpop.f32.mrf.mxu0
  %v1857 = vadd.f32 %v1758, %v1856
  %1858 = vmatmul.bf16.gmra.mxu0 %v938
  %v1859 = vpop.f32.mrf.mxu0
  %v1860 = vadd.f32 %v1761, %v1859
  %v1861 = vpop.f32.mrf.mxu0
  %v1862 = vadd.f32 %v1763, %v1861
  %1863 = vmatmul.bf16.gmra.mxu0 %v947
  %v1864 = vpop.f32.mrf.mxu0
  %v1865 = vadd.f32 %v1766, %v1864
  %v1866 = vpop.f32.mrf.mxu0
  %v1867 = vadd.f32 %v1768, %v1866
  %1868 = vmatmul.bf16.gmra.mxu0 %v956
  %v1869 = vpop.f32.mrf.mxu0
  %v1870 = vadd.f32 %v1771, %v1869
  %v1871 = vpop.f32.mrf.mxu0
  %v1872 = vadd.f32 %v1773, %v1871
  %1873 = vmatmul.bf16.gmra.mxu0 %v965
  %v1874 = vpop.f32.mrf.mxu0
  %v1875 = vadd.f32 %v1776, %v1874
  %v1876 = vpop.f32.mrf.mxu0
  %v1877 = vadd.f32 %v1778, %v1876
  %1878 = vmatmul.bf16.gmra.mxu0 %v974
  %v1879 = vpop.f32.mrf.mxu0
  %v1880 = vadd.f32 %v1781, %v1879
  %v1881 = vpop.f32.mrf.mxu0
  %v1882 = vadd.f32 %v1783, %v1881
  %1883 = vmatmul.bf16.gmra.mxu0 %v983
  %v1884 = vpop.f32.mrf.mxu0
  %v1885 = vadd.f32 %v1786, %v1884
  %v1886 = vpop.f32.mrf.mxu0
  %v1887 = vadd.f32 %v1788, %v1886
  %1888 = vmatmul.bf16.gmra.mxu0 %v992
  %v1889 = vpop.f32.mrf.mxu0
  %v1890 = vadd.f32 %v1791, %v1889
  %v1891 = vpop.f32.mrf.mxu0
  %v1892 = vadd.f32 %v1793, %v1891
  %1893 = vmatmul.bf16.gmra.mxu0 %v1001
  %v1894 = vpop.f32.mrf.mxu0
  %v1895 = vadd.f32 %v1796, %v1894
  %v1896 = vpop.f32.mrf.mxu0
  %v1897 = vadd.f32 %v1798, %v1896
  %1898 = vdwg.mxu0
  %1899 = vmatpush.bf16.msra.mxu0 %v1489
  %1900 = vmatpush.bf16.msra.mxu0 %v1488
  %1901 = vmatpush.bf16.msra.mxu0 %v1487
  %1902 = vmatpush.bf16.msra.mxu0 %v1486
  %1903 = vmatpush.bf16.msra.mxu0 %v1485
  %1904 = vmatpush.bf16.msra.mxu0 %v1484
  %1905 = vmatpush.bf16.msra.mxu0 %v1483
  %1906 = vmatpush.bf16.msra.mxu0 %v1482
  %1907 = vmatmul.bf16.gmra.mxu0 %v849
  %v1908 = vpop.f32.mrf.mxu0
  %v1909 = vadd.f32 %v1810, %v1908
  %v1910 = vpop.f32.mrf.mxu0
  %v1911 = vadd.f32 %v1812, %v1910
  %1912 = vmatmul.bf16.gmra.mxu0 %v858
  %v1913 = vpop.f32.mrf.mxu0
  %v1914 = vadd.f32 %v1815, %v1913
  %v1915 = vpop.f32.mrf.mxu0
  %v1916 = vadd.f32 %v1817, %v1915
  %1917 = vmatmul.bf16.gmra.mxu0 %v867
  %v1918 = vpop.f32.mrf.mxu0
  %v1919 = vadd.f32 %v1820, %v1918
  %v1920 = vpop.f32.mrf.mxu0
  %v1921 = vadd.f32 %v1822, %v1920
  %1922 = vmatmul.bf16.gmra.mxu0 %v876
  %v1923 = vpop.f32.mrf.mxu0
  %v1924 = vadd.f32 %v1825, %v1923
  %v1925 = vpop.f32.mrf.mxu0
  %v1926 = vadd.f32 %v1827, %v1925
  %1927 = vmatmul.bf16.gmra.mxu0 %v885
  %v1928 = vpop.f32.mrf.mxu0
  %v1929 = vadd.f32 %v1830, %v1928
  %v1930 = vpop.f32.mrf.mxu0
  %v1931 = vadd.f32 %v1832, %v1930
  %1932 = vmatmul.bf16.gmra.mxu0 %v894
  %v1933 = vpop.f32.mrf.mxu0
  %v1934 = vadd.f32 %v1835, %v1933
  %v1935 = vpop.f32.mrf.mxu0
  %v1936 = vadd.f32 %v1837, %v1935
  %1937 = vmatmul.bf16.gmra.mxu0 %v903
  %v1938 = vpop.f32.mrf.mxu0
  %v1939 = vadd.f32 %v1840, %v1938
  %v1940 = vpop.f32.mrf.mxu0
  %v1941 = vadd.f32 %v1842, %v1940
  %1942 = vmatmul.bf16.gmra.mxu0 %v912
  %v1943 = vpop.f32.mrf.mxu0
  %v1944 = vadd.f32 %v1845, %v1943
  %v1945 = vpop.f32.mrf.mxu0
  %v1946 = vadd.f32 %v1847, %v1945
  %1947 = vmatmul.bf16.gmra.mxu0 %v921
  %v1948 = vpop.f32.mrf.mxu0
  %v1949 = vadd.f32 %v1850, %v1948
  %v1950 = vpop.f32.mrf.mxu0
  %v1951 = vadd.f32 %v1852, %v1950
  %1952 = vmatmul.bf16.gmra.mxu0 %v930
  %v1953 = vpop.f32.mrf.mxu0
  %v1954 = vadd.f32 %v1855, %v1953
  %v1955 = vpop.f32.mrf.mxu0
  %v1956 = vadd.f32 %v1857, %v1955
  %1957 = vmatmul.bf16.gmra.mxu0 %v939
  %v1958 = vpop.f32.mrf.mxu0
  %v1959 = vadd.f32 %v1860, %v1958
  %v1960 = vpop.f32.mrf.mxu0
  %v1961 = vadd.f32 %v1862, %v1960
  %1962 = vmatmul.bf16.gmra.mxu0 %v948
  %v1963 = vpop.f32.mrf.mxu0
  %v1964 = vadd.f32 %v1865, %v1963
  %v1965 = vpop.f32.mrf.mxu0
  %v1966 = vadd.f32 %v1867, %v1965
  %1967 = vmatmul.bf16.gmra.mxu0 %v957
  %v1968 = vpop.f32.mrf.mxu0
  %v1969 = vadd.f32 %v1870, %v1968
  %v1970 = vpop.f32.mrf.mxu0
  %v1971 = vadd.f32 %v1872, %v1970
  %1972 = vmatmul.bf16.gmra.mxu0 %v966
  %v1973 = vpop.f32.mrf.mxu0
  %v1974 = vadd.f32 %v1875, %v1973
  %v1975 = vpop.f32.mrf.mxu0
  %v1976 = vadd.f32 %v1877, %v1975
  %1977 = vmatmul.bf16.gmra.mxu0 %v975
  %v1978 = vpop.f32.mrf.mxu0
  %v1979 = vadd.f32 %v1880, %v1978
  %v1980 = vpop.f32.mrf.mxu0
  %v1981 = vadd.f32 %v1882, %v1980
  %1982 = vmatmul.bf16.gmra.mxu0 %v984
  %v1983 = vpop.f32.mrf.mxu0
  %v1984 = vadd.f32 %v1885, %v1983
  %v1985 = vpop.f32.mrf.mxu0
  %v1986 = vadd.f32 %v1887, %v1985
  %1987 = vmatmul.bf16.gmra.mxu0 %v993
  %v1988 = vpop.f32.mrf.mxu0
  %v1989 = vadd.f32 %v1890, %v1988
  %v1990 = vpop.f32.mrf.mxu0
  %v1991 = vadd.f32 %v1892, %v1990
  %1992 = vmatmul.bf16.gmra.mxu0 %v1002
  %v1993 = vpop.f32.mrf.mxu0
  %v1994 = vadd.f32 %v1895, %v1993
  %v1995 = vpop.f32.mrf.mxu0
  %v1996 = vadd.f32 %v1897, %v1995
  %1997 = vdwg.mxu0
  %1998 = vmatpush.bf16.msra.mxu0 %v1497
  %1999 = vmatpush.bf16.msra.mxu0 %v1496
  %2000 = vmatpush.bf16.msra.mxu0 %v1495
  %2001 = vmatpush.bf16.msra.mxu0 %v1494
  %2002 = vmatpush.bf16.msra.mxu0 %v1493
  %2003 = vmatpush.bf16.msra.mxu0 %v1492
  %2004 = vmatpush.bf16.msra.mxu0 %v1491
  %2005 = vmatpush.bf16.msra.mxu0 %v1490
  %2006 = vmatmul.bf16.gmra.mxu0 %v850
  %v2007 = vpop.f32.mrf.mxu0
  %v2008 = vadd.f32 %v1909, %v2007
  %v2009 = vpop.f32.mrf.mxu0
  %v2010 = vadd.f32 %v1911, %v2009
  %2011 = vmatmul.bf16.gmra.mxu0 %v859
  %v2012 = vpop.f32.mrf.mxu0
  %v2013 = vadd.f32 %v1914, %v2012
  %v2014 = vpop.f32.mrf.mxu0
  %v2015 = vadd.f32 %v1916, %v2014
  %2016 = vmatmul.bf16.gmra.mxu0 %v868
  %v2017 = vpop.f32.mrf.mxu0
  %v2018 = vadd.f32 %v1919, %v2017
  %v2019 = vpop.f32.mrf.mxu0
  %v2020 = vadd.f32 %v1921, %v2019
  %2021 = vmatmul.bf16.gmra.mxu0 %v877
  %v2022 = vpop.f32.mrf.mxu0
  %v2023 = vadd.f32 %v1924, %v2022
  %v2024 = vpop.f32.mrf.mxu0
  %v2025 = vadd.f32 %v1926, %v2024
  %2026 = vmatmul.bf16.gmra.mxu0 %v886
  %v2027 = vpop.f32.mrf.mxu0
  %v2028 = vadd.f32 %v1929, %v2027
  %v2029 = vpop.f32.mrf.mxu0
  %v2030 = vadd.f32 %v1931, %v2029
  %2031 = vmatmul.bf16.gmra.mxu0 %v895
  %v2032 = vpop.f32.mrf.mxu0
  %v2033 = vadd.f32 %v1934, %v2032
  %v2034 = vpop.f32.mrf.mxu0
  %v2035 = vadd.f32 %v1936, %v2034
  %2036 = vmatmul.bf16.gmra.mxu0 %v904
  %v2037 = vpop.f32.mrf.mxu0
  %v2038 = vadd.f32 %v1939, %v2037
  %v2039 = vpop.f32.mrf.mxu0
  %v2040 = vadd.f32 %v1941, %v2039
  %2041 = vmatmul.bf16.gmra.mxu0 %v913
  %v2042 = vpop.f32.mrf.mxu0
  %v2043 = vadd.f32 %v1944, %v2042
  %v2044 = vpop.f32.mrf.mxu0
  %v2045 = vadd.f32 %v1946, %v2044
  %2046 = vmatmul.bf16.gmra.mxu0 %v922
  %v2047 = vpop.f32.mrf.mxu0
  %v2048 = vadd.f32 %v1949, %v2047
  %v2049 = vpop.f32.mrf.mxu0
  %v2050 = vadd.f32 %v1951, %v2049
  %2051 = vmatmul.bf16.gmra.mxu0 %v931
  %v2052 = vpop.f32.mrf.mxu0
  %v2053 = vadd.f32 %v1954, %v2052
  %v2054 = vpop.f32.mrf.mxu0
  %v2055 = vadd.f32 %v1956, %v2054
  %2056 = vmatmul.bf16.gmra.mxu0 %v940
  %v2057 = vpop.f32.mrf.mxu0
  %v2058 = vadd.f32 %v1959, %v2057
  %v2059 = vpop.f32.mrf.mxu0
  %v2060 = vadd.f32 %v1961, %v2059
  %2061 = vmatmul.bf16.gmra.mxu0 %v949
  %v2062 = vpop.f32.mrf.mxu0
  %v2063 = vadd.f32 %v1964, %v2062
  %v2064 = vpop.f32.mrf.mxu0
  %v2065 = vadd.f32 %v1966, %v2064
  %2066 = vmatmul.bf16.gmra.mxu0 %v958
  %v2067 = vpop.f32.mrf.mxu0
  %v2068 = vadd.f32 %v1969, %v2067
  %v2069 = vpop.f32.mrf.mxu0
  %v2070 = vadd.f32 %v1971, %v2069
  %2071 = vmatmul.bf16.gmra.mxu0 %v967
  %v2072 = vpop.f32.mrf.mxu0
  %v2073 = vadd.f32 %v1974, %v2072
  %v2074 = vpop.f32.mrf.mxu0
  %v2075 = vadd.f32 %v1976, %v2074
  %2076 = vmatmul.bf16.gmra.mxu0 %v976
  %v2077 = vpop.f32.mrf.mxu0
  %v2078 = vadd.f32 %v1979, %v2077
  %v2079 = vpop.f32.mrf.mxu0
  %v2080 = vadd.f32 %v1981, %v2079
  %2081 = vmatmul.bf16.gmra.mxu0 %v985
  %v2082 = vpop.f32.mrf.mxu0
  %v2083 = vadd.f32 %v1984, %v2082
  %v2084 = vpop.f32.mrf.mxu0
  %v2085 = vadd.f32 %v1986, %v2084
  %2086 = vmatmul.bf16.gmra.mxu0 %v994
  %v2087 = vpop.f32.mrf.mxu0
  %v2088 = vadd.f32 %v1989, %v2087
  %v2089 = vpop.f32.mrf.mxu0
  %v2090 = vadd.f32 %v1991, %v2089
  %2091 = vmatmul.bf16.gmra.mxu0 %v1003
  %v2092 = vpop.f32.mrf.mxu0
  %v2093 = vadd.f32 %v1994, %v2092
  %v2094 = vpop.f32.mrf.mxu0
  %v2095 = vadd.f32 %v1996, %v2094
  %2096 = vdwg.mxu0
  %2097 = vmatpush.bf16.msra.mxu0 %v1505
  %2098 = vmatpush.bf16.msra.mxu0 %v1504
  %2099 = vmatpush.bf16.msra.mxu0 %v1503
  %2100 = vmatpush.bf16.msra.mxu0 %v1502
  %2101 = vmatpush.bf16.msra.mxu0 %v1501
  %2102 = vmatpush.bf16.msra.mxu0 %v1500
  %2103 = vmatpush.bf16.msra.mxu0 %v1499
  %2104 = vmatpush.bf16.msra.mxu0 %v1498
  %2105 = vmatmul.bf16.gmra.mxu0 %v851
  %v2106 = vpop.f32.mrf.mxu0
  %v2107 = vadd.f32 %v2008, %v2106
  %v2108 = vpop.f32.mrf.mxu0
  %v2109 = vadd.f32 %v2010, %v2108
  %2110 = vmatmul.bf16.gmra.mxu0 %v860
  %v2111 = vpop.f32.mrf.mxu0
  %v2112 = vadd.f32 %v2013, %v2111
  %v2113 = vpop.f32.mrf.mxu0
  %v2114 = vadd.f32 %v2015, %v2113
  %2115 = vmatmul.bf16.gmra.mxu0 %v869
  %v2116 = vpop.f32.mrf.mxu0
  %v2117 = vadd.f32 %v2018, %v2116
  %v2118 = vpop.f32.mrf.mxu0
  %v2119 = vadd.f32 %v2020, %v2118
  %2120 = vmatmul.bf16.gmra.mxu0 %v878
  %v2121 = vpop.f32.mrf.mxu0
  %v2122 = vadd.f32 %v2023, %v2121
  %v2123 = vpop.f32.mrf.mxu0
  %v2124 = vadd.f32 %v2025, %v2123
  %2125 = vmatmul.bf16.gmra.mxu0 %v887
  %v2126 = vpop.f32.mrf.mxu0
  %v2127 = vadd.f32 %v2028, %v2126
  %v2128 = vpop.f32.mrf.mxu0
  %v2129 = vadd.f32 %v2030, %v2128
  %2130 = vmatmul.bf16.gmra.mxu0 %v896
  %v2131 = vpop.f32.mrf.mxu0
  %v2132 = vadd.f32 %v2033, %v2131
  %v2133 = vpop.f32.mrf.mxu0
  %v2134 = vadd.f32 %v2035, %v2133
  %2135 = vmatmul.bf16.gmra.mxu0 %v905
  %v2136 = vpop.f32.mrf.mxu0
  %v2137 = vadd.f32 %v2038, %v2136
  %v2138 = vpop.f32.mrf.mxu0
  %v2139 = vadd.f32 %v2040, %v2138
  %2140 = vmatmul.bf16.gmra.mxu0 %v914
  %v2141 = vpop.f32.mrf.mxu0
  %v2142 = vadd.f32 %v2043, %v2141
  %v2143 = vpop.f32.mrf.mxu0
  %v2144 = vadd.f32 %v2045, %v2143
  %2145 = vmatmul.bf16.gmra.mxu0 %v923
  %v2146 = vpop.f32.mrf.mxu0
  %v2147 = vadd.f32 %v2048, %v2146
  %v2148 = vpop.f32.mrf.mxu0
  %v2149 = vadd.f32 %v2050, %v2148
  %2150 = vmatmul.bf16.gmra.mxu0 %v932
  %v2151 = vpop.f32.mrf.mxu0
  %v2152 = vadd.f32 %v2053, %v2151
  %v2153 = vpop.f32.mrf.mxu0
  %v2154 = vadd.f32 %v2055, %v2153
  %2155 = vmatmul.bf16.gmra.mxu0 %v941
  %v2156 = vpop.f32.mrf.mxu0
  %v2157 = vadd.f32 %v2058, %v2156
  %v2158 = vpop.f32.mrf.mxu0
  %v2159 = vadd.f32 %v2060, %v2158
  %2160 = vmatmul.bf16.gmra.mxu0 %v950
  %v2161 = vpop.f32.mrf.mxu0
  %v2162 = vadd.f32 %v2063, %v2161
  %v2163 = vpop.f32.mrf.mxu0
  %v2164 = vadd.f32 %v2065, %v2163
  %2165 = vmatmul.bf16.gmra.mxu0 %v959
  %v2166 = vpop.f32.mrf.mxu0
  %v2167 = vadd.f32 %v2068, %v2166
  %v2168 = vpop.f32.mrf.mxu0
  %v2169 = vadd.f32 %v2070, %v2168
  %2170 = vmatmul.bf16.gmra.mxu0 %v968
  %v2171 = vpop.f32.mrf.mxu0
  %v2172 = vadd.f32 %v2073, %v2171
  %v2173 = vpop.f32.mrf.mxu0
  %v2174 = vadd.f32 %v2075, %v2173
  %2175 = vmatmul.bf16.gmra.mxu0 %v977
  %v2176 = vpop.f32.mrf.mxu0
  %v2177 = vadd.f32 %v2078, %v2176
  %v2178 = vpop.f32.mrf.mxu0
  %v2179 = vadd.f32 %v2080, %v2178
  %2180 = vmatmul.bf16.gmra.mxu0 %v986
  %v2181 = vpop.f32.mrf.mxu0
  %v2182 = vadd.f32 %v2083, %v2181
  %v2183 = vpop.f32.mrf.mxu0
  %v2184 = vadd.f32 %v2085, %v2183
  %2185 = vmatmul.bf16.gmra.mxu0 %v995
  %v2186 = vpop.f32.mrf.mxu0
  %v2187 = vadd.f32 %v2088, %v2186
  %v2188 = vpop.f32.mrf.mxu0
  %v2189 = vadd.f32 %v2090, %v2188
  %2190 = vmatmul.bf16.gmra.mxu0 %v1004
  %v2191 = vpop.f32.mrf.mxu0
  %v2192 = vadd.f32 %v2093, %v2191
  %v2193 = vpop.f32.mrf.mxu0
  %v2194 = vadd.f32 %v2095, %v2193
  %2195 = vdwg.mxu0
  %2196 = vmatpush.bf16.msra.mxu0 %v1513
  %2197 = vmatpush.bf16.msra.mxu0 %v1512
  %2198 = vmatpush.bf16.msra.mxu0 %v1511
  %2199 = vmatpush.bf16.msra.mxu0 %v1510
  %2200 = vmatpush.bf16.msra.mxu0 %v1509
  %2201 = vmatpush.bf16.msra.mxu0 %v1508
  %2202 = vmatpush.bf16.msra.mxu0 %v1507
  %2203 = vmatpush.bf16.msra.mxu0 %v1506
  %2204 = vmatmul.bf16.gmra.mxu0 %v852
  %v2205 = vpop.f32.mrf.mxu0
  %v2206 = vadd.f32 %v2107, %v2205
  %v2207 = vpop.f32.mrf.mxu0
  %v2208 = vadd.f32 %v2109, %v2207
  %2209 = vmatmul.bf16.gmra.mxu0 %v861
  %v2210 = vpop.f32.mrf.mxu0
  %v2211 = vadd.f32 %v2112, %v2210
  %v2212 = vpop.f32.mrf.mxu0
  %v2213 = vadd.f32 %v2114, %v2212
  %2214 = vmatmul.bf16.gmra.mxu0 %v870
  %v2215 = vpop.f32.mrf.mxu0
  %v2216 = vadd.f32 %v2117, %v2215
  %v2217 = vpop.f32.mrf.mxu0
  %v2218 = vadd.f32 %v2119, %v2217
  %2219 = vmatmul.bf16.gmra.mxu0 %v879
  %v2220 = vpop.f32.mrf.mxu0
  %v2221 = vadd.f32 %v2122, %v2220
  %v2222 = vpop.f32.mrf.mxu0
  %v2223 = vadd.f32 %v2124, %v2222
  %2224 = vmatmul.bf16.gmra.mxu0 %v888
  %v2225 = vpop.f32.mrf.mxu0
  %v2226 = vadd.f32 %v2127, %v2225
  %v2227 = vpop.f32.mrf.mxu0
  %v2228 = vadd.f32 %v2129, %v2227
  %2229 = vmatmul.bf16.gmra.mxu0 %v897
  %v2230 = vpop.f32.mrf.mxu0
  %v2231 = vadd.f32 %v2132, %v2230
  %v2232 = vpop.f32.mrf.mxu0
  %v2233 = vadd.f32 %v2134, %v2232
  %2234 = vmatmul.bf16.gmra.mxu0 %v906
  %v2235 = vpop.f32.mrf.mxu0
  %v2236 = vadd.f32 %v2137, %v2235
  %v2237 = vpop.f32.mrf.mxu0
  %v2238 = vadd.f32 %v2139, %v2237
  %2239 = vmatmul.bf16.gmra.mxu0 %v915
  %v2240 = vpop.f32.mrf.mxu0
  %v2241 = vadd.f32 %v2142, %v2240
  %v2242 = vpop.f32.mrf.mxu0
  %v2243 = vadd.f32 %v2144, %v2242
  %2244 = vmatmul.bf16.gmra.mxu0 %v924
  %v2245 = vpop.f32.mrf.mxu0
  %v2246 = vadd.f32 %v2147, %v2245
  %v2247 = vpop.f32.mrf.mxu0
  %v2248 = vadd.f32 %v2149, %v2247
  %2249 = vmatmul.bf16.gmra.mxu0 %v933
  %v2250 = vpop.f32.mrf.mxu0
  %v2251 = vadd.f32 %v2152, %v2250
  %v2252 = vpop.f32.mrf.mxu0
  %v2253 = vadd.f32 %v2154, %v2252
  %2254 = vmatmul.bf16.gmra.mxu0 %v942
  %v2255 = vpop.f32.mrf.mxu0
  %v2256 = vadd.f32 %v2157, %v2255
  %v2257 = vpop.f32.mrf.mxu0
  %v2258 = vadd.f32 %v2159, %v2257
  %2259 = vmatmul.bf16.gmra.mxu0 %v951
  %v2260 = vpop.f32.mrf.mxu0
  %v2261 = vadd.f32 %v2162, %v2260
  %v2262 = vpop.f32.mrf.mxu0
  %v2263 = vadd.f32 %v2164, %v2262
  %2264 = vmatmul.bf16.gmra.mxu0 %v960
  %v2265 = vpop.f32.mrf.mxu0
  %v2266 = vadd.f32 %v2167, %v2265
  %v2267 = vpop.f32.mrf.mxu0
  %v2268 = vadd.f32 %v2169, %v2267
  %2269 = vmatmul.bf16.gmra.mxu0 %v969
  %v2270 = vpop.f32.mrf.mxu0
  %v2271 = vadd.f32 %v2172, %v2270
  %v2272 = vpop.f32.mrf.mxu0
  %v2273 = vadd.f32 %v2174, %v2272
  %2274 = vmatmul.bf16.gmra.mxu0 %v978
  %v2275 = vpop.f32.mrf.mxu0
  %v2276 = vadd.f32 %v2177, %v2275
  %v2277 = vpop.f32.mrf.mxu0
  %v2278 = vadd.f32 %v2179, %v2277
  %2279 = vmatmul.bf16.gmra.mxu0 %v987
  %v2280 = vpop.f32.mrf.mxu0
  %v2281 = vadd.f32 %v2182, %v2280
  %v2282 = vpop.f32.mrf.mxu0
  %v2283 = vadd.f32 %v2184, %v2282
  %2284 = vmatmul.bf16.gmra.mxu0 %v996
  %v2285 = vpop.f32.mrf.mxu0
  %v2286 = vadd.f32 %v2187, %v2285
  %v2287 = vpop.f32.mrf.mxu0
  %v2288 = vadd.f32 %v2189, %v2287
  %2289 = vmatmul.bf16.gmra.mxu0 %v1005
  %v2290 = vpop.f32.mrf.mxu0
  %v2291 = vadd.f32 %v2192, %v2290
  %v2292 = vpop.f32.mrf.mxu0
  %v2293 = vadd.f32 %v2194, %v2292
  %2294 = vdwg.mxu0
  %2295 = vmatpush.bf16.msra.mxu0 %v1521
  %2296 = vmatpush.bf16.msra.mxu0 %v1520
  %2297 = vmatpush.bf16.msra.mxu0 %v1519
  %2298 = vmatpush.bf16.msra.mxu0 %v1518
  %2299 = vmatpush.bf16.msra.mxu0 %v1517
  %2300 = vmatpush.bf16.msra.mxu0 %v1516
  %2301 = vmatpush.bf16.msra.mxu0 %v1515
  %2302 = vmatpush.bf16.msra.mxu0 %v1514
  %2303 = vmatmul.bf16.gmra.mxu0 %v853
  %v2304 = vpop.f32.mrf.mxu0
  %v2305 = vadd.f32 %v2206, %v2304
  %v2306 = vpop.f32.mrf.mxu0
  %v2307 = vadd.f32 %v2208, %v2306
  %2308 = vmatmul.bf16.gmra.mxu0 %v862
  %v2309 = vpop.f32.mrf.mxu0
  %v2310 = vadd.f32 %v2211, %v2309
  %v2311 = vpop.f32.mrf.mxu0
  %v2312 = vadd.f32 %v2213, %v2311
  %2313 = vmatmul.bf16.gmra.mxu0 %v871
  %v2314 = vpop.f32.mrf.mxu0
  %v2315 = vadd.f32 %v2216, %v2314
  %v2316 = vpop.f32.mrf.mxu0
  %v2317 = vadd.f32 %v2218, %v2316
  %2318 = vmatmul.bf16.gmra.mxu0 %v880
  %v2319 = vpop.f32.mrf.mxu0
  %v2320 = vadd.f32 %v2221, %v2319
  %v2321 = vpop.f32.mrf.mxu0
  %v2322 = vadd.f32 %v2223, %v2321
  %2323 = vmatmul.bf16.gmra.mxu0 %v889
  %v2324 = vpop.f32.mrf.mxu0
  %v2325 = vadd.f32 %v2226, %v2324
  %v2326 = vpop.f32.mrf.mxu0
  %v2327 = vadd.f32 %v2228, %v2326
  %2328 = vmatmul.bf16.gmra.mxu0 %v898
  %v2329 = vpop.f32.mrf.mxu0
  %v2330 = vadd.f32 %v2231, %v2329
  %v2331 = vpop.f32.mrf.mxu0
  %v2332 = vadd.f32 %v2233, %v2331
  %2333 = vmatmul.bf16.gmra.mxu0 %v907
  %v2334 = vpop.f32.mrf.mxu0
  %v2335 = vadd.f32 %v2236, %v2334
  %v2336 = vpop.f32.mrf.mxu0
  %v2337 = vadd.f32 %v2238, %v2336
  %2338 = vmatmul.bf16.gmra.mxu0 %v916
  %v2339 = vpop.f32.mrf.mxu0
  %v2340 = vadd.f32 %v2241, %v2339
  %v2341 = vpop.f32.mrf.mxu0
  %v2342 = vadd.f32 %v2243, %v2341
  %2343 = vmatmul.bf16.gmra.mxu0 %v925
  %v2344 = vpop.f32.mrf.mxu0
  %v2345 = vadd.f32 %v2246, %v2344
  %v2346 = vpop.f32.mrf.mxu0
  %v2347 = vadd.f32 %v2248, %v2346
  %2348 = vmatmul.bf16.gmra.mxu0 %v934
  %v2349 = vpop.f32.mrf.mxu0
  %v2350 = vadd.f32 %v2251, %v2349
  %v2351 = vpop.f32.mrf.mxu0
  %v2352 = vadd.f32 %v2253, %v2351
  %2353 = vmatmul.bf16.gmra.mxu0 %v943
  %v2354 = vpop.f32.mrf.mxu0
  %v2355 = vadd.f32 %v2256, %v2354
  %v2356 = vpop.f32.mrf.mxu0
  %v2357 = vadd.f32 %v2258, %v2356
  %2358 = vmatmul.bf16.gmra.mxu0 %v952
  %v2359 = vpop.f32.mrf.mxu0
  %v2360 = vadd.f32 %v2261, %v2359
  %v2361 = vpop.f32.mrf.mxu0
  %v2362 = vadd.f32 %v2263, %v2361
  %2363 = vmatmul.bf16.gmra.mxu0 %v961
  %v2364 = vpop.f32.mrf.mxu0
  %v2365 = vadd.f32 %v2266, %v2364
  %v2366 = vpop.f32.mrf.mxu0
  %v2367 = vadd.f32 %v2268, %v2366
  %2368 = vmatmul.bf16.gmra.mxu0 %v970
  %v2369 = vpop.f32.mrf.mxu0
  %v2370 = vadd.f32 %v2271, %v2369
  %v2371 = vpop.f32.mrf.mxu0
  %v2372 = vadd.f32 %v2273, %v2371
  %2373 = vmatmul.bf16.gmra.mxu0 %v979
  %v2374 = vpop.f32.mrf.mxu0
  %v2375 = vadd.f32 %v2276, %v2374
  %v2376 = vpop.f32.mrf.mxu0
  %v2377 = vadd.f32 %v2278, %v2376
  %2378 = vmatmul.bf16.gmra.mxu0 %v988
  %v2379 = vpop.f32.mrf.mxu0
  %v2380 = vadd.f32 %v2281, %v2379
  %v2381 = vpop.f32.mrf.mxu0
  %v2382 = vadd.f32 %v2283, %v2381
  %2383 = vmatmul.bf16.gmra.mxu0 %v997
  %v2384 = vpop.f32.mrf.mxu0
  %v2385 = vadd.f32 %v2286, %v2384
  %v2386 = vpop.f32.mrf.mxu0
  %v2387 = vadd.f32 %v2288, %v2386
  %2388 = vmatmul.bf16.gmra.mxu0 %v1006
  %v2389 = vpop.f32.mrf.mxu0
  %v2390 = vadd.f32 %v2291, %v2389
  %v2391 = vpop.f32.mrf.mxu0
  %v2392 = vadd.f32 %v2293, %v2391
  %2393 = vdwg.mxu0
  %2394 = vmatpush.bf16.msra.mxu0 %v1529
  %2395 = vmatpush.bf16.msra.mxu0 %v1528
  %2396 = vmatpush.bf16.msra.mxu0 %v1527
  %2397 = vmatpush.bf16.msra.mxu0 %v1526
  %2398 = vmatpush.bf16.msra.mxu0 %v1525
  %2399 = vmatpush.bf16.msra.mxu0 %v1524
  %2400 = vmatpush.bf16.msra.mxu0 %v1523
  %2401 = vmatpush.bf16.msra.mxu0 %v1522
  %2402 = vmatmul.bf16.gmra.mxu0 %v854
  %v2403 = vpop.f32.mrf.mxu0
  %v2404 = vadd.f32 %v2305, %v2403
  %v2405 = vpop.f32.mrf.mxu0
  %v2406 = vadd.f32 %v2307, %v2405
  %2407 = vmatmul.bf16.gmra.mxu0 %v863
  %v2408 = vpop.f32.mrf.mxu0
  %v2409 = vadd.f32 %v2310, %v2408
  %v2410 = vpop.f32.mrf.mxu0
  %v2411 = vadd.f32 %v2312, %v2410
  %2412 = vmatmul.bf16.gmra.mxu0 %v872
  %v2413 = vpop.f32.mrf.mxu0
  %v2414 = vadd.f32 %v2315, %v2413
  %v2415 = vpop.f32.mrf.mxu0
  %v2416 = vadd.f32 %v2317, %v2415
  %2417 = vmatmul.bf16.gmra.mxu0 %v881
  %v2418 = vpop.f32.mrf.mxu0
  %v2419 = vadd.f32 %v2320, %v2418
  %v2420 = vpop.f32.mrf.mxu0
  %v2421 = vadd.f32 %v2322, %v2420
  %2422 = vmatmul.bf16.gmra.mxu0 %v890
  %v2423 = vpop.f32.mrf.mxu0
  %v2424 = vadd.f32 %v2325, %v2423
  %v2425 = vpop.f32.mrf.mxu0
  %v2426 = vadd.f32 %v2327, %v2425
  %2427 = vmatmul.bf16.gmra.mxu0 %v899
  %v2428 = vpop.f32.mrf.mxu0
  %v2429 = vadd.f32 %v2330, %v2428
  %v2430 = vpop.f32.mrf.mxu0
  %v2431 = vadd.f32 %v2332, %v2430
  %2432 = vmatmul.bf16.gmra.mxu0 %v908
  %v2433 = vpop.f32.mrf.mxu0
  %v2434 = vadd.f32 %v2335, %v2433
  %v2435 = vpop.f32.mrf.mxu0
  %v2436 = vadd.f32 %v2337, %v2435
  %2437 = vmatmul.bf16.gmra.mxu0 %v917
  %v2438 = vpop.f32.mrf.mxu0
  %v2439 = vadd.f32 %v2340, %v2438
  %v2440 = vpop.f32.mrf.mxu0
  %v2441 = vadd.f32 %v2342, %v2440
  %2442 = vmatmul.bf16.gmra.mxu0 %v926
  %v2443 = vpop.f32.mrf.mxu0
  %v2444 = vadd.f32 %v2345, %v2443
  %v2445 = vpop.f32.mrf.mxu0
  %v2446 = vadd.f32 %v2347, %v2445
  %2447 = vmatmul.bf16.gmra.mxu0 %v935
  %v2448 = vpop.f32.mrf.mxu0
  %v2449 = vadd.f32 %v2350, %v2448
  %v2450 = vpop.f32.mrf.mxu0
  %v2451 = vadd.f32 %v2352, %v2450
  %2452 = vmatmul.bf16.gmra.mxu0 %v944
  %v2453 = vpop.f32.mrf.mxu0
  %v2454 = vadd.f32 %v2355, %v2453
  %v2455 = vpop.f32.mrf.mxu0
  %v2456 = vadd.f32 %v2357, %v2455
  %2457 = vmatmul.bf16.gmra.mxu0 %v953
  %v2458 = vpop.f32.mrf.mxu0
  %v2459 = vadd.f32 %v2360, %v2458
  %v2460 = vpop.f32.mrf.mxu0
  %v2461 = vadd.f32 %v2362, %v2460
  %2462 = vmatmul.bf16.gmra.mxu0 %v962
  %v2463 = vpop.f32.mrf.mxu0
  %v2464 = vadd.f32 %v2365, %v2463
  %v2465 = vpop.f32.mrf.mxu0
  %v2466 = vadd.f32 %v2367, %v2465
  %2467 = vmatmul.bf16.gmra.mxu0 %v971
  %v2468 = vpop.f32.mrf.mxu0
  %v2469 = vadd.f32 %v2370, %v2468
  %v2470 = vpop.f32.mrf.mxu0
  %v2471 = vadd.f32 %v2372, %v2470
  %2472 = vmatmul.bf16.gmra.mxu0 %v980
  %v2473 = vpop.f32.mrf.mxu0
  %v2474 = vadd.f32 %v2375, %v2473
  %v2475 = vpop.f32.mrf.mxu0
  %v2476 = vadd.f32 %v2377, %v2475
  %2477 = vmatmul.bf16.gmra.mxu0 %v989
  %v2478 = vpop.f32.mrf.mxu0
  %v2479 = vadd.f32 %v2380, %v2478
  %v2480 = vpop.f32.mrf.mxu0
  %v2481 = vadd.f32 %v2382, %v2480
  %2482 = vmatmul.bf16.gmra.mxu0 %v998
  %v2483 = vpop.f32.mrf.mxu0
  %v2484 = vadd.f32 %v2385, %v2483
  %v2485 = vpop.f32.mrf.mxu0
  %v2486 = vadd.f32 %v2387, %v2485
  %2487 = vmatmul.bf16.gmra.mxu0 %v1007
  %v2488 = vpop.f32.mrf.mxu0
  %v2489 = vadd.f32 %v2390, %v2488
  %v2490 = vpop.f32.mrf.mxu0
  %v2491 = vadd.f32 %v2392, %v2490
  %2492 = vdwg.mxu0
  %v2493 = vmax.f32 %v2404, 0.0
  %v2494 = vmax.f32 %v2406, 0.0
  %v2495 = vmax.f32 %v2409, 0.0
  %v2496 = vmax.f32 %v2411, 0.0
  %v2497 = vmax.f32 %v2414, 0.0
  %v2498 = vmax.f32 %v2416, 0.0
  %v2499 = vmax.f32 %v2419, 0.0
  %v2500 = vmax.f32 %v2421, 0.0
  %v2501 = vmax.f32 %v2424, 0.0
  %v2502 = vmax.f32 %v2426, 0.0
  %v2503 = vmax.f32 %v2429, 0.0
  %v2504 = vmax.f32 %v2431, 0.0
  %v2505 = vmax.f32 %v2434, 0.0
  %v2506 = vmax.f32 %v2436, 0.0
  %v2507 = vmax.f32 %v2439, 0.0
  %v2508 = vmax.f32 %v2441, 0.0
  %v2509 = vmax.f32 %v2444, 0.0
  %v2510 = vmax.f32 %v2446, 0.0
  %v2511 = vmax.f32 %v2449, 0.0
  %v2512 = vmax.f32 %v2451, 0.0
  %v2513 = vmax.f32 %v2454, 0.0
  %v2514 = vmax.f32 %v2456, 0.0
  %v2515 = vmax.f32 %v2459, 0.0
  %v2516 = vmax.f32 %v2461, 0.0
  %v2517 = vmax.f32 %v2464, 0.0
  %v2518 = vmax.f32 %v2466, 0.0
  %v2519 = vmax.f32 %v2469, 0.0
  %v2520 = vmax.f32 %v2471, 0.0
  %v2521 = vmax.f32 %v2474, 0.0
  %v2522 = vmax.f32 %v2476, 0.0
  %v2523 = vmax.f32 %v2479, 0.0
  %v2524 = vmax.f32 %v2481, 0.0
  %v2525 = vmax.f32 %v2484, 0.0
  %v2526 = vmax.f32 %v2486, 0.0
  %v2527 = vmax.f32 %v2489, 0.0
  %v2528 = vmax.f32 %v2491, 0.0
  %v2529 = vpack.c.bf16 %v2493, %v2493
  %v2530 = vpack.c.bf16 %v2494, %v2494
  %v2531 = vpack.c.bf16 %v2495, %v2495
  %v2532 = vpack.c.bf16 %v2496, %v2496
  %v2533 = vpack.c.bf16 %v2497, %v2497
  %v2534 = vpack.c.bf16 %v2498, %v2498
  %v2535 = vpack.c.bf16 %v2499, %v2499
  %v2536 = vpack.c.bf16 %v2500, %v2500
  %v2537 = vpack.c.bf16 %v2501, %v2501
  %v2538 = vpack.c.bf16 %v2502, %v2502
  %v2539 = vpack.c.bf16 %v2503, %v2503
  %v2540 = vpack.c.bf16 %v2504, %v2504
  %v2541 = vpack.c.bf16 %v2505, %v2505
  %v2542 = vpack.c.bf16 %v2506, %v2506
  %v2543 = vpack.c.bf16 %v2507, %v2507
  %v2544 = vpack.c.bf16 %v2508, %v2508
  %v2545 = vpack.c.bf16 %v2509, %v2509
  %v2546 = vpack.c.bf16 %v2510, %v2510
  %v2547 = vpack.c.bf16 %v2511, %v2511
  %v2548 = vpack.c.bf16 %v2512, %v2512
  %v2549 = vpack.c.bf16 %v2513, %v2513
  %v2550 = vpack.c.bf16 %v2514, %v2514
  %v2551 = vpack.c.bf16 %v2515, %v2515
  %v2552 = vpack.c.bf16 %v2516, %v2516
  %v2553 = vpack.c.bf16 %v2517, %v2517
  %v2554 = vpack.c.bf16 %v2518, %v2518
  %v2555 = vpack.c.bf16 %v2519, %v2519
  %v2556 = vpack.c.bf16 %v2520, %v2520
  %v2557 = vpack.c.bf16 %v2521, %v2521
  %v2558 = vpack.c.bf16 %v2522, %v2522
  %v2559 = vpack.c.bf16 %v2523, %v2523
  %v2560 = vpack.c.bf16 %v2524, %v2524
  %v2561 = vpack.c.bf16 %v2525, %v2525
  %v2562 = vpack.c.bf16 %v2526, %v2526
  %v2563 = vpack.c.bf16 %v2527, %v2527
  %v2564 = vpack.c.bf16 %v2528, %v2528
  %2565 = vst [vmem:[%s3] sm:$0xf] %v2529
  %2566 = vst [vmem:[%s3 + $0x4] sm:$0xf] %v2530
  %2567 = vst [vmem:[%s3 + $0x8] sm:$0xf] %v2531
  %2568 = vst [vmem:[%s3 + $0xc] sm:$0xf] %v2532
  %2569 = vst [vmem:[%s3 + $0x10] sm:$0xf] %v2533
  %2570 = vst [vmem:[%s3 + $0x14] sm:$0xf] %v2534
  %2571 = vst [vmem:[%s3 + $0x18] sm:$0xf] %v2535
  %2572 = vst [vmem:[%s3 + $0x1c] sm:$0xf] %v2536
  %2573 = vst [vmem:[%s3 + $0x20] sm:$0xf] %v2537
  %2574 = vst [vmem:[%s3 + $0x24] sm:$0xf] %v2538
  %2575 = vst [vmem:[%s3 + $0x28] sm:$0xf] %v2539
  %2576 = vst [vmem:[%s3 + $0x2c] sm:$0xf] %v2540
  %2577 = vst [vmem:[%s3 + $0x30] sm:$0xf] %v2541
  %2578 = vst [vmem:[%s3 + $0x34] sm:$0xf] %v2542
  %2579 = vst [vmem:[%s3 + $0x38] sm:$0xf] %v2543
  %2580 = vst [vmem:[%s3 + $0x3c] sm:$0xf] %v2544
  %2581 = vst [vmem:[%s3 + $0x40] sm:$0xf] %v2545
  %2582 = vst [vmem:[%s3 + $0x44] sm:$0xf] %v2546
  %2583 = vst [vmem:[%s3 + $0x48] sm:$0xf] %v2547
  %2584 = vst [vmem:[%s3 + $0x4c] sm:$0xf] %v2548
  %2585 = vst [vmem:[%s3 + $0x50] sm:$0xf] %v2549
  %2586 = vst [vmem:[%s3 + $0x54] sm:$0xf] %v2550
  %2587 = vst [vmem:[%s3 + $0x58] sm:$0xf] %v2551
  %2588 = vst [vmem:[%s3 + $0x5c] sm:$0xf] %v2552
  %2589 = vst [vmem:[%s3 + $0x60] sm:$0xf] %v2553
  %2590 = vst [vmem:[%s3 + $0x64] sm:$0xf] %v2554
  %2591 = vst [vmem:[%s3 + $0x68] sm:$0xf] %v2555
  %2592 = vst [vmem:[%s3 + $0x6c] sm:$0xf] %v2556
  %2593 = vst [vmem:[%s3 + $0x70] sm:$0xf] %v2557
  %2594 = vst [vmem:[%s3 + $0x74] sm:$0xf] %v2558
  %2595 = vst [vmem:[%s3 + $0x78] sm:$0xf] %v2559
  %2596 = vst [vmem:[%s3 + $0x7c] sm:$0xf] %v2560
  %2597 = vst [vmem:[%s3 + $0x80] sm:$0xf] %v2561
  %2598 = vst [vmem:[%s3 + $0x84] sm:$0xf] %v2562
  %2599 = vst [vmem:[%s3 + $0x88] sm:$0xf] %v2563
  %2600 = vst [vmem:[%s3 + $0x8c] sm:$0xf] %v2564
  // Predicated region
  $region14: #{_lambda_.60} parent=0 // pred_check
    _
  $region15: #{_lambda_.60} parent=0 // pred_check_branch
    %2602 = sbr.rel (0) target = $region17
  $region16: #{_lambda_.60} parent=0 // pred_region
    _
  $region17: #{_lambda_.60} parent=0 // pred_fallthru
    _
  // Predicated region
  $region18: #{_lambda_.60} parent=0 // pred_check
    _
  $region19: #{_lambda_.60} parent=0 // pred_check_branch
    %2604 = sbr.rel (0) target = $region21
  $region20: #{_lambda_.60} parent=0 // pred_region
    _
  $region21: #{_lambda_.60} parent=0 // pred_fallthru
    _

// kernel: _lambda_.61
$region0: #{_lambda_.61}
  #allocation0 [shape = 'u32[]', space=smem, size = 0x4, offset = 0x4, fixed_abs, tag = 'smem constant byte address 0x4 - core index']
  #allocation1 [shape = 'u32[72,128]{1,0:T(1,128)}', space=vmem, size = 0x9000, scoped, tag = 'internal scratch']
  %s0 = inlined_call_operand.vmem [shape: bf16[288,128], index: 0, kind: input, shape index: {}]
  %s1 = inlined_call_operand.vmem [shape: bf16[128,128], index: 1, kind: input, shape index: {}]
  %s2 = inlined_call_operand.vmem [shape: f32[1,128], index: 2, kind: input, shape index: {}]
  %s3 = inlined_call_operand.vmem [shape: bf16[288,128], index: 3, kind: input, shape index: {}]
  %s4 = inlined_call_operand.vmem [shape: bf16[288,128], index: 4, kind: output, shape index: {}]
  %s5 = sld [smem:[#allocation0]]
  $region26: #{_lambda_.61} parent=0
    _
  %s7 = ssub.s32 1, %s5
  %s8 = scalar_select 0, %s7, %s5
  // Predicated region
  $region2: #{_lambda_.61} parent=0 // pred_check
    _
  $region3: #{_lambda_.61} parent=0 // pred_check_branch
    %10 = sbr.rel (0) target = $region5
  $region4: #{_lambda_.61} parent=0 // pred_region
    _
  $region5: #{_lambda_.61} parent=0 // pred_fallthru
    _
  // Predicated region
  $region6: #{_lambda_.61} parent=0 // pred_check
    _
  $region7: #{_lambda_.61} parent=0 // pred_check_branch
    %12 = sbr.rel (0) target = $region9
  $region8: #{_lambda_.61} parent=0 // pred_region
    _
  $region9: #{_lambda_.61} parent=0 // pred_fallthru
    _
  // Predicated region
  $region10: #{_lambda_.61} parent=0 // pred_check
    _
  $region11: #{_lambda_.61} parent=0 // pred_check_branch
    %14 = sbr.rel (0) target = $region13
  $region12: #{_lambda_.61} parent=0 // pred_region
    _
  $region13: #{_lambda_.61} parent=0 // pred_fallthru
    _
  // Predicated region
  $region14: #{_lambda_.61} parent=0 // pred_check
    _
  $region15: #{_lambda_.61} parent=0 // pred_check_branch
    %16 = sbr.rel (0) target = $region17
  $region16: #{_lambda_.61} parent=0 // pred_region
    _
  $region17: #{_lambda_.61} parent=0 // pred_fallthru
    _
  %v17 = vld [vmem:[%s0] sm:$0xf]
  %v18 = vld [vmem:[%s0 + $0x4] sm:$0xf]
  %v19 = vld [vmem:[%s0 + $0x8] sm:$0xf]
  %v20 = vld [vmem:[%s0 + $0xc] sm:$0xf]
  %v21 = vld [vmem:[%s0 + $0x10] sm:$0xf]
  %v22 = vld [vmem:[%s0 + $0x14] sm:$0xf]
  %v23 = vld [vmem:[%s0 + $0x18] sm:$0xf]
  %v24 = vld [vmem:[%s0 + $0x1c] sm:$0xf]
  %v25 = vld [vmem:[%s0 + $0x20] sm:$0xf]
  %v26 = vld [vmem:[%s0 + $0x24] sm:$0xf]
  %v27 = vld [vmem:[%s0 + $0x28] sm:$0xf]
  %v28 = vld [vmem:[%s0 + $0x2c] sm:$0xf]
  %v29 = vld [vmem:[%s0 + $0x30] sm:$0xf]
  %v30 = vld [vmem:[%s0 + $0x34] sm:$0xf]
  %v31 = vld [vmem:[%s0 + $0x38] sm:$0xf]
  %v32 = vld [vmem:[%s0 + $0x3c] sm:$0xf]
  %v33 = vld [vmem:[%s0 + $0x40] sm:$0xf]
  %v34 = vld [vmem:[%s0 + $0x44] sm:$0xf]
  %v35 = vld [vmem:[%s0 + $0x48] sm:$0xf]
  %v36 = vld [vmem:[%s0 + $0x4c] sm:$0xf]
  %v37 = vld [vmem:[%s0 + $0x50] sm:$0xf]
  %v38 = vld [vmem:[%s0 + $0x54] sm:$0xf]
  %v39 = vld [vmem:[%s0 + $0x58] sm:$0xf]
  %v40 = vld [vmem:[%s0 + $0x5c] sm:$0xf]
  %v41 = vld [vmem:[%s0 + $0x60] sm:$0xf]
  %v42 = vld [vmem:[%s0 + $0x64] sm:$0xf]
  %v43 = vld [vmem:[%s0 + $0x68] sm:$0xf]
  %v44 = vld [vmem:[%s0 + $0x6c] sm:$0xf]
  %v45 = vld [vmem:[%s0 + $0x70] sm:$0xf]
  %v46 = vld [vmem:[%s0 + $0x74] sm:$0xf]
  %v47 = vld [vmem:[%s0 + $0x78] sm:$0xf]
  %v48 = vld [vmem:[%s0 + $0x7c] sm:$0xf]
  %v49 = vld [vmem:[%s0 + $0x80] sm:$0xf]
  %v50 = vld [vmem:[%s0 + $0x84] sm:$0xf]
  %v51 = vld [vmem:[%s0 + $0x88] sm:$0xf]
  %v52 = vld [vmem:[%s0 + $0x8c] sm:$0xf]
  %v53 = vld [vmem:[%s1] sm:$0xf]
  %v54 = vld [vmem:[%s1 + $0x4] sm:$0xf]
  %v55 = vld [vmem:[%s1 + $0x8] sm:$0xf]
  %v56 = vld [vmem:[%s1 + $0xc] sm:$0xf]
  %v57 = vld [vmem:[%s1 + $0x10] sm:$0xf]
  %v58 = vld [vmem:[%s1 + $0x14] sm:$0xf]
  %v59 = vld [vmem:[%s1 + $0x18] sm:$0xf]
  %v60 = vld [vmem:[%s1 + $0x1c] sm:$0xf]
  %v61 = vld [vmem:[%s1 + $0x20] sm:$0xf]
  %v62 = vld [vmem:[%s1 + $0x24] sm:$0xf]
  %v63 = vld [vmem:[%s1 + $0x28] sm:$0xf]
  %v64 = vld [vmem:[%s1 + $0x2c] sm:$0xf]
  %v65 = vld [vmem:[%s1 + $0x30] sm:$0xf]
  %v66 = vld [vmem:[%s1 + $0x34] sm:$0xf]
  %v67 = vld [vmem:[%s1 + $0x38] sm:$0xf]
  %v68 = vld [vmem:[%s1 + $0x3c] sm:$0xf]
  %v69 = vld [vmem:[%s2] sm:$0x1]
  %v71 = vperm.slane %v69, 0
  %v109 = vunpack.c.l.b16 %v17
  %v110 = vunpack.c.l.b16 %v18
  %v111 = vunpack.c.l.b16 %v19
  %v112 = vunpack.c.l.b16 %v20
  %v113 = vunpack.c.l.b16 %v21
  %v114 = vunpack.c.l.b16 %v22
  %v115 = vunpack.c.l.b16 %v23
  %v116 = vunpack.c.l.b16 %v24
  %v117 = vunpack.c.l.b16 %v25
  %v118 = vunpack.c.l.b16 %v26
  %v119 = vunpack.c.l.b16 %v27
  %v120 = vunpack.c.l.b16 %v28
  %v121 = vunpack.c.l.b16 %v29
  %v122 = vunpack.c.l.b16 %v30
  %v123 = vunpack.c.l.b16 %v31
  %v124 = vunpack.c.l.b16 %v32
  %v125 = vunpack.c.l.b16 %v33
  %v126 = vunpack.c.l.b16 %v34
  %v127 = vunpack.c.l.b16 %v35
  %v128 = vunpack.c.l.b16 %v36
  %v129 = vunpack.c.l.b16 %v37
  %v130 = vunpack.c.l.b16 %v38
  %v131 = vunpack.c.l.b16 %v39
  %v132 = vunpack.c.l.b16 %v40
  %v133 = vunpack.c.l.b16 %v41
  %v134 = vunpack.c.l.b16 %v42
  %v135 = vunpack.c.l.b16 %v43
  %v136 = vunpack.c.l.b16 %v44
  %v137 = vunpack.c.l.b16 %v45
  %v138 = vunpack.c.l.b16 %v46
  %v139 = vunpack.c.l.b16 %v47
  %v140 = vunpack.c.l.b16 %v48
  %v141 = vunpack.c.l.b16 %v49
  %v142 = vunpack.c.l.b16 %v50
  %v143 = vunpack.c.l.b16 %v51
  %v144 = vunpack.c.l.b16 %v52
  %v145 = vpack.c.b16 %v110, %v109
  %v146 = vpack.c.b16 %v112, %v111
  %v147 = vpack.c.b16 %v114, %v113
  %v148 = vpack.c.b16 %v116, %v115
  %v149 = vpack.c.b16 %v118, %v117
  %v150 = vpack.c.b16 %v120, %v119
  %v151 = vpack.c.b16 %v122, %v121
  %v152 = vpack.c.b16 %v124, %v123
  %v153 = vpack.c.b16 %v126, %v125
  %v154 = vpack.c.b16 %v128, %v127
  %v155 = vpack.c.b16 %v130, %v129
  %v156 = vpack.c.b16 %v132, %v131
  %v157 = vpack.c.b16 %v134, %v133
  %v158 = vpack.c.b16 %v136, %v135
  %v159 = vpack.c.b16 %v138, %v137
  %v160 = vpack.c.b16 %v140, %v139
  %v161 = vpack.c.b16 %v142, %v141
  %v162 = vpack.c.b16 %v144, %v143
  %v197 = vunpack.c.l.b16 %v53
  %v198 = vunpack.c.l.b16 %v54
  %v199 = vunpack.c.l.b16 %v55
  %v200 = vunpack.c.l.b16 %v56
  %v201 = vunpack.c.l.b16 %v57
  %v202 = vunpack.c.l.b16 %v58
  %v203 = vunpack.c.l.b16 %v59
  %v204 = vunpack.c.l.b16 %v60
  %v205 = vunpack.c.l.b16 %v61
  %v206 = vunpack.c.l.b16 %v62
  %v207 = vunpack.c.l.b16 %v63
  %v208 = vunpack.c.l.b16 %v64
  %v209 = vunpack.c.l.b16 %v65
  %v210 = vunpack.c.l.b16 %v66
  %v211 = vunpack.c.l.b16 %v67
  %v212 = vunpack.c.l.b16 %v68
  %v213 = vpack.c.b16 %v198, %v197
  %v214 = vpack.c.b16 %v200, %v199
  %v215 = vpack.c.b16 %v202, %v201
  %v216 = vpack.c.b16 %v204, %v203
  %v217 = vpack.c.b16 %v206, %v205
  %v218 = vpack.c.b16 %v208, %v207
  %v219 = vpack.c.b16 %v210, %v209
  %v220 = vpack.c.b16 %v212, %v211
  %229 = vmatpush.bf16.msra.mxu0 %v220
  %230 = vmatpush.bf16.msra.mxu0 %v219
  %231 = vmatpush.bf16.msra.mxu0 %v218
  %232 = vmatpush.bf16.msra.mxu0 %v217
  %233 = vmatpush.bf16.msra.mxu0 %v216
  %234 = vmatpush.bf16.msra.mxu0 %v215
  %235 = vmatpush.bf16.msra.mxu0 %v214
  %236 = vmatpush.bf16.msra.mxu0 %v213
  %237 = vmatmul.bf16.gmra.mxu0 %v145
  %v238 = vpop.f32.mrf.mxu0
  %v239 = vadd.f32 %v71, %v238
  %v240 = vpop.f32.mrf.mxu0
  %v241 = vadd.f32 %v71, %v240
  %242 = vmatmul.bf16.gmra.mxu0 %v146
  %v243 = vpop.f32.mrf.mxu0
  %v244 = vadd.f32 %v71, %v243
  %v245 = vpop.f32.mrf.mxu0
  %v246 = vadd.f32 %v71, %v245
  %247 = vmatmul.bf16.gmra.mxu0 %v147
  %v248 = vpop.f32.mrf.mxu0
  %v249 = vadd.f32 %v71, %v248
  %v250 = vpop.f32.mrf.mxu0
  %v251 = vadd.f32 %v71, %v250
  %252 = vmatmul.bf16.gmra.mxu0 %v148
  %v253 = vpop.f32.mrf.mxu0
  %v254 = vadd.f32 %v71, %v253
  %v255 = vpop.f32.mrf.mxu0
  %v256 = vadd.f32 %v71, %v255
  %257 = vmatmul.bf16.gmra.mxu0 %v149
  %v258 = vpop.f32.mrf.mxu0
  %v259 = vadd.f32 %v71, %v258
  %v260 = vpop.f32.mrf.mxu0
  %v261 = vadd.f32 %v71, %v260
  %262 = vmatmul.bf16.gmra.mxu0 %v150
  %v263 = vpop.f32.mrf.mxu0
  %v264 = vadd.f32 %v71, %v263
  %v265 = vpop.f32.mrf.mxu0
  %v266 = vadd.f32 %v71, %v265
  %267 = vmatmul.bf16.gmra.mxu0 %v151
  %v268 = vpop.f32.mrf.mxu0
  %v269 = vadd.f32 %v71, %v268
  %v270 = vpop.f32.mrf.mxu0
  %v271 = vadd.f32 %v71, %v270
  %272 = vmatmul.bf16.gmra.mxu0 %v152
  %v273 = vpop.f32.mrf.mxu0
  %v274 = vadd.f32 %v71, %v273
  %v275 = vpop.f32.mrf.mxu0
  %v276 = vadd.f32 %v71, %v275
  %277 = vmatmul.bf16.gmra.mxu0 %v153
  %v278 = vpop.f32.mrf.mxu0
  %v279 = vadd.f32 %v71, %v278
  %v280 = vpop.f32.mrf.mxu0
  %v281 = vadd.f32 %v71, %v280
  %282 = vmatmul.bf16.gmra.mxu0 %v154
  %v283 = vpop.f32.mrf.mxu0
  %v284 = vadd.f32 %v71, %v283
  %v285 = vpop.f32.mrf.mxu0
  %v286 = vadd.f32 %v71, %v285
  %287 = vmatmul.bf16.gmra.mxu0 %v155
  %v288 = vpop.f32.mrf.mxu0
  %v289 = vadd.f32 %v71, %v288
  %v290 = vpop.f32.mrf.mxu0
  %v291 = vadd.f32 %v71, %v290
  %292 = vmatmul.bf16.gmra.mxu0 %v156
  %v293 = vpop.f32.mrf.mxu0
  %v294 = vadd.f32 %v71, %v293
  %v295 = vpop.f32.mrf.mxu0
  %v296 = vadd.f32 %v71, %v295
  %297 = vmatmul.bf16.gmra.mxu0 %v157
  %v298 = vpop.f32.mrf.mxu0
  %v299 = vadd.f32 %v71, %v298
  %v300 = vpop.f32.mrf.mxu0
  %v301 = vadd.f32 %v71, %v300
  %302 = vmatmul.bf16.gmra.mxu0 %v158
  %v303 = vpop.f32.mrf.mxu0
  %v304 = vadd.f32 %v71, %v303
  %v305 = vpop.f32.mrf.mxu0
  %v306 = vadd.f32 %v71, %v305
  %307 = vmatmul.bf16.gmra.mxu0 %v159
  %v308 = vpop.f32.mrf.mxu0
  %v309 = vadd.f32 %v71, %v308
  %v310 = vpop.f32.mrf.mxu0
  %v311 = vadd.f32 %v71, %v310
  %312 = vmatmul.bf16.gmra.mxu0 %v160
  %v313 = vpop.f32.mrf.mxu0
  %v314 = vadd.f32 %v71, %v313
  %v315 = vpop.f32.mrf.mxu0
  %v316 = vadd.f32 %v71, %v315
  %317 = vmatmul.bf16.gmra.mxu0 %v161
  %v318 = vpop.f32.mrf.mxu0
  %v319 = vadd.f32 %v71, %v318
  %v320 = vpop.f32.mrf.mxu0
  %v321 = vadd.f32 %v71, %v320
  %322 = vmatmul.bf16.gmra.mxu0 %v162
  %v323 = vpop.f32.mrf.mxu0
  %v324 = vadd.f32 %v71, %v323
  %v325 = vpop.f32.mrf.mxu0
  %v326 = vadd.f32 %v71, %v325
  %327 = vdwg.mxu0
  %v328 = vld [vmem:[%s3] sm:$0xf]
  %v329 = vld [vmem:[%s3 + $0x4] sm:$0xf]
  %v330 = vld [vmem:[%s3 + $0x8] sm:$0xf]
  %v331 = vld [vmem:[%s3 + $0xc] sm:$0xf]
  %v332 = vld [vmem:[%s3 + $0x10] sm:$0xf]
  %v333 = vld [vmem:[%s3 + $0x14] sm:$0xf]
  %v334 = vld [vmem:[%s3 + $0x18] sm:$0xf]
  %v335 = vld [vmem:[%s3 + $0x1c] sm:$0xf]
  %v336 = vld [vmem:[%s3 + $0x20] sm:$0xf]
  %v337 = vld [vmem:[%s3 + $0x24] sm:$0xf]
  %v338 = vld [vmem:[%s3 + $0x28] sm:$0xf]
  %v339 = vld [vmem:[%s3 + $0x2c] sm:$0xf]
  %v340 = vld [vmem:[%s3 + $0x30] sm:$0xf]
  %v341 = vld [vmem:[%s3 + $0x34] sm:$0xf]
  %v342 = vld [vmem:[%s3 + $0x38] sm:$0xf]
  %v343 = vld [vmem:[%s3 + $0x3c] sm:$0xf]
  %v344 = vld [vmem:[%s3 + $0x40] sm:$0xf]
  %v345 = vld [vmem:[%s3 + $0x44] sm:$0xf]
  %v346 = vld [vmem:[%s3 + $0x48] sm:$0xf]
  %v347 = vld [vmem:[%s3 + $0x4c] sm:$0xf]
  %v348 = vld [vmem:[%s3 + $0x50] sm:$0xf]
  %v349 = vld [vmem:[%s3 + $0x54] sm:$0xf]
  %v350 = vld [vmem:[%s3 + $0x58] sm:$0xf]
  %v351 = vld [vmem:[%s3 + $0x5c] sm:$0xf]
  %v352 = vld [vmem:[%s3 + $0x60] sm:$0xf]
  %v353 = vld [vmem:[%s3 + $0x64] sm:$0xf]
  %v354 = vld [vmem:[%s3 + $0x68] sm:$0xf]
  %v355 = vld [vmem:[%s3 + $0x6c] sm:$0xf]
  %v356 = vld [vmem:[%s3 + $0x70] sm:$0xf]
  %v357 = vld [vmem:[%s3 + $0x74] sm:$0xf]
  %v358 = vld [vmem:[%s3 + $0x78] sm:$0xf]
  %v359 = vld [vmem:[%s3 + $0x7c] sm:$0xf]
  %v360 = vld [vmem:[%s3 + $0x80] sm:$0xf]
  %v361 = vld [vmem:[%s3 + $0x84] sm:$0xf]
  %v362 = vld [vmem:[%s3 + $0x88] sm:$0xf]
  %v363 = vld [vmem:[%s3 + $0x8c] sm:$0xf]
  %v364 = vunpack.c.l.bf16 %v328
  %v365 = vunpack.c.l.bf16 %v329
  %v366 = vunpack.c.l.bf16 %v330
  %v367 = vunpack.c.l.bf16 %v331
  %v368 = vunpack.c.l.bf16 %v332
  %v369 = vunpack.c.l.bf16 %v333
  %v370 = vunpack.c.l.bf16 %v334
  %v371 = vunpack.c.l.bf16 %v335
  %v372 = vunpack.c.l.bf16 %v336
  %v373 = vunpack.c.l.bf16 %v337
  %v374 = vunpack.c.l.bf16 %v338
  %v375 = vunpack.c.l.bf16 %v339
  %v376 = vunpack.c.l.bf16 %v340
  %v377 = vunpack.c.l.bf16 %v341
  %v378 = vunpack.c.l.bf16 %v342
  %v379 = vunpack.c.l.bf16 %v343
  %v380 = vunpack.c.l.bf16 %v344
  %v381 = vunpack.c.l.bf16 %v345
  %v382 = vunpack.c.l.bf16 %v346
  %v383 = vunpack.c.l.bf16 %v347
  %v384 = vunpack.c.l.bf16 %v348
  %v385 = vunpack.c.l.bf16 %v349
  %v386 = vunpack.c.l.bf16 %v350
  %v387 = vunpack.c.l.bf16 %v351
  %v388 = vunpack.c.l.bf16 %v352
  %v389 = vunpack.c.l.bf16 %v353
  %v390 = vunpack.c.l.bf16 %v354
  %v391 = vunpack.c.l.bf16 %v355
  %v392 = vunpack.c.l.bf16 %v356
  %v393 = vunpack.c.l.bf16 %v357
  %v394 = vunpack.c.l.bf16 %v358
  %v395 = vunpack.c.l.bf16 %v359
  %v396 = vunpack.c.l.bf16 %v360
  %v397 = vunpack.c.l.bf16 %v361
  %v398 = vunpack.c.l.bf16 %v362
  %v399 = vunpack.c.l.bf16 %v363
  %v400 = vadd.f32 %v239, %v364
  %v401 = vadd.f32 %v241, %v365
  %v402 = vadd.f32 %v244, %v366
  %v403 = vadd.f32 %v246, %v367
  %v404 = vadd.f32 %v249, %v368
  %v405 = vadd.f32 %v251, %v369
  %v406 = vadd.f32 %v254, %v370
  %v407 = vadd.f32 %v256, %v371
  %v408 = vadd.f32 %v259, %v372
  %v409 = vadd.f32 %v261, %v373
  %v410 = vadd.f32 %v264, %v374
  %v411 = vadd.f32 %v266, %v375
  %v412 = vadd.f32 %v269, %v376
  %v413 = vadd.f32 %v271, %v377
  %v414 = vadd.f32 %v274, %v378
  %v415 = vadd.f32 %v276, %v379
  %v416 = vadd.f32 %v279, %v380
  %v417 = vadd.f32 %v281, %v381
  %v418 = vadd.f32 %v284, %v382
  %v419 = vadd.f32 %v286, %v383
  %v420 = vadd.f32 %v289, %v384
  %v421 = vadd.f32 %v291, %v385
  %v422 = vadd.f32 %v294, %v386
  %v423 = vadd.f32 %v296, %v387
  %v424 = vadd.f32 %v299, %v388
  %v425 = vadd.f32 %v301, %v389
  %v426 = vadd.f32 %v304, %v390
  %v427 = vadd.f32 %v306, %v391
  %v428 = vadd.f32 %v309, %v392
  %v429 = vadd.f32 %v311, %v393
  %v430 = vadd.f32 %v314, %v394
  %v431 = vadd.f32 %v316, %v395
  %v432 = vadd.f32 %v319, %v396
  %v433 = vadd.f32 %v321, %v397
  %v434 = vadd.f32 %v324, %v398
  %v435 = vadd.f32 %v326, %v399
  %v436 = vmax.f32 %v400, 0.0
  %v437 = vmax.f32 %v401, 0.0
  %v438 = vmax.f32 %v402, 0.0
  %v439 = vmax.f32 %v403, 0.0
  %v440 = vmax.f32 %v404, 0.0
  %v441 = vmax.f32 %v405, 0.0
  %v442 = vmax.f32 %v406, 0.0
  %v443 = vmax.f32 %v407, 0.0
  %v444 = vmax.f32 %v408, 0.0
  %v445 = vmax.f32 %v409, 0.0
  %v446 = vmax.f32 %v410, 0.0
  %v447 = vmax.f32 %v411, 0.0
  %v448 = vmax.f32 %v412, 0.0
  %v449 = vmax.f32 %v413, 0.0
  %v450 = vmax.f32 %v414, 0.0
  %v451 = vmax.f32 %v415, 0.0
  %v452 = vmax.f32 %v416, 0.0
  %v453 = vmax.f32 %v417, 0.0
  %v454 = vmax.f32 %v418, 0.0
  %v455 = vmax.f32 %v419, 0.0
  %v456 = vmax.f32 %v420, 0.0
  %v457 = vmax.f32 %v421, 0.0
  %v458 = vmax.f32 %v422, 0.0
  %v459 = vmax.f32 %v423, 0.0
  %v460 = vmax.f32 %v424, 0.0
  %v461 = vmax.f32 %v425, 0.0
  %v462 = vmax.f32 %v426, 0.0
  %v463 = vmax.f32 %v427, 0.0
  %v464 = vmax.f32 %v428, 0.0
  %v465 = vmax.f32 %v429, 0.0
  %v466 = vmax.f32 %v430, 0.0
  %v467 = vmax.f32 %v431, 0.0
  %v468 = vmax.f32 %v432, 0.0
  %v469 = vmax.f32 %v433, 0.0
  %v470 = vmax.f32 %v434, 0.0
  %v471 = vmax.f32 %v435, 0.0
  %v472 = vpack.c.bf16 %v436, %v436
  %v473 = vpack.c.bf16 %v437, %v437
  %v474 = vpack.c.bf16 %v438, %v438
  %v475 = vpack.c.bf16 %v439, %v439
  %v476 = vpack.c.bf16 %v440, %v440
  %v477 = vpack.c.bf16 %v441, %v441
  %v478 = vpack.c.bf16 %v442, %v442
  %v479 = vpack.c.bf16 %v443, %v443
  %v480 = vpack.c.bf16 %v444, %v444
  %v481 = vpack.c.bf16 %v445, %v445
  %v482 = vpack.c.bf16 %v446, %v446
  %v483 = vpack.c.bf16 %v447, %v447
  %v484 = vpack.c.bf16 %v448, %v448
  %v485 = vpack.c.bf16 %v449, %v449
  %v486 = vpack.c.bf16 %v450, %v450
  %v487 = vpack.c.bf16 %v451, %v451
  %v488 = vpack.c.bf16 %v452, %v452
  %v489 = vpack.c.bf16 %v453, %v453
  %v490 = vpack.c.bf16 %v454, %v454
  %v491 = vpack.c.bf16 %v455, %v455
  %v492 = vpack.c.bf16 %v456, %v456
  %v493 = vpack.c.bf16 %v457, %v457
  %v494 = vpack.c.bf16 %v458, %v458
  %v495 = vpack.c.bf16 %v459, %v459
  %v496 = vpack.c.bf16 %v460, %v460
  %v497 = vpack.c.bf16 %v461, %v461
  %v498 = vpack.c.bf16 %v462, %v462
  %v499 = vpack.c.bf16 %v463, %v463
  %v500 = vpack.c.bf16 %v464, %v464
  %v501 = vpack.c.bf16 %v465, %v465
  %v502 = vpack.c.bf16 %v466, %v466
  %v503 = vpack.c.bf16 %v467, %v467
  %v504 = vpack.c.bf16 %v468, %v468
  %v505 = vpack.c.bf16 %v469, %v469
  %v506 = vpack.c.bf16 %v470, %v470
  %v507 = vpack.c.bf16 %v471, %v471
  %508 = vst [vmem:[%s4] sm:$0xf] %v472
  %509 = vst [vmem:[%s4 + $0x4] sm:$0xf] %v473
  %510 = vst [vmem:[%s4 + $0x8] sm:$0xf] %v474
  %511 = vst [vmem:[%s4 + $0xc] sm:$0xf] %v475
  %512 = vst [vmem:[%s4 + $0x10] sm:$0xf] %v476
  %513 = vst [vmem:[%s4 + $0x14] sm:$0xf] %v477
  %514 = vst [vmem:[%s4 + $0x18] sm:$0xf] %v478
  %515 = vst [vmem:[%s4 + $0x1c] sm:$0xf] %v479
  %516 = vst [vmem:[%s4 + $0x20] sm:$0xf] %v480
  %517 = vst [vmem:[%s4 + $0x24] sm:$0xf] %v481
  %518 = vst [vmem:[%s4 + $0x28] sm:$0xf] %v482
  %519 = vst [vmem:[%s4 + $0x2c] sm:$0xf] %v483
  %520 = vst [vmem:[%s4 + $0x30] sm:$0xf] %v484
  %521 = vst [vmem:[%s4 + $0x34] sm:$0xf] %v485
  %522 = vst [vmem:[%s4 + $0x38] sm:$0xf] %v486
  %523 = vst [vmem:[%s4 + $0x3c] sm:$0xf] %v487
  %524 = vst [vmem:[%s4 + $0x40] sm:$0xf] %v488
  %525 = vst [vmem:[%s4 + $0x44] sm:$0xf] %v489
  %526 = vst [vmem:[%s4 + $0x48] sm:$0xf] %v490
  %527 = vst [vmem:[%s4 + $0x4c] sm:$0xf] %v491
  %528 = vst [vmem:[%s4 + $0x50] sm:$0xf] %v492
  %529 = vst [vmem:[%s4 + $0x54] sm:$0xf] %v493
  %530 = vst [vmem:[%s4 + $0x58] sm:$0xf] %v494
  %531 = vst [vmem:[%s4 + $0x5c] sm:$0xf] %v495
  %532 = vst [vmem:[%s4 + $0x60] sm:$0xf] %v496
  %533 = vst [vmem:[%s4 + $0x64] sm:$0xf] %v497
  %534 = vst [vmem:[%s4 + $0x68] sm:$0xf] %v498
  %535 = vst [vmem:[%s4 + $0x6c] sm:$0xf] %v499
  %536 = vst [vmem:[%s4 + $0x70] sm:$0xf] %v500
  %537 = vst [vmem:[%s4 + $0x74] sm:$0xf] %v501
  %538 = vst [vmem:[%s4 + $0x78] sm:$0xf] %v502
  %539 = vst [vmem:[%s4 + $0x7c] sm:$0xf] %v503
  %540 = vst [vmem:[%s4 + $0x80] sm:$0xf] %v504
  %541 = vst [vmem:[%s4 + $0x84] sm:$0xf] %v505
  %542 = vst [vmem:[%s4 + $0x88] sm:$0xf] %v506
  %543 = vst [vmem:[%s4 + $0x8c] sm:$0xf] %v507
  // Predicated region
  $region18: #{_lambda_.61} parent=0 // pred_check
    _
  $region19: #{_lambda_.61} parent=0 // pred_check_branch
    %545 = sbr.rel (0) target = $region21
  $region20: #{_lambda_.61} parent=0 // pred_region
    _
  $region21: #{_lambda_.61} parent=0 // pred_fallthru
    _
  // Predicated region
  $region22: #{_lambda_.61} parent=0 // pred_check
    _
  $region23: #{_lambda_.61} parent=0 // pred_check_branch
    %547 = sbr.rel (0) target = $region25
  $region24: #{_lambda_.61} parent=0 // pred_region
    _
  $region25: #{_lambda_.61} parent=0 // pred_fallthru
    _

// kernel: _lambda_.62
$region0: #{_lambda_.62}
  #allocation0 [shape = 'u32[]', space=smem, size = 0x4, offset = 0x4, fixed_abs, tag = 'smem constant byte address 0x4 - core index']
  #allocation1 [shape = 'u32[72,128]{1,0:T(1,128)}', space=vmem, size = 0x9000, scoped, tag = 'internal scratch']
  %s0 = inlined_call_operand.vmem [shape: bf16[288,128], index: 0, kind: input, shape index: {}]
  %s1 = inlined_call_operand.vmem [shape: bf16[128,128], index: 1, kind: input, shape index: {}]
  %s2 = inlined_call_operand.vmem [shape: f32[1,128], index: 2, kind: input, shape index: {}]
  %s3 = inlined_call_operand.vmem [shape: bf16[288,128], index: 3, kind: output, shape index: {}]
  %s4 = sld [smem:[#allocation0]]
  $region22: #{_lambda_.62} parent=0
    _
  %s6 = ssub.s32 1, %s4
  %s7 = scalar_select 0, %s6, %s4
  // Predicated region
  $region2: #{_lambda_.62} parent=0 // pred_check
    _
  $region3: #{_lambda_.62} parent=0 // pred_check_branch
    %9 = sbr.rel (0) target = $region5
  $region4: #{_lambda_.62} parent=0 // pred_region
    _
  $region5: #{_lambda_.62} parent=0 // pred_fallthru
    _
  // Predicated region
  $region6: #{_lambda_.62} parent=0 // pred_check
    _
  $region7: #{_lambda_.62} parent=0 // pred_check_branch
    %11 = sbr.rel (0) target = $region9
  $region8: #{_lambda_.62} parent=0 // pred_region
    _
  $region9: #{_lambda_.62} parent=0 // pred_fallthru
    _
  // Predicated region
  $region10: #{_lambda_.62} parent=0 // pred_check
    _
  $region11: #{_lambda_.62} parent=0 // pred_check_branch
    %13 = sbr.rel (0) target = $region13
  $region12: #{_lambda_.62} parent=0 // pred_region
    _
  $region13: #{_lambda_.62} parent=0 // pred_fallthru
    _
  %v14 = vld [vmem:[%s0] sm:$0xf]
  %v15 = vld [vmem:[%s0 + $0x4] sm:$0xf]
  %v16 = vld [vmem:[%s0 + $0x8] sm:$0xf]
  %v17 = vld [vmem:[%s0 + $0xc] sm:$0xf]
  %v18 = vld [vmem:[%s0 + $0x10] sm:$0xf]
  %v19 = vld [vmem:[%s0 + $0x14] sm:$0xf]
  %v20 = vld [vmem:[%s0 + $0x18] sm:$0xf]
  %v21 = vld [vmem:[%s0 + $0x1c] sm:$0xf]
  %v22 = vld [vmem:[%s0 + $0x20] sm:$0xf]
  %v23 = vld [vmem:[%s0 + $0x24] sm:$0xf]
  %v24 = vld [vmem:[%s0 + $0x28] sm:$0xf]
  %v25 = vld [vmem:[%s0 + $0x2c] sm:$0xf]
  %v26 = vld [vmem:[%s0 + $0x30] sm:$0xf]
  %v27 = vld [vmem:[%s0 + $0x34] sm:$0xf]
  %v28 = vld [vmem:[%s0 + $0x38] sm:$0xf]
  %v29 = vld [vmem:[%s0 + $0x3c] sm:$0xf]
  %v30 = vld [vmem:[%s0 + $0x40] sm:$0xf]
  %v31 = vld [vmem:[%s0 + $0x44] sm:$0xf]
  %v32 = vld [vmem:[%s0 + $0x48] sm:$0xf]
  %v33 = vld [vmem:[%s0 + $0x4c] sm:$0xf]
  %v34 = vld [vmem:[%s0 + $0x50] sm:$0xf]
  %v35 = vld [vmem:[%s0 + $0x54] sm:$0xf]
  %v36 = vld [vmem:[%s0 + $0x58] sm:$0xf]
  %v37 = vld [vmem:[%s0 + $0x5c] sm:$0xf]
  %v38 = vld [vmem:[%s0 + $0x60] sm:$0xf]
  %v39 = vld [vmem:[%s0 + $0x64] sm:$0xf]
  %v40 = vld [vmem:[%s0 + $0x68] sm:$0xf]
  %v41 = vld [vmem:[%s0 + $0x6c] sm:$0xf]
  %v42 = vld [vmem:[%s0 + $0x70] sm:$0xf]
  %v43 = vld [vmem:[%s0 + $0x74] sm:$0xf]
  %v44 = vld [vmem:[%s0 + $0x78] sm:$0xf]
  %v45 = vld [vmem:[%s0 + $0x7c] sm:$0xf]
  %v46 = vld [vmem:[%s0 + $0x80] sm:$0xf]
  %v47 = vld [vmem:[%s0 + $0x84] sm:$0xf]
  %v48 = vld [vmem:[%s0 + $0x88] sm:$0xf]
  %v49 = vld [vmem:[%s0 + $0x8c] sm:$0xf]
  %v50 = vld [vmem:[%s1] sm:$0xf]
  %v51 = vld [vmem:[%s1 + $0x4] sm:$0xf]
  %v52 = vld [vmem:[%s1 + $0x8] sm:$0xf]
  %v53 = vld [vmem:[%s1 + $0xc] sm:$0xf]
  %v54 = vld [vmem:[%s1 + $0x10] sm:$0xf]
  %v55 = vld [vmem:[%s1 + $0x14] sm:$0xf]
  %v56 = vld [vmem:[%s1 + $0x18] sm:$0xf]
  %v57 = vld [vmem:[%s1 + $0x1c] sm:$0xf]
  %v58 = vld [vmem:[%s1 + $0x20] sm:$0xf]
  %v59 = vld [vmem:[%s1 + $0x24] sm:$0xf]
  %v60 = vld [vmem:[%s1 + $0x28] sm:$0xf]
  %v61 = vld [vmem:[%s1 + $0x2c] sm:$0xf]
  %v62 = vld [vmem:[%s1 + $0x30] sm:$0xf]
  %v63 = vld [vmem:[%s1 + $0x34] sm:$0xf]
  %v64 = vld [vmem:[%s1 + $0x38] sm:$0xf]
  %v65 = vld [vmem:[%s1 + $0x3c] sm:$0xf]
  %v66 = vld [vmem:[%s2] sm:$0x1]
  %v68 = vperm.slane %v66, 0
  %v106 = vunpack.c.l.b16 %v14
  %v107 = vunpack.c.l.b16 %v15
  %v108 = vunpack.c.l.b16 %v16
  %v109 = vunpack.c.l.b16 %v17
  %v110 = vunpack.c.l.b16 %v18
  %v111 = vunpack.c.l.b16 %v19
  %v112 = vunpack.c.l.b16 %v20
  %v113 = vunpack.c.l.b16 %v21
  %v114 = vunpack.c.l.b16 %v22
  %v115 = vunpack.c.l.b16 %v23
  %v116 = vunpack.c.l.b16 %v24
  %v117 = vunpack.c.l.b16 %v25
  %v118 = vunpack.c.l.b16 %v26
  %v119 = vunpack.c.l.b16 %v27
  %v120 = vunpack.c.l.b16 %v28
  %v121 = vunpack.c.l.b16 %v29
  %v122 = vunpack.c.l.b16 %v30
  %v123 = vunpack.c.l.b16 %v31
  %v124 = vunpack.c.l.b16 %v32
  %v125 = vunpack.c.l.b16 %v33
  %v126 = vunpack.c.l.b16 %v34
  %v127 = vunpack.c.l.b16 %v35
  %v128 = vunpack.c.l.b16 %v36
  %v129 = vunpack.c.l.b16 %v37
  %v130 = vunpack.c.l.b16 %v38
  %v131 = vunpack.c.l.b16 %v39
  %v132 = vunpack.c.l.b16 %v40
  %v133 = vunpack.c.l.b16 %v41
  %v134 = vunpack.c.l.b16 %v42
  %v135 = vunpack.c.l.b16 %v43
  %v136 = vunpack.c.l.b16 %v44
  %v137 = vunpack.c.l.b16 %v45
  %v138 = vunpack.c.l.b16 %v46
  %v139 = vunpack.c.l.b16 %v47
  %v140 = vunpack.c.l.b16 %v48
  %v141 = vunpack.c.l.b16 %v49
  %v142 = vpack.c.b16 %v107, %v106
  %v143 = vpack.c.b16 %v109, %v108
  %v144 = vpack.c.b16 %v111, %v110
  %v145 = vpack.c.b16 %v113, %v112
  %v146 = vpack.c.b16 %v115, %v114
  %v147 = vpack.c.b16 %v117, %v116
  %v148 = vpack.c.b16 %v119, %v118
  %v149 = vpack.c.b16 %v121, %v120
  %v150 = vpack.c.b16 %v123, %v122
  %v151 = vpack.c.b16 %v125, %v124
  %v152 = vpack.c.b16 %v127, %v126
  %v153 = vpack.c.b16 %v129, %v128
  %v154 = vpack.c.b16 %v131, %v130
  %v155 = vpack.c.b16 %v133, %v132
  %v156 = vpack.c.b16 %v135, %v134
  %v157 = vpack.c.b16 %v137, %v136
  %v158 = vpack.c.b16 %v139, %v138
  %v159 = vpack.c.b16 %v141, %v140
  %v194 = vunpack.c.l.b16 %v50
  %v195 = vunpack.c.l.b16 %v51
  %v196 = vunpack.c.l.b16 %v52
  %v197 = vunpack.c.l.b16 %v53
  %v198 = vunpack.c.l.b16 %v54
  %v199 = vunpack.c.l.b16 %v55
  %v200 = vunpack.c.l.b16 %v56
  %v201 = vunpack.c.l.b16 %v57
  %v202 = vunpack.c.l.b16 %v58
  %v203 = vunpack.c.l.b16 %v59
  %v204 = vunpack.c.l.b16 %v60
  %v205 = vunpack.c.l.b16 %v61
  %v206 = vunpack.c.l.b16 %v62
  %v207 = vunpack.c.l.b16 %v63
  %v208 = vunpack.c.l.b16 %v64
  %v209 = vunpack.c.l.b16 %v65
  %v210 = vpack.c.b16 %v195, %v194
  %v211 = vpack.c.b16 %v197, %v196
  %v212 = vpack.c.b16 %v199, %v198
  %v213 = vpack.c.b16 %v201, %v200
  %v214 = vpack.c.b16 %v203, %v202
  %v215 = vpack.c.b16 %v205, %v204
  %v216 = vpack.c.b16 %v207, %v206
  %v217 = vpack.c.b16 %v209, %v208
  %226 = vmatpush.bf16.msra.mxu0 %v217
  %227 = vmatpush.bf16.msra.mxu0 %v216
  %228 = vmatpush.bf16.msra.mxu0 %v215
  %229 = vmatpush.bf16.msra.mxu0 %v214
  %230 = vmatpush.bf16.msra.mxu0 %v213
  %231 = vmatpush.bf16.msra.mxu0 %v212
  %232 = vmatpush.bf16.msra.mxu0 %v211
  %233 = vmatpush.bf16.msra.mxu0 %v210
  %234 = vmatmul.bf16.gmra.mxu0 %v142
  %v235 = vpop.f32.mrf.mxu0
  %v236 = vadd.f32 %v68, %v235
  %v237 = vpop.f32.mrf.mxu0
  %v238 = vadd.f32 %v68, %v237
  %239 = vmatmul.bf16.gmra.mxu0 %v143
  %v240 = vpop.f32.mrf.mxu0
  %v241 = vadd.f32 %v68, %v240
  %v242 = vpop.f32.mrf.mxu0
  %v243 = vadd.f32 %v68, %v242
  %244 = vmatmul.bf16.gmra.mxu0 %v144
  %v245 = vpop.f32.mrf.mxu0
  %v246 = vadd.f32 %v68, %v245
  %v247 = vpop.f32.mrf.mxu0
  %v248 = vadd.f32 %v68, %v247
  %249 = vmatmul.bf16.gmra.mxu0 %v145
  %v250 = vpop.f32.mrf.mxu0
  %v251 = vadd.f32 %v68, %v250
  %v252 = vpop.f32.mrf.mxu0
  %v253 = vadd.f32 %v68, %v252
  %254 = vmatmul.bf16.gmra.mxu0 %v146
  %v255 = vpop.f32.mrf.mxu0
  %v256 = vadd.f32 %v68, %v255
  %v257 = vpop.f32.mrf.mxu0
  %v258 = vadd.f32 %v68, %v257
  %259 = vmatmul.bf16.gmra.mxu0 %v147
  %v260 = vpop.f32.mrf.mxu0
  %v261 = vadd.f32 %v68, %v260
  %v262 = vpop.f32.mrf.mxu0
  %v263 = vadd.f32 %v68, %v262
  %264 = vmatmul.bf16.gmra.mxu0 %v148
  %v265 = vpop.f32.mrf.mxu0
  %v266 = vadd.f32 %v68, %v265
  %v267 = vpop.f32.mrf.mxu0
  %v268 = vadd.f32 %v68, %v267
  %269 = vmatmul.bf16.gmra.mxu0 %v149
  %v270 = vpop.f32.mrf.mxu0
  %v271 = vadd.f32 %v68, %v270
  %v272 = vpop.f32.mrf.mxu0
  %v273 = vadd.f32 %v68, %v272
  %274 = vmatmul.bf16.gmra.mxu0 %v150
  %v275 = vpop.f32.mrf.mxu0
  %v276 = vadd.f32 %v68, %v275
  %v277 = vpop.f32.mrf.mxu0
  %v278 = vadd.f32 %v68, %v277
  %279 = vmatmul.bf16.gmra.mxu0 %v151
  %v280 = vpop.f32.mrf.mxu0
  %v281 = vadd.f32 %v68, %v280
  %v282 = vpop.f32.mrf.mxu0
  %v283 = vadd.f32 %v68, %v282
  %284 = vmatmul.bf16.gmra.mxu0 %v152
  %v285 = vpop.f32.mrf.mxu0
  %v286 = vadd.f32 %v68, %v285
  %v287 = vpop.f32.mrf.mxu0
  %v288 = vadd.f32 %v68, %v287
  %289 = vmatmul.bf16.gmra.mxu0 %v153
  %v290 = vpop.f32.mrf.mxu0
  %v291 = vadd.f32 %v68, %v290
  %v292 = vpop.f32.mrf.mxu0
  %v293 = vadd.f32 %v68, %v292
  %294 = vmatmul.bf16.gmra.mxu0 %v154
  %v295 = vpop.f32.mrf.mxu0
  %v296 = vadd.f32 %v68, %v295
  %v297 = vpop.f32.mrf.mxu0
  %v298 = vadd.f32 %v68, %v297
  %299 = vmatmul.bf16.gmra.mxu0 %v155
  %v300 = vpop.f32.mrf.mxu0
  %v301 = vadd.f32 %v68, %v300
  %v302 = vpop.f32.mrf.mxu0
  %v303 = vadd.f32 %v68, %v302
  %304 = vmatmul.bf16.gmra.mxu0 %v156
  %v305 = vpop.f32.mrf.mxu0
  %v306 = vadd.f32 %v68, %v305
  %v307 = vpop.f32.mrf.mxu0
  %v308 = vadd.f32 %v68, %v307
  %309 = vmatmul.bf16.gmra.mxu0 %v157
  %v310 = vpop.f32.mrf.mxu0
  %v311 = vadd.f32 %v68, %v310
  %v312 = vpop.f32.mrf.mxu0
  %v313 = vadd.f32 %v68, %v312
  %314 = vmatmul.bf16.gmra.mxu0 %v158
  %v315 = vpop.f32.mrf.mxu0
  %v316 = vadd.f32 %v68, %v315
  %v317 = vpop.f32.mrf.mxu0
  %v318 = vadd.f32 %v68, %v317
  %319 = vmatmul.bf16.gmra.mxu0 %v159
  %v320 = vpop.f32.mrf.mxu0
  %v321 = vadd.f32 %v68, %v320
  %v322 = vpop.f32.mrf.mxu0
  %v323 = vadd.f32 %v68, %v322
  %324 = vdwg.mxu0
  %v325 = vmax.f32 %v236, 0.0
  %v326 = vmax.f32 %v238, 0.0
  %v327 = vmax.f32 %v241, 0.0
  %v328 = vmax.f32 %v243, 0.0
  %v329 = vmax.f32 %v246, 0.0
  %v330 = vmax.f32 %v248, 0.0
  %v331 = vmax.f32 %v251, 0.0
  %v332 = vmax.f32 %v253, 0.0
  %v333 = vmax.f32 %v256, 0.0
  %v334 = vmax.f32 %v258, 0.0
  %v335 = vmax.f32 %v261, 0.0
  %v336 = vmax.f32 %v263, 0.0
  %v337 = vmax.f32 %v266, 0.0
  %v338 = vmax.f32 %v268, 0.0
  %v339 = vmax.f32 %v271, 0.0
  %v340 = vmax.f32 %v273, 0.0
  %v341 = vmax.f32 %v276, 0.0
  %v342 = vmax.f32 %v278, 0.0
  %v343 = vmax.f32 %v281, 0.0
  %v344 = vmax.f32 %v283, 0.0
  %v345 = vmax.f32 %v286, 0.0
  %v346 = vmax.f32 %v288, 0.0
  %v347 = vmax.f32 %v291, 0.0
  %v348 = vmax.f32 %v293, 0.0
  %v349 = vmax.f32 %v296, 0.0
  %v350 = vmax.f32 %v298, 0.0
  %v351 = vmax.f32 %v301, 0.0
  %v352 = vmax.f32 %v303, 0.0
  %v353 = vmax.f32 %v306, 0.0
  %v354 = vmax.f32 %v308, 0.0
  %v355 = vmax.f32 %v311, 0.0
  %v356 = vmax.f32 %v313, 0.0
  %v357 = vmax.f32 %v316, 0.0
  %v358 = vmax.f32 %v318, 0.0
  %v359 = vmax.f32 %v321, 0.0
  %v360 = vmax.f32 %v323, 0.0
  %v361 = vpack.c.bf16 %v325, %v325
  %v362 = vpack.c.bf16 %v326, %v326
  %v363 = vpack.c.bf16 %v327, %v327
  %v364 = vpack.c.bf16 %v328, %v328
  %v365 = vpack.c.bf16 %v329, %v329
  %v366 = vpack.c.bf16 %v330, %v330
  %v367 = vpack.c.bf16 %v331, %v331
  %v368 = vpack.c.bf16 %v332, %v332
  %v369 = vpack.c.bf16 %v333, %v333
  %v370 = vpack.c.bf16 %v334, %v334
  %v371 = vpack.c.bf16 %v335, %v335
  %v372 = vpack.c.bf16 %v336, %v336
  %v373 = vpack.c.bf16 %v337, %v337
  %v374 = vpack.c.bf16 %v338, %v338
  %v375 = vpack.c.bf16 %v339, %v339
  %v376 = vpack.c.bf16 %v340, %v340
  %v377 = vpack.c.bf16 %v341, %v341
  %v378 = vpack.c.bf16 %v342, %v342
  %v379 = vpack.c.bf16 %v343, %v343
  %v380 = vpack.c.bf16 %v344, %v344
  %v381 = vpack.c.bf16 %v345, %v345
  %v382 = vpack.c.bf16 %v346, %v346
  %v383 = vpack.c.bf16 %v347, %v347
  %v384 = vpack.c.bf16 %v348, %v348
  %v385 = vpack.c.bf16 %v349, %v349
  %v386 = vpack.c.bf16 %v350, %v350
  %v387 = vpack.c.bf16 %v351, %v351
  %v388 = vpack.c.bf16 %v352, %v352
  %v389 = vpack.c.bf16 %v353, %v353
  %v390 = vpack.c.bf16 %v354, %v354
  %v391 = vpack.c.bf16 %v355, %v355
  %v392 = vpack.c.bf16 %v356, %v356
  %v393 = vpack.c.bf16 %v357, %v357
  %v394 = vpack.c.bf16 %v358, %v358
  %v395 = vpack.c.bf16 %v359, %v359
  %v396 = vpack.c.bf16 %v360, %v360
  %397 = vst [vmem:[%s3] sm:$0xf] %v361
  %398 = vst [vmem:[%s3 + $0x4] sm:$0xf] %v362
  %399 = vst [vmem:[%s3 + $0x8] sm:$0xf] %v363
  %400 = vst [vmem:[%s3 + $0xc] sm:$0xf] %v364
  %401 = vst [vmem:[%s3 + $0x10] sm:$0xf] %v365
  %402 = vst [vmem:[%s3 + $0x14] sm:$0xf] %v366
  %403 = vst [vmem:[%s3 + $0x18] sm:$0xf] %v367
  %404 = vst [vmem:[%s3 + $0x1c] sm:$0xf] %v368
  %405 = vst [vmem:[%s3 + $0x20] sm:$0xf] %v369
  %406 = vst [vmem:[%s3 + $0x24] sm:$0xf] %v370
  %407 = vst [vmem:[%s3 + $0x28] sm:$0xf] %v371
  %408 = vst [vmem:[%s3 + $0x2c] sm:$0xf] %v372
  %409 = vst [vmem:[%s3 + $0x30] sm:$0xf] %v373
  %410 = vst [vmem:[%s3 + $0x34] sm:$0xf] %v374
  %411 = vst [vmem:[%s3 + $0x38] sm:$0xf] %v375
  %412 = vst [vmem:[%s3 + $0x3c] sm:$0xf] %v376
  %413 = vst [vmem:[%s3 + $0x40] sm:$0xf] %v377
  %414 = vst [vmem:[%s3 + $0x44] sm:$0xf] %v378
  %415 = vst [vmem:[%s3 + $0x48] sm:$0xf] %v379
  %416 = vst [vmem:[%s3 + $0x4c] sm:$0xf] %v380
  %417 = vst [vmem:[%s3 + $0x50] sm:$0xf] %v381
  %418 = vst [vmem:[%s3 + $0x54] sm:$0xf] %v382
  %419 = vst [vmem:[%s3 + $0x58] sm:$0xf] %v383
  %420 = vst [vmem:[%s3 + $0x5c] sm:$0xf] %v384
  %421 = vst [vmem:[%s3 + $0x60] sm:$0xf] %v385
  %422 = vst [vmem:[%s3 + $0x64] sm:$0xf] %v386
  %423 = vst [vmem:[%s3 + $0x68] sm:$0xf] %v387
  %424 = vst [vmem:[%s3 + $0x6c] sm:$0xf] %v388
  %425 = vst [vmem:[%s3 + $0x70] sm:$0xf] %v389
  %426 = vst [vmem:[%s3 + $0x74] sm:$0xf] %v390
  %427 = vst [vmem:[%s3 + $0x78] sm:$0xf] %v391
  %428 = vst [vmem:[%s3 + $0x7c] sm:$0xf] %v392
  %429 = vst [vmem:[%s3 + $0x80] sm:$0xf] %v393
  %430 = vst [vmem:[%s3 + $0x84] sm:$0xf] %v394
  %431 = vst [vmem:[%s3 + $0x88] sm:$0xf] %v395
  %432 = vst [vmem:[%s3 + $0x8c] sm:$0xf] %v396
  // Predicated region
  $region14: #{_lambda_.62} parent=0 // pred_check
    _
  $region15: #{_lambda_.62} parent=0 // pred_check_branch
    %434 = sbr.rel (0) target = $region17
  $region16: #{_lambda_.62} parent=0 // pred_region
    _
  $region17: #{_lambda_.62} parent=0 // pred_fallthru
    _
  // Predicated region
  $region18: #{_lambda_.62} parent=0 // pred_check
    _
  $region19: #{_lambda_.62} parent=0 // pred_check_branch
    %436 = sbr.rel (0) target = $region21
  $region20: #{_lambda_.62} parent=0 // pred_region
    _
  $region21: #{_lambda_.62} parent=0 // pred_fallthru
    _

// kernel: _lambda_.70
$region0: #{_lambda_.70}
  #allocation0 [shape = 'u32[]', space=smem, size = 0x4, offset = 0x4, fixed_abs, tag = 'smem constant byte address 0x4 - core index']
  #allocation1 [shape = 'u32[72,128]{1,0:T(1,128)}', space=vmem, size = 0x9000, scoped, tag = 'internal scratch']
  %s0 = inlined_call_operand.vmem [shape: bf16[80,1152], index: 0, kind: input, shape index: {}]
  %s1 = inlined_call_operand.vmem [shape: bf16[1152,128], index: 1, kind: input, shape index: {}]
  %s2 = inlined_call_operand.vmem [shape: f32[1,128], index: 2, kind: input, shape index: {}]
  %s3 = inlined_call_operand.vmem [shape: bf16[80,128], index: 3, kind: output, shape index: {}]
  %s4 = sld [smem:[#allocation0]]
  $region22: #{_lambda_.70} parent=0
    _
  %s6 = ssub.s32 1, %s4
  %s7 = scalar_select 0, %s6, %s4
  // Predicated region
  $region2: #{_lambda_.70} parent=0 // pred_check
    _
  $region3: #{_lambda_.70} parent=0 // pred_check_branch
    %9 = sbr.rel (0) target = $region5
  $region4: #{_lambda_.70} parent=0 // pred_region
    _
  $region5: #{_lambda_.70} parent=0 // pred_fallthru
    _
  // Predicated region
  $region6: #{_lambda_.70} parent=0 // pred_check
    _
  $region7: #{_lambda_.70} parent=0 // pred_check_branch
    %11 = sbr.rel (0) target = $region9
  $region8: #{_lambda_.70} parent=0 // pred_region
    _
  $region9: #{_lambda_.70} parent=0 // pred_fallthru
    _
  // Predicated region
  $region10: #{_lambda_.70} parent=0 // pred_check
    _
  $region11: #{_lambda_.70} parent=0 // pred_check_branch
    %13 = sbr.rel (0) target = $region13
  $region12: #{_lambda_.70} parent=0 // pred_region
    _
  $region13: #{_lambda_.70} parent=0 // pred_fallthru
    _
  %v14 = vld [vmem:[%s0] sm:$0xff]
  %v15 = vld [vmem:[%s0 + $0x8] sm:$0xff]
  %v16 = vld [vmem:[%s0 + $0x10] sm:$0xff]
  %v17 = vld [vmem:[%s0 + $0x18] sm:$0xff]
  %v18 = vld [vmem:[%s0 + $0x20] sm:$0xf]
  %v19 = vld [vmem:[%s0 + $0x24] sm:$0xff]
  %v20 = vld [vmem:[%s0 + $0x2c] sm:$0xff]
  %v21 = vld [vmem:[%s0 + $0x34] sm:$0xff]
  %v22 = vld [vmem:[%s0 + $0x3c] sm:$0xff]
  %v23 = vld [vmem:[%s0 + $0x44] sm:$0xf]
  %v24 = vld [vmem:[%s0 + $0x48] sm:$0xff]
  %v25 = vld [vmem:[%s0 + $0x50] sm:$0xff]
  %v26 = vld [vmem:[%s0 + $0x58] sm:$0xff]
  %v27 = vld [vmem:[%s0 + $0x60] sm:$0xff]
  %v28 = vld [vmem:[%s0 + $0x68] sm:$0xf]
  %v29 = vld [vmem:[%s0 + $0x6c] sm:$0xff]
  %v30 = vld [vmem:[%s0 + $0x74] sm:$0xff]
  %v31 = vld [vmem:[%s0 + $0x7c] sm:$0xff]
  %v32 = vld [vmem:[%s0 + $0x84] sm:$0xff]
  %v33 = vld [vmem:[%s0 + $0x8c] sm:$0xf]
  %v34 = vld [vmem:[%s0 + $0x90] sm:$0xff]
  %v35 = vld [vmem:[%s0 + $0x98] sm:$0xff]
  %v36 = vld [vmem:[%s0 + $0xa0] sm:$0xff]
  %v37 = vld [vmem:[%s0 + $0xa8] sm:$0xff]
  %v38 = vld [vmem:[%s0 + $0xb0] sm:$0xf]
  %v39 = vld [vmem:[%s0 + $0xb4] sm:$0xff]
  %v40 = vld [vmem:[%s0 + $0xbc] sm:$0xff]
  %v41 = vld [vmem:[%s0 + $0xc4] sm:$0xff]
  %v42 = vld [vmem:[%s0 + $0xcc] sm:$0xff]
  %v43 = vld [vmem:[%s0 + $0xd4] sm:$0xf]
  %v44 = vld [vmem:[%s0 + $0xd8] sm:$0xff]
  %v45 = vld [vmem:[%s0 + $0xe0] sm:$0xff]
  %v46 = vld [vmem:[%s0 + $0xe8] sm:$0xff]
  %v47 = vld [vmem:[%s0 + $0xf0] sm:$0xff]
  %v48 = vld [vmem:[%s0 + $0xf8] sm:$0xf]
  %v49 = vld [vmem:[%s0 + $0xfc] sm:$0xff]
  %v50 = vld [vmem:[%s0 + $0x104] sm:$0xff]
  %v51 = vld [vmem:[%s0 + $0x10c] sm:$0xff]
  %v52 = vld [vmem:[%s0 + $0x114] sm:$0xff]
  %v53 = vld [vmem:[%s0 + $0x11c] sm:$0xf]
  %v54 = vld [vmem:[%s0 + $0x120] sm:$0xff]
  %v55 = vld [vmem:[%s0 + $0x128] sm:$0xff]
  %v56 = vld [vmem:[%s0 + $0x130] sm:$0xff]
  %v57 = vld [vmem:[%s0 + $0x138] sm:$0xff]
  %v58 = vld [vmem:[%s0 + $0x140] sm:$0xf]
  %v59 = vld [vmem:[%s0 + $0x144] sm:$0xff]
  %v60 = vld [vmem:[%s0 + $0x14c] sm:$0xff]
  %v61 = vld [vmem:[%s0 + $0x154] sm:$0xff]
  %v62 = vld [vmem:[%s0 + $0x15c] sm:$0xff]
  %v63 = vld [vmem:[%s0 + $0x164] sm:$0xf]
  %v64 = vld [vmem:[%s1] sm:$0xf]
  %v65 = vld [vmem:[%s1 + $0x4] sm:$0xf]
  %v66 = vld [vmem:[%s1 + $0x8] sm:$0xf]
  %v67 = vld [vmem:[%s1 + $0xc] sm:$0xf]
  %v68 = vld [vmem:[%s1 + $0x10] sm:$0xf]
  %v69 = vld [vmem:[%s1 + $0x14] sm:$0xf]
  %v70 = vld [vmem:[%s1 + $0x18] sm:$0xf]
  %v71 = vld [vmem:[%s1 + $0x1c] sm:$0xf]
  %v72 = vld [vmem:[%s1 + $0x20] sm:$0xf]
  %v73 = vld [vmem:[%s1 + $0x24] sm:$0xf]
  %v74 = vld [vmem:[%s1 + $0x28] sm:$0xf]
  %v75 = vld [vmem:[%s1 + $0x2c] sm:$0xf]
  %v76 = vld [vmem:[%s1 + $0x30] sm:$0xf]
  %v77 = vld [vmem:[%s1 + $0x34] sm:$0xf]
  %v78 = vld [vmem:[%s1 + $0x38] sm:$0xf]
  %v79 = vld [vmem:[%s1 + $0x3c] sm:$0xf]
  %v80 = vld [vmem:[%s1 + $0x40] sm:$0xf]
  %v81 = vld [vmem:[%s1 + $0x44] sm:$0xf]
  %v82 = vld [vmem:[%s1 + $0x48] sm:$0xf]
  %v83 = vld [vmem:[%s1 + $0x4c] sm:$0xf]
  %v84 = vld [vmem:[%s1 + $0x50] sm:$0xf]
  %v85 = vld [vmem:[%s1 + $0x54] sm:$0xf]
  %v86 = vld [vmem:[%s1 + $0x58] sm:$0xf]
  %v87 = vld [vmem:[%s1 + $0x5c] sm:$0xf]
  %v88 = vld [vmem:[%s1 + $0x60] sm:$0xf]
  %v89 = vld [vmem:[%s1 + $0x64] sm:$0xf]
  %v90 = vld [vmem:[%s1 + $0x68] sm:$0xf]
  %v91 = vld [vmem:[%s1 + $0x6c] sm:$0xf]
  %v92 = vld [vmem:[%s1 + $0x70] sm:$0xf]
  %v93 = vld [vmem:[%s1 + $0x74] sm:$0xf]
  %v94 = vld [vmem:[%s1 + $0x78] sm:$0xf]
  %v95 = vld [vmem:[%s1 + $0x7c] sm:$0xf]
  %v96 = vld [vmem:[%s1 + $0x80] sm:$0xf]
  %v97 = vld [vmem:[%s1 + $0x84] sm:$0xf]
  %v98 = vld [vmem:[%s1 + $0x88] sm:$0xf]
  %v99 = vld [vmem:[%s1 + $0x8c] sm:$0xf]
  %v100 = vld [vmem:[%s1 + $0x90] sm:$0xf]
  %v101 = vld [vmem:[%s1 + $0x94] sm:$0xf]
  %v102 = vld [vmem:[%s1 + $0x98] sm:$0xf]
  %v103 = vld [vmem:[%s1 + $0x9c] sm:$0xf]
  %v104 = vld [vmem:[%s1 + $0xa0] sm:$0xf]
  %v105 = vld [vmem:[%s1 + $0xa4] sm:$0xf]
  %v106 = vld [vmem:[%s1 + $0xa8] sm:$0xf]
  %v107 = vld [vmem:[%s1 + $0xac] sm:$0xf]
  %v108 = vld [vmem:[%s1 + $0xb0] sm:$0xf]
  %v109 = vld [vmem:[%s1 + $0xb4] sm:$0xf]
  %v110 = vld [vmem:[%s1 + $0xb8] sm:$0xf]
  %v111 = vld [vmem:[%s1 + $0xbc] sm:$0xf]
  %v112 = vld [vmem:[%s1 + $0xc0] sm:$0xf]
  %v113 = vld [vmem:[%s1 + $0xc4] sm:$0xf]
  %v114 = vld [vmem:[%s1 + $0xc8] sm:$0xf]
  %v115 = vld [vmem:[%s1 + $0xcc] sm:$0xf]
  %v116 = vld [vmem:[%s1 + $0xd0] sm:$0xf]
  %v117 = vld [vmem:[%s1 + $0xd4] sm:$0xf]
  %v118 = vld [vmem:[%s1 + $0xd8] sm:$0xf]
  %v119 = vld [vmem:[%s1 + $0xdc] sm:$0xf]
  %v120 = vld [vmem:[%s1 + $0xe0] sm:$0xf]
  %v121 = vld [vmem:[%s1 + $0xe4] sm:$0xf]
  %v122 = vld [vmem:[%s1 + $0xe8] sm:$0xf]
  %v123 = vld [vmem:[%s1 + $0xec] sm:$0xf]
  %v124 = vld [vmem:[%s1 + $0xf0] sm:$0xf]
  %v125 = vld [vmem:[%s1 + $0xf4] sm:$0xf]
  %v126 = vld [vmem:[%s1 + $0xf8] sm:$0xf]
  %v127 = vld [vmem:[%s1 + $0xfc] sm:$0xf]
  %v128 = vld [vmem:[%s1 + $0x100] sm:$0xf]
  %v129 = vld [vmem:[%s1 + $0x104] sm:$0xf]
  %v130 = vld [vmem:[%s1 + $0x108] sm:$0xf]
  %v131 = vld [vmem:[%s1 + $0x10c] sm:$0xf]
  %v132 = vld [vmem:[%s1 + $0x110] sm:$0xf]
  %v133 = vld [vmem:[%s1 + $0x114] sm:$0xf]
  %v134 = vld [vmem:[%s1 + $0x118] sm:$0xf]
  %v135 = vld [vmem:[%s1 + $0x11c] sm:$0xf]
  %v136 = vld [vmem:[%s1 + $0x120] sm:$0xf]
  %v137 = vld [vmem:[%s1 + $0x124] sm:$0xf]
  %v138 = vld [vmem:[%s1 + $0x128] sm:$0xf]
  %v139 = vld [vmem:[%s1 + $0x12c] sm:$0xf]
  %v140 = vld [vmem:[%s1 + $0x130] sm:$0xf]
  %v141 = vld [vmem:[%s1 + $0x134] sm:$0xf]
  %v142 = vld [vmem:[%s1 + $0x138] sm:$0xf]
  %v143 = vld [vmem:[%s1 + $0x13c] sm:$0xf]
  %v144 = vld [vmem:[%s1 + $0x140] sm:$0xf]
  %v145 = vld [vmem:[%s1 + $0x144] sm:$0xf]
  %v146 = vld [vmem:[%s1 + $0x148] sm:$0xf]
  %v147 = vld [vmem:[%s1 + $0x14c] sm:$0xf]
  %v148 = vld [vmem:[%s1 + $0x150] sm:$0xf]
  %v149 = vld [vmem:[%s1 + $0x154] sm:$0xf]
  %v150 = vld [vmem:[%s1 + $0x158] sm:$0xf]
  %v151 = vld [vmem:[%s1 + $0x15c] sm:$0xf]
  %v152 = vld [vmem:[%s1 + $0x160] sm:$0xf]
  %v153 = vld [vmem:[%s1 + $0x164] sm:$0xf]
  %v154 = vld [vmem:[%s1 + $0x168] sm:$0xf]
  %v155 = vld [vmem:[%s1 + $0x16c] sm:$0xf]
  %v156 = vld [vmem:[%s1 + $0x170] sm:$0xf]
  %v157 = vld [vmem:[%s1 + $0x174] sm:$0xf]
  %v158 = vld [vmem:[%s1 + $0x178] sm:$0xf]
  %v159 = vld [vmem:[%s1 + $0x17c] sm:$0xf]
  %v160 = vld [vmem:[%s1 + $0x180] sm:$0xf]
  %v161 = vld [vmem:[%s1 + $0x184] sm:$0xf]
  %v162 = vld [vmem:[%s1 + $0x188] sm:$0xf]
  %v163 = vld [vmem:[%s1 + $0x18c] sm:$0xf]
  %v164 = vld [vmem:[%s1 + $0x190] sm:$0xf]
  %v165 = vld [vmem:[%s1 + $0x194] sm:$0xf]
  %v166 = vld [vmem:[%s1 + $0x198] sm:$0xf]
  %v167 = vld [vmem:[%s1 + $0x19c] sm:$0xf]
  %v168 = vld [vmem:[%s1 + $0x1a0] sm:$0xf]
  %v169 = vld [vmem:[%s1 + $0x1a4] sm:$0xf]
  %v170 = vld [vmem:[%s1 + $0x1a8] sm:$0xf]
  %v171 = vld [vmem:[%s1 + $0x1ac] sm:$0xf]
  %v172 = vld [vmem:[%s1 + $0x1b0] sm:$0xf]
  %v173 = vld [vmem:[%s1 + $0x1b4] sm:$0xf]
  %v174 = vld [vmem:[%s1 + $0x1b8] sm:$0xf]
  %v175 = vld [vmem:[%s1 + $0x1bc] sm:$0xf]
  %v176 = vld [vmem:[%s1 + $0x1c0] sm:$0xf]
  %v177 = vld [vmem:[%s1 + $0x1c4] sm:$0xf]
  %v178 = vld [vmem:[%s1 + $0x1c8] sm:$0xf]
  %v179 = vld [vmem:[%s1 + $0x1cc] sm:$0xf]
  %v180 = vld [vmem:[%s1 + $0x1d0] sm:$0xf]
  %v181 = vld [vmem:[%s1 + $0x1d4] sm:$0xf]
  %v182 = vld [vmem:[%s1 + $0x1d8] sm:$0xf]
  %v183 = vld [vmem:[%s1 + $0x1dc] sm:$0xf]
  %v184 = vld [vmem:[%s1 + $0x1e0] sm:$0xf]
  %v185 = vld [vmem:[%s1 + $0x1e4] sm:$0xf]
  %v186 = vld [vmem:[%s1 + $0x1e8] sm:$0xf]
  %v187 = vld [vmem:[%s1 + $0x1ec] sm:$0xf]
  %v188 = vld [vmem:[%s1 + $0x1f0] sm:$0xf]
  %v189 = vld [vmem:[%s1 + $0x1f4] sm:$0xf]
  %v190 = vld [vmem:[%s1 + $0x1f8] sm:$0xf]
  %v191 = vld [vmem:[%s1 + $0x1fc] sm:$0xf]
  %v192 = vld [vmem:[%s1 + $0x200] sm:$0xf]
  %v193 = vld [vmem:[%s1 + $0x204] sm:$0xf]
  %v194 = vld [vmem:[%s1 + $0x208] sm:$0xf]
  %v195 = vld [vmem:[%s1 + $0x20c] sm:$0xf]
  %v196 = vld [vmem:[%s1 + $0x210] sm:$0xf]
  %v197 = vld [vmem:[%s1 + $0x214] sm:$0xf]
  %v198 = vld [vmem:[%s1 + $0x218] sm:$0xf]
  %v199 = vld [vmem:[%s1 + $0x21c] sm:$0xf]
  %v200 = vld [vmem:[%s1 + $0x220] sm:$0xf]
  %v201 = vld [vmem:[%s1 + $0x224] sm:$0xf]
  %v202 = vld [vmem:[%s1 + $0x228] sm:$0xf]
  %v203 = vld [vmem:[%s1 + $0x22c] sm:$0xf]
  %v204 = vld [vmem:[%s1 + $0x230] sm:$0xf]
  %v205 = vld [vmem:[%s1 + $0x234] sm:$0xf]
  %v206 = vld [vmem:[%s1 + $0x238] sm:$0xf]
  %v207 = vld [vmem:[%s1 + $0x23c] sm:$0xf]
  %v208 = vld [vmem:[%s2] sm:$0x1]
  %v210 = vperm.slane %v208, 0
  %v262 = vunpack.c.l.b16 %v14
  %v263 = vunpack.c.h.b16 %v14
  %v264 = vunpack.c.l.b16 %v15
  %v265 = vunpack.c.h.b16 %v15
  %v266 = vunpack.c.l.b16 %v16
  %v267 = vunpack.c.h.b16 %v16
  %v268 = vunpack.c.l.b16 %v17
  %v269 = vunpack.c.h.b16 %v17
  %v270 = vunpack.c.l.b16 %v18
  %v271 = vunpack.c.l.b16 %v19
  %v272 = vunpack.c.h.b16 %v19
  %v273 = vunpack.c.l.b16 %v20
  %v274 = vunpack.c.h.b16 %v20
  %v275 = vunpack.c.l.b16 %v21
  %v276 = vunpack.c.h.b16 %v21
  %v277 = vunpack.c.l.b16 %v22
  %v278 = vunpack.c.h.b16 %v22
  %v279 = vunpack.c.l.b16 %v23
  %v280 = vunpack.c.l.b16 %v24
  %v281 = vunpack.c.h.b16 %v24
  %v282 = vunpack.c.l.b16 %v25
  %v283 = vunpack.c.h.b16 %v25
  %v284 = vunpack.c.l.b16 %v26
  %v285 = vunpack.c.h.b16 %v26
  %v286 = vunpack.c.l.b16 %v27
  %v287 = vunpack.c.h.b16 %v27
  %v288 = vunpack.c.l.b16 %v28
  %v289 = vunpack.c.l.b16 %v29
  %v290 = vunpack.c.h.b16 %v29
  %v291 = vunpack.c.l.b16 %v30
  %v292 = vunpack.c.h.b16 %v30
  %v293 = vunpack.c.l.b16 %v31
  %v294 = vunpack.c.h.b16 %v31
  %v295 = vunpack.c.l.b16 %v32
  %v296 = vunpack.c.h.b16 %v32
  %v297 = vunpack.c.l.b16 %v33
  %v298 = vunpack.c.l.b16 %v34
  %v299 = vunpack.c.h.b16 %v34
  %v300 = vunpack.c.l.b16 %v35
  %v301 = vunpack.c.h.b16 %v35
  %v302 = vunpack.c.l.b16 %v36
  %v303 = vunpack.c.h.b16 %v36
  %v304 = vunpack.c.l.b16 %v37
  %v305 = vunpack.c.h.b16 %v37
  %v306 = vunpack.c.l.b16 %v38
  %v307 = vunpack.c.l.b16 %v39
  %v308 = vunpack.c.h.b16 %v39
  %v309 = vunpack.c.l.b16 %v40
  %v310 = vunpack.c.h.b16 %v40
  %v311 = vunpack.c.l.b16 %v41
  %v312 = vunpack.c.h.b16 %v41
  %v313 = vunpack.c.l.b16 %v42
  %v314 = vunpack.c.h.b16 %v42
  %v315 = vunpack.c.l.b16 %v43
  %v316 = vunpack.c.l.b16 %v44
  %v317 = vunpack.c.h.b16 %v44
  %v318 = vunpack.c.l.b16 %v45
  %v319 = vunpack.c.h.b16 %v45
  %v320 = vunpack.c.l.b16 %v46
  %v321 = vunpack.c.h.b16 %v46
  %v322 = vunpack.c.l.b16 %v47
  %v323 = vunpack.c.h.b16 %v47
  %v324 = vunpack.c.l.b16 %v48
  %v325 = vunpack.c.l.b16 %v49
  %v326 = vunpack.c.h.b16 %v49
  %v327 = vunpack.c.l.b16 %v50
  %v328 = vunpack.c.h.b16 %v50
  %v329 = vunpack.c.l.b16 %v51
  %v330 = vunpack.c.h.b16 %v51
  %v331 = vunpack.c.l.b16 %v52
  %v332 = vunpack.c.h.b16 %v52
  %v333 = vunpack.c.l.b16 %v53
  %v334 = vunpack.c.l.b16 %v54
  %v335 = vunpack.c.h.b16 %v54
  %v336 = vunpack.c.l.b16 %v55
  %v337 = vunpack.c.h.b16 %v55
  %v338 = vunpack.c.l.b16 %v56
  %v339 = vunpack.c.h.b16 %v56
  %v340 = vunpack.c.l.b16 %v57
  %v341 = vunpack.c.h.b16 %v57
  %v342 = vunpack.c.l.b16 %v58
  %v343 = vunpack.c.l.b16 %v59
  %v344 = vunpack.c.h.b16 %v59
  %v345 = vunpack.c.l.b16 %v60
  %v346 = vunpack.c.h.b16 %v60
  %v347 = vunpack.c.l.b16 %v61
  %v348 = vunpack.c.h.b16 %v61
  %v349 = vunpack.c.l.b16 %v62
  %v350 = vunpack.c.h.b16 %v62
  %v351 = vunpack.c.l.b16 %v63
  %v352 = vpack.c.b16 %v271, %v262
  %v353 = vpack.c.b16 %v272, %v263
  %v354 = vpack.c.b16 %v273, %v264
  %v355 = vpack.c.b16 %v274, %v265
  %v356 = vpack.c.b16 %v275, %v266
  %v357 = vpack.c.b16 %v276, %v267
  %v358 = vpack.c.b16 %v277, %v268
  %v359 = vpack.c.b16 %v278, %v269
  %v360 = vpack.c.b16 %v279, %v270
  %v361 = vpack.c.b16 %v289, %v280
  %v362 = vpack.c.b16 %v290, %v281
  %v363 = vpack.c.b16 %v291, %v282
  %v364 = vpack.c.b16 %v292, %v283
  %v365 = vpack.c.b16 %v293, %v284
  %v366 = vpack.c.b16 %v294, %v285
  %v367 = vpack.c.b16 %v295, %v286
  %v368 = vpack.c.b16 %v296, %v287
  %v369 = vpack.c.b16 %v297, %v288
  %v370 = vpack.c.b16 %v307, %v298
  %v371 = vpack.c.b16 %v308, %v299
  %v372 = vpack.c.b16 %v309, %v300
  %v373 = vpack.c.b16 %v310, %v301
  %v374 = vpack.c.b16 %v311, %v302
  %v375 = vpack.c.b16 %v312, %v303
  %v376 = vpack.c.b16 %v313, %v304
  %v377 = vpack.c.b16 %v314, %v305
  %v378 = vpack.c.b16 %v315, %v306
  %v379 = vpack.c.b16 %v325, %v316
  %v380 = vpack.c.b16 %v326, %v317
  %v381 = vpack.c.b16 %v327, %v318
  %v382 = vpack.c.b16 %v328, %v319
  %v383 = vpack.c.b16 %v329, %v320
  %v384 = vpack.c.b16 %v330, %v321
  %v385 = vpack.c.b16 %v331, %v322
  %v386 = vpack.c.b16 %v332, %v323
  %v387 = vpack.c.b16 %v333, %v324
  %v388 = vpack.c.b16 %v343, %v334
  %v389 = vpack.c.b16 %v344, %v335
  %v390 = vpack.c.b16 %v345, %v336
  %v391 = vpack.c.b16 %v346, %v337
  %v392 = vpack.c.b16 %v347, %v338
  %v393 = vpack.c.b16 %v348, %v339
  %v394 = vpack.c.b16 %v349, %v340
  %v395 = vpack.c.b16 %v350, %v341
  %v396 = vpack.c.b16 %v351, %v342
  %v586 = vunpack.c.l.b16 %v64
  %v587 = vunpack.c.l.b16 %v65
  %v588 = vunpack.c.l.b16 %v66
  %v589 = vunpack.c.l.b16 %v67
  %v590 = vunpack.c.l.b16 %v68
  %v591 = vunpack.c.l.b16 %v69
  %v592 = vunpack.c.l.b16 %v70
  %v593 = vunpack.c.l.b16 %v71
  %v594 = vunpack.c.l.b16 %v72
  %v595 = vunpack.c.l.b16 %v73
  %v596 = vunpack.c.l.b16 %v74
  %v597 = vunpack.c.l.b16 %v75
  %v598 = vunpack.c.l.b16 %v76
  %v599 = vunpack.c.l.b16 %v77
  %v600 = vunpack.c.l.b16 %v78
  %v601 = vunpack.c.l.b16 %v79
  %v602 = vunpack.c.l.b16 %v80
  %v603 = vunpack.c.l.b16 %v81
  %v604 = vunpack.c.l.b16 %v82
  %v605 = vunpack.c.l.b16 %v83
  %v606 = vunpack.c.l.b16 %v84
  %v607 = vunpack.c.l.b16 %v85
  %v608 = vunpack.c.l.b16 %v86
  %v609 = vunpack.c.l.b16 %v87
  %v610 = vunpack.c.l.b16 %v88
  %v611 = vunpack.c.l.b16 %v89
  %v612 = vunpack.c.l.b16 %v90
  %v613 = vunpack.c.l.b16 %v91
  %v614 = vunpack.c.l.b16 %v92
  %v615 = vunpack.c.l.b16 %v93
  %v616 = vunpack.c.l.b16 %v94
  %v617 = vunpack.c.l.b16 %v95
  %v618 = vunpack.c.l.b16 %v96
  %v619 = vunpack.c.l.b16 %v97
  %v620 = vunpack.c.l.b16 %v98
  %v621 = vunpack.c.l.b16 %v99
  %v622 = vunpack.c.l.b16 %v100
  %v623 = vunpack.c.l.b16 %v101
  %v624 = vunpack.c.l.b16 %v102
  %v625 = vunpack.c.l.b16 %v103
  %v626 = vunpack.c.l.b16 %v104
  %v627 = vunpack.c.l.b16 %v105
  %v628 = vunpack.c.l.b16 %v106
  %v629 = vunpack.c.l.b16 %v107
  %v630 = vunpack.c.l.b16 %v108
  %v631 = vunpack.c.l.b16 %v109
  %v632 = vunpack.c.l.b16 %v110
  %v633 = vunpack.c.l.b16 %v111
  %v634 = vunpack.c.l.b16 %v112
  %v635 = vunpack.c.l.b16 %v113
  %v636 = vunpack.c.l.b16 %v114
  %v637 = vunpack.c.l.b16 %v115
  %v638 = vunpack.c.l.b16 %v116
  %v639 = vunpack.c.l.b16 %v117
  %v640 = vunpack.c.l.b16 %v118
  %v641 = vunpack.c.l.b16 %v119
  %v642 = vunpack.c.l.b16 %v120
  %v643 = vunpack.c.l.b16 %v121
  %v644 = vunpack.c.l.b16 %v122
  %v645 = vunpack.c.l.b16 %v123
  %v646 = vunpack.c.l.b16 %v124
  %v647 = vunpack.c.l.b16 %v125
  %v648 = vunpack.c.l.b16 %v126
  %v649 = vunpack.c.l.b16 %v127
  %v650 = vunpack.c.l.b16 %v128
  %v651 = vunpack.c.l.b16 %v129
  %v652 = vunpack.c.l.b16 %v130
  %v653 = vunpack.c.l.b16 %v131
  %v654 = vunpack.c.l.b16 %v132
  %v655 = vunpack.c.l.b16 %v133
  %v656 = vunpack.c.l.b16 %v134
  %v657 = vunpack.c.l.b16 %v135
  %v658 = vunpack.c.l.b16 %v136
  %v659 = vunpack.c.l.b16 %v137
  %v660 = vunpack.c.l.b16 %v138
  %v661 = vunpack.c.l.b16 %v139
  %v662 = vunpack.c.l.b16 %v140
  %v663 = vunpack.c.l.b16 %v141
  %v664 = vunpack.c.l.b16 %v142
  %v665 = vunpack.c.l.b16 %v143
  %v666 = vunpack.c.l.b16 %v144
  %v667 = vunpack.c.l.b16 %v145
  %v668 = vunpack.c.l.b16 %v146
  %v669 = vunpack.c.l.b16 %v147
  %v670 = vunpack.c.l.b16 %v148
  %v671 = vunpack.c.l.b16 %v149
  %v672 = vunpack.c.l.b16 %v150
  %v673 = vunpack.c.l.b16 %v151
  %v674 = vunpack.c.l.b16 %v152
  %v675 = vunpack.c.l.b16 %v153
  %v676 = vunpack.c.l.b16 %v154
  %v677 = vunpack.c.l.b16 %v155
  %v678 = vunpack.c.l.b16 %v156
  %v679 = vunpack.c.l.b16 %v157
  %v680 = vunpack.c.l.b16 %v158
  %v681 = vunpack.c.l.b16 %v159
  %v682 = vunpack.c.l.b16 %v160
  %v683 = vunpack.c.l.b16 %v161
  %v684 = vunpack.c.l.b16 %v162
  %v685 = vunpack.c.l.b16 %v163
  %v686 = vunpack.c.l.b16 %v164
  %v687 = vunpack.c.l.b16 %v165
  %v688 = vunpack.c.l.b16 %v166
  %v689 = vunpack.c.l.b16 %v167
  %v690 = vunpack.c.l.b16 %v168
  %v691 = vunpack.c.l.b16 %v169
  %v692 = vunpack.c.l.b16 %v170
  %v693 = vunpack.c.l.b16 %v171
  %v694 = vunpack.c.l.b16 %v172
  %v695 = vunpack.c.l.b16 %v173
  %v696 = vunpack.c.l.b16 %v174
  %v697 = vunpack.c.l.b16 %v175
  %v698 = vunpack.c.l.b16 %v176
  %v699 = vunpack.c.l.b16 %v177
  %v700 = vunpack.c.l.b16 %v178
  %v701 = vunpack.c.l.b16 %v179
  %v702 = vunpack.c.l.b16 %v180
  %v703 = vunpack.c.l.b16 %v181
  %v704 = vunpack.c.l.b16 %v182
  %v705 = vunpack.c.l.b16 %v183
  %v706 = vunpack.c.l.b16 %v184
  %v707 = vunpack.c.l.b16 %v185
  %v708 = vunpack.c.l.b16 %v186
  %v709 = vunpack.c.l.b16 %v187
  %v710 = vunpack.c.l.b16 %v188
  %v711 = vunpack.c.l.b16 %v189
  %v712 = vunpack.c.l.b16 %v190
  %v713 = vunpack.c.l.b16 %v191
  %v714 = vunpack.c.l.b16 %v192
  %v715 = vunpack.c.l.b16 %v193
  %v716 = vunpack.c.l.b16 %v194
  %v717 = vunpack.c.l.b16 %v195
  %v718 = vunpack.c.l.b16 %v196
  %v719 = vunpack.c.l.b16 %v197
  %v720 = vunpack.c.l.b16 %v198
  %v721 = vunpack.c.l.b16 %v199
  %v722 = vunpack.c.l.b16 %v200
  %v723 = vunpack.c.l.b16 %v201
  %v724 = vunpack.c.l.b16 %v202
  %v725 = vunpack.c.l.b16 %v203
  %v726 = vunpack.c.l.b16 %v204
  %v727 = vunpack.c.l.b16 %v205
  %v728 = vunpack.c.l.b16 %v206
  %v729 = vunpack.c.l.b16 %v207
  %v730 = vpack.c.b16 %v587, %v586
  %v731 = vpack.c.b16 %v589, %v588
  %v732 = vpack.c.b16 %v591, %v590
  %v733 = vpack.c.b16 %v593, %v592
  %v734 = vpack.c.b16 %v595, %v594
  %v735 = vpack.c.b16 %v597, %v596
  %v736 = vpack.c.b16 %v599, %v598
  %v737 = vpack.c.b16 %v601, %v600
  %v738 = vpack.c.b16 %v603, %v602
  %v739 = vpack.c.b16 %v605, %v604
  %v740 = vpack.c.b16 %v607, %v606
  %v741 = vpack.c.b16 %v609, %v608
  %v742 = vpack.c.b16 %v611, %v610
  %v743 = vpack.c.b16 %v613, %v612
  %v744 = vpack.c.b16 %v615, %v614
  %v745 = vpack.c.b16 %v617, %v616
  %v746 = vpack.c.b16 %v619, %v618
  %v747 = vpack.c.b16 %v621, %v620
  %v748 = vpack.c.b16 %v623, %v622
  %v749 = vpack.c.b16 %v625, %v624
  %v750 = vpack.c.b16 %v627, %v626
  %v751 = vpack.c.b16 %v629, %v628
  %v752 = vpack.c.b16 %v631, %v630
  %v753 = vpack.c.b16 %v633, %v632
  %v754 = vpack.c.b16 %v635, %v634
  %v755 = vpack.c.b16 %v637, %v636
  %v756 = vpack.c.b16 %v639, %v638
  %v757 = vpack.c.b16 %v641, %v640
  %v758 = vpack.c.b16 %v643, %v642
  %v759 = vpack.c.b16 %v645, %v644
  %v760 = vpack.c.b16 %v647, %v646
  %v761 = vpack.c.b16 %v649, %v648
  %v762 = vpack.c.b16 %v651, %v650
  %v763 = vpack.c.b16 %v653, %v652
  %v764 = vpack.c.b16 %v655, %v654
  %v765 = vpack.c.b16 %v657, %v656
  %v766 = vpack.c.b16 %v659, %v658
  %v767 = vpack.c.b16 %v661, %v660
  %v768 = vpack.c.b16 %v663, %v662
  %v769 = vpack.c.b16 %v665, %v664
  %v770 = vpack.c.b16 %v667, %v666
  %v771 = vpack.c.b16 %v669, %v668
  %v772 = vpack.c.b16 %v671, %v670
  %v773 = vpack.c.b16 %v673, %v672
  %v774 = vpack.c.b16 %v675, %v674
  %v775 = vpack.c.b16 %v677, %v676
  %v776 = vpack.c.b16 %v679, %v678
  %v777 = vpack.c.b16 %v681, %v680
  %v778 = vpack.c.b16 %v683, %v682
  %v779 = vpack.c.b16 %v685, %v684
  %v780 = vpack.c.b16 %v687, %v686
  %v781 = vpack.c.b16 %v689, %v688
  %v782 = vpack.c.b16 %v691, %v690
  %v783 = vpack.c.b16 %v693, %v692
  %v784 = vpack.c.b16 %v695, %v694
  %v785 = vpack.c.b16 %v697, %v696
  %v786 = vpack.c.b16 %v699, %v698
  %v787 = vpack.c.b16 %v701, %v700
  %v788 = vpack.c.b16 %v703, %v702
  %v789 = vpack.c.b16 %v705, %v704
  %v790 = vpack.c.b16 %v707, %v706
  %v791 = vpack.c.b16 %v709, %v708
  %v792 = vpack.c.b16 %v711, %v710
  %v793 = vpack.c.b16 %v713, %v712
  %v794 = vpack.c.b16 %v715, %v714
  %v795 = vpack.c.b16 %v717, %v716
  %v796 = vpack.c.b16 %v719, %v718
  %v797 = vpack.c.b16 %v721, %v720
  %v798 = vpack.c.b16 %v723, %v722
  %v799 = vpack.c.b16 %v725, %v724
  %v800 = vpack.c.b16 %v727, %v726
  %v801 = vpack.c.b16 %v729, %v728
  %874 = vmatpush.bf16.msra.mxu0 %v737
  %875 = vmatpush.bf16.msra.mxu0 %v736
  %876 = vmatpush.bf16.msra.mxu0 %v735
  %877 = vmatpush.bf16.msra.mxu0 %v734
  %878 = vmatpush.bf16.msra.mxu0 %v733
  %879 = vmatpush.bf16.msra.mxu0 %v732
  %880 = vmatpush.bf16.msra.mxu0 %v731
  %881 = vmatpush.bf16.msra.mxu0 %v730
  %882 = vmatmul.bf16.gmra.mxu0 %v352
  %v883 = vpop.f32.mrf.mxu0
  %v884 = vadd.f32 %v210, %v883
  %v885 = vpop.f32.mrf.mxu0
  %v886 = vadd.f32 %v210, %v885
  %887 = vmatmul.bf16.gmra.mxu0 %v361
  %v888 = vpop.f32.mrf.mxu0
  %v889 = vadd.f32 %v210, %v888
  %v890 = vpop.f32.mrf.mxu0
  %v891 = vadd.f32 %v210, %v890
  %892 = vmatmul.bf16.gmra.mxu0 %v370
  %v893 = vpop.f32.mrf.mxu0
  %v894 = vadd.f32 %v210, %v893
  %v895 = vpop.f32.mrf.mxu0
  %v896 = vadd.f32 %v210, %v895
  %897 = vmatmul.bf16.gmra.mxu0 %v379
  %v898 = vpop.f32.mrf.mxu0
  %v899 = vadd.f32 %v210, %v898
  %v900 = vpop.f32.mrf.mxu0
  %v901 = vadd.f32 %v210, %v900
  %902 = vmatmul.bf16.gmra.mxu0 %v388
  %v903 = vpop.f32.mrf.mxu0
  %v904 = vadd.f32 %v210, %v903
  %v905 = vpop.f32.mrf.mxu0
  %v906 = vadd.f32 %v210, %v905
  %907 = vdwg.mxu0
  %908 = vmatpush.bf16.msra.mxu0 %v745
  %909 = vmatpush.bf16.msra.mxu0 %v744
  %910 = vmatpush.bf16.msra.mxu0 %v743
  %911 = vmatpush.bf16.msra.mxu0 %v742
  %912 = vmatpush.bf16.msra.mxu0 %v741
  %913 = vmatpush.bf16.msra.mxu0 %v740
  %914 = vmatpush.bf16.msra.mxu0 %v739
  %915 = vmatpush.bf16.msra.mxu0 %v738
  %916 = vmatmul.bf16.gmra.mxu0 %v353
  %v917 = vpop.f32.mrf.mxu0
  %v918 = vadd.f32 %v884, %v917
  %v919 = vpop.f32.mrf.mxu0
  %v920 = vadd.f32 %v886, %v919
  %921 = vmatmul.bf16.gmra.mxu0 %v362
  %v922 = vpop.f32.mrf.mxu0
  %v923 = vadd.f32 %v889, %v922
  %v924 = vpop.f32.mrf.mxu0
  %v925 = vadd.f32 %v891, %v924
  %926 = vmatmul.bf16.gmra.mxu0 %v371
  %v927 = vpop.f32.mrf.mxu0
  %v928 = vadd.f32 %v894, %v927
  %v929 = vpop.f32.mrf.mxu0
  %v930 = vadd.f32 %v896, %v929
  %931 = vmatmul.bf16.gmra.mxu0 %v380
  %v932 = vpop.f32.mrf.mxu0
  %v933 = vadd.f32 %v899, %v932
  %v934 = vpop.f32.mrf.mxu0
  %v935 = vadd.f32 %v901, %v934
  %936 = vmatmul.bf16.gmra.mxu0 %v389
  %v937 = vpop.f32.mrf.mxu0
  %v938 = vadd.f32 %v904, %v937
  %v939 = vpop.f32.mrf.mxu0
  %v940 = vadd.f32 %v906, %v939
  %941 = vdwg.mxu0
  %942 = vmatpush.bf16.msra.mxu0 %v753
  %943 = vmatpush.bf16.msra.mxu0 %v752
  %944 = vmatpush.bf16.msra.mxu0 %v751
  %945 = vmatpush.bf16.msra.mxu0 %v750
  %946 = vmatpush.bf16.msra.mxu0 %v749
  %947 = vmatpush.bf16.msra.mxu0 %v748
  %948 = vmatpush.bf16.msra.mxu0 %v747
  %949 = vmatpush.bf16.msra.mxu0 %v746
  %950 = vmatmul.bf16.gmra.mxu0 %v354
  %v951 = vpop.f32.mrf.mxu0
  %v952 = vadd.f32 %v918, %v951
  %v953 = vpop.f32.mrf.mxu0
  %v954 = vadd.f32 %v920, %v953
  %955 = vmatmul.bf16.gmra.mxu0 %v363
  %v956 = vpop.f32.mrf.mxu0
  %v957 = vadd.f32 %v923, %v956
  %v958 = vpop.f32.mrf.mxu0
  %v959 = vadd.f32 %v925, %v958
  %960 = vmatmul.bf16.gmra.mxu0 %v372
  %v961 = vpop.f32.mrf.mxu0
  %v962 = vadd.f32 %v928, %v961
  %v963 = vpop.f32.mrf.mxu0
  %v964 = vadd.f32 %v930, %v963
  %965 = vmatmul.bf16.gmra.mxu0 %v381
  %v966 = vpop.f32.mrf.mxu0
  %v967 = vadd.f32 %v933, %v966
  %v968 = vpop.f32.mrf.mxu0
  %v969 = vadd.f32 %v935, %v968
  %970 = vmatmul.bf16.gmra.mxu0 %v390
  %v971 = vpop.f32.mrf.mxu0
  %v972 = vadd.f32 %v938, %v971
  %v973 = vpop.f32.mrf.mxu0
  %v974 = vadd.f32 %v940, %v973
  %975 = vdwg.mxu0
  %976 = vmatpush.bf16.msra.mxu0 %v761
  %977 = vmatpush.bf16.msra.mxu0 %v760
  %978 = vmatpush.bf16.msra.mxu0 %v759
  %979 = vmatpush.bf16.msra.mxu0 %v758
  %980 = vmatpush.bf16.msra.mxu0 %v757
  %981 = vmatpush.bf16.msra.mxu0 %v756
  %982 = vmatpush.bf16.msra.mxu0 %v755
  %983 = vmatpush.bf16.msra.mxu0 %v754
  %984 = vmatmul.bf16.gmra.mxu0 %v355
  %v985 = vpop.f32.mrf.mxu0
  %v986 = vadd.f32 %v952, %v985
  %v987 = vpop.f32.mrf.mxu0
  %v988 = vadd.f32 %v954, %v987
  %989 = vmatmul.bf16.gmra.mxu0 %v364
  %v990 = vpop.f32.mrf.mxu0
  %v991 = vadd.f32 %v957, %v990
  %v992 = vpop.f32.mrf.mxu0
  %v993 = vadd.f32 %v959, %v992
  %994 = vmatmul.bf16.gmra.mxu0 %v373
  %v995 = vpop.f32.mrf.mxu0
  %v996 = vadd.f32 %v962, %v995
  %v997 = vpop.f32.mrf.mxu0
  %v998 = vadd.f32 %v964, %v997
  %999 = vmatmul.bf16.gmra.mxu0 %v382
  %v1000 = vpop.f32.mrf.mxu0
  %v1001 = vadd.f32 %v967, %v1000
  %v1002 = vpop.f32.mrf.mxu0
  %v1003 = vadd.f32 %v969, %v1002
  %1004 = vmatmul.bf16.gmra.mxu0 %v391
  %v1005 = vpop.f32.mrf.mxu0
  %v1006 = vadd.f32 %v972, %v1005
  %v1007 = vpop.f32.mrf.mxu0
  %v1008 = vadd.f32 %v974, %v1007
  %1009 = vdwg.mxu0
  %1010 = vmatpush.bf16.msra.mxu0 %v769
  %1011 = vmatpush.bf16.msra.mxu0 %v768
  %1012 = vmatpush.bf16.msra.mxu0 %v767
  %1013 = vmatpush.bf16.msra.mxu0 %v766
  %1014 = vmatpush.bf16.msra.mxu0 %v765
  %1015 = vmatpush.bf16.msra.mxu0 %v764
  %1016 = vmatpush.bf16.msra.mxu0 %v763
  %1017 = vmatpush.bf16.msra.mxu0 %v762
  %1018 = vmatmul.bf16.gmra.mxu0 %v356
  %v1019 = vpop.f32.mrf.mxu0
  %v1020 = vadd.f32 %v986, %v1019
  %v1021 = vpop.f32.mrf.mxu0
  %v1022 = vadd.f32 %v988, %v1021
  %1023 = vmatmul.bf16.gmra.mxu0 %v365
  %v1024 = vpop.f32.mrf.mxu0
  %v1025 = vadd.f32 %v991, %v1024
  %v1026 = vpop.f32.mrf.mxu0
  %v1027 = vadd.f32 %v993, %v1026
  %1028 = vmatmul.bf16.gmra.mxu0 %v374
  %v1029 = vpop.f32.mrf.mxu0
  %v1030 = vadd.f32 %v996, %v1029
  %v1031 = vpop.f32.mrf.mxu0
  %v1032 = vadd.f32 %v998, %v1031
  %1033 = vmatmul.bf16.gmra.mxu0 %v383
  %v1034 = vpop.f32.mrf.mxu0
  %v1035 = vadd.f32 %v1001, %v1034
  %v1036 = vpop.f32.mrf.mxu0
  %v1037 = vadd.f32 %v1003, %v1036
  %1038 = vmatmul.bf16.gmra.mxu0 %v392
  %v1039 = vpop.f32.mrf.mxu0
  %v1040 = vadd.f32 %v1006, %v1039
  %v1041 = vpop.f32.mrf.mxu0
  %v1042 = vadd.f32 %v1008, %v1041
  %1043 = vdwg.mxu0
  %1044 = vmatpush.bf16.msra.mxu0 %v777
  %1045 = vmatpush.bf16.msra.mxu0 %v776
  %1046 = vmatpush.bf16.msra.mxu0 %v775
  %1047 = vmatpush.bf16.msra.mxu0 %v774
  %1048 = vmatpush.bf16.msra.mxu0 %v773
  %1049 = vmatpush.bf16.msra.mxu0 %v772
  %1050 = vmatpush.bf16.msra.mxu0 %v771
  %1051 = vmatpush.bf16.msra.mxu0 %v770
  %1052 = vmatmul.bf16.gmra.mxu0 %v357
  %v1053 = vpop.f32.mrf.mxu0
  %v1054 = vadd.f32 %v1020, %v1053
  %v1055 = vpop.f32.mrf.mxu0
  %v1056 = vadd.f32 %v1022, %v1055
  %1057 = vmatmul.bf16.gmra.mxu0 %v366
  %v1058 = vpop.f32.mrf.mxu0
  %v1059 = vadd.f32 %v1025, %v1058
  %v1060 = vpop.f32.mrf.mxu0
  %v1061 = vadd.f32 %v1027, %v1060
  %1062 = vmatmul.bf16.gmra.mxu0 %v375
  %v1063 = vpop.f32.mrf.mxu0
  %v1064 = vadd.f32 %v1030, %v1063
  %v1065 = vpop.f32.mrf.mxu0
  %v1066 = vadd.f32 %v1032, %v1065
  %1067 = vmatmul.bf16.gmra.mxu0 %v384
  %v1068 = vpop.f32.mrf.mxu0
  %v1069 = vadd.f32 %v1035, %v1068
  %v1070 = vpop.f32.mrf.mxu0
  %v1071 = vadd.f32 %v1037, %v1070
  %1072 = vmatmul.bf16.gmra.mxu0 %v393
  %v1073 = vpop.f32.mrf.mxu0
  %v1074 = vadd.f32 %v1040, %v1073
  %v1075 = vpop.f32.mrf.mxu0
  %v1076 = vadd.f32 %v1042, %v1075
  %1077 = vdwg.mxu0
  %1078 = vmatpush.bf16.msra.mxu0 %v785
  %1079 = vmatpush.bf16.msra.mxu0 %v784
  %1080 = vmatpush.bf16.msra.mxu0 %v783
  %1081 = vmatpush.bf16.msra.mxu0 %v782
  %1082 = vmatpush.bf16.msra.mxu0 %v781
  %1083 = vmatpush.bf16.msra.mxu0 %v780
  %1084 = vmatpush.bf16.msra.mxu0 %v779
  %1085 = vmatpush.bf16.msra.mxu0 %v778
  %1086 = vmatmul.bf16.gmra.mxu0 %v358
  %v1087 = vpop.f32.mrf.mxu0
  %v1088 = vadd.f32 %v1054, %v1087
  %v1089 = vpop.f32.mrf.mxu0
  %v1090 = vadd.f32 %v1056, %v1089
  %1091 = vmatmul.bf16.gmra.mxu0 %v367
  %v1092 = vpop.f32.mrf.mxu0
  %v1093 = vadd.f32 %v1059, %v1092
  %v1094 = vpop.f32.mrf.mxu0
  %v1095 = vadd.f32 %v1061, %v1094
  %1096 = vmatmul.bf16.gmra.mxu0 %v376
  %v1097 = vpop.f32.mrf.mxu0
  %v1098 = vadd.f32 %v1064, %v1097
  %v1099 = vpop.f32.mrf.mxu0
  %v1100 = vadd.f32 %v1066, %v1099
  %1101 = vmatmul.bf16.gmra.mxu0 %v385
  %v1102 = vpop.f32.mrf.mxu0
  %v1103 = vadd.f32 %v1069, %v1102
  %v1104 = vpop.f32.mrf.mxu0
  %v1105 = vadd.f32 %v1071, %v1104
  %1106 = vmatmul.bf16.gmra.mxu0 %v394
  %v1107 = vpop.f32.mrf.mxu0
  %v1108 = vadd.f32 %v1074, %v1107
  %v1109 = vpop.f32.mrf.mxu0
  %v1110 = vadd.f32 %v1076, %v1109
  %1111 = vdwg.mxu0
  %1112 = vmatpush.bf16.msra.mxu0 %v793
  %1113 = vmatpush.bf16.msra.mxu0 %v792
  %1114 = vmatpush.bf16.msra.mxu0 %v791
  %1115 = vmatpush.bf16.msra.mxu0 %v790
  %1116 = vmatpush.bf16.msra.mxu0 %v789
  %1117 = vmatpush.bf16.msra.mxu0 %v788
  %1118 = vmatpush.bf16.msra.mxu0 %v787
  %1119 = vmatpush.bf16.msra.mxu0 %v786
  %1120 = vmatmul.bf16.gmra.mxu0 %v359
  %v1121 = vpop.f32.mrf.mxu0
  %v1122 = vadd.f32 %v1088, %v1121
  %v1123 = vpop.f32.mrf.mxu0
  %v1124 = vadd.f32 %v1090, %v1123
  %1125 = vmatmul.bf16.gmra.mxu0 %v368
  %v1126 = vpop.f32.mrf.mxu0
  %v1127 = vadd.f32 %v1093, %v1126
  %v1128 = vpop.f32.mrf.mxu0
  %v1129 = vadd.f32 %v1095, %v1128
  %1130 = vmatmul.bf16.gmra.mxu0 %v377
  %v1131 = vpop.f32.mrf.mxu0
  %v1132 = vadd.f32 %v1098, %v1131
  %v1133 = vpop.f32.mrf.mxu0
  %v1134 = vadd.f32 %v1100, %v1133
  %1135 = vmatmul.bf16.gmra.mxu0 %v386
  %v1136 = vpop.f32.mrf.mxu0
  %v1137 = vadd.f32 %v1103, %v1136
  %v1138 = vpop.f32.mrf.mxu0
  %v1139 = vadd.f32 %v1105, %v1138
  %1140 = vmatmul.bf16.gmra.mxu0 %v395
  %v1141 = vpop.f32.mrf.mxu0
  %v1142 = vadd.f32 %v1108, %v1141
  %v1143 = vpop.f32.mrf.mxu0
  %v1144 = vadd.f32 %v1110, %v1143
  %1145 = vdwg.mxu0
  %1146 = vmatpush.bf16.msra.mxu0 %v801
  %1147 = vmatpush.bf16.msra.mxu0 %v800
  %1148 = vmatpush.bf16.msra.mxu0 %v799
  %1149 = vmatpush.bf16.msra.mxu0 %v798
  %1150 = vmatpush.bf16.msra.mxu0 %v797
  %1151 = vmatpush.bf16.msra.mxu0 %v796
  %1152 = vmatpush.bf16.msra.mxu0 %v795
  %1153 = vmatpush.bf16.msra.mxu0 %v794
  %1154 = vmatmul.bf16.gmra.mxu0 %v360
  %v1155 = vpop.f32.mrf.mxu0
  %v1156 = vadd.f32 %v1122, %v1155
  %v1157 = vpop.f32.mrf.mxu0
  %v1158 = vadd.f32 %v1124, %v1157
  %1159 = vmatmul.bf16.gmra.mxu0 %v369
  %v1160 = vpop.f32.mrf.mxu0
  %v1161 = vadd.f32 %v1127, %v1160
  %v1162 = vpop.f32.mrf.mxu0
  %v1163 = vadd.f32 %v1129, %v1162
  %1164 = vmatmul.bf16.gmra.mxu0 %v378
  %v1165 = vpop.f32.mrf.mxu0
  %v1166 = vadd.f32 %v1132, %v1165
  %v1167 = vpop.f32.mrf.mxu0
  %v1168 = vadd.f32 %v1134, %v1167
  %1169 = vmatmul.bf16.gmra.mxu0 %v387
  %v1170 = vpop.f32.mrf.mxu0
  %v1171 = vadd.f32 %v1137, %v1170
  %v1172 = vpop.f32.mrf.mxu0
  %v1173 = vadd.f32 %v1139, %v1172
  %1174 = vmatmul.bf16.gmra.mxu0 %v396
  %v1175 = vpop.f32.mrf.mxu0
  %v1176 = vadd.f32 %v1142, %v1175
  %v1177 = vpop.f32.mrf.mxu0
  %v1178 = vadd.f32 %v1144, %v1177
  %1179 = vdwg.mxu0
  %v1180 = vmax.f32 %v1156, 0.0
  %v1181 = vmax.f32 %v1158, 0.0
  %v1182 = vmax.f32 %v1161, 0.0
  %v1183 = vmax.f32 %v1163, 0.0
  %v1184 = vmax.f32 %v1166, 0.0
  %v1185 = vmax.f32 %v1168, 0.0
  %v1186 = vmax.f32 %v1171, 0.0
  %v1187 = vmax.f32 %v1173, 0.0
  %v1188 = vmax.f32 %v1176, 0.0
  %v1189 = vmax.f32 %v1178, 0.0
  %v1190 = vpack.c.bf16 %v1180, %v1180
  %v1191 = vpack.c.bf16 %v1181, %v1181
  %v1192 = vpack.c.bf16 %v1182, %v1182
  %v1193 = vpack.c.bf16 %v1183, %v1183
  %v1194 = vpack.c.bf16 %v1184, %v1184
  %v1195 = vpack.c.bf16 %v1185, %v1185
  %v1196 = vpack.c.bf16 %v1186, %v1186
  %v1197 = vpack.c.bf16 %v1187, %v1187
  %v1198 = vpack.c.bf16 %v1188, %v1188
  %v1199 = vpack.c.bf16 %v1189, %v1189
  %1200 = vst [vmem:[%s3] sm:$0xf] %v1190
  %1201 = vst [vmem:[%s3 + $0x4] sm:$0xf] %v1191
  %1202 = vst [vmem:[%s3 + $0x8] sm:$0xf] %v1192
  %1203 = vst [vmem:[%s3 + $0xc] sm:$0xf] %v1193
  %1204 = vst [vmem:[%s3 + $0x10] sm:$0xf] %v1194
  %1205 = vst [vmem:[%s3 + $0x14] sm:$0xf] %v1195
  %1206 = vst [vmem:[%s3 + $0x18] sm:$0xf] %v1196
  %1207 = vst [vmem:[%s3 + $0x1c] sm:$0xf] %v1197
  %1208 = vst [vmem:[%s3 + $0x20] sm:$0xf] %v1198
  %1209 = vst [vmem:[%s3 + $0x24] sm:$0xf] %v1199
  // Predicated region
  $region14: #{_lambda_.70} parent=0 // pred_check
    _
  $region15: #{_lambda_.70} parent=0 // pred_check_branch
    %1211 = sbr.rel (0) target = $region17
  $region16: #{_lambda_.70} parent=0 // pred_region
    _
  $region17: #{_lambda_.70} parent=0 // pred_fallthru
    _
  // Predicated region
  $region18: #{_lambda_.70} parent=0 // pred_check
    _
  $region19: #{_lambda_.70} parent=0 // pred_check_branch
    %1213 = sbr.rel (0) target = $region21
  $region20: #{_lambda_.70} parent=0 // pred_region
    _
  $region21: #{_lambda_.70} parent=0 // pred_fallthru
    _

// kernel: _lambda_.69
$region0: #{_lambda_.69}
  #allocation0 [shape = 'u32[]', space=smem, size = 0x4, offset = 0x4, fixed_abs, tag = 'smem constant byte address 0x4 - core index']
  #allocation1 [shape = 'u32[72,128]{1,0:T(1,128)}', space=vmem, size = 0x9000, scoped, tag = 'internal scratch']
  %s0 = inlined_call_operand.vmem [shape: bf16[80,128], index: 0, kind: input, shape index: {}]
  %s1 = inlined_call_operand.vmem [shape: bf16[128,128], index: 1, kind: input, shape index: {}]
  %s2 = inlined_call_operand.vmem [shape: f32[1,128], index: 2, kind: input, shape index: {}]
  %s3 = inlined_call_operand.vmem [shape: bf16[80,128], index: 3, kind: output, shape index: {}]
  %s4 = sld [smem:[#allocation0]]
  $region22: #{_lambda_.69} parent=0
    _
  %s6 = ssub.s32 1, %s4
  %s7 = scalar_select 0, %s6, %s4
  // Predicated region
  $region2: #{_lambda_.69} parent=0 // pred_check
    _
  $region3: #{_lambda_.69} parent=0 // pred_check_branch
    %9 = sbr.rel (0) target = $region5
  $region4: #{_lambda_.69} parent=0 // pred_region
    _
  $region5: #{_lambda_.69} parent=0 // pred_fallthru
    _
  // Predicated region
  $region6: #{_lambda_.69} parent=0 // pred_check
    _
  $region7: #{_lambda_.69} parent=0 // pred_check_branch
    %11 = sbr.rel (0) target = $region9
  $region8: #{_lambda_.69} parent=0 // pred_region
    _
  $region9: #{_lambda_.69} parent=0 // pred_fallthru
    _
  // Predicated region
  $region10: #{_lambda_.69} parent=0 // pred_check
    _
  $region11: #{_lambda_.69} parent=0 // pred_check_branch
    %13 = sbr.rel (0) target = $region13
  $region12: #{_lambda_.69} parent=0 // pred_region
    _
  $region13: #{_lambda_.69} parent=0 // pred_fallthru
    _
  %v14 = vld [vmem:[%s0] sm:$0xf]
  %v15 = vld [vmem:[%s0 + $0x4] sm:$0xf]
  %v16 = vld [vmem:[%s0 + $0x8] sm:$0xf]
  %v17 = vld [vmem:[%s0 + $0xc] sm:$0xf]
  %v18 = vld [vmem:[%s0 + $0x10] sm:$0xf]
  %v19 = vld [vmem:[%s0 + $0x14] sm:$0xf]
  %v20 = vld [vmem:[%s0 + $0x18] sm:$0xf]
  %v21 = vld [vmem:[%s0 + $0x1c] sm:$0xf]
  %v22 = vld [vmem:[%s0 + $0x20] sm:$0xf]
  %v23 = vld [vmem:[%s0 + $0x24] sm:$0xf]
  %v24 = vld [vmem:[%s1] sm:$0xf]
  %v25 = vld [vmem:[%s1 + $0x4] sm:$0xf]
  %v26 = vld [vmem:[%s1 + $0x8] sm:$0xf]
  %v27 = vld [vmem:[%s1 + $0xc] sm:$0xf]
  %v28 = vld [vmem:[%s1 + $0x10] sm:$0xf]
  %v29 = vld [vmem:[%s1 + $0x14] sm:$0xf]
  %v30 = vld [vmem:[%s1 + $0x18] sm:$0xf]
  %v31 = vld [vmem:[%s1 + $0x1c] sm:$0xf]
  %v32 = vld [vmem:[%s1 + $0x20] sm:$0xf]
  %v33 = vld [vmem:[%s1 + $0x24] sm:$0xf]
  %v34 = vld [vmem:[%s1 + $0x28] sm:$0xf]
  %v35 = vld [vmem:[%s1 + $0x2c] sm:$0xf]
  %v36 = vld [vmem:[%s1 + $0x30] sm:$0xf]
  %v37 = vld [vmem:[%s1 + $0x34] sm:$0xf]
  %v38 = vld [vmem:[%s1 + $0x38] sm:$0xf]
  %v39 = vld [vmem:[%s1 + $0x3c] sm:$0xf]
  %v40 = vld [vmem:[%s2] sm:$0x1]
  %v42 = vperm.slane %v40, 0
  %v54 = vunpack.c.l.b16 %v14
  %v55 = vunpack.c.l.b16 %v15
  %v56 = vunpack.c.l.b16 %v16
  %v57 = vunpack.c.l.b16 %v17
  %v58 = vunpack.c.l.b16 %v18
  %v59 = vunpack.c.l.b16 %v19
  %v60 = vunpack.c.l.b16 %v20
  %v61 = vunpack.c.l.b16 %v21
  %v62 = vunpack.c.l.b16 %v22
  %v63 = vunpack.c.l.b16 %v23
  %v64 = vpack.c.b16 %v55, %v54
  %v65 = vpack.c.b16 %v57, %v56
  %v66 = vpack.c.b16 %v59, %v58
  %v67 = vpack.c.b16 %v61, %v60
  %v68 = vpack.c.b16 %v63, %v62
  %v90 = vunpack.c.l.b16 %v24
  %v91 = vunpack.c.l.b16 %v25
  %v92 = vunpack.c.l.b16 %v26
  %v93 = vunpack.c.l.b16 %v27
  %v94 = vunpack.c.l.b16 %v28
  %v95 = vunpack.c.l.b16 %v29
  %v96 = vunpack.c.l.b16 %v30
  %v97 = vunpack.c.l.b16 %v31
  %v98 = vunpack.c.l.b16 %v32
  %v99 = vunpack.c.l.b16 %v33
  %v100 = vunpack.c.l.b16 %v34
  %v101 = vunpack.c.l.b16 %v35
  %v102 = vunpack.c.l.b16 %v36
  %v103 = vunpack.c.l.b16 %v37
  %v104 = vunpack.c.l.b16 %v38
  %v105 = vunpack.c.l.b16 %v39
  %v106 = vpack.c.b16 %v91, %v90
  %v107 = vpack.c.b16 %v93, %v92
  %v108 = vpack.c.b16 %v95, %v94
  %v109 = vpack.c.b16 %v97, %v96
  %v110 = vpack.c.b16 %v99, %v98
  %v111 = vpack.c.b16 %v101, %v100
  %v112 = vpack.c.b16 %v103, %v102
  %v113 = vpack.c.b16 %v105, %v104
  %122 = vmatpush.bf16.msra.mxu0 %v113
  %123 = vmatpush.bf16.msra.mxu0 %v112
  %124 = vmatpush.bf16.msra.mxu0 %v111
  %125 = vmatpush.bf16.msra.mxu0 %v110
  %126 = vmatpush.bf16.msra.mxu0 %v109
  %127 = vmatpush.bf16.msra.mxu0 %v108
  %128 = vmatpush.bf16.msra.mxu0 %v107
  %129 = vmatpush.bf16.msra.mxu0 %v106
  %130 = vmatmul.bf16.gmra.mxu0 %v64
  %v131 = vpop.f32.mrf.mxu0
  %v132 = vadd.f32 %v42, %v131
  %v133 = vpop.f32.mrf.mxu0
  %v134 = vadd.f32 %v42, %v133
  %135 = vmatmul.bf16.gmra.mxu0 %v65
  %v136 = vpop.f32.mrf.mxu0
  %v137 = vadd.f32 %v42, %v136
  %v138 = vpop.f32.mrf.mxu0
  %v139 = vadd.f32 %v42, %v138
  %140 = vmatmul.bf16.gmra.mxu0 %v66
  %v141 = vpop.f32.mrf.mxu0
  %v142 = vadd.f32 %v42, %v141
  %v143 = vpop.f32.mrf.mxu0
  %v144 = vadd.f32 %v42, %v143
  %145 = vmatmul.bf16.gmra.mxu0 %v67
  %v146 = vpop.f32.mrf.mxu0
  %v147 = vadd.f32 %v42, %v146
  %v148 = vpop.f32.mrf.mxu0
  %v149 = vadd.f32 %v42, %v148
  %150 = vmatmul.bf16.gmra.mxu0 %v68
  %v151 = vpop.f32.mrf.mxu0
  %v152 = vadd.f32 %v42, %v151
  %v153 = vpop.f32.mrf.mxu0
  %v154 = vadd.f32 %v42, %v153
  %155 = vdwg.mxu0
  %v156 = vpack.c.bf16 %v132, %v132
  %v157 = vpack.c.bf16 %v134, %v134
  %v158 = vpack.c.bf16 %v137, %v137
  %v159 = vpack.c.bf16 %v139, %v139
  %v160 = vpack.c.bf16 %v142, %v142
  %v161 = vpack.c.bf16 %v144, %v144
  %v162 = vpack.c.bf16 %v147, %v147
  %v163 = vpack.c.bf16 %v149, %v149
  %v164 = vpack.c.bf16 %v152, %v152
  %v165 = vpack.c.bf16 %v154, %v154
  %166 = vst [vmem:[%s3] sm:$0xf] %v156
  %167 = vst [vmem:[%s3 + $0x4] sm:$0xf] %v157
  %168 = vst [vmem:[%s3 + $0x8] sm:$0xf] %v158
  %169 = vst [vmem:[%s3 + $0xc] sm:$0xf] %v159
  %170 = vst [vmem:[%s3 + $0x10] sm:$0xf] %v160
  %171 = vst [vmem:[%s3 + $0x14] sm:$0xf] %v161
  %172 = vst [vmem:[%s3 + $0x18] sm:$0xf] %v162
  %173 = vst [vmem:[%s3 + $0x1c] sm:$0xf] %v163
  %174 = vst [vmem:[%s3 + $0x20] sm:$0xf] %v164
  %175 = vst [vmem:[%s3 + $0x24] sm:$0xf] %v165
  // Predicated region
  $region14: #{_lambda_.69} parent=0 // pred_check
    _
  $region15: #{_lambda_.69} parent=0 // pred_check_branch
    %177 = sbr.rel (0) target = $region17
  $region16: #{_lambda_.69} parent=0 // pred_region
    _
  $region17: #{_lambda_.69} parent=0 // pred_fallthru
    _
  // Predicated region
  $region18: #{_lambda_.69} parent=0 // pred_check
    _
  $region19: #{_lambda_.69} parent=0 // pred_check_branch
    %179 = sbr.rel (0) target = $region21
  $region20: #{_lambda_.69} parent=0 // pred_region
    _
  $region21: #{_lambda_.69} parent=0 // pred_fallthru
    _

// kernel: _lambda_.71
$region0: #{_lambda_.71}
  #allocation0 [shape = 'u32[]', space=smem, size = 0x4, offset = 0x4, fixed_abs, tag = 'smem constant byte address 0x4 - core index']
  #allocation1 [shape = 'u32[72,128]{1,0:T(1,128)}', space=vmem, size = 0x9000, scoped, tag = 'internal scratch']
  %s0 = inlined_call_operand.vmem [shape: bf16[80,128], index: 0, kind: input, shape index: {}]
  %s1 = inlined_call_operand.vmem [shape: bf16[128,128], index: 1, kind: input, shape index: {}]
  %s2 = inlined_call_operand.vmem [shape: f32[1,128], index: 2, kind: input, shape index: {}]
  %s3 = inlined_call_operand.vmem [shape: bf16[80,128], index: 3, kind: input, shape index: {}]
  %s4 = inlined_call_operand.vmem [shape: bf16[80,128], index: 4, kind: output, shape index: {}]
  %s5 = sld [smem:[#allocation0]]
  $region26: #{_lambda_.71} parent=0
    _
  %s7 = ssub.s32 1, %s5
  %s8 = scalar_select 0, %s7, %s5
  // Predicated region
  $region2: #{_lambda_.71} parent=0 // pred_check
    _
  $region3: #{_lambda_.71} parent=0 // pred_check_branch
    %10 = sbr.rel (0) target = $region5
  $region4: #{_lambda_.71} parent=0 // pred_region
    _
  $region5: #{_lambda_.71} parent=0 // pred_fallthru
    _
  // Predicated region
  $region6: #{_lambda_.71} parent=0 // pred_check
    _
  $region7: #{_lambda_.71} parent=0 // pred_check_branch
    %12 = sbr.rel (0) target = $region9
  $region8: #{_lambda_.71} parent=0 // pred_region
    _
  $region9: #{_lambda_.71} parent=0 // pred_fallthru
    _
  // Predicated region
  $region10: #{_lambda_.71} parent=0 // pred_check
    _
  $region11: #{_lambda_.71} parent=0 // pred_check_branch
    %14 = sbr.rel (0) target = $region13
  $region12: #{_lambda_.71} parent=0 // pred_region
    _
  $region13: #{_lambda_.71} parent=0 // pred_fallthru
    _
  // Predicated region
  $region14: #{_lambda_.71} parent=0 // pred_check
    _
  $region15: #{_lambda_.71} parent=0 // pred_check_branch
    %16 = sbr.rel (0) target = $region17
  $region16: #{_lambda_.71} parent=0 // pred_region
    _
  $region17: #{_lambda_.71} parent=0 // pred_fallthru
    _
  %v17 = vld [vmem:[%s0] sm:$0xf]
  %v18 = vld [vmem:[%s0 + $0x4] sm:$0xf]
  %v19 = vld [vmem:[%s0 + $0x8] sm:$0xf]
  %v20 = vld [vmem:[%s0 + $0xc] sm:$0xf]
  %v21 = vld [vmem:[%s0 + $0x10] sm:$0xf]
  %v22 = vld [vmem:[%s0 + $0x14] sm:$0xf]
  %v23 = vld [vmem:[%s0 + $0x18] sm:$0xf]
  %v24 = vld [vmem:[%s0 + $0x1c] sm:$0xf]
  %v25 = vld [vmem:[%s0 + $0x20] sm:$0xf]
  %v26 = vld [vmem:[%s0 + $0x24] sm:$0xf]
  %v27 = vld [vmem:[%s1] sm:$0xf]
  %v28 = vld [vmem:[%s1 + $0x4] sm:$0xf]
  %v29 = vld [vmem:[%s1 + $0x8] sm:$0xf]
  %v30 = vld [vmem:[%s1 + $0xc] sm:$0xf]
  %v31 = vld [vmem:[%s1 + $0x10] sm:$0xf]
  %v32 = vld [vmem:[%s1 + $0x14] sm:$0xf]
  %v33 = vld [vmem:[%s1 + $0x18] sm:$0xf]
  %v34 = vld [vmem:[%s1 + $0x1c] sm:$0xf]
  %v35 = vld [vmem:[%s1 + $0x20] sm:$0xf]
  %v36 = vld [vmem:[%s1 + $0x24] sm:$0xf]
  %v37 = vld [vmem:[%s1 + $0x28] sm:$0xf]
  %v38 = vld [vmem:[%s1 + $0x2c] sm:$0xf]
  %v39 = vld [vmem:[%s1 + $0x30] sm:$0xf]
  %v40 = vld [vmem:[%s1 + $0x34] sm:$0xf]
  %v41 = vld [vmem:[%s1 + $0x38] sm:$0xf]
  %v42 = vld [vmem:[%s1 + $0x3c] sm:$0xf]
  %v43 = vld [vmem:[%s2] sm:$0x1]
  %v45 = vperm.slane %v43, 0
  %v57 = vunpack.c.l.b16 %v17
  %v58 = vunpack.c.l.b16 %v18
  %v59 = vunpack.c.l.b16 %v19
  %v60 = vunpack.c.l.b16 %v20
  %v61 = vunpack.c.l.b16 %v21
  %v62 = vunpack.c.l.b16 %v22
  %v63 = vunpack.c.l.b16 %v23
  %v64 = vunpack.c.l.b16 %v24
  %v65 = vunpack.c.l.b16 %v25
  %v66 = vunpack.c.l.b16 %v26
  %v67 = vpack.c.b16 %v58, %v57
  %v68 = vpack.c.b16 %v60, %v59
  %v69 = vpack.c.b16 %v62, %v61
  %v70 = vpack.c.b16 %v64, %v63
  %v71 = vpack.c.b16 %v66, %v65
  %v93 = vunpack.c.l.b16 %v27
  %v94 = vunpack.c.l.b16 %v28
  %v95 = vunpack.c.l.b16 %v29
  %v96 = vunpack.c.l.b16 %v30
  %v97 = vunpack.c.l.b16 %v31
  %v98 = vunpack.c.l.b16 %v32
  %v99 = vunpack.c.l.b16 %v33
  %v100 = vunpack.c.l.b16 %v34
  %v101 = vunpack.c.l.b16 %v35
  %v102 = vunpack.c.l.b16 %v36
  %v103 = vunpack.c.l.b16 %v37
  %v104 = vunpack.c.l.b16 %v38
  %v105 = vunpack.c.l.b16 %v39
  %v106 = vunpack.c.l.b16 %v40
  %v107 = vunpack.c.l.b16 %v41
  %v108 = vunpack.c.l.b16 %v42
  %v109 = vpack.c.b16 %v94, %v93
  %v110 = vpack.c.b16 %v96, %v95
  %v111 = vpack.c.b16 %v98, %v97
  %v112 = vpack.c.b16 %v100, %v99
  %v113 = vpack.c.b16 %v102, %v101
  %v114 = vpack.c.b16 %v104, %v103
  %v115 = vpack.c.b16 %v106, %v105
  %v116 = vpack.c.b16 %v108, %v107
  %125 = vmatpush.bf16.msra.mxu0 %v116
  %126 = vmatpush.bf16.msra.mxu0 %v115
  %127 = vmatpush.bf16.msra.mxu0 %v114
  %128 = vmatpush.bf16.msra.mxu0 %v113
  %129 = vmatpush.bf16.msra.mxu0 %v112
  %130 = vmatpush.bf16.msra.mxu0 %v111
  %131 = vmatpush.bf16.msra.mxu0 %v110
  %132 = vmatpush.bf16.msra.mxu0 %v109
  %133 = vmatmul.bf16.gmra.mxu0 %v67
  %v134 = vpop.f32.mrf.mxu0
  %v135 = vadd.f32 %v45, %v134
  %v136 = vpop.f32.mrf.mxu0
  %v137 = vadd.f32 %v45, %v136
  %138 = vmatmul.bf16.gmra.mxu0 %v68
  %v139 = vpop.f32.mrf.mxu0
  %v140 = vadd.f32 %v45, %v139
  %v141 = vpop.f32.mrf.mxu0
  %v142 = vadd.f32 %v45, %v141
  %143 = vmatmul.bf16.gmra.mxu0 %v69
  %v144 = vpop.f32.mrf.mxu0
  %v145 = vadd.f32 %v45, %v144
  %v146 = vpop.f32.mrf.mxu0
  %v147 = vadd.f32 %v45, %v146
  %148 = vmatmul.bf16.gmra.mxu0 %v70
  %v149 = vpop.f32.mrf.mxu0
  %v150 = vadd.f32 %v45, %v149
  %v151 = vpop.f32.mrf.mxu0
  %v152 = vadd.f32 %v45, %v151
  %153 = vmatmul.bf16.gmra.mxu0 %v71
  %v154 = vpop.f32.mrf.mxu0
  %v155 = vadd.f32 %v45, %v154
  %v156 = vpop.f32.mrf.mxu0
  %v157 = vadd.f32 %v45, %v156
  %158 = vdwg.mxu0
  %v159 = vld [vmem:[%s3] sm:$0xf]
  %v160 = vld [vmem:[%s3 + $0x4] sm:$0xf]
  %v161 = vld [vmem:[%s3 + $0x8] sm:$0xf]
  %v162 = vld [vmem:[%s3 + $0xc] sm:$0xf]
  %v163 = vld [vmem:[%s3 + $0x10] sm:$0xf]
  %v164 = vld [vmem:[%s3 + $0x14] sm:$0xf]
  %v165 = vld [vmem:[%s3 + $0x18] sm:$0xf]
  %v166 = vld [vmem:[%s3 + $0x1c] sm:$0xf]
  %v167 = vld [vmem:[%s3 + $0x20] sm:$0xf]
  %v168 = vld [vmem:[%s3 + $0x24] sm:$0xf]
  %v169 = vunpack.c.l.bf16 %v159
  %v170 = vunpack.c.l.bf16 %v160
  %v171 = vunpack.c.l.bf16 %v161
  %v172 = vunpack.c.l.bf16 %v162
  %v173 = vunpack.c.l.bf16 %v163
  %v174 = vunpack.c.l.bf16 %v164
  %v175 = vunpack.c.l.bf16 %v165
  %v176 = vunpack.c.l.bf16 %v166
  %v177 = vunpack.c.l.bf16 %v167
  %v178 = vunpack.c.l.bf16 %v168
  %v179 = vadd.f32 %v135, %v169
  %v180 = vadd.f32 %v137, %v170
  %v181 = vadd.f32 %v140, %v171
  %v182 = vadd.f32 %v142, %v172
  %v183 = vadd.f32 %v145, %v173
  %v184 = vadd.f32 %v147, %v174
  %v185 = vadd.f32 %v150, %v175
  %v186 = vadd.f32 %v152, %v176
  %v187 = vadd.f32 %v155, %v177
  %v188 = vadd.f32 %v157, %v178
  %v189 = vmax.f32 %v179, 0.0
  %v190 = vmax.f32 %v180, 0.0
  %v191 = vmax.f32 %v181, 0.0
  %v192 = vmax.f32 %v182, 0.0
  %v193 = vmax.f32 %v183, 0.0
  %v194 = vmax.f32 %v184, 0.0
  %v195 = vmax.f32 %v185, 0.0
  %v196 = vmax.f32 %v186, 0.0
  %v197 = vmax.f32 %v187, 0.0
  %v198 = vmax.f32 %v188, 0.0
  %v199 = vpack.c.bf16 %v189, %v189
  %v200 = vpack.c.bf16 %v190, %v190
  %v201 = vpack.c.bf16 %v191, %v191
  %v202 = vpack.c.bf16 %v192, %v192
  %v203 = vpack.c.bf16 %v193, %v193
  %v204 = vpack.c.bf16 %v194, %v194
  %v205 = vpack.c.bf16 %v195, %v195
  %v206 = vpack.c.bf16 %v196, %v196
  %v207 = vpack.c.bf16 %v197, %v197
  %v208 = vpack.c.bf16 %v198, %v198
  %209 = vst [vmem:[%s4] sm:$0xf] %v199
  %210 = vst [vmem:[%s4 + $0x4] sm:$0xf] %v200
  %211 = vst [vmem:[%s4 + $0x8] sm:$0xf] %v201
  %212 = vst [vmem:[%s4 + $0xc] sm:$0xf] %v202
  %213 = vst [vmem:[%s4 + $0x10] sm:$0xf] %v203
  %214 = vst [vmem:[%s4 + $0x14] sm:$0xf] %v204
  %215 = vst [vmem:[%s4 + $0x18] sm:$0xf] %v205
  %216 = vst [vmem:[%s4 + $0x1c] sm:$0xf] %v206
  %217 = vst [vmem:[%s4 + $0x20] sm:$0xf] %v207
  %218 = vst [vmem:[%s4 + $0x24] sm:$0xf] %v208
  // Predicated region
  $region18: #{_lambda_.71} parent=0 // pred_check
    _
  $region19: #{_lambda_.71} parent=0 // pred_check_branch
    %220 = sbr.rel (0) target = $region21
  $region20: #{_lambda_.71} parent=0 // pred_region
    _
  $region21: #{_lambda_.71} parent=0 // pred_fallthru
    _
  // Predicated region
  $region22: #{_lambda_.71} parent=0 // pred_check
    _
  $region23: #{_lambda_.71} parent=0 // pred_check_branch
    %222 = sbr.rel (0) target = $region25
  $region24: #{_lambda_.71} parent=0 // pred_region
    _
  $region25: #{_lambda_.71} parent=0 // pred_fallthru
    _

// kernel: _lambda_.72
$region0: #{_lambda_.72}
  #allocation0 [shape = 'u32[]', space=smem, size = 0x4, offset = 0x4, fixed_abs, tag = 'smem constant byte address 0x4 - core index']
  #allocation1 [shape = 'u32[72,128]{1,0:T(1,128)}', space=vmem, size = 0x9000, scoped, tag = 'internal scratch']
  %s0 = inlined_call_operand.vmem [shape: bf16[80,128], index: 0, kind: input, shape index: {}]
  %s1 = inlined_call_operand.vmem [shape: bf16[128,128], index: 1, kind: input, shape index: {}]
  %s2 = inlined_call_operand.vmem [shape: f32[1,128], index: 2, kind: input, shape index: {}]
  %s3 = inlined_call_operand.vmem [shape: bf16[80,128], index: 3, kind: output, shape index: {}]
  %s4 = sld [smem:[#allocation0]]
  $region22: #{_lambda_.72} parent=0
    _
  %s6 = ssub.s32 1, %s4
  %s7 = scalar_select 0, %s6, %s4
  // Predicated region
  $region2: #{_lambda_.72} parent=0 // pred_check
    _
  $region3: #{_lambda_.72} parent=0 // pred_check_branch
    %9 = sbr.rel (0) target = $region5
  $region4: #{_lambda_.72} parent=0 // pred_region
    _
  $region5: #{_lambda_.72} parent=0 // pred_fallthru
    _
  // Predicated region
  $region6: #{_lambda_.72} parent=0 // pred_check
    _
  $region7: #{_lambda_.72} parent=0 // pred_check_branch
    %11 = sbr.rel (0) target = $region9
  $region8: #{_lambda_.72} parent=0 // pred_region
    _
  $region9: #{_lambda_.72} parent=0 // pred_fallthru
    _
  // Predicated region
  $region10: #{_lambda_.72} parent=0 // pred_check
    _
  $region11: #{_lambda_.72} parent=0 // pred_check_branch
    %13 = sbr.rel (0) target = $region13
  $region12: #{_lambda_.72} parent=0 // pred_region
    _
  $region13: #{_lambda_.72} parent=0 // pred_fallthru
    _
  %v14 = vld [vmem:[%s0] sm:$0xf]
  %v15 = vld [vmem:[%s0 + $0x4] sm:$0xf]
  %v16 = vld [vmem:[%s0 + $0x8] sm:$0xf]
  %v17 = vld [vmem:[%s0 + $0xc] sm:$0xf]
  %v18 = vld [vmem:[%s0 + $0x10] sm:$0xf]
  %v19 = vld [vmem:[%s0 + $0x14] sm:$0xf]
  %v20 = vld [vmem:[%s0 + $0x18] sm:$0xf]
  %v21 = vld [vmem:[%s0 + $0x1c] sm:$0xf]
  %v22 = vld [vmem:[%s0 + $0x20] sm:$0xf]
  %v23 = vld [vmem:[%s0 + $0x24] sm:$0xf]
  %v24 = vld [vmem:[%s1] sm:$0xf]
  %v25 = vld [vmem:[%s1 + $0x4] sm:$0xf]
  %v26 = vld [vmem:[%s1 + $0x8] sm:$0xf]
  %v27 = vld [vmem:[%s1 + $0xc] sm:$0xf]
  %v28 = vld [vmem:[%s1 + $0x10] sm:$0xf]
  %v29 = vld [vmem:[%s1 + $0x14] sm:$0xf]
  %v30 = vld [vmem:[%s1 + $0x18] sm:$0xf]
  %v31 = vld [vmem:[%s1 + $0x1c] sm:$0xf]
  %v32 = vld [vmem:[%s1 + $0x20] sm:$0xf]
  %v33 = vld [vmem:[%s1 + $0x24] sm:$0xf]
  %v34 = vld [vmem:[%s1 + $0x28] sm:$0xf]
  %v35 = vld [vmem:[%s1 + $0x2c] sm:$0xf]
  %v36 = vld [vmem:[%s1 + $0x30] sm:$0xf]
  %v37 = vld [vmem:[%s1 + $0x34] sm:$0xf]
  %v38 = vld [vmem:[%s1 + $0x38] sm:$0xf]
  %v39 = vld [vmem:[%s1 + $0x3c] sm:$0xf]
  %v40 = vld [vmem:[%s2] sm:$0x1]
  %v42 = vperm.slane %v40, 0
  %v54 = vunpack.c.l.b16 %v14
  %v55 = vunpack.c.l.b16 %v15
  %v56 = vunpack.c.l.b16 %v16
  %v57 = vunpack.c.l.b16 %v17
  %v58 = vunpack.c.l.b16 %v18
  %v59 = vunpack.c.l.b16 %v19
  %v60 = vunpack.c.l.b16 %v20
  %v61 = vunpack.c.l.b16 %v21
  %v62 = vunpack.c.l.b16 %v22
  %v63 = vunpack.c.l.b16 %v23
  %v64 = vpack.c.b16 %v55, %v54
  %v65 = vpack.c.b16 %v57, %v56
  %v66 = vpack.c.b16 %v59, %v58
  %v67 = vpack.c.b16 %v61, %v60
  %v68 = vpack.c.b16 %v63, %v62
  %v90 = vunpack.c.l.b16 %v24
  %v91 = vunpack.c.l.b16 %v25
  %v92 = vunpack.c.l.b16 %v26
  %v93 = vunpack.c.l.b16 %v27
  %v94 = vunpack.c.l.b16 %v28
  %v95 = vunpack.c.l.b16 %v29
  %v96 = vunpack.c.l.b16 %v30
  %v97 = vunpack.c.l.b16 %v31
  %v98 = vunpack.c.l.b16 %v32
  %v99 = vunpack.c.l.b16 %v33
  %v100 = vunpack.c.l.b16 %v34
  %v101 = vunpack.c.l.b16 %v35
  %v102 = vunpack.c.l.b16 %v36
  %v103 = vunpack.c.l.b16 %v37
  %v104 = vunpack.c.l.b16 %v38
  %v105 = vunpack.c.l.b16 %v39
  %v106 = vpack.c.b16 %v91, %v90
  %v107 = vpack.c.b16 %v93, %v92
  %v108 = vpack.c.b16 %v95, %v94
  %v109 = vpack.c.b16 %v97, %v96
  %v110 = vpack.c.b16 %v99, %v98
  %v111 = vpack.c.b16 %v101, %v100
  %v112 = vpack.c.b16 %v103, %v102
  %v113 = vpack.c.b16 %v105, %v104
  %122 = vmatpush.bf16.msra.mxu0 %v113
  %123 = vmatpush.bf16.msra.mxu0 %v112
  %124 = vmatpush.bf16.msra.mxu0 %v111
  %125 = vmatpush.bf16.msra.mxu0 %v110
  %126 = vmatpush.bf16.msra.mxu0 %v109
  %127 = vmatpush.bf16.msra.mxu0 %v108
  %128 = vmatpush.bf16.msra.mxu0 %v107
  %129 = vmatpush.bf16.msra.mxu0 %v106
  %130 = vmatmul.bf16.gmra.mxu0 %v64
  %v131 = vpop.f32.mrf.mxu0
  %v132 = vadd.f32 %v42, %v131
  %v133 = vpop.f32.mrf.mxu0
  %v134 = vadd.f32 %v42, %v133
  %135 = vmatmul.bf16.gmra.mxu0 %v65
  %v136 = vpop.f32.mrf.mxu0
  %v137 = vadd.f32 %v42, %v136
  %v138 = vpop.f32.mrf.mxu0
  %v139 = vadd.f32 %v42, %v138
  %140 = vmatmul.bf16.gmra.mxu0 %v66
  %v141 = vpop.f32.mrf.mxu0
  %v142 = vadd.f32 %v42, %v141
  %v143 = vpop.f32.mrf.mxu0
  %v144 = vadd.f32 %v42, %v143
  %145 = vmatmul.bf16.gmra.mxu0 %v67
  %v146 = vpop.f32.mrf.mxu0
  %v147 = vadd.f32 %v42, %v146
  %v148 = vpop.f32.mrf.mxu0
  %v149 = vadd.f32 %v42, %v148
  %150 = vmatmul.bf16.gmra.mxu0 %v68
  %v151 = vpop.f32.mrf.mxu0
  %v152 = vadd.f32 %v42, %v151
  %v153 = vpop.f32.mrf.mxu0
  %v154 = vadd.f32 %v42, %v153
  %155 = vdwg.mxu0
  %v156 = vmax.f32 %v132, 0.0
  %v157 = vmax.f32 %v134, 0.0
  %v158 = vmax.f32 %v137, 0.0
  %v159 = vmax.f32 %v139, 0.0
  %v160 = vmax.f32 %v142, 0.0
  %v161 = vmax.f32 %v144, 0.0
  %v162 = vmax.f32 %v147, 0.0
  %v163 = vmax.f32 %v149, 0.0
  %v164 = vmax.f32 %v152, 0.0
  %v165 = vmax.f32 %v154, 0.0
  %v166 = vpack.c.bf16 %v156, %v156
  %v167 = vpack.c.bf16 %v157, %v157
  %v168 = vpack.c.bf16 %v158, %v158
  %v169 = vpack.c.bf16 %v159, %v159
  %v170 = vpack.c.bf16 %v160, %v160
  %v171 = vpack.c.bf16 %v161, %v161
  %v172 = vpack.c.bf16 %v162, %v162
  %v173 = vpack.c.bf16 %v163, %v163
  %v174 = vpack.c.bf16 %v164, %v164
  %v175 = vpack.c.bf16 %v165, %v165
  %176 = vst [vmem:[%s3] sm:$0xf] %v166
  %177 = vst [vmem:[%s3 + $0x4] sm:$0xf] %v167
  %178 = vst [vmem:[%s3 + $0x8] sm:$0xf] %v168
  %179 = vst [vmem:[%s3 + $0xc] sm:$0xf] %v169
  %180 = vst [vmem:[%s3 + $0x10] sm:$0xf] %v170
  %181 = vst [vmem:[%s3 + $0x14] sm:$0xf] %v171
  %182 = vst [vmem:[%s3 + $0x18] sm:$0xf] %v172
  %183 = vst [vmem:[%s3 + $0x1c] sm:$0xf] %v173
  %184 = vst [vmem:[%s3 + $0x20] sm:$0xf] %v174
  %185 = vst [vmem:[%s3 + $0x24] sm:$0xf] %v175
  // Predicated region
  $region14: #{_lambda_.72} parent=0 // pred_check
    _
  $region15: #{_lambda_.72} parent=0 // pred_check_branch
    %187 = sbr.rel (0) target = $region17
  $region16: #{_lambda_.72} parent=0 // pred_region
    _
  $region17: #{_lambda_.72} parent=0 // pred_fallthru
    _
  // Predicated region
  $region18: #{_lambda_.72} parent=0 // pred_check
    _
  $region19: #{_lambda_.72} parent=0 // pred_check_branch
    %189 = sbr.rel (0) target = $region21
  $region20: #{_lambda_.72} parent=0 // pred_region
    _
  $region21: #{_lambda_.72} parent=0 // pred_fallthru
    _

// kernel: _lambda_.81
$region0: #{_lambda_.81}
  #allocation0 [shape = 'u32[]', space=smem, size = 0x4, offset = 0x4, fixed_abs, tag = 'smem constant byte address 0x4 - core index']
  #allocation1 [shape = 'u32[72,128]{1,0:T(1,128)}', space=vmem, size = 0x9000, scoped, tag = 'internal scratch']
  %s0 = inlined_call_operand.vmem [shape: bf16[80,128], index: 0, kind: input, shape index: {}]
  %s1 = inlined_call_operand.vmem [shape: bf16[128,256], index: 1, kind: input, shape index: {}]
  %s2 = inlined_call_operand.vmem [shape: f32[1,256], index: 2, kind: input, shape index: {}]
  %s3 = inlined_call_operand.vmem [shape: bf16[80,256], index: 3, kind: output, shape index: {}]
  %s4 = sld [smem:[#allocation0]]
  $region22: #{_lambda_.81} parent=0
    _
  %s6 = ssub.s32 1, %s4
  %s7 = scalar_select 0, %s6, %s4
  // Predicated region
  $region2: #{_lambda_.81} parent=0 // pred_check
    _
  $region3: #{_lambda_.81} parent=0 // pred_check_branch
    %9 = sbr.rel (0) target = $region5
  $region4: #{_lambda_.81} parent=0 // pred_region
    _
  $region5: #{_lambda_.81} parent=0 // pred_fallthru
    _
  // Predicated region
  $region6: #{_lambda_.81} parent=0 // pred_check
    _
  $region7: #{_lambda_.81} parent=0 // pred_check_branch
    %11 = sbr.rel (0) target = $region9
  $region8: #{_lambda_.81} parent=0 // pred_region
    _
  $region9: #{_lambda_.81} parent=0 // pred_fallthru
    _
  // Predicated region
  $region10: #{_lambda_.81} parent=0 // pred_check
    _
  $region11: #{_lambda_.81} parent=0 // pred_check_branch
    %13 = sbr.rel (0) target = $region13
  $region12: #{_lambda_.81} parent=0 // pred_region
    _
  $region13: #{_lambda_.81} parent=0 // pred_fallthru
    _
  %v14 = vld [vmem:[%s0] sm:$0xf]
  %v15 = vld [vmem:[%s0 + $0x4] sm:$0xf]
  %v16 = vld [vmem:[%s0 + $0x8] sm:$0xf]
  %v17 = vld [vmem:[%s0 + $0xc] sm:$0xf]
  %v18 = vld [vmem:[%s0 + $0x10] sm:$0xf]
  %v19 = vld [vmem:[%s0 + $0x14] sm:$0xf]
  %v20 = vld [vmem:[%s0 + $0x18] sm:$0xf]
  %v21 = vld [vmem:[%s0 + $0x1c] sm:$0xf]
  %v22 = vld [vmem:[%s0 + $0x20] sm:$0xf]
  %v23 = vld [vmem:[%s0 + $0x24] sm:$0xf]
  %v24 = vld [vmem:[%s1] sm:$0xff]
  %v25 = vld [vmem:[%s1 + $0x8] sm:$0xff]
  %v26 = vld [vmem:[%s1 + $0x10] sm:$0xff]
  %v27 = vld [vmem:[%s1 + $0x18] sm:$0xff]
  %v28 = vld [vmem:[%s1 + $0x20] sm:$0xff]
  %v29 = vld [vmem:[%s1 + $0x28] sm:$0xff]
  %v30 = vld [vmem:[%s1 + $0x30] sm:$0xff]
  %v31 = vld [vmem:[%s1 + $0x38] sm:$0xff]
  %v32 = vld [vmem:[%s1 + $0x40] sm:$0xff]
  %v33 = vld [vmem:[%s1 + $0x48] sm:$0xff]
  %v34 = vld [vmem:[%s1 + $0x50] sm:$0xff]
  %v35 = vld [vmem:[%s1 + $0x58] sm:$0xff]
  %v36 = vld [vmem:[%s1 + $0x60] sm:$0xff]
  %v37 = vld [vmem:[%s1 + $0x68] sm:$0xff]
  %v38 = vld [vmem:[%s1 + $0x70] sm:$0xff]
  %v39 = vld [vmem:[%s1 + $0x78] sm:$0xff]
  %v40 = vld [vmem:[%s2] sm:$0x3]
  %v42 = vperm.slane %v40, 0
  %v43 = vperm.slane %v40, 1
  %v56 = vunpack.c.l.b16 %v14
  %v57 = vunpack.c.l.b16 %v15
  %v58 = vunpack.c.l.b16 %v16
  %v59 = vunpack.c.l.b16 %v17
  %v60 = vunpack.c.l.b16 %v18
  %v61 = vunpack.c.l.b16 %v19
  %v62 = vunpack.c.l.b16 %v20
  %v63 = vunpack.c.l.b16 %v21
  %v64 = vunpack.c.l.b16 %v22
  %v65 = vunpack.c.l.b16 %v23
  %v66 = vpack.c.b16 %v57, %v56
  %v67 = vpack.c.b16 %v59, %v58
  %v68 = vpack.c.b16 %v61, %v60
  %v69 = vpack.c.b16 %v63, %v62
  %v70 = vpack.c.b16 %v65, %v64
  %v92 = vunpack.c.l.b16 %v24
  %v93 = vunpack.c.h.b16 %v24
  %v94 = vunpack.c.l.b16 %v25
  %v95 = vunpack.c.h.b16 %v25
  %v96 = vunpack.c.l.b16 %v26
  %v97 = vunpack.c.h.b16 %v26
  %v98 = vunpack.c.l.b16 %v27
  %v99 = vunpack.c.h.b16 %v27
  %v100 = vunpack.c.l.b16 %v28
  %v101 = vunpack.c.h.b16 %v28
  %v102 = vunpack.c.l.b16 %v29
  %v103 = vunpack.c.h.b16 %v29
  %v104 = vunpack.c.l.b16 %v30
  %v105 = vunpack.c.h.b16 %v30
  %v106 = vunpack.c.l.b16 %v31
  %v107 = vunpack.c.h.b16 %v31
  %v108 = vunpack.c.l.b16 %v32
  %v109 = vunpack.c.h.b16 %v32
  %v110 = vunpack.c.l.b16 %v33
  %v111 = vunpack.c.h.b16 %v33
  %v112 = vunpack.c.l.b16 %v34
  %v113 = vunpack.c.h.b16 %v34
  %v114 = vunpack.c.l.b16 %v35
  %v115 = vunpack.c.h.b16 %v35
  %v116 = vunpack.c.l.b16 %v36
  %v117 = vunpack.c.h.b16 %v36
  %v118 = vunpack.c.l.b16 %v37
  %v119 = vunpack.c.h.b16 %v37
  %v120 = vunpack.c.l.b16 %v38
  %v121 = vunpack.c.h.b16 %v38
  %v122 = vunpack.c.l.b16 %v39
  %v123 = vunpack.c.h.b16 %v39
  %v124 = vpack.c.b16 %v94, %v92
  %v125 = vpack.c.b16 %v95, %v93
  %v126 = vpack.c.b16 %v98, %v96
  %v127 = vpack.c.b16 %v99, %v97
  %v128 = vpack.c.b16 %v102, %v100
  %v129 = vpack.c.b16 %v103, %v101
  %v130 = vpack.c.b16 %v106, %v104
  %v131 = vpack.c.b16 %v107, %v105
  %v132 = vpack.c.b16 %v110, %v108
  %v133 = vpack.c.b16 %v111, %v109
  %v134 = vpack.c.b16 %v114, %v112
  %v135 = vpack.c.b16 %v115, %v113
  %v136 = vpack.c.b16 %v118, %v116
  %v137 = vpack.c.b16 %v119, %v117
  %v138 = vpack.c.b16 %v122, %v120
  %v139 = vpack.c.b16 %v123, %v121
  %156 = vmatpush.bf16.msra.mxu0 %v138
  %157 = vmatpush.bf16.msra.mxu0 %v136
  %158 = vmatpush.bf16.msra.mxu0 %v134
  %159 = vmatpush.bf16.msra.mxu0 %v132
  %160 = vmatpush.bf16.msra.mxu0 %v130
  %161 = vmatpush.bf16.msra.mxu0 %v128
  %162 = vmatpush.bf16.msra.mxu0 %v126
  %163 = vmatpush.bf16.msra.mxu0 %v124
  %164 = vmatmul.bf16.gmra.mxu0 %v66
  %v165 = vpop.f32.mrf.mxu0
  %v166 = vadd.f32 %v42, %v165
  %v167 = vpop.f32.mrf.mxu0
  %v168 = vadd.f32 %v42, %v167
  %169 = vmatmul.bf16.gmra.mxu0 %v67
  %v170 = vpop.f32.mrf.mxu0
  %v171 = vadd.f32 %v42, %v170
  %v172 = vpop.f32.mrf.mxu0
  %v173 = vadd.f32 %v42, %v172
  %174 = vmatmul.bf16.gmra.mxu0 %v68
  %v175 = vpop.f32.mrf.mxu0
  %v176 = vadd.f32 %v42, %v175
  %v177 = vpop.f32.mrf.mxu0
  %v178 = vadd.f32 %v42, %v177
  %179 = vmatmul.bf16.gmra.mxu0 %v69
  %v180 = vpop.f32.mrf.mxu0
  %v181 = vadd.f32 %v42, %v180
  %v182 = vpop.f32.mrf.mxu0
  %v183 = vadd.f32 %v42, %v182
  %184 = vmatmul.bf16.gmra.mxu0 %v70
  %v185 = vpop.f32.mrf.mxu0
  %v186 = vadd.f32 %v42, %v185
  %v187 = vpop.f32.mrf.mxu0
  %v188 = vadd.f32 %v42, %v187
  %189 = vdwg.mxu0
  %190 = vmatpush.bf16.msra.mxu0 %v139
  %191 = vmatpush.bf16.msra.mxu0 %v137
  %192 = vmatpush.bf16.msra.mxu0 %v135
  %193 = vmatpush.bf16.msra.mxu0 %v133
  %194 = vmatpush.bf16.msra.mxu0 %v131
  %195 = vmatpush.bf16.msra.mxu0 %v129
  %196 = vmatpush.bf16.msra.mxu0 %v127
  %197 = vmatpush.bf16.msra.mxu0 %v125
  %198 = vmatmul.bf16.gmra.mxu0 %v66
  %v199 = vpop.f32.mrf.mxu0
  %v200 = vadd.f32 %v43, %v199
  %v201 = vpop.f32.mrf.mxu0
  %v202 = vadd.f32 %v43, %v201
  %203 = vmatmul.bf16.gmra.mxu0 %v67
  %v204 = vpop.f32.mrf.mxu0
  %v205 = vadd.f32 %v43, %v204
  %v206 = vpop.f32.mrf.mxu0
  %v207 = vadd.f32 %v43, %v206
  %208 = vmatmul.bf16.gmra.mxu0 %v68
  %v209 = vpop.f32.mrf.mxu0
  %v210 = vadd.f32 %v43, %v209
  %v211 = vpop.f32.mrf.mxu0
  %v212 = vadd.f32 %v43, %v211
  %213 = vmatmul.bf16.gmra.mxu0 %v69
  %v214 = vpop.f32.mrf.mxu0
  %v215 = vadd.f32 %v43, %v214
  %v216 = vpop.f32.mrf.mxu0
  %v217 = vadd.f32 %v43, %v216
  %218 = vmatmul.bf16.gmra.mxu0 %v70
  %v219 = vpop.f32.mrf.mxu0
  %v220 = vadd.f32 %v43, %v219
  %v221 = vpop.f32.mrf.mxu0
  %v222 = vadd.f32 %v43, %v221
  %223 = vdwg.mxu0
  %v224 = vlaneseq
  %v225 = vand.u32 %v224, 127
  %v226 = vadd.s32 %v225, 128
  %vm227 = vcmp.lt.s32.totalorder %v225, 128
  %vm228 = vcmp.lt.s32.totalorder %v226, 128
  %v229 = vmax.f32 %v166, 0.0
  %v230 = vmax.f32 %v200, 0.0
  %v231 = vmax.f32 %v168, 0.0
  %v232 = vmax.f32 %v202, 0.0
  %v233 = vmax.f32 %v171, 0.0
  %v234 = vmax.f32 %v205, 0.0
  %v235 = vmax.f32 %v173, 0.0
  %v236 = vmax.f32 %v207, 0.0
  %v237 = vmax.f32 %v176, 0.0
  %v238 = vmax.f32 %v210, 0.0
  %v239 = vmax.f32 %v178, 0.0
  %v240 = vmax.f32 %v212, 0.0
  %v241 = vmax.f32 %v181, 0.0
  %v242 = vmax.f32 %v215, 0.0
  %v243 = vmax.f32 %v183, 0.0
  %v244 = vmax.f32 %v217, 0.0
  %v245 = vmax.f32 %v186, 0.0
  %v246 = vmax.f32 %v220, 0.0
  %v247 = vmax.f32 %v188, 0.0
  %v248 = vmax.f32 %v222, 0.0
  %v249 = vsel %vm227, %v229, %v166
  %v250 = vsel %vm228, %v230, %v200
  %v251 = vsel %vm227, %v231, %v168
  %v252 = vsel %vm228, %v232, %v202
  %v253 = vsel %vm227, %v233, %v171
  %v254 = vsel %vm228, %v234, %v205
  %v255 = vsel %vm227, %v235, %v173
  %v256 = vsel %vm228, %v236, %v207
  %v257 = vsel %vm227, %v237, %v176
  %v258 = vsel %vm228, %v238, %v210
  %v259 = vsel %vm227, %v239, %v178
  %v260 = vsel %vm228, %v240, %v212
  %v261 = vsel %vm227, %v241, %v181
  %v262 = vsel %vm228, %v242, %v215
  %v263 = vsel %vm227, %v243, %v183
  %v264 = vsel %vm228, %v244, %v217
  %v265 = vsel %vm227, %v245, %v186
  %v266 = vsel %vm228, %v246, %v220
  %v267 = vsel %vm227, %v247, %v188
  %v268 = vsel %vm228, %v248, %v222
  %v269 = vpack.c.bf16 %v250, %v249
  %v270 = vpack.c.bf16 %v252, %v251
  %v271 = vpack.c.bf16 %v254, %v253
  %v272 = vpack.c.bf16 %v256, %v255
  %v273 = vpack.c.bf16 %v258, %v257
  %v274 = vpack.c.bf16 %v260, %v259
  %v275 = vpack.c.bf16 %v262, %v261
  %v276 = vpack.c.bf16 %v264, %v263
  %v277 = vpack.c.bf16 %v266, %v265
  %v278 = vpack.c.bf16 %v268, %v267
  %279 = vst [vmem:[%s3] sm:$0xff] %v269
  %280 = vst [vmem:[%s3 + $0x8] sm:$0xff] %v270
  %281 = vst [vmem:[%s3 + $0x10] sm:$0xff] %v271
  %282 = vst [vmem:[%s3 + $0x18] sm:$0xff] %v272
  %283 = vst [vmem:[%s3 + $0x20] sm:$0xff] %v273
  %284 = vst [vmem:[%s3 + $0x28] sm:$0xff] %v274
  %285 = vst [vmem:[%s3 + $0x30] sm:$0xff] %v275
  %286 = vst [vmem:[%s3 + $0x38] sm:$0xff] %v276
  %287 = vst [vmem:[%s3 + $0x40] sm:$0xff] %v277
  %288 = vst [vmem:[%s3 + $0x48] sm:$0xff] %v278
  // Predicated region
  $region14: #{_lambda_.81} parent=0 // pred_check
    _
  $region15: #{_lambda_.81} parent=0 // pred_check_branch
    %290 = sbr.rel (0) target = $region17
  $region16: #{_lambda_.81} parent=0 // pred_region
    _
  $region17: #{_lambda_.81} parent=0 // pred_fallthru
    _
  // Predicated region
  $region18: #{_lambda_.81} parent=0 // pred_check
    _
  $region19: #{_lambda_.81} parent=0 // pred_check_branch
    %292 = sbr.rel (0) target = $region21
  $region20: #{_lambda_.81} parent=0 // pred_region
    _
  $region21: #{_lambda_.81} parent=0 // pred_fallthru
    _

// kernel: _lambda_.101
$region0: #{_lambda_.101}
  #allocation0 [shape = 'u32[]', space=smem, size = 0x4, offset = 0x4, fixed_abs, tag = 'smem constant byte address 0x4 - core index']
  #allocation1 [shape = 'u32[72,128]{1,0:T(1,128)}', space=vmem, size = 0x9000, scoped, tag = 'internal scratch']
  %s0 = inlined_call_operand.vmem [shape: bf16[32,128], index: 0, kind: input, shape index: {}]
  %s1 = inlined_call_operand.vmem [shape: bf16[128,128], index: 1, kind: input, shape index: {}]
  %s2 = inlined_call_operand.vmem [shape: f32[1,128], index: 2, kind: input, shape index: {}]
  %s3 = inlined_call_operand.vmem [shape: bf16[32,128], index: 3, kind: output, shape index: {}]
  %s4 = sld [smem:[#allocation0]]
  $region22: #{_lambda_.101} parent=0
    _
  %s6 = ssub.s32 1, %s4
  %s7 = scalar_select 0, %s6, %s4
  // Predicated region
  $region2: #{_lambda_.101} parent=0 // pred_check
    _
  $region3: #{_lambda_.101} parent=0 // pred_check_branch
    %9 = sbr.rel (0) target = $region5
  $region4: #{_lambda_.101} parent=0 // pred_region
    _
  $region5: #{_lambda_.101} parent=0 // pred_fallthru
    _
  // Predicated region
  $region6: #{_lambda_.101} parent=0 // pred_check
    _
  $region7: #{_lambda_.101} parent=0 // pred_check_branch
    %11 = sbr.rel (0) target = $region9
  $region8: #{_lambda_.101} parent=0 // pred_region
    _
  $region9: #{_lambda_.101} parent=0 // pred_fallthru
    _
  // Predicated region
  $region10: #{_lambda_.101} parent=0 // pred_check
    _
  $region11: #{_lambda_.101} parent=0 // pred_check_branch
    %13 = sbr.rel (0) target = $region13
  $region12: #{_lambda_.101} parent=0 // pred_region
    _
  $region13: #{_lambda_.101} parent=0 // pred_fallthru
    _
  %v14 = vld [vmem:[%s0] sm:$0xf]
  %v15 = vld [vmem:[%s0 + $0x4] sm:$0xf]
  %v16 = vld [vmem:[%s0 + $0x8] sm:$0xf]
  %v17 = vld [vmem:[%s0 + $0xc] sm:$0xf]
  %v18 = vld [vmem:[%s1] sm:$0xf]
  %v19 = vld [vmem:[%s1 + $0x4] sm:$0xf]
  %v20 = vld [vmem:[%s1 + $0x8] sm:$0xf]
  %v21 = vld [vmem:[%s1 + $0xc] sm:$0xf]
  %v22 = vld [vmem:[%s1 + $0x10] sm:$0xf]
  %v23 = vld [vmem:[%s1 + $0x14] sm:$0xf]
  %v24 = vld [vmem:[%s1 + $0x18] sm:$0xf]
  %v25 = vld [vmem:[%s1 + $0x1c] sm:$0xf]
  %v26 = vld [vmem:[%s1 + $0x20] sm:$0xf]
  %v27 = vld [vmem:[%s1 + $0x24] sm:$0xf]
  %v28 = vld [vmem:[%s1 + $0x28] sm:$0xf]
  %v29 = vld [vmem:[%s1 + $0x2c] sm:$0xf]
  %v30 = vld [vmem:[%s1 + $0x30] sm:$0xf]
  %v31 = vld [vmem:[%s1 + $0x34] sm:$0xf]
  %v32 = vld [vmem:[%s1 + $0x38] sm:$0xf]
  %v33 = vld [vmem:[%s1 + $0x3c] sm:$0xf]
  %v34 = vld [vmem:[%s2] sm:$0x1]
  %v36 = vperm.slane %v34, 0
  %v42 = vunpack.c.l.b16 %v14
  %v43 = vunpack.c.l.b16 %v15
  %v44 = vunpack.c.l.b16 %v16
  %v45 = vunpack.c.l.b16 %v17
  %v46 = vpack.c.b16 %v43, %v42
  %v47 = vpack.c.b16 %v45, %v44
  %v66 = vunpack.c.l.b16 %v18
  %v67 = vunpack.c.l.b16 %v19
  %v68 = vunpack.c.l.b16 %v20
  %v69 = vunpack.c.l.b16 %v21
  %v70 = vunpack.c.l.b16 %v22
  %v71 = vunpack.c.l.b16 %v23
  %v72 = vunpack.c.l.b16 %v24
  %v73 = vunpack.c.l.b16 %v25
  %v74 = vunpack.c.l.b16 %v26
  %v75 = vunpack.c.l.b16 %v27
  %v76 = vunpack.c.l.b16 %v28
  %v77 = vunpack.c.l.b16 %v29
  %v78 = vunpack.c.l.b16 %v30
  %v79 = vunpack.c.l.b16 %v31
  %v80 = vunpack.c.l.b16 %v32
  %v81 = vunpack.c.l.b16 %v33
  %v82 = vpack.c.b16 %v67, %v66
  %v83 = vpack.c.b16 %v69, %v68
  %v84 = vpack.c.b16 %v71, %v70
  %v85 = vpack.c.b16 %v73, %v72
  %v86 = vpack.c.b16 %v75, %v74
  %v87 = vpack.c.b16 %v77, %v76
  %v88 = vpack.c.b16 %v79, %v78
  %v89 = vpack.c.b16 %v81, %v80
  %98 = vmatpush.bf16.msra.mxu0 %v89
  %99 = vmatpush.bf16.msra.mxu0 %v88
  %100 = vmatpush.bf16.msra.mxu0 %v87
  %101 = vmatpush.bf16.msra.mxu0 %v86
  %102 = vmatpush.bf16.msra.mxu0 %v85
  %103 = vmatpush.bf16.msra.mxu0 %v84
  %104 = vmatpush.bf16.msra.mxu0 %v83
  %105 = vmatpush.bf16.msra.mxu0 %v82
  %106 = vmatmul.bf16.gmra.mxu0 %v46
  %v107 = vpop.f32.mrf.mxu0
  %v108 = vadd.f32 %v36, %v107
  %v109 = vpop.f32.mrf.mxu0
  %v110 = vadd.f32 %v36, %v109
  %111 = vmatmul.bf16.gmra.mxu0 %v47
  %v112 = vpop.f32.mrf.mxu0
  %v113 = vadd.f32 %v36, %v112
  %v114 = vpop.f32.mrf.mxu0
  %v115 = vadd.f32 %v36, %v114
  %116 = vdwg.mxu0
  %v117 = vmax.f32 %v108, 0.0
  %v118 = vmax.f32 %v110, 0.0
  %v119 = vmax.f32 %v113, 0.0
  %v120 = vmax.f32 %v115, 0.0
  %v121 = vpack.c.bf16 %v117, %v117
  %v122 = vpack.c.bf16 %v118, %v118
  %v123 = vpack.c.bf16 %v119, %v119
  %v124 = vpack.c.bf16 %v120, %v120
  %125 = vst [vmem:[%s3] sm:$0xf] %v121
  %126 = vst [vmem:[%s3 + $0x4] sm:$0xf] %v122
  %127 = vst [vmem:[%s3 + $0x8] sm:$0xf] %v123
  %128 = vst [vmem:[%s3 + $0xc] sm:$0xf] %v124
  // Predicated region
  $region14: #{_lambda_.101} parent=0 // pred_check
    _
  $region15: #{_lambda_.101} parent=0 // pred_check_branch
    %130 = sbr.rel (0) target = $region17
  $region16: #{_lambda_.101} parent=0 // pred_region
    _
  $region17: #{_lambda_.101} parent=0 // pred_fallthru
    _
  // Predicated region
  $region18: #{_lambda_.101} parent=0 // pred_check
    _
  $region19: #{_lambda_.101} parent=0 // pred_check_branch
    %132 = sbr.rel (0) target = $region21
  $region20: #{_lambda_.101} parent=0 // pred_region
    _
  $region21: #{_lambda_.101} parent=0 // pred_fallthru
    _

// kernel: _lambda_.100
$region0: #{_lambda_.100}
  #allocation0 [shape = 'u32[]', space=smem, size = 0x4, offset = 0x4, fixed_abs, tag = 'smem constant byte address 0x4 - core index']
  #allocation1 [shape = 'u32[72,128]{1,0:T(1,128)}', space=vmem, size = 0x9000, scoped, tag = 'internal scratch']
  %s0 = inlined_call_operand.vmem [shape: bf16[16,128], index: 0, kind: input, shape index: {}]
  %s1 = inlined_call_operand.vmem [shape: bf16[128,128], index: 1, kind: input, shape index: {}]
  %s2 = inlined_call_operand.vmem [shape: f32[1,128], index: 2, kind: input, shape index: {}]
  %s3 = inlined_call_operand.vmem [shape: bf16[16,128], index: 3, kind: output, shape index: {}]
  %s4 = sld [smem:[#allocation0]]
  $region22: #{_lambda_.100} parent=0
    _
  %s6 = ssub.s32 1, %s4
  %s7 = scalar_select 0, %s6, %s4
  // Predicated region
  $region2: #{_lambda_.100} parent=0 // pred_check
    _
  $region3: #{_lambda_.100} parent=0 // pred_check_branch
    %9 = sbr.rel (0) target = $region5
  $region4: #{_lambda_.100} parent=0 // pred_region
    _
  $region5: #{_lambda_.100} parent=0 // pred_fallthru
    _
  // Predicated region
  $region6: #{_lambda_.100} parent=0 // pred_check
    _
  $region7: #{_lambda_.100} parent=0 // pred_check_branch
    %11 = sbr.rel (0) target = $region9
  $region8: #{_lambda_.100} parent=0 // pred_region
    _
  $region9: #{_lambda_.100} parent=0 // pred_fallthru
    _
  // Predicated region
  $region10: #{_lambda_.100} parent=0 // pred_check
    _
  $region11: #{_lambda_.100} parent=0 // pred_check_branch
    %13 = sbr.rel (0) target = $region13
  $region12: #{_lambda_.100} parent=0 // pred_region
    _
  $region13: #{_lambda_.100} parent=0 // pred_fallthru
    _
  %v14 = vld [vmem:[%s0] sm:$0xf]
  %v15 = vld [vmem:[%s0 + $0x4] sm:$0xf]
  %v16 = vld [vmem:[%s1] sm:$0xf]
  %v17 = vld [vmem:[%s1 + $0x4] sm:$0xf]
  %v18 = vld [vmem:[%s1 + $0x8] sm:$0xf]
  %v19 = vld [vmem:[%s1 + $0xc] sm:$0xf]
  %v20 = vld [vmem:[%s1 + $0x10] sm:$0xf]
  %v21 = vld [vmem:[%s1 + $0x14] sm:$0xf]
  %v22 = vld [vmem:[%s1 + $0x18] sm:$0xf]
  %v23 = vld [vmem:[%s1 + $0x1c] sm:$0xf]
  %v24 = vld [vmem:[%s1 + $0x20] sm:$0xf]
  %v25 = vld [vmem:[%s1 + $0x24] sm:$0xf]
  %v26 = vld [vmem:[%s1 + $0x28] sm:$0xf]
  %v27 = vld [vmem:[%s1 + $0x2c] sm:$0xf]
  %v28 = vld [vmem:[%s1 + $0x30] sm:$0xf]
  %v29 = vld [vmem:[%s1 + $0x34] sm:$0xf]
  %v30 = vld [vmem:[%s1 + $0x38] sm:$0xf]
  %v31 = vld [vmem:[%s1 + $0x3c] sm:$0xf]
  %v32 = vld [vmem:[%s2] sm:$0x1]
  %v34 = vperm.slane %v32, 0
  %v38 = vunpack.c.l.b16 %v14
  %v39 = vunpack.c.l.b16 %v15
  %v40 = vpack.c.b16 %v39, %v38
  %v58 = vunpack.c.l.b16 %v16
  %v59 = vunpack.c.l.b16 %v17
  %v60 = vunpack.c.l.b16 %v18
  %v61 = vunpack.c.l.b16 %v19
  %v62 = vunpack.c.l.b16 %v20
  %v63 = vunpack.c.l.b16 %v21
  %v64 = vunpack.c.l.b16 %v22
  %v65 = vunpack.c.l.b16 %v23
  %v66 = vunpack.c.l.b16 %v24
  %v67 = vunpack.c.l.b16 %v25
  %v68 = vunpack.c.l.b16 %v26
  %v69 = vunpack.c.l.b16 %v27
  %v70 = vunpack.c.l.b16 %v28
  %v71 = vunpack.c.l.b16 %v29
  %v72 = vunpack.c.l.b16 %v30
  %v73 = vunpack.c.l.b16 %v31
  %v74 = vpack.c.b16 %v59, %v58
  %v75 = vpack.c.b16 %v61, %v60
  %v76 = vpack.c.b16 %v63, %v62
  %v77 = vpack.c.b16 %v65, %v64
  %v78 = vpack.c.b16 %v67, %v66
  %v79 = vpack.c.b16 %v69, %v68
  %v80 = vpack.c.b16 %v71, %v70
  %v81 = vpack.c.b16 %v73, %v72
  %90 = vmatpush.bf16.msra.mxu0 %v81
  %91 = vmatpush.bf16.msra.mxu0 %v80
  %92 = vmatpush.bf16.msra.mxu0 %v79
  %93 = vmatpush.bf16.msra.mxu0 %v78
  %94 = vmatpush.bf16.msra.mxu0 %v77
  %95 = vmatpush.bf16.msra.mxu0 %v76
  %96 = vmatpush.bf16.msra.mxu0 %v75
  %97 = vmatpush.bf16.msra.mxu0 %v74
  %98 = vmatmul.bf16.gmra.mxu0 %v40
  %v99 = vpop.f32.mrf.mxu0
  %v100 = vadd.f32 %v34, %v99
  %v101 = vpop.f32.mrf.mxu0
  %v102 = vadd.f32 %v34, %v101
  %103 = vdwg.mxu0
  %v104 = vmax.f32 %v100, 0.0
  %v105 = vmax.f32 %v102, 0.0
  %v106 = vpack.c.bf16 %v104, %v104
  %v107 = vpack.c.bf16 %v105, %v105
  %108 = vst [vmem:[%s3] sm:$0xf] %v106
  %109 = vst [vmem:[%s3 + $0x4] sm:$0xf] %v107
  // Predicated region
  $region14: #{_lambda_.100} parent=0 // pred_check
    _
  $region15: #{_lambda_.100} parent=0 // pred_check_branch
    %111 = sbr.rel (0) target = $region17
  $region16: #{_lambda_.100} parent=0 // pred_region
    _
  $region17: #{_lambda_.100} parent=0 // pred_fallthru
    _
  // Predicated region
  $region18: #{_lambda_.100} parent=0 // pred_check
    _
  $region19: #{_lambda_.100} parent=0 // pred_check_branch
    %113 = sbr.rel (0) target = $region21
  $region20: #{_lambda_.100} parent=0 // pred_region
    _
  $region21: #{_lambda_.100} parent=0 // pred_fallthru
    _

// kernel: _lambda_.103
$region0: #{_lambda_.103}
  #allocation0 [shape = 'u32[]', space=smem, size = 0x4, offset = 0x4, fixed_abs, tag = 'smem constant byte address 0x4 - core index']
  #allocation1 [shape = 'u32[72,128]{1,0:T(1,128)}', space=vmem, size = 0x9000, scoped, tag = 'internal scratch']
  %s0 = inlined_call_operand.vmem [shape: bf16[80,576], index: 0, kind: input, shape index: {}]
  %s1 = inlined_call_operand.vmem [shape: bf16[576,128], index: 1, kind: input, shape index: {}]
  %s2 = inlined_call_operand.vmem [shape: f32[1,128], index: 2, kind: input, shape index: {}]
  %s3 = inlined_call_operand.vmem [shape: bf16[80,128], index: 3, kind: output, shape index: {}]
  %s4 = sld [smem:[#allocation0]]
  $region22: #{_lambda_.103} parent=0
    _
  %s6 = ssub.s32 1, %s4
  %s7 = scalar_select 0, %s6, %s4
  // Predicated region
  $region2: #{_lambda_.103} parent=0 // pred_check
    _
  $region3: #{_lambda_.103} parent=0 // pred_check_branch
    %9 = sbr.rel (0) target = $region5
  $region4: #{_lambda_.103} parent=0 // pred_region
    _
  $region5: #{_lambda_.103} parent=0 // pred_fallthru
    _
  // Predicated region
  $region6: #{_lambda_.103} parent=0 // pred_check
    _
  $region7: #{_lambda_.103} parent=0 // pred_check_branch
    %11 = sbr.rel (0) target = $region9
  $region8: #{_lambda_.103} parent=0 // pred_region
    _
  $region9: #{_lambda_.103} parent=0 // pred_fallthru
    _
  // Predicated region
  $region10: #{_lambda_.103} parent=0 // pred_check
    _
  $region11: #{_lambda_.103} parent=0 // pred_check_branch
    %13 = sbr.rel (0) target = $region13
  $region12: #{_lambda_.103} parent=0 // pred_region
    _
  $region13: #{_lambda_.103} parent=0 // pred_fallthru
    _
  %v15 = vld [vmem:[%s0] sm:$0xff]
  %v16 = vld [vmem:[%s0 + $0x8] sm:$0xff]
  %v17 = vld [vmem:[%s0 + $0x10] sm:$0xf]
  %v18 = vld [vmem:[%s0 + $0x14] sm:$0xff]
  %v19 = vld [vmem:[%s0 + $0x1c] sm:$0xff]
  %v20 = vld [vmem:[%s0 + $0x24] sm:$0xf]
  %v21 = vld [vmem:[%s0 + $0x28] sm:$0xff]
  %v22 = vld [vmem:[%s0 + $0x30] sm:$0xff]
  %v23 = vld [vmem:[%s0 + $0x38] sm:$0xf]
  %v24 = vld [vmem:[%s0 + $0x3c] sm:$0xff]
  %v25 = vld [vmem:[%s0 + $0x44] sm:$0xff]
  %v26 = vld [vmem:[%s0 + $0x4c] sm:$0xf]
  %v27 = vld [vmem:[%s0 + $0x50] sm:$0xff]
  %v28 = vld [vmem:[%s0 + $0x58] sm:$0xff]
  %v29 = vld [vmem:[%s0 + $0x60] sm:$0xf]
  %v30 = vld [vmem:[%s0 + $0x64] sm:$0xff]
  %v31 = vld [vmem:[%s0 + $0x6c] sm:$0xff]
  %v32 = vld [vmem:[%s0 + $0x74] sm:$0xf]
  %v33 = vld [vmem:[%s0 + $0x78] sm:$0xff]
  %v34 = vld [vmem:[%s0 + $0x80] sm:$0xff]
  %v35 = vld [vmem:[%s0 + $0x88] sm:$0xf]
  %v36 = vld [vmem:[%s0 + $0x8c] sm:$0xff]
  %v37 = vld [vmem:[%s0 + $0x94] sm:$0xff]
  %v38 = vld [vmem:[%s0 + $0x9c] sm:$0xf]
  %v39 = vld [vmem:[%s0 + $0xa0] sm:$0xff]
  %v40 = vld [vmem:[%s0 + $0xa8] sm:$0xff]
  %v41 = vld [vmem:[%s0 + $0xb0] sm:$0xf]
  %v42 = vld [vmem:[%s0 + $0xb4] sm:$0xff]
  %v43 = vld [vmem:[%s0 + $0xbc] sm:$0xff]
  %v44 = vld [vmem:[%s0 + $0xc4] sm:$0xf]
  %v45 = vld [vmem:[%s1] sm:$0xf]
  %v46 = vld [vmem:[%s1 + $0x4] sm:$0xf]
  %v47 = vld [vmem:[%s1 + $0x8] sm:$0xf]
  %v48 = vld [vmem:[%s1 + $0xc] sm:$0xf]
  %v49 = vld [vmem:[%s1 + $0x10] sm:$0xf]
  %v50 = vld [vmem:[%s1 + $0x14] sm:$0xf]
  %v51 = vld [vmem:[%s1 + $0x18] sm:$0xf]
  %v52 = vld [vmem:[%s1 + $0x1c] sm:$0xf]
  %v53 = vld [vmem:[%s1 + $0x20] sm:$0xf]
  %v54 = vld [vmem:[%s1 + $0x24] sm:$0xf]
  %v55 = vld [vmem:[%s1 + $0x28] sm:$0xf]
  %v56 = vld [vmem:[%s1 + $0x2c] sm:$0xf]
  %v57 = vld [vmem:[%s1 + $0x30] sm:$0xf]
  %v58 = vld [vmem:[%s1 + $0x34] sm:$0xf]
  %v59 = vld [vmem:[%s1 + $0x38] sm:$0xf]
  %v60 = vld [vmem:[%s1 + $0x3c] sm:$0xf]
  %v61 = vld [vmem:[%s1 + $0x40] sm:$0xf]
  %v62 = vld [vmem:[%s1 + $0x44] sm:$0xf]
  %v63 = vld [vmem:[%s1 + $0x48] sm:$0xf]
  %v64 = vld [vmem:[%s1 + $0x4c] sm:$0xf]
  %v65 = vld [vmem:[%s1 + $0x50] sm:$0xf]
  %v66 = vld [vmem:[%s1 + $0x54] sm:$0xf]
  %v67 = vld [vmem:[%s1 + $0x58] sm:$0xf]
  %v68 = vld [vmem:[%s1 + $0x5c] sm:$0xf]
  %v69 = vld [vmem:[%s1 + $0x60] sm:$0xf]
  %v70 = vld [vmem:[%s1 + $0x64] sm:$0xf]
  %v71 = vld [vmem:[%s1 + $0x68] sm:$0xf]
  %v72 = vld [vmem:[%s1 + $0x6c] sm:$0xf]
  %v73 = vld [vmem:[%s1 + $0x70] sm:$0xf]
  %v74 = vld [vmem:[%s1 + $0x74] sm:$0xf]
  %v75 = vld [vmem:[%s1 + $0x78] sm:$0xf]
  %v76 = vld [vmem:[%s1 + $0x7c] sm:$0xf]
  %v77 = vld [vmem:[%s1 + $0x80] sm:$0xf]
  %v78 = vld [vmem:[%s1 + $0x84] sm:$0xf]
  %v79 = vld [vmem:[%s1 + $0x88] sm:$0xf]
  %v80 = vld [vmem:[%s1 + $0x8c] sm:$0xf]
  %v81 = vld [vmem:[%s1 + $0x90] sm:$0xf]
  %v82 = vld [vmem:[%s1 + $0x94] sm:$0xf]
  %v83 = vld [vmem:[%s1 + $0x98] sm:$0xf]
  %v84 = vld [vmem:[%s1 + $0x9c] sm:$0xf]
  %v85 = vld [vmem:[%s1 + $0xa0] sm:$0xf]
  %v86 = vld [vmem:[%s1 + $0xa4] sm:$0xf]
  %v87 = vld [vmem:[%s1 + $0xa8] sm:$0xf]
  %v88 = vld [vmem:[%s1 + $0xac] sm:$0xf]
  %v89 = vld [vmem:[%s1 + $0xb0] sm:$0xf]
  %v90 = vld [vmem:[%s1 + $0xb4] sm:$0xf]
  %v91 = vld [vmem:[%s1 + $0xb8] sm:$0xf]
  %v92 = vld [vmem:[%s1 + $0xbc] sm:$0xf]
  %v93 = vld [vmem:[%s1 + $0xc0] sm:$0xf]
  %v94 = vld [vmem:[%s1 + $0xc4] sm:$0xf]
  %v95 = vld [vmem:[%s1 + $0xc8] sm:$0xf]
  %v96 = vld [vmem:[%s1 + $0xcc] sm:$0xf]
  %v97 = vld [vmem:[%s1 + $0xd0] sm:$0xf]
  %v98 = vld [vmem:[%s1 + $0xd4] sm:$0xf]
  %v99 = vld [vmem:[%s1 + $0xd8] sm:$0xf]
  %v100 = vld [vmem:[%s1 + $0xdc] sm:$0xf]
  %v101 = vld [vmem:[%s1 + $0xe0] sm:$0xf]
  %v102 = vld [vmem:[%s1 + $0xe4] sm:$0xf]
  %v103 = vld [vmem:[%s1 + $0xe8] sm:$0xf]
  %v104 = vld [vmem:[%s1 + $0xec] sm:$0xf]
  %v105 = vld [vmem:[%s1 + $0xf0] sm:$0xf]
  %v106 = vld [vmem:[%s1 + $0xf4] sm:$0xf]
  %v107 = vld [vmem:[%s1 + $0xf8] sm:$0xf]
  %v108 = vld [vmem:[%s1 + $0xfc] sm:$0xf]
  %v109 = vld [vmem:[%s1 + $0x100] sm:$0xf]
  %v110 = vld [vmem:[%s1 + $0x104] sm:$0xf]
  %v111 = vld [vmem:[%s1 + $0x108] sm:$0xf]
  %v112 = vld [vmem:[%s1 + $0x10c] sm:$0xf]
  %v113 = vld [vmem:[%s1 + $0x110] sm:$0xf]
  %v114 = vld [vmem:[%s1 + $0x114] sm:$0xf]
  %v115 = vld [vmem:[%s1 + $0x118] sm:$0xf]
  %v116 = vld [vmem:[%s1 + $0x11c] sm:$0xf]
  %v117 = vld [vmem:[%s2] sm:$0x1]
  %v119 = vperm.slane %v117, 0
  %v151 = vunpack.c.l.b16 %v15
  %v152 = vunpack.c.h.b16 %v15
  %v153 = vunpack.c.l.b16 %v16
  %v154 = vunpack.c.h.b16 %v16
  %v155 = vunpack.c.l.b16 %v17
  %v156 = vunpack.c.l.b16 %v18
  %v157 = vunpack.c.h.b16 %v18
  %v158 = vunpack.c.l.b16 %v19
  %v159 = vunpack.c.h.b16 %v19
  %v160 = vunpack.c.l.b16 %v20
  %v161 = vunpack.c.l.b16 %v21
  %v162 = vunpack.c.h.b16 %v21
  %v163 = vunpack.c.l.b16 %v22
  %v164 = vunpack.c.h.b16 %v22
  %v165 = vunpack.c.l.b16 %v23
  %v166 = vunpack.c.l.b16 %v24
  %v167 = vunpack.c.h.b16 %v24
  %v168 = vunpack.c.l.b16 %v25
  %v169 = vunpack.c.h.b16 %v25
  %v170 = vunpack.c.l.b16 %v26
  %v171 = vunpack.c.l.b16 %v27
  %v172 = vunpack.c.h.b16 %v27
  %v173 = vunpack.c.l.b16 %v28
  %v174 = vunpack.c.h.b16 %v28
  %v175 = vunpack.c.l.b16 %v29
  %v176 = vunpack.c.l.b16 %v30
  %v177 = vunpack.c.h.b16 %v30
  %v178 = vunpack.c.l.b16 %v31
  %v179 = vunpack.c.h.b16 %v31
  %v180 = vunpack.c.l.b16 %v32
  %v181 = vunpack.c.l.b16 %v33
  %v182 = vunpack.c.h.b16 %v33
  %v183 = vunpack.c.l.b16 %v34
  %v184 = vunpack.c.h.b16 %v34
  %v185 = vunpack.c.l.b16 %v35
  %v186 = vunpack.c.l.b16 %v36
  %v187 = vunpack.c.h.b16 %v36
  %v188 = vunpack.c.l.b16 %v37
  %v189 = vunpack.c.h.b16 %v37
  %v190 = vunpack.c.l.b16 %v38
  %v191 = vunpack.c.l.b16 %v39
  %v192 = vunpack.c.h.b16 %v39
  %v193 = vunpack.c.l.b16 %v40
  %v194 = vunpack.c.h.b16 %v40
  %v195 = vunpack.c.l.b16 %v41
  %v196 = vunpack.c.l.b16 %v42
  %v197 = vunpack.c.h.b16 %v42
  %v198 = vunpack.c.l.b16 %v43
  %v199 = vunpack.c.h.b16 %v43
  %v200 = vunpack.c.l.b16 %v44
  %v201 = vpack.c.b16 %v156, %v151
  %v202 = vpack.c.b16 %v157, %v152
  %v203 = vpack.c.b16 %v158, %v153
  %v204 = vpack.c.b16 %v159, %v154
  %v205 = vpack.c.b16 %v160, %v155
  %v206 = vpack.c.b16 %v166, %v161
  %v207 = vpack.c.b16 %v167, %v162
  %v208 = vpack.c.b16 %v168, %v163
  %v209 = vpack.c.b16 %v169, %v164
  %v210 = vpack.c.b16 %v170, %v165
  %v211 = vpack.c.b16 %v176, %v171
  %v212 = vpack.c.b16 %v177, %v172
  %v213 = vpack.c.b16 %v178, %v173
  %v214 = vpack.c.b16 %v179, %v174
  %v215 = vpack.c.b16 %v180, %v175
  %v216 = vpack.c.b16 %v186, %v181
  %v217 = vpack.c.b16 %v187, %v182
  %v218 = vpack.c.b16 %v188, %v183
  %v219 = vpack.c.b16 %v189, %v184
  %v220 = vpack.c.b16 %v190, %v185
  %v221 = vpack.c.b16 %v196, %v191
  %v222 = vpack.c.b16 %v197, %v192
  %v223 = vpack.c.b16 %v198, %v193
  %v224 = vpack.c.b16 %v199, %v194
  %v225 = vpack.c.b16 %v200, %v195
  %v318 = vunpack.c.l.b16 %v45
  %v319 = vunpack.c.l.b16 %v46
  %v320 = vunpack.c.l.b16 %v47
  %v321 = vunpack.c.l.b16 %v48
  %v322 = vunpack.c.l.b16 %v49
  %v323 = vunpack.c.l.b16 %v50
  %v324 = vunpack.c.l.b16 %v51
  %v325 = vunpack.c.l.b16 %v52
  %v326 = vunpack.c.l.b16 %v53
  %v327 = vunpack.c.l.b16 %v54
  %v328 = vunpack.c.l.b16 %v55
  %v329 = vunpack.c.l.b16 %v56
  %v330 = vunpack.c.l.b16 %v57
  %v331 = vunpack.c.l.b16 %v58
  %v332 = vunpack.c.l.b16 %v59
  %v333 = vunpack.c.l.b16 %v60
  %v334 = vunpack.c.l.b16 %v61
  %v335 = vunpack.c.l.b16 %v62
  %v336 = vunpack.c.l.b16 %v63
  %v337 = vunpack.c.l.b16 %v64
  %v338 = vunpack.c.l.b16 %v65
  %v339 = vunpack.c.l.b16 %v66
  %v340 = vunpack.c.l.b16 %v67
  %v341 = vunpack.c.l.b16 %v68
  %v342 = vunpack.c.l.b16 %v69
  %v343 = vunpack.c.l.b16 %v70
  %v344 = vunpack.c.l.b16 %v71
  %v345 = vunpack.c.l.b16 %v72
  %v346 = vunpack.c.l.b16 %v73
  %v347 = vunpack.c.l.b16 %v74
  %v348 = vunpack.c.l.b16 %v75
  %v349 = vunpack.c.l.b16 %v76
  %v350 = vunpack.c.l.b16 %v77
  %v351 = vunpack.c.l.b16 %v78
  %v352 = vunpack.c.l.b16 %v79
  %v353 = vunpack.c.l.b16 %v80
  %v354 = vunpack.c.l.b16 %v81
  %v355 = vunpack.c.l.b16 %v82
  %v356 = vunpack.c.l.b16 %v83
  %v357 = vunpack.c.l.b16 %v84
  %v358 = vunpack.c.l.b16 %v85
  %v359 = vunpack.c.l.b16 %v86
  %v360 = vunpack.c.l.b16 %v87
  %v361 = vunpack.c.l.b16 %v88
  %v362 = vunpack.c.l.b16 %v89
  %v363 = vunpack.c.l.b16 %v90
  %v364 = vunpack.c.l.b16 %v91
  %v365 = vunpack.c.l.b16 %v92
  %v366 = vunpack.c.l.b16 %v93
  %v367 = vunpack.c.l.b16 %v94
  %v368 = vunpack.c.l.b16 %v95
  %v369 = vunpack.c.l.b16 %v96
  %v370 = vunpack.c.l.b16 %v97
  %v371 = vunpack.c.l.b16 %v98
  %v372 = vunpack.c.l.b16 %v99
  %v373 = vunpack.c.l.b16 %v100
  %v374 = vunpack.c.l.b16 %v101
  %v375 = vunpack.c.l.b16 %v102
  %v376 = vunpack.c.l.b16 %v103
  %v377 = vunpack.c.l.b16 %v104
  %v378 = vunpack.c.l.b16 %v105
  %v379 = vunpack.c.l.b16 %v106
  %v380 = vunpack.c.l.b16 %v107
  %v381 = vunpack.c.l.b16 %v108
  %v382 = vunpack.c.l.b16 %v109
  %v383 = vunpack.c.l.b16 %v110
  %v384 = vunpack.c.l.b16 %v111
  %v385 = vunpack.c.l.b16 %v112
  %v386 = vunpack.c.l.b16 %v113
  %v387 = vunpack.c.l.b16 %v114
  %v388 = vunpack.c.l.b16 %v115
  %v389 = vunpack.c.l.b16 %v116
  %v390 = vpack.c.b16 %v319, %v318
  %v391 = vpack.c.b16 %v321, %v320
  %v392 = vpack.c.b16 %v323, %v322
  %v393 = vpack.c.b16 %v325, %v324
  %v394 = vpack.c.b16 %v327, %v326
  %v395 = vpack.c.b16 %v329, %v328
  %v396 = vpack.c.b16 %v331, %v330
  %v397 = vpack.c.b16 %v333, %v332
  %v398 = vpack.c.b16 %v335, %v334
  %v399 = vpack.c.b16 %v337, %v336
  %v400 = vpack.c.b16 %v339, %v338
  %v401 = vpack.c.b16 %v341, %v340
  %v402 = vpack.c.b16 %v343, %v342
  %v403 = vpack.c.b16 %v345, %v344
  %v404 = vpack.c.b16 %v347, %v346
  %v405 = vpack.c.b16 %v349, %v348
  %v406 = vpack.c.b16 %v351, %v350
  %v407 = vpack.c.b16 %v353, %v352
  %v408 = vpack.c.b16 %v355, %v354
  %v409 = vpack.c.b16 %v357, %v356
  %v410 = vpack.c.b16 %v359, %v358
  %v411 = vpack.c.b16 %v361, %v360
  %v412 = vpack.c.b16 %v363, %v362
  %v413 = vpack.c.b16 %v365, %v364
  %v414 = vpack.c.b16 %v367, %v366
  %v415 = vpack.c.b16 %v369, %v368
  %v416 = vpack.c.b16 %v371, %v370
  %v417 = vpack.c.b16 %v373, %v372
  %v418 = vpack.c.b16 %v375, %v374
  %v419 = vpack.c.b16 %v377, %v376
  %v420 = vpack.c.b16 %v379, %v378
  %v421 = vpack.c.b16 %v381, %v380
  %v422 = vpack.c.b16 %v383, %v382
  %v423 = vpack.c.b16 %v385, %v384
  %v424 = vpack.c.b16 %v387, %v386
  %v425 = vpack.c.b16 %v389, %v388
  %vm462 = vcmask 523264
  %v464 = vsel %vm462, %v205, 0
  %v467 = vsel %vm462, %v210, 0
  %v470 = vsel %vm462, %v215, 0
  %v473 = vsel %vm462, %v220, 0
  %v476 = vsel %vm462, %v225, 0
  %478 = vmatpush.bf16.msra.mxu0 %v397
  %479 = vmatpush.bf16.msra.mxu0 %v396
  %480 = vmatpush.bf16.msra.mxu0 %v395
  %481 = vmatpush.bf16.msra.mxu0 %v394
  %482 = vmatpush.bf16.msra.mxu0 %v393
  %483 = vmatpush.bf16.msra.mxu0 %v392
  %484 = vmatpush.bf16.msra.mxu0 %v391
  %485 = vmatpush.bf16.msra.mxu0 %v390
  %486 = vmatmul.bf16.gmra.mxu0 %v201
  %v487 = vpop.f32.mrf.mxu0
  %v488 = vadd.f32 %v119, %v487
  %v489 = vpop.f32.mrf.mxu0
  %v490 = vadd.f32 %v119, %v489
  %491 = vmatmul.bf16.gmra.mxu0 %v206
  %v492 = vpop.f32.mrf.mxu0
  %v493 = vadd.f32 %v119, %v492
  %v494 = vpop.f32.mrf.mxu0
  %v495 = vadd.f32 %v119, %v494
  %496 = vmatmul.bf16.gmra.mxu0 %v211
  %v497 = vpop.f32.mrf.mxu0
  %v498 = vadd.f32 %v119, %v497
  %v499 = vpop.f32.mrf.mxu0
  %v500 = vadd.f32 %v119, %v499
  %501 = vmatmul.bf16.gmra.mxu0 %v216
  %v502 = vpop.f32.mrf.mxu0
  %v503 = vadd.f32 %v119, %v502
  %v504 = vpop.f32.mrf.mxu0
  %v505 = vadd.f32 %v119, %v504
  %506 = vmatmul.bf16.gmra.mxu0 %v221
  %v507 = vpop.f32.mrf.mxu0
  %v508 = vadd.f32 %v119, %v507
  %v509 = vpop.f32.mrf.mxu0
  %v510 = vadd.f32 %v119, %v509
  %511 = vdwg.mxu0
  %512 = vmatpush.bf16.msra.mxu0 %v405
  %513 = vmatpush.bf16.msra.mxu0 %v404
  %514 = vmatpush.bf16.msra.mxu0 %v403
  %515 = vmatpush.bf16.msra.mxu0 %v402
  %516 = vmatpush.bf16.msra.mxu0 %v401
  %517 = vmatpush.bf16.msra.mxu0 %v400
  %518 = vmatpush.bf16.msra.mxu0 %v399
  %519 = vmatpush.bf16.msra.mxu0 %v398
  %520 = vmatmul.bf16.gmra.mxu0 %v202
  %v521 = vpop.f32.mrf.mxu0
  %v522 = vadd.f32 %v488, %v521
  %v523 = vpop.f32.mrf.mxu0
  %v524 = vadd.f32 %v490, %v523
  %525 = vmatmul.bf16.gmra.mxu0 %v207
  %v526 = vpop.f32.mrf.mxu0
  %v527 = vadd.f32 %v493, %v526
  %v528 = vpop.f32.mrf.mxu0
  %v529 = vadd.f32 %v495, %v528
  %530 = vmatmul.bf16.gmra.mxu0 %v212
  %v531 = vpop.f32.mrf.mxu0
  %v532 = vadd.f32 %v498, %v531
  %v533 = vpop.f32.mrf.mxu0
  %v534 = vadd.f32 %v500, %v533
  %535 = vmatmul.bf16.gmra.mxu0 %v217
  %v536 = vpop.f32.mrf.mxu0
  %v537 = vadd.f32 %v503, %v536
  %v538 = vpop.f32.mrf.mxu0
  %v539 = vadd.f32 %v505, %v538
  %540 = vmatmul.bf16.gmra.mxu0 %v222
  %v541 = vpop.f32.mrf.mxu0
  %v542 = vadd.f32 %v508, %v541
  %v543 = vpop.f32.mrf.mxu0
  %v544 = vadd.f32 %v510, %v543
  %545 = vdwg.mxu0
  %546 = vmatpush.bf16.msra.mxu0 %v413
  %547 = vmatpush.bf16.msra.mxu0 %v412
  %548 = vmatpush.bf16.msra.mxu0 %v411
  %549 = vmatpush.bf16.msra.mxu0 %v410
  %550 = vmatpush.bf16.msra.mxu0 %v409
  %551 = vmatpush.bf16.msra.mxu0 %v408
  %552 = vmatpush.bf16.msra.mxu0 %v407
  %553 = vmatpush.bf16.msra.mxu0 %v406
  %554 = vmatmul.bf16.gmra.mxu0 %v203
  %v555 = vpop.f32.mrf.mxu0
  %v556 = vadd.f32 %v522, %v555
  %v557 = vpop.f32.mrf.mxu0
  %v558 = vadd.f32 %v524, %v557
  %559 = vmatmul.bf16.gmra.mxu0 %v208
  %v560 = vpop.f32.mrf.mxu0
  %v561 = vadd.f32 %v527, %v560
  %v562 = vpop.f32.mrf.mxu0
  %v563 = vadd.f32 %v529, %v562
  %564 = vmatmul.bf16.gmra.mxu0 %v213
  %v565 = vpop.f32.mrf.mxu0
  %v566 = vadd.f32 %v532, %v565
  %v567 = vpop.f32.mrf.mxu0
  %v568 = vadd.f32 %v534, %v567
  %569 = vmatmul.bf16.gmra.mxu0 %v218
  %v570 = vpop.f32.mrf.mxu0
  %v571 = vadd.f32 %v537, %v570
  %v572 = vpop.f32.mrf.mxu0
  %v573 = vadd.f32 %v539, %v572
  %574 = vmatmul.bf16.gmra.mxu0 %v223
  %v575 = vpop.f32.mrf.mxu0
  %v576 = vadd.f32 %v542, %v575
  %v577 = vpop.f32.mrf.mxu0
  %v578 = vadd.f32 %v544, %v577
  %579 = vdwg.mxu0
  %580 = vmatpush.bf16.msra.mxu0 %v421
  %581 = vmatpush.bf16.msra.mxu0 %v420
  %582 = vmatpush.bf16.msra.mxu0 %v419
  %583 = vmatpush.bf16.msra.mxu0 %v418
  %584 = vmatpush.bf16.msra.mxu0 %v417
  %585 = vmatpush.bf16.msra.mxu0 %v416
  %586 = vmatpush.bf16.msra.mxu0 %v415
  %587 = vmatpush.bf16.msra.mxu0 %v414
  %588 = vmatmul.bf16.gmra.mxu0 %v204
  %v589 = vpop.f32.mrf.mxu0
  %v590 = vadd.f32 %v556, %v589
  %v591 = vpop.f32.mrf.mxu0
  %v592 = vadd.f32 %v558, %v591
  %593 = vmatmul.bf16.gmra.mxu0 %v209
  %v594 = vpop.f32.mrf.mxu0
  %v595 = vadd.f32 %v561, %v594
  %v596 = vpop.f32.mrf.mxu0
  %v597 = vadd.f32 %v563, %v596
  %598 = vmatmul.bf16.gmra.mxu0 %v214
  %v599 = vpop.f32.mrf.mxu0
  %v600 = vadd.f32 %v566, %v599
  %v601 = vpop.f32.mrf.mxu0
  %v602 = vadd.f32 %v568, %v601
  %603 = vmatmul.bf16.gmra.mxu0 %v219
  %v604 = vpop.f32.mrf.mxu0
  %v605 = vadd.f32 %v571, %v604
  %v606 = vpop.f32.mrf.mxu0
  %v607 = vadd.f32 %v573, %v606
  %608 = vmatmul.bf16.gmra.mxu0 %v224
  %v609 = vpop.f32.mrf.mxu0
  %v610 = vadd.f32 %v576, %v609
  %v611 = vpop.f32.mrf.mxu0
  %v612 = vadd.f32 %v578, %v611
  %613 = vdwg.mxu0
  %614 = vmatpush.bf16.msra.mxu0 0
  %615 = vmatpush.bf16.msra.mxu0 0
  %616 = vmatpush.bf16.msra.mxu0 0
  %617 = vmatpush.bf16.msra.mxu0 0
  %618 = vmatpush.bf16.msra.mxu0 %v425
  %619 = vmatpush.bf16.msra.mxu0 %v424
  %620 = vmatpush.bf16.msra.mxu0 %v423
  %621 = vmatpush.bf16.msra.mxu0 %v422
  %622 = vmatmul.bf16.gmra.mxu0 %v464
  %v623 = vpop.f32.mrf.mxu0
  %v624 = vadd.f32 %v590, %v623
  %v625 = vpop.f32.mrf.mxu0
  %v626 = vadd.f32 %v592, %v625
  %627 = vmatmul.bf16.gmra.mxu0 %v467
  %v628 = vpop.f32.mrf.mxu0
  %v629 = vadd.f32 %v595, %v628
  %v630 = vpop.f32.mrf.mxu0
  %v631 = vadd.f32 %v597, %v630
  %632 = vmatmul.bf16.gmra.mxu0 %v470
  %v633 = vpop.f32.mrf.mxu0
  %v634 = vadd.f32 %v600, %v633
  %v635 = vpop.f32.mrf.mxu0
  %v636 = vadd.f32 %v602, %v635
  %637 = vmatmul.bf16.gmra.mxu0 %v473
  %v638 = vpop.f32.mrf.mxu0
  %v639 = vadd.f32 %v605, %v638
  %v640 = vpop.f32.mrf.mxu0
  %v641 = vadd.f32 %v607, %v640
  %642 = vmatmul.bf16.gmra.mxu0 %v476
  %v643 = vpop.f32.mrf.mxu0
  %v644 = vadd.f32 %v610, %v643
  %v645 = vpop.f32.mrf.mxu0
  %v646 = vadd.f32 %v612, %v645
  %647 = vdwg.mxu0
  %v648 = vmax.f32 %v624, 0.0
  %v649 = vmax.f32 %v626, 0.0
  %v650 = vmax.f32 %v629, 0.0
  %v651 = vmax.f32 %v631, 0.0
  %v652 = vmax.f32 %v634, 0.0
  %v653 = vmax.f32 %v636, 0.0
  %v654 = vmax.f32 %v639, 0.0
  %v655 = vmax.f32 %v641, 0.0
  %v656 = vmax.f32 %v644, 0.0
  %v657 = vmax.f32 %v646, 0.0
  %v658 = vpack.c.bf16 %v648, %v648
  %v659 = vpack.c.bf16 %v649, %v649
  %v660 = vpack.c.bf16 %v650, %v650
  %v661 = vpack.c.bf16 %v651, %v651
  %v662 = vpack.c.bf16 %v652, %v652
  %v663 = vpack.c.bf16 %v653, %v653
  %v664 = vpack.c.bf16 %v654, %v654
  %v665 = vpack.c.bf16 %v655, %v655
  %v666 = vpack.c.bf16 %v656, %v656
  %v667 = vpack.c.bf16 %v657, %v657
  %668 = vst [vmem:[%s3] sm:$0xf] %v658
  %669 = vst [vmem:[%s3 + $0x4] sm:$0xf] %v659
  %670 = vst [vmem:[%s3 + $0x8] sm:$0xf] %v660
  %671 = vst [vmem:[%s3 + $0xc] sm:$0xf] %v661
  %672 = vst [vmem:[%s3 + $0x10] sm:$0xf] %v662
  %673 = vst [vmem:[%s3 + $0x14] sm:$0xf] %v663
  %674 = vst [vmem:[%s3 + $0x18] sm:$0xf] %v664
  %675 = vst [vmem:[%s3 + $0x1c] sm:$0xf] %v665
  %676 = vst [vmem:[%s3 + $0x20] sm:$0xf] %v666
  %677 = vst [vmem:[%s3 + $0x24] sm:$0xf] %v667
  // Predicated region
  $region14: #{_lambda_.103} parent=0 // pred_check
    _
  $region15: #{_lambda_.103} parent=0 // pred_check_branch
    %679 = sbr.rel (0) target = $region17
  $region16: #{_lambda_.103} parent=0 // pred_region
    _
  $region17: #{_lambda_.103} parent=0 // pred_fallthru
    _
  // Predicated region
  $region18: #{_lambda_.103} parent=0 // pred_check
    _
  $region19: #{_lambda_.103} parent=0 // pred_check_branch
    %681 = sbr.rel (0) target = $region21
  $region20: #{_lambda_.103} parent=0 // pred_region
    _
  $region21: #{_lambda_.103} parent=0 // pred_fallthru
    _

// kernel: _lambda_.115
$region0: #{_lambda_.115}
  #allocation0 [shape = 'u32[]', space=smem, size = 0x4, offset = 0x4, fixed_abs, tag = 'smem constant byte address 0x4 - core index']
  #allocation1 [shape = 'u32[72,128]{1,0:T(1,128)}', space=vmem, size = 0x9000, scoped, tag = 'internal scratch']
  %s0 = inlined_call_operand.vmem [shape: bf16[80,128], index: 0, kind: input, shape index: {}]
  %s1 = inlined_call_operand.vmem [shape: bf16[128,128], index: 1, kind: input, shape index: {}]
  %s2 = inlined_call_operand.vmem [shape: f32[1,128], index: 2, kind: input, shape index: {}]
  %s3 = inlined_call_operand.vmem [shape: f32[80,128], index: 3, kind: output, shape index: {}]
  %s4 = sld [smem:[#allocation0]]
  $region22: #{_lambda_.115} parent=0
    _
  %s6 = ssub.s32 1, %s4
  %s7 = scalar_select 0, %s6, %s4
  // Predicated region
  $region2: #{_lambda_.115} parent=0 // pred_check
    _
  $region3: #{_lambda_.115} parent=0 // pred_check_branch
    %9 = sbr.rel (0) target = $region5
  $region4: #{_lambda_.115} parent=0 // pred_region
    _
  $region5: #{_lambda_.115} parent=0 // pred_fallthru
    _
  // Predicated region
  $region6: #{_lambda_.115} parent=0 // pred_check
    _
  $region7: #{_lambda_.115} parent=0 // pred_check_branch
    %11 = sbr.rel (0) target = $region9
  $region8: #{_lambda_.115} parent=0 // pred_region
    _
  $region9: #{_lambda_.115} parent=0 // pred_fallthru
    _
  // Predicated region
  $region10: #{_lambda_.115} parent=0 // pred_check
    _
  $region11: #{_lambda_.115} parent=0 // pred_check_branch
    %13 = sbr.rel (0) target = $region13
  $region12: #{_lambda_.115} parent=0 // pred_region
    _
  $region13: #{_lambda_.115} parent=0 // pred_fallthru
    _
  %v14 = vld [vmem:[%s0] sm:$0xf]
  %v15 = vld [vmem:[%s0 + $0x4] sm:$0xf]
  %v16 = vld [vmem:[%s0 + $0x8] sm:$0xf]
  %v17 = vld [vmem:[%s0 + $0xc] sm:$0xf]
  %v18 = vld [vmem:[%s0 + $0x10] sm:$0xf]
  %v19 = vld [vmem:[%s0 + $0x14] sm:$0xf]
  %v20 = vld [vmem:[%s0 + $0x18] sm:$0xf]
  %v21 = vld [vmem:[%s0 + $0x1c] sm:$0xf]
  %v22 = vld [vmem:[%s0 + $0x20] sm:$0xf]
  %v23 = vld [vmem:[%s0 + $0x24] sm:$0xf]
  %v24 = vld [vmem:[%s1] sm:$0xf]
  %v25 = vld [vmem:[%s1 + $0x4] sm:$0xf]
  %v26 = vld [vmem:[%s1 + $0x8] sm:$0xf]
  %v27 = vld [vmem:[%s1 + $0xc] sm:$0xf]
  %v28 = vld [vmem:[%s1 + $0x10] sm:$0xf]
  %v29 = vld [vmem:[%s1 + $0x14] sm:$0xf]
  %v30 = vld [vmem:[%s1 + $0x18] sm:$0xf]
  %v31 = vld [vmem:[%s1 + $0x1c] sm:$0xf]
  %v32 = vld [vmem:[%s1 + $0x20] sm:$0xf]
  %v33 = vld [vmem:[%s1 + $0x24] sm:$0xf]
  %v34 = vld [vmem:[%s1 + $0x28] sm:$0xf]
  %v35 = vld [vmem:[%s1 + $0x2c] sm:$0xf]
  %v36 = vld [vmem:[%s1 + $0x30] sm:$0xf]
  %v37 = vld [vmem:[%s1 + $0x34] sm:$0xf]
  %v38 = vld [vmem:[%s1 + $0x38] sm:$0xf]
  %v39 = vld [vmem:[%s1 + $0x3c] sm:$0xf]
  %v40 = vld [vmem:[%s2] sm:$0x1]
  %v42 = vperm.slane %v40, 0
  %v54 = vunpack.c.l.b16 %v14
  %v55 = vunpack.c.l.b16 %v15
  %v56 = vunpack.c.l.b16 %v16
  %v57 = vunpack.c.l.b16 %v17
  %v58 = vunpack.c.l.b16 %v18
  %v59 = vunpack.c.l.b16 %v19
  %v60 = vunpack.c.l.b16 %v20
  %v61 = vunpack.c.l.b16 %v21
  %v62 = vunpack.c.l.b16 %v22
  %v63 = vunpack.c.l.b16 %v23
  %v64 = vpack.c.b16 %v55, %v54
  %v65 = vpack.c.b16 %v57, %v56
  %v66 = vpack.c.b16 %v59, %v58
  %v67 = vpack.c.b16 %v61, %v60
  %v68 = vpack.c.b16 %v63, %v62
  %v90 = vunpack.c.l.b16 %v24
  %v91 = vunpack.c.l.b16 %v25
  %v92 = vunpack.c.l.b16 %v26
  %v93 = vunpack.c.l.b16 %v27
  %v94 = vunpack.c.l.b16 %v28
  %v95 = vunpack.c.l.b16 %v29
  %v96 = vunpack.c.l.b16 %v30
  %v97 = vunpack.c.l.b16 %v31
  %v98 = vunpack.c.l.b16 %v32
  %v99 = vunpack.c.l.b16 %v33
  %v100 = vunpack.c.l.b16 %v34
  %v101 = vunpack.c.l.b16 %v35
  %v102 = vunpack.c.l.b16 %v36
  %v103 = vunpack.c.l.b16 %v37
  %v104 = vunpack.c.l.b16 %v38
  %v105 = vunpack.c.l.b16 %v39
  %v106 = vpack.c.b16 %v91, %v90
  %v107 = vpack.c.b16 %v93, %v92
  %v108 = vpack.c.b16 %v95, %v94
  %v109 = vpack.c.b16 %v97, %v96
  %v110 = vpack.c.b16 %v99, %v98
  %v111 = vpack.c.b16 %v101, %v100
  %v112 = vpack.c.b16 %v103, %v102
  %v113 = vpack.c.b16 %v105, %v104
  %122 = vmatpush.bf16.msra.mxu0 %v113
  %123 = vmatpush.bf16.msra.mxu0 %v112
  %124 = vmatpush.bf16.msra.mxu0 %v111
  %125 = vmatpush.bf16.msra.mxu0 %v110
  %126 = vmatpush.bf16.msra.mxu0 %v109
  %127 = vmatpush.bf16.msra.mxu0 %v108
  %128 = vmatpush.bf16.msra.mxu0 %v107
  %129 = vmatpush.bf16.msra.mxu0 %v106
  %130 = vmatmul.bf16.gmra.mxu0 %v64
  %v131 = vpop.f32.mrf.mxu0
  %v132 = vadd.f32 %v42, %v131
  %v133 = vpop.f32.mrf.mxu0
  %v134 = vadd.f32 %v42, %v133
  %135 = vmatmul.bf16.gmra.mxu0 %v65
  %v136 = vpop.f32.mrf.mxu0
  %v137 = vadd.f32 %v42, %v136
  %v138 = vpop.f32.mrf.mxu0
  %v139 = vadd.f32 %v42, %v138
  %140 = vmatmul.bf16.gmra.mxu0 %v66
  %v141 = vpop.f32.mrf.mxu0
  %v142 = vadd.f32 %v42, %v141
  %v143 = vpop.f32.mrf.mxu0
  %v144 = vadd.f32 %v42, %v143
  %145 = vmatmul.bf16.gmra.mxu0 %v67
  %v146 = vpop.f32.mrf.mxu0
  %v147 = vadd.f32 %v42, %v146
  %v148 = vpop.f32.mrf.mxu0
  %v149 = vadd.f32 %v42, %v148
  %150 = vmatmul.bf16.gmra.mxu0 %v68
  %v151 = vpop.f32.mrf.mxu0
  %v152 = vadd.f32 %v42, %v151
  %v153 = vpop.f32.mrf.mxu0
  %v154 = vadd.f32 %v42, %v153
  %155 = vdwg.mxu0
  %156 = vst [vmem:[%s3] sm:$0xff] %v132
  %157 = vst [vmem:[%s3 + $0x8] sm:$0xff] %v134
  %158 = vst [vmem:[%s3 + $0x10] sm:$0xff] %v137
  %159 = vst [vmem:[%s3 + $0x18] sm:$0xff] %v139
  %160 = vst [vmem:[%s3 + $0x20] sm:$0xff] %v142
  %161 = vst [vmem:[%s3 + $0x28] sm:$0xff] %v144
  %162 = vst [vmem:[%s3 + $0x30] sm:$0xff] %v147
  %163 = vst [vmem:[%s3 + $0x38] sm:$0xff] %v149
  %164 = vst [vmem:[%s3 + $0x40] sm:$0xff] %v152
  %165 = vst [vmem:[%s3 + $0x48] sm:$0xff] %v154
  // Predicated region
  $region14: #{_lambda_.115} parent=0 // pred_check
    _
  $region15: #{_lambda_.115} parent=0 // pred_check_branch
    %167 = sbr.rel (0) target = $region17
  $region16: #{_lambda_.115} parent=0 // pred_region
    _
  $region17: #{_lambda_.115} parent=0 // pred_fallthru
    _
  // Predicated region
  $region18: #{_lambda_.115} parent=0 // pred_check
    _
  $region19: #{_lambda_.115} parent=0 // pred_check_branch
    %169 = sbr.rel (0) target = $region21
  $region20: #{_lambda_.115} parent=0 // pred_region
    _
  $region21: #{_lambda_.115} parent=0 // pred_fallthru
    _

</llo_original>
